<compile_context>
chip_gen: v6e
topology: v6e:2x2x1
jax: 0.10.0
libtpu: 0.0.40
codegen_flags: <defaults>
</compile_context>

<pallas_src>
import math

import jax
import jax.numpy as jnp
from jax import lax
from jax.experimental import pallas as pl
from jax.experimental.pallas import tpu as pltpu

CHANNELS = 32          # embedding dim (must be divisible by NUM_HEADS)
SIZE = 16              # sequence length after view/swapaxes
NUM_HEADS = 4
HEAD_DIM = CHANNELS // NUM_HEADS
EPS = 1e-5             # nn.LayerNorm default eps
BLOCK_B = 256          # max batch elements per grid step
_LANES = 128


def _round_up(a, b):
    return ((a + b - 1) // b) * b


def _layernorm(v, w, b):
    # One-pass: var = E[x^2] - mu^2 (drops the second subtract+square pass).
    mu = jnp.mean(v, axis=-1, keepdims=True)
    ms = jnp.mean(v * v, axis=-1, keepdims=True)
    var = ms - mu * mu
    return (v - mu) * lax.rsqrt(var + EPS) * w + b


def _gelu_exact(v):
    # PyTorch nn.GELU() default = exact erf formulation.
    return 0.5 * v * (1.0 + lax.erf(v / math.sqrt(2.0)))


def self_attention_kernel(x_ref, p_ref, o_ref):
    BB = x_ref.shape[0]
    C, S, H, Dh = CHANNELS, SIZE, NUM_HEADS, HEAD_DIM
    N = BB * S

    # ---- unpack the single packed parameter slab (grid-invariant) -----------
    P = p_ref[...]                                # (4*C + 8, 128)
    wqkv = P[0 * C:1 * C, 0:3 * C]                # (C, 3C); q columns pre-scaled
    wo = P[1 * C:2 * C, 0:C]
    w1 = P[2 * C:3 * C, 0:C]
    w2 = P[3 * C:4 * C, 0:C]
    r = 4 * C
    ln_w = P[r + 0:r + 1, 0:C]
    ln_b = P[r + 1:r + 2, 0:C]
    bqkv = P[r + 2:r + 3, 0:3 * C]                # q part pre-scaled
    bo = P[r + 3:r + 4, 0:C]
    ln2_w = P[r + 4:r + 5, 0:C]
    ln2_b = P[r + 5:r + 6, 0:C]
    b1 = P[r + 6:r + 7, 0:C]
    b2 = P[r + 7:r + 8, 0:C]

    # ---- lane-dense input block -> token-major activations (XLU relayout) ---
    x_blk = x_ref[...].astype(jnp.float32)                      # (BB, C*S)
    x_seq = jnp.swapaxes(x_blk.reshape(BB, C, S), 1, 2)         # (BB, S, C)
    x_flat = x_seq.reshape(N, C)

    # ---- LayerNorm (self.ln) over all BB*S tokens at once -------------------
    x_ln = _layernorm(x_flat, ln_w, ln_b)

    # ---- fused Q/K/V projection: one (N,32)x(32,96) matmul ------------------
    qkv = jnp.dot(x_ln, wqkv, preferred_element_type=jnp.float32) + bqkv

    # ---- per-head attention (static unroll; score/PV batched over BB) -------
    pv_heads = []
    for h in range(H):
        q3 = qkv[:, h * Dh:(h + 1) * Dh].reshape(BB, S, Dh)
        k3 = qkv[:, C + h * Dh:C + (h + 1) * Dh].reshape(BB, S, Dh)
        v3 = qkv[:, 2 * C + h * Dh:2 * C + (h + 1) * Dh].reshape(BB, S, Dh)

        s = jnp.einsum("bqd,bkd->bqk", q3, k3,
                       preferred_element_type=jnp.float32)      # (BB, S, S)
        s = s - jnp.max(s, axis=-1, keepdims=True)
        p = jnp.exp(s)
        p = p * pl.reciprocal(jnp.sum(p, axis=-1, keepdims=True), approx=True)
        pv = jnp.einsum("bqk,bkd->bqd", p, v3,
                        preferred_element_type=jnp.float32)     # (BB, S, Dh)
        pv_heads.append(pv.reshape(N, Dh))

    # ---- single output projection + residual --------------------------------
    attn = jnp.concatenate(pv_heads, axis=-1)                   # (N, C)
    h1 = jnp.dot(attn, wo, preferred_element_type=jnp.float32) + bo + x_flat

    # ---- ff_self: LN -> Linear -> GELU -> Linear, + residual ----------------
    h2 = _layernorm(h1, ln2_w, ln2_b)
    h3 = _gelu_exact(jnp.dot(h2, w1, preferred_element_type=jnp.float32) + b1)
    h4 = jnp.dot(h3, w2, preferred_element_type=jnp.float32) + b2
    y = (h4 + h1).reshape(BB, S, C)

    # ---- relayout back (XLU) and lane-dense store ----------------------------
    out = jnp.swapaxes(y, 1, 2).reshape(BB, C * S)              # (BB, C*S)
    o_ref[...] = out.astype(o_ref.dtype)


def _pack_params(params):
    """Pack all 12 small parameter tensors into one (4*C + 8, 128) f32 slab."""
    C = CHANNELS
    scale = 1.0 / math.sqrt(HEAD_DIM)
    in_w = params["in_w"].astype(jnp.float32)                   # (3C, C) = (out, in)
    in_b = params["in_b"].astype(jnp.float32)                   # (3C,)
    # pre-transpose (x @ W.T convention) and fold softmax scale into q
    wq = in_w[0:C].T * scale
    wk = in_w[C:2 * C].T
    wv = in_w[2 * C:3 * C].T
    bq = in_b[0:C] * scale
    bk = in_b[C:2 * C]
    bv = in_b[2 * C:3 * C]
    wqkv = jnp.concatenate([wq, wk, wv], axis=1)                # (C, 3C)
    bqkv = jnp.concatenate([bq, bk, bv])                        # (3C,)

    wo = params["out_w"].T.astype(jnp.float32)                  # (C, C)
    w1 = params["fc1_w"].T.astype(jnp.float32)
    w2 = params["fc2_w"].T.astype(jnp.float32)

    def lane_pad(a):
        return jnp.pad(a, ((0, 0), (0, _LANES - a.shape[1])))

    vec_rows = jnp.zeros((8, _LANES), jnp.float32)
    for i, v in enumerate([params["ln_w"], params["ln_b"], bqkv,
                           params["out_b"], params["ln2_w"], params["ln2_b"],
                           params["fc1_b"], params["fc2_b"]]):
        v = v.astype(jnp.float32)
        vec_rows = vec_rows.at[i, :v.shape[0]].set(v)

    slab = jnp.concatenate(
        [lane_pad(wqkv), lane_pad(wo), lane_pad(w1), lane_pad(w2), vec_rows],
        axis=0)                                                 # (4*C + 8, 128)
    return slab


def self_attention(x, params, *, block_b=BLOCK_B):
    """x: (B, C, size) — same convention as the PyTorch module's view."""
    B, C, S = x.shape
    assert C == CHANNELS and S == SIZE

    # Block size: multiple of 8 (sublane constraint), capped at block_b.
    BB = max(8, min(block_b, _round_up(B, 8)))
    B_pad = _round_up(B, BB)

    x2 = x.reshape(B, C * S)                                    # lane-dense (B, 512)
    if B_pad != B:
        x2 = jnp.pad(x2, ((0, B_pad - B), (0, 0)))

    slab = _pack_params(params)

    out = pl.pallas_call(
        self_attention_kernel,
        out_shape=jax.ShapeDtypeStruct((B_pad, C * S), x.dtype),
        grid=(B_pad // BB,),
        in_specs=[pl.BlockSpec((BB, C * S), lambda i: (i, 0)),
                  pl.BlockSpec(slab.shape, lambda i: (0, 0))],
        out_specs=pl.BlockSpec((BB, C * S), lambda i: (i, 0)),
        compiler_params=pltpu.CompilerParams(
            dimension_semantics=("parallel",),
            vmem_limit_bytes=32 * 1024 * 1024),
    )(x2, slab)
    return out[:B].reshape(B, C, S)


def self_attention_ref(x, params):
    """Pure-JAX reference mirroring PyTorch semantics, for verification."""
    def ln(v, w, b):
        mu = jnp.mean(v, axis=-1, keepdims=True)
        var = jnp.mean((v - mu) ** 2, axis=-1, keepdims=True)
        return (v - mu) * lax.rsqrt(var + EPS) * w + b

    x_seq = jnp.swapaxes(x, 1, 2).astype(jnp.float32)           # (B, S, C)
    x_ln = ln(x_seq, params["ln_w"], params["ln_b"])
    qkv = jnp.einsum("bsc,dc->bsd", x_ln, params["in_w"]) + params["in_b"]
    q, k, v = jnp.split(qkv, 3, axis=-1)
    B, S, C = x_ln.shape

    def heads(t):
        return t.reshape(B, S, NUM_HEADS, HEAD_DIM).transpose(0, 2, 1, 3)

    qh, kh, vh = heads(q), heads(k), heads(v)
    s = jnp.einsum("bhqd,bhkd->bhqk", qh, kh) / math.sqrt(HEAD_DIM)
    p = jax.nn.softmax(s, axis=-1)
    o = jnp.einsum("bhqk,bhkd->bhqd", p, vh).transpose(0, 2, 1, 3).reshape(B, S, C)
    o = jnp.einsum("bsc,dc->bsd", o, params["out_w"]) + params["out_b"]
    h1 = o + x_seq
    h2 = ln(h1, params["ln2_w"], params["ln2_b"])
    h3 = _gelu_exact(jnp.einsum("bsc,dc->bsd", h2, params["fc1_w"]) + params["fc1_b"])
    h4 = jnp.einsum("bsc,dc->bsd", h3, params["fc2_w"]) + params["fc2_b"]
    return jnp.swapaxes(h4 + h1, 1, 2)


def init_params(key, channels):
    keys = jax.random.split(key, 8)
    n = lambda k, shape, s=0.05: (jax.random.normal(k, shape, jnp.float32) * s)
    return {
        "ln_w": 1.0 + n(keys[0], (channels,)),
        "ln_b": n(keys[0], (channels,)),
        "in_w": n(keys[1], (3 * channels, channels)),
        "in_b": n(keys[2], (3 * channels,)),
        "out_w": n(keys[3], (channels, channels)),
        "out_b": n(keys[3], (channels,)),
        "ln2_w": 1.0 + n(keys[4], (channels,)),
        "ln2_b": n(keys[4], (channels,)),
        "fc1_w": n(keys[5], (channels, channels)),
        "fc1_b": n(keys[6], (channels,)),
        "fc2_w": n(keys[7], (channels, channels)),
        "fc2_b": n(keys[7], (channels,)),
    }


if __name__ == "__main__":
    key = jax.random.PRNGKey(0)
    k_x, k_p = jax.random.split(key)
    B = 2
    x = jax.random.normal(k_x, (B, CHANNELS, SIZE), jnp.float32)   # (B, C, size)
    params = init_params(k_p, CHANNELS)

    out = self_attention(x, params)
    out = jax.block_until_ready(out)
    assert out.shape == (B, CHANNELS, SIZE)

    ref = jax.block_until_ready(self_attention_ref(x, params))
    # 5e-4 tolerance: exact up to fp reassociation, the one-pass LayerNorm
    # variance, and the EUP approx reciprocal in the softmax denominator.
    assert jnp.max(jnp.abs(out - ref)) < 5e-4, "mismatch vs pure-JAX reference"

    print("KERNEL_OK")
</pallas_src>

<mosaic_0001>
module attributes {stable_mosaic.version = 11 : i64} {
  func.func @self_attention_kernel(%arg0: i32, %arg1: memref<8x512xf32, #tpu.memory_space<vmem>>, %arg2: memref<136x128xf32, #tpu.memory_space<vmem>>, %arg3: memref<8x512xf32, #tpu.memory_space<vmem>>) attributes {dimension_semantics = [#tpu.dimension_semantics<parallel>], iteration_bounds = array<i64: 1>, scalar_prefetch = 0 : i64, scratch_operands = 0 : i64, tpu.core_type = #tpu.core_type<tc>, window_params = [{transform_indices = @transform_0, window_bounds = array<i64: 8, 512>}, {pipeline_mode = #tpu.pipeline_mode<synchronous>, transform_indices = @transform_1, window_bounds = array<i64: 136, 128>}, {transform_indices = @transform_2, window_bounds = array<i64: 8, 512>}]} {
    %c0 = arith.constant 0 : index
    %c0_0 = arith.constant 0 : index
    %0 = vector.load %arg2[%c0, %c0_0] : memref<136x128xf32, #tpu.memory_space<vmem>>, vector<136x128xf32>
    %1 = vector.extract_strided_slice %0 {offsets = [0, 0], sizes = [32, 96], strides = [1, 1]} : vector<136x128xf32> to vector<32x96xf32>
    %2 = vector.extract_strided_slice %0 {offsets = [32, 0], sizes = [32, 32], strides = [1, 1]} : vector<136x128xf32> to vector<32x32xf32>
    %3 = vector.extract_strided_slice %0 {offsets = [64, 0], sizes = [32, 32], strides = [1, 1]} : vector<136x128xf32> to vector<32x32xf32>
    %4 = vector.extract_strided_slice %0 {offsets = [96, 0], sizes = [32, 32], strides = [1, 1]} : vector<136x128xf32> to vector<32x32xf32>
    %5 = vector.extract_strided_slice %0 {offsets = [128, 0], sizes = [1, 32], strides = [1, 1]} : vector<136x128xf32> to vector<1x32xf32>
    %6 = vector.extract_strided_slice %0 {offsets = [129, 0], sizes = [1, 32], strides = [1, 1]} : vector<136x128xf32> to vector<1x32xf32>
    %7 = vector.extract_strided_slice %0 {offsets = [130, 0], sizes = [1, 96], strides = [1, 1]} : vector<136x128xf32> to vector<1x96xf32>
    %8 = vector.extract_strided_slice %0 {offsets = [131, 0], sizes = [1, 32], strides = [1, 1]} : vector<136x128xf32> to vector<1x32xf32>
    %9 = vector.extract_strided_slice %0 {offsets = [132, 0], sizes = [1, 32], strides = [1, 1]} : vector<136x128xf32> to vector<1x32xf32>
    %10 = vector.extract_strided_slice %0 {offsets = [133, 0], sizes = [1, 32], strides = [1, 1]} : vector<136x128xf32> to vector<1x32xf32>
    %11 = vector.extract_strided_slice %0 {offsets = [134, 0], sizes = [1, 32], strides = [1, 1]} : vector<136x128xf32> to vector<1x32xf32>
    %12 = vector.extract_strided_slice %0 {offsets = [135, 0], sizes = [1, 32], strides = [1, 1]} : vector<136x128xf32> to vector<1x32xf32>
    %c0_1 = arith.constant 0 : index
    %c0_2 = arith.constant 0 : index
    %13 = vector.load %arg1[%c0_1, %c0_2] : memref<8x512xf32, #tpu.memory_space<vmem>>, vector<8x512xf32>
    %14 = vector.shape_cast %13 : vector<8x512xf32> to vector<8x32x16xf32>
    %15 = tpu.transpose %14, [0, 2, 1] : vector<8x32x16xf32> -> vector<8x16x32xf32>
    %16 = vector.shape_cast %15 : vector<8x16x32xf32> to vector<128x32xf32>
    %cst = arith.constant dense<0.000000e+00> : vector<128xf32>
    %17 = vector.multi_reduction <add>, %16, %cst [1] : vector<128x32xf32> to vector<128xf32>
    %18 = vector.shape_cast %17 : vector<128xf32> to vector<128x1xf32>
    %cst_3 = arith.constant 3.200000e+01 : f32
    %19 = vector.broadcast %cst_3 : f32 to vector<128x1xf32>
    %20 = arith.divf %18, %19 : vector<128x1xf32>
    %21 = arith.mulf %16, %16 : vector<128x32xf32>
    %cst_4 = arith.constant dense<0.000000e+00> : vector<128xf32>
    %22 = vector.multi_reduction <add>, %21, %cst_4 [1] : vector<128x32xf32> to vector<128xf32>
    %23 = vector.shape_cast %22 : vector<128xf32> to vector<128x1xf32>
    %cst_5 = arith.constant 3.200000e+01 : f32
    %24 = vector.broadcast %cst_5 : f32 to vector<128x1xf32>
    %25 = arith.divf %23, %24 : vector<128x1xf32>
    %26 = arith.mulf %20, %20 : vector<128x1xf32>
    %27 = arith.subf %25, %26 : vector<128x1xf32>
    %28 = vector.broadcast %20 : vector<128x1xf32> to vector<128x32xf32>
    %29 = arith.subf %16, %28 : vector<128x32xf32>
    %cst_6 = arith.constant 9.99999974E-6 : f32
    %30 = vector.broadcast %cst_6 : f32 to vector<128x1xf32>
    %31 = arith.addf %27, %30 : vector<128x1xf32>
    %32 = math.rsqrt %31 : vector<128x1xf32>
    %33 = vector.broadcast %32 : vector<128x1xf32> to vector<128x32xf32>
    %34 = arith.mulf %29, %33 : vector<128x32xf32>
    %35 = vector.broadcast %5 : vector<1x32xf32> to vector<128x32xf32>
    %36 = arith.mulf %34, %35 : vector<128x32xf32>
    %37 = vector.broadcast %6 : vector<1x32xf32> to vector<128x32xf32>
    %38 = arith.addf %36, %37 : vector<128x32xf32>
    %cst_7 = arith.constant dense<0.000000e+00> : vector<128x96xf32>
    %39 = tpu.matmul %38, %1, %cst_7 {dimension_numbers = #tpu.dot_dimension_numbers<[1], [0], [0], [1], [0, 0, 1, 1], [], []>} : vector<128x32xf32>, vector<32x96xf32>, vector<128x96xf32> -> vector<128x96xf32>
    %40 = vector.broadcast %7 : vector<1x96xf32> to vector<128x96xf32>
    %41 = arith.addf %39, %40 : vector<128x96xf32>
    %42 = vector.extract_strided_slice %41 {offsets = [0, 0], sizes = [128, 8], strides = [1, 1]} : vector<128x96xf32> to vector<128x8xf32>
    %43 = vector.shape_cast %42 : vector<128x8xf32> to vector<8x16x8xf32>
    %44 = vector.extract_strided_slice %41 {offsets = [0, 32], sizes = [128, 8], strides = [1, 1]} : vector<128x96xf32> to vector<128x8xf32>
    %45 = vector.shape_cast %44 : vector<128x8xf32> to vector<8x16x8xf32>
    %46 = vector.extract_strided_slice %41 {offsets = [0, 64], sizes = [128, 8], strides = [1, 1]} : vector<128x96xf32> to vector<128x8xf32>
    %47 = vector.shape_cast %46 : vector<128x8xf32> to vector<8x16x8xf32>
    "tpu.trace_start"() <{level = 10 : i32, message = "bqd,bkd->bqk"}> : () -> ()
    %cst_8 = arith.constant dense<0.000000e+00> : vector<8x16x16xf32>
    %48 = tpu.matmul %43, %45, %cst_8 {dimension_numbers = #tpu.dot_dimension_numbers<[2], [2], [1], [1], [0, 0, 0, 1, 1, 1], [0], [0]>} : vector<8x16x8xf32>, vector<8x16x8xf32>, vector<8x16x16xf32> -> vector<8x16x16xf32>
    "tpu.trace_stop"() : () -> ()
    %cst_9 = arith.constant dense<0xFF800000> : vector<8x16xf32>
    %49 = vector.multi_reduction <maximumf>, %48, %cst_9 [2] : vector<8x16x16xf32> to vector<8x16xf32>
    %50 = vector.shape_cast %49 : vector<8x16xf32> to vector<8x16x1xf32>
    %51 = vector.broadcast %50 : vector<8x16x1xf32> to vector<8x16x16xf32>
    %52 = arith.subf %48, %51 : vector<8x16x16xf32>
    %53 = math.exp %52 : vector<8x16x16xf32>
    %cst_10 = arith.constant dense<0.000000e+00> : vector<8x16xf32>
    %54 = vector.multi_reduction <add>, %53, %cst_10 [2] : vector<8x16x16xf32> to vector<8x16xf32>
    %55 = vector.shape_cast %54 : vector<8x16xf32> to vector<8x16x1xf32>
    %56 = tpu.reciprocal %55 {approx = true} : vector<8x16x1xf32> -> vector<8x16x1xf32>
    %57 = vector.broadcast %56 : vector<8x16x1xf32> to vector<8x16x16xf32>
    %58 = arith.mulf %53, %57 : vector<8x16x16xf32>
    "tpu.trace_start"() <{level = 10 : i32, message = "bqk,bkd->bqd"}> : () -> ()
    %cst_11 = arith.constant dense<0.000000e+00> : vector<8x16x8xf32>
    %59 = tpu.matmul %58, %47, %cst_11 {dimension_numbers = #tpu.dot_dimension_numbers<[2], [1], [1], [2], [0, 0, 0, 1, 1, 2], [0], [0]>} : vector<8x16x16xf32>, vector<8x16x8xf32>, vector<8x16x8xf32> -> vector<8x16x8xf32>
    "tpu.trace_stop"() : () -> ()
    %60 = vector.shape_cast %59 : vector<8x16x8xf32> to vector<128x8xf32>
    %61 = vector.extract_strided_slice %41 {offsets = [0, 8], sizes = [128, 8], strides = [1, 1]} : vector<128x96xf32> to vector<128x8xf32>
    %62 = vector.shape_cast %61 : vector<128x8xf32> to vector<8x16x8xf32>
    %63 = vector.extract_strided_slice %41 {offsets = [0, 40], sizes = [128, 8], strides = [1, 1]} : vector<128x96xf32> to vector<128x8xf32>
    %64 = vector.shape_cast %63 : vector<128x8xf32> to vector<8x16x8xf32>
    %65 = vector.extract_strided_slice %41 {offsets = [0, 72], sizes = [128, 8], strides = [1, 1]} : vector<128x96xf32> to vector<128x8xf32>
    %66 = vector.shape_cast %65 : vector<128x8xf32> to vector<8x16x8xf32>
    "tpu.trace_start"() <{level = 10 : i32, message = "bqd,bkd->bqk"}> : () -> ()
    %cst_12 = arith.constant dense<0.000000e+00> : vector<8x16x16xf32>
    %67 = tpu.matmul %62, %64, %cst_12 {dimension_numbers = #tpu.dot_dimension_numbers<[2], [2], [1], [1], [0, 0, 0, 1, 1, 1], [0], [0]>} : vector<8x16x8xf32>, vector<8x16x8xf32>, vector<8x16x16xf32> -> vector<8x16x16xf32>
    "tpu.trace_stop"() : () -> ()
    %cst_13 = arith.constant dense<0xFF800000> : vector<8x16xf32>
    %68 = vector.multi_reduction <maximumf>, %67, %cst_13 [2] : vector<8x16x16xf32> to vector<8x16xf32>
    %69 = vector.shape_cast %68 : vector<8x16xf32> to vector<8x16x1xf32>
    %70 = vector.broadcast %69 : vector<8x16x1xf32> to vector<8x16x16xf32>
    %71 = arith.subf %67, %70 : vector<8x16x16xf32>
    %72 = math.exp %71 : vector<8x16x16xf32>
    %cst_14 = arith.constant dense<0.000000e+00> : vector<8x16xf32>
    %73 = vector.multi_reduction <add>, %72, %cst_14 [2] : vector<8x16x16xf32> to vector<8x16xf32>
    %74 = vector.shape_cast %73 : vector<8x16xf32> to vector<8x16x1xf32>
    %75 = tpu.reciprocal %74 {approx = true} : vector<8x16x1xf32> -> vector<8x16x1xf32>
    %76 = vector.broadcast %75 : vector<8x16x1xf32> to vector<8x16x16xf32>
    %77 = arith.mulf %72, %76 : vector<8x16x16xf32>
    "tpu.trace_start"() <{level = 10 : i32, message = "bqk,bkd->bqd"}> : () -> ()
    %cst_15 = arith.constant dense<0.000000e+00> : vector<8x16x8xf32>
    %78 = tpu.matmul %77, %66, %cst_15 {dimension_numbers = #tpu.dot_dimension_numbers<[2], [1], [1], [2], [0, 0, 0, 1, 1, 2], [0], [0]>} : vector<8x16x16xf32>, vector<8x16x8xf32>, vector<8x16x8xf32> -> vector<8x16x8xf32>
    "tpu.trace_stop"() : () -> ()
    %79 = vector.shape_cast %78 : vector<8x16x8xf32> to vector<128x8xf32>
    %80 = vector.extract_strided_slice %41 {offsets = [0, 16], sizes = [128, 8], strides = [1, 1]} : vector<128x96xf32> to vector<128x8xf32>
    %81 = vector.shape_cast %80 : vector<128x8xf32> to vector<8x16x8xf32>
    %82 = vector.extract_strided_slice %41 {offsets = [0, 48], sizes = [128, 8], strides = [1, 1]} : vector<128x96xf32> to vector<128x8xf32>
    %83 = vector.shape_cast %82 : vector<128x8xf32> to vector<8x16x8xf32>
    %84 = vector.extract_strided_slice %41 {offsets = [0, 80], sizes = [128, 8], strides = [1, 1]} : vector<128x96xf32> to vector<128x8xf32>
    %85 = vector.shape_cast %84 : vector<128x8xf32> to vector<8x16x8xf32>
    "tpu.trace_start"() <{level = 10 : i32, message = "bqd,bkd->bqk"}> : () -> ()
    %cst_16 = arith.constant dense<0.000000e+00> : vector<8x16x16xf32>
    %86 = tpu.matmul %81, %83, %cst_16 {dimension_numbers = #tpu.dot_dimension_numbers<[2], [2], [1], [1], [0, 0, 0, 1, 1, 1], [0], [0]>} : vector<8x16x8xf32>, vector<8x16x8xf32>, vector<8x16x16xf32> -> vector<8x16x16xf32>
    "tpu.trace_stop"() : () -> ()
    %cst_17 = arith.constant dense<0xFF800000> : vector<8x16xf32>
    %87 = vector.multi_reduction <maximumf>, %86, %cst_17 [2] : vector<8x16x16xf32> to vector<8x16xf32>
    %88 = vector.shape_cast %87 : vector<8x16xf32> to vector<8x16x1xf32>
    %89 = vector.broadcast %88 : vector<8x16x1xf32> to vector<8x16x16xf32>
    %90 = arith.subf %86, %89 : vector<8x16x16xf32>
    %91 = math.exp %90 : vector<8x16x16xf32>
    %cst_18 = arith.constant dense<0.000000e+00> : vector<8x16xf32>
    %92 = vector.multi_reduction <add>, %91, %cst_18 [2] : vector<8x16x16xf32> to vector<8x16xf32>
    %93 = vector.shape_cast %92 : vector<8x16xf32> to vector<8x16x1xf32>
    %94 = tpu.reciprocal %93 {approx = true} : vector<8x16x1xf32> -> vector<8x16x1xf32>
    %95 = vector.broadcast %94 : vector<8x16x1xf32> to vector<8x16x16xf32>
    %96 = arith.mulf %91, %95 : vector<8x16x16xf32>
    "tpu.trace_start"() <{level = 10 : i32, message = "bqk,bkd->bqd"}> : () -> ()
    %cst_19 = arith.constant dense<0.000000e+00> : vector<8x16x8xf32>
    %97 = tpu.matmul %96, %85, %cst_19 {dimension_numbers = #tpu.dot_dimension_numbers<[2], [1], [1], [2], [0, 0, 0, 1, 1, 2], [0], [0]>} : vector<8x16x16xf32>, vector<8x16x8xf32>, vector<8x16x8xf32> -> vector<8x16x8xf32>
    "tpu.trace_stop"() : () -> ()
    %98 = vector.shape_cast %97 : vector<8x16x8xf32> to vector<128x8xf32>
    %99 = vector.extract_strided_slice %41 {offsets = [0, 24], sizes = [128, 8], strides = [1, 1]} : vector<128x96xf32> to vector<128x8xf32>
    %100 = vector.shape_cast %99 : vector<128x8xf32> to vector<8x16x8xf32>
    %101 = vector.extract_strided_slice %41 {offsets = [0, 56], sizes = [128, 8], strides = [1, 1]} : vector<128x96xf32> to vector<128x8xf32>
    %102 = vector.shape_cast %101 : vector<128x8xf32> to vector<8x16x8xf32>
    %103 = vector.extract_strided_slice %41 {offsets = [0, 88], sizes = [128, 8], strides = [1, 1]} : vector<128x96xf32> to vector<128x8xf32>
    %104 = vector.shape_cast %103 : vector<128x8xf32> to vector<8x16x8xf32>
    "tpu.trace_start"() <{level = 10 : i32, message = "bqd,bkd->bqk"}> : () -> ()
    %cst_20 = arith.constant dense<0.000000e+00> : vector<8x16x16xf32>
    %105 = tpu.matmul %100, %102, %cst_20 {dimension_numbers = #tpu.dot_dimension_numbers<[2], [2], [1], [1], [0, 0, 0, 1, 1, 1], [0], [0]>} : vector<8x16x8xf32>, vector<8x16x8xf32>, vector<8x16x16xf32> -> vector<8x16x16xf32>
    "tpu.trace_stop"() : () -> ()
    %cst_21 = arith.constant dense<0xFF800000> : vector<8x16xf32>
    %106 = vector.multi_reduction <maximumf>, %105, %cst_21 [2] : vector<8x16x16xf32> to vector<8x16xf32>
    %107 = vector.shape_cast %106 : vector<8x16xf32> to vector<8x16x1xf32>
    %108 = vector.broadcast %107 : vector<8x16x1xf32> to vector<8x16x16xf32>
    %109 = arith.subf %105, %108 : vector<8x16x16xf32>
    %110 = math.exp %109 : vector<8x16x16xf32>
    %cst_22 = arith.constant dense<0.000000e+00> : vector<8x16xf32>
    %111 = vector.multi_reduction <add>, %110, %cst_22 [2] : vector<8x16x16xf32> to vector<8x16xf32>
    %112 = vector.shape_cast %111 : vector<8x16xf32> to vector<8x16x1xf32>
    %113 = tpu.reciprocal %112 {approx = true} : vector<8x16x1xf32> -> vector<8x16x1xf32>
    %114 = vector.broadcast %113 : vector<8x16x1xf32> to vector<8x16x16xf32>
    %115 = arith.mulf %110, %114 : vector<8x16x16xf32>
    "tpu.trace_start"() <{level = 10 : i32, message = "bqk,bkd->bqd"}> : () -> ()
    %cst_23 = arith.constant dense<0.000000e+00> : vector<8x16x8xf32>
    %116 = tpu.matmul %115, %104, %cst_23 {dimension_numbers = #tpu.dot_dimension_numbers<[2], [1], [1], [2], [0, 0, 0, 1, 1, 2], [0], [0]>} : vector<8x16x16xf32>, vector<8x16x8xf32>, vector<8x16x8xf32> -> vector<8x16x8xf32>
    "tpu.trace_stop"() : () -> ()
    %117 = vector.shape_cast %116 : vector<8x16x8xf32> to vector<128x8xf32>
    %118 = tpu.concatenate %60, %79, %98, %117 in 1 : vector<128x8xf32>, vector<128x8xf32>, vector<128x8xf32>, vector<128x8xf32> -> vector<128x32xf32>
    %cst_24 = arith.constant dense<0.000000e+00> : vector<128x32xf32>
    %119 = tpu.matmul %118, %2, %cst_24 {dimension_numbers = #tpu.dot_dimension_numbers<[1], [0], [0], [1], [0, 0, 1, 1], [], []>} : vector<128x32xf32>, vector<32x32xf32>, vector<128x32xf32> -> vector<128x32xf32>
    %120 = vector.broadcast %8 : vector<1x32xf32> to vector<128x32xf32>
    %121 = arith.addf %119, %120 : vector<128x32xf32>
    %122 = arith.addf %121, %16 : vector<128x32xf32>
    %cst_25 = arith.constant dense<0.000000e+00> : vector<128xf32>
    %123 = vector.multi_reduction <add>, %122, %cst_25 [1] : vector<128x32xf32> to vector<128xf32>
    %124 = vector.shape_cast %123 : vector<128xf32> to vector<128x1xf32>
    %cst_26 = arith.constant 3.200000e+01 : f32
    %125 = vector.broadcast %cst_26 : f32 to vector<128x1xf32>
    %126 = arith.divf %124, %125 : vector<128x1xf32>
    %127 = arith.mulf %122, %122 : vector<128x32xf32>
    %cst_27 = arith.constant dense<0.000000e+00> : vector<128xf32>
    %128 = vector.multi_reduction <add>, %127, %cst_27 [1] : vector<128x32xf32> to vector<128xf32>
    %129 = vector.shape_cast %128 : vector<128xf32> to vector<128x1xf32>
    %cst_28 = arith.constant 3.200000e+01 : f32
    %130 = vector.broadcast %cst_28 : f32 to vector<128x1xf32>
    %131 = arith.divf %129, %130 : vector<128x1xf32>
    %132 = arith.mulf %126, %126 : vector<128x1xf32>
    %133 = arith.subf %131, %132 : vector<128x1xf32>
    %134 = vector.broadcast %126 : vector<128x1xf32> to vector<128x32xf32>
    %135 = arith.subf %122, %134 : vector<128x32xf32>
    %cst_29 = arith.constant 9.99999974E-6 : f32
    %136 = vector.broadcast %cst_29 : f32 to vector<128x1xf32>
    %137 = arith.addf %133, %136 : vector<128x1xf32>
    %138 = math.rsqrt %137 : vector<128x1xf32>
    %139 = vector.broadcast %138 : vector<128x1xf32> to vector<128x32xf32>
    %140 = arith.mulf %135, %139 : vector<128x32xf32>
    %141 = vector.broadcast %9 : vector<1x32xf32> to vector<128x32xf32>
    %142 = arith.mulf %140, %141 : vector<128x32xf32>
    %143 = vector.broadcast %10 : vector<1x32xf32> to vector<128x32xf32>
    %144 = arith.addf %142, %143 : vector<128x32xf32>
    %cst_30 = arith.constant dense<0.000000e+00> : vector<128x32xf32>
    %145 = tpu.matmul %144, %3, %cst_30 {dimension_numbers = #tpu.dot_dimension_numbers<[1], [0], [0], [1], [0, 0, 1, 1], [], []>} : vector<128x32xf32>, vector<32x32xf32>, vector<128x32xf32> -> vector<128x32xf32>
    %146 = vector.broadcast %11 : vector<1x32xf32> to vector<128x32xf32>
    %147 = arith.addf %145, %146 : vector<128x32xf32>
    %cst_31 = arith.constant 5.000000e-01 : f32
    %148 = vector.broadcast %cst_31 : f32 to vector<128x32xf32>
    %149 = arith.mulf %148, %147 : vector<128x32xf32>
    %cst_32 = arith.constant 1.41421354 : f32
    %150 = vector.broadcast %cst_32 : f32 to vector<128x32xf32>
    %151 = arith.divf %147, %150 : vector<128x32xf32>
    %152 = math.erf %151 : vector<128x32xf32>
    %cst_33 = arith.constant 1.000000e+00 : f32
    %153 = vector.broadcast %cst_33 : f32 to vector<128x32xf32>
    %154 = arith.addf %153, %152 : vector<128x32xf32>
    %155 = arith.mulf %149, %154 : vector<128x32xf32>
    %cst_34 = arith.constant dense<0.000000e+00> : vector<128x32xf32>
    %156 = tpu.matmul %155, %4, %cst_34 {dimension_numbers = #tpu.dot_dimension_numbers<[1], [0], [0], [1], [0, 0, 1, 1], [], []>} : vector<128x32xf32>, vector<32x32xf32>, vector<128x32xf32> -> vector<128x32xf32>
    %157 = vector.broadcast %12 : vector<1x32xf32> to vector<128x32xf32>
    %158 = arith.addf %156, %157 : vector<128x32xf32>
    %159 = arith.addf %158, %122 : vector<128x32xf32>
    %160 = vector.shape_cast %159 : vector<128x32xf32> to vector<8x16x32xf32>
    %161 = tpu.transpose %160, [0, 2, 1] : vector<8x16x32xf32> -> vector<8x32x16xf32>
    %162 = vector.shape_cast %161 : vector<8x32x16xf32> to vector<8x512xf32>
    %c0_35 = arith.constant 0 : index
    %c0_36 = arith.constant 0 : index
    %163 = vector.load %arg3[%c0_35, %c0_36] : memref<8x512xf32, #tpu.memory_space<vmem>>, vector<8x512xf32>
    tpu.vector_store %arg3[%c0_35, %c0_36], %162 {strides = array<i32>} : memref<8x512xf32, #tpu.memory_space<vmem>>, vector<8x512xf32>,
    return
  }
  func.func @transform_0(%arg0: i32) -> (i32, i32) {
    %c0_i32 = arith.constant 0 : i32
    %c0_i32_0 = arith.constant 0 : i32
    return %arg0, %c0_i32 : i32, i32
  }
  func.func @transform_1(%arg0: i32) -> (i32, i32) {
    %c0_i32 = arith.constant 0 : i32
    %c0_i32_0 = arith.constant 0 : i32
    %c0_i32_1 = arith.constant 0 : i32
    return %c0_i32, %c0_i32_0 : i32, i32
  }
  func.func @transform_2(%arg0: i32) -> (i32, i32) {
    %c0_i32 = arith.constant 0 : i32
    %c0_i32_0 = arith.constant 0 : i32
    return %arg0, %c0_i32 : i32, i32
  }
}

</mosaic_0001>

<llo_original>
// kernel: tpu_custom_call.1
$region0: #{tpu_custom_call.1}
  #allocation0 [shape = 'u32[]', space=smem, size = 0x4, offset = 0x4, fixed_abs, tag = 'smem constant byte address 0x4 - core index']
  #allocation1 [shape = 'u32[144,128]{1,0:T(1,128)}', space=vmem, size = 0x12000, scoped, tag = 'internal scratch']
  %s0 = inlined_call_operand.hbm [shape: f32[8,512], index: 0, kind: input, shape index: {}]
  %s1 = inlined_call_operand.hbm [shape: f32[136,128], index: 1, kind: input, shape index: {}]
  %s2 = inlined_call_operand.hbm [shape: f32[8,512], index: 2, kind: output, shape index: {}]
  %s3 = sld [smem:[#allocation0]]
  $region26: #{tpu_custom_call.1} parent=0
    _
  %s5 = ssub.s32 1, %s3
  %s6 = scalar_select 0, %s5, %s3
  $region1: #{tpu_custom_call.1} parent=0
    #allocation2 [shape = 'u8[16384]{0}', space=vmem, size = 0x4000, scoped, tag = 'input window, operand 0, single buffered']
    #allocation3 [shape = 's32[1]{0}', space=sflag, size = 0x4, scoped, tag = 'scoped memory for tpu_custom_call.1']
    #allocation4 [shape = 's32[1]{0}', space=sflag, size = 0x4, scoped, tag = 'scoped memory for tpu_custom_call.1']
    #allocation5 [shape = 'u8[69632]{0}', space=vmem, size = 0x11000, scoped, tag = 'input window, operand 1, single buffered']
    #allocation6 [shape = 's32[1]{0}', space=sflag, size = 0x4, scoped, tag = 'scoped memory for tpu_custom_call.1']
    #allocation7 [shape = 'u8[16384]{0}', space=vmem, size = 0x4000, scoped, tag = 'output window, operand 0, single buffered']
    %7 = vsyncpa [#allocation3], 0
    %8 = vsyncpa [#allocation6], 0
    %9 = vsyncpa [#allocation4], 0
    // Predicated region
    $region2: #{tpu_custom_call.1} parent=1 // pred_check
      _
    $region3: #{tpu_custom_call.1} parent=1 // pred_check_branch
      %11 = sbr.rel (0) target = $region5
    $region4: #{tpu_custom_call.1} parent=1 // pred_region
      %s13 = ssub.s32 512, 512
      %14 = vsyncadd [#allocation3], %s13
      %s16 = sshll.u32 [#allocation2], 4
      %s17 = int_to_ptr.vmem [resolvable:$true] %s16
      %19 = dma.hbm_to_vmem [thread:$0]  %s0, 512, %s17, [#allocation3]
    $region5: #{tpu_custom_call.1} parent=1 // pred_fallthru
      _
    // Predicated region
    $region6: #{tpu_custom_call.1} parent=1 // pred_check
      _
    $region7: #{tpu_custom_call.1} parent=1 // pred_check_branch
      %21 = sbr.rel (0) target = $region9
    $region8: #{tpu_custom_call.1} parent=1 // pred_region
      %s23 = ssub.s32 2176, 2176
      %24 = vsyncadd [#allocation6], %s23
      %s25 = sshll.u32 [#allocation5], 4
      %s26 = int_to_ptr.vmem [resolvable:$true] %s25
      %31 = dma.hbm_to_vmem [thread:$0]  %s1, 2176, %s26, [#allocation6], 128, 128, 8
    $region9: #{tpu_custom_call.1} parent=1 // pred_fallthru
      _
    // Predicated region
    $region10: #{tpu_custom_call.1} parent=1 // pred_check
      _
    $region11: #{tpu_custom_call.1} parent=1 // pred_check_branch
      %33 = sbr.rel (0) target = $region13
    $region12: #{tpu_custom_call.1} parent=1 // pred_region
      %34 = dma.done [#allocation3], 512
    $region13: #{tpu_custom_call.1} parent=1 // pred_fallthru
      _
    // Predicated region
    $region14: #{tpu_custom_call.1} parent=1 // pred_check
      _
    $region15: #{tpu_custom_call.1} parent=1 // pred_check_branch
      %36 = sbr.rel (0) target = $region17
    $region16: #{tpu_custom_call.1} parent=1 // pred_region
      %37 = dma.done [#allocation6], 2176
    $region17: #{tpu_custom_call.1} parent=1 // pred_fallthru
      _
    %v38 = vld [vmem:[#allocation5] sm:$0xff]
    %v39 = vld [vmem:[#allocation5 + $0x8] sm:$0xff]
    %v40 = vld [vmem:[#allocation5 + $0x10] sm:$0xff]
    %v41 = vld [vmem:[#allocation5 + $0x18] sm:$0xff]
    %v42 = vld [vmem:[#allocation5 + $0x20] sm:$0xff]
    %v43 = vld [vmem:[#allocation5 + $0x28] sm:$0xff]
    %v44 = vld [vmem:[#allocation5 + $0x30] sm:$0xff]
    %v45 = vld [vmem:[#allocation5 + $0x38] sm:$0xff]
    %v46 = vld [vmem:[#allocation5 + $0x40] sm:$0xff]
    %v47 = vld [vmem:[#allocation5 + $0x48] sm:$0xff]
    %v48 = vld [vmem:[#allocation5 + $0x50] sm:$0xff]
    %v49 = vld [vmem:[#allocation5 + $0x58] sm:$0xff]
    %v50 = vld [vmem:[#allocation5 + $0x60] sm:$0xff]
    %v51 = vld [vmem:[#allocation5 + $0x68] sm:$0xff]
    %v52 = vld [vmem:[#allocation5 + $0x70] sm:$0xff]
    %v53 = vld [vmem:[#allocation5 + $0x78] sm:$0xff]
    %v54 = vld [vmem:[#allocation5 + $0x80] sm:$0xff]
    %v55 = vld [vmem:[#allocation2] sm:$0xff]
    %v56 = vld [vmem:[#allocation2 + $0x8] sm:$0xff]
    %v57 = vld [vmem:[#allocation2 + $0x10] sm:$0xff]
    %v58 = vld [vmem:[#allocation2 + $0x18] sm:$0xff]
    %60 = vrot.lane.b32.xlu0 %v55, 112
    %v61 = vpop.permute.xlu0 %60
    %63 = vrot.lane.b32.xlu0 %v55, 96
    %v64 = vpop.permute.xlu0 %63
    %66 = vrot.lane.b32.xlu0 %v55, 80
    %v67 = vpop.permute.xlu0 %66
    %69 = vrot.lane.b32.xlu0 %v55, 64
    %v70 = vpop.permute.xlu0 %69
    %72 = vrot.lane.b32.xlu0 %v55, 48
    %v73 = vpop.permute.xlu0 %72
    %75 = vrot.lane.b32.xlu0 %v55, 32
    %v76 = vpop.permute.xlu0 %75
    %78 = vrot.lane.b32.xlu0 %v55, 16
    %v79 = vpop.permute.xlu0 %78
    %82 = vrot.lane.b32.xlu0 %v56, 112
    %v83 = vpop.permute.xlu0 %82
    %85 = vrot.lane.b32.xlu0 %v56, 96
    %v86 = vpop.permute.xlu0 %85
    %88 = vrot.lane.b32.xlu0 %v56, 80
    %v89 = vpop.permute.xlu0 %88
    %91 = vrot.lane.b32.xlu0 %v56, 64
    %v92 = vpop.permute.xlu0 %91
    %94 = vrot.lane.b32.xlu0 %v56, 48
    %v95 = vpop.permute.xlu0 %94
    %97 = vrot.lane.b32.xlu0 %v56, 32
    %v98 = vpop.permute.xlu0 %97
    %100 = vrot.lane.b32.xlu0 %v56, 16
    %v101 = vpop.permute.xlu0 %100
    %104 = vrot.lane.b32.xlu0 %v57, 112
    %v105 = vpop.permute.xlu0 %104
    %107 = vrot.lane.b32.xlu0 %v57, 96
    %v108 = vpop.permute.xlu0 %107
    %110 = vrot.lane.b32.xlu0 %v57, 80
    %v111 = vpop.permute.xlu0 %110
    %113 = vrot.lane.b32.xlu0 %v57, 64
    %v114 = vpop.permute.xlu0 %113
    %116 = vrot.lane.b32.xlu0 %v57, 48
    %v117 = vpop.permute.xlu0 %116
    %119 = vrot.lane.b32.xlu0 %v57, 32
    %v120 = vpop.permute.xlu0 %119
    %122 = vrot.lane.b32.xlu0 %v57, 16
    %v123 = vpop.permute.xlu0 %122
    %126 = vrot.lane.b32.xlu0 %v58, 112
    %v127 = vpop.permute.xlu0 %126
    %129 = vrot.lane.b32.xlu0 %v58, 96
    %v130 = vpop.permute.xlu0 %129
    %132 = vrot.lane.b32.xlu0 %v58, 80
    %v133 = vpop.permute.xlu0 %132
    %135 = vrot.lane.b32.xlu0 %v58, 64
    %v136 = vpop.permute.xlu0 %135
    %138 = vrot.lane.b32.xlu0 %v58, 48
    %v139 = vpop.permute.xlu0 %138
    %141 = vrot.lane.b32.xlu0 %v58, 32
    %v142 = vpop.permute.xlu0 %141
    %144 = vrot.lane.b32.xlu0 %v58, 16
    %v145 = vpop.permute.xlu0 %144
    %v147 = vcombine.low %v55, %v64
    %v148 = vcombine.high %v55, %v64
    %v150 = vunpack.c.l.s4 1983009808
    %v151 = vunpack.c.0.s8 %v150
    %v152 = vlaneseq
    %v153 = vshrl.u32 %v152, 7
    %v154 = vsub.s32 %v151, %v153
    %v155 = vrot.slane %v147, %v154
    %v157 = vunpack.c.l.s4 1983009808
    %v158 = vunpack.c.0.s8 %v157
    %v159 = vlaneseq
    %v160 = vshrl.u32 %v159, 7
    %v161 = vsub.s32 %v158, %v160
    %v162 = vrot.slane %v148, %v161
    %v163 = vcombine.low %v61, %v67
    %v164 = vcombine.high %v61, %v67
    %v166 = vunpack.c.l.s4 1983009808
    %v167 = vunpack.c.0.s8 %v166
    %v168 = vlaneseq
    %v169 = vshrl.u32 %v168, 7
    %v170 = vsub.s32 %v167, %v169
    %v171 = vrot.slane %v163, %v170
    %v173 = vunpack.c.l.s4 1983009808
    %v174 = vunpack.c.0.s8 %v173
    %v175 = vlaneseq
    %v176 = vshrl.u32 %v175, 7
    %v177 = vsub.s32 %v174, %v176
    %v178 = vrot.slane %v164, %v177
    %v179 = vcombine.low %v70, %v76
    %v180 = vcombine.high %v70, %v76
    %v182 = vunpack.c.l.s4 1983009808
    %v183 = vunpack.c.0.s8 %v182
    %v184 = vlaneseq
    %v185 = vshrl.u32 %v184, 7
    %v186 = vsub.s32 %v183, %v185
    %v187 = vrot.slane %v179, %v186
    %v189 = vunpack.c.l.s4 1983009808
    %v190 = vunpack.c.0.s8 %v189
    %v191 = vlaneseq
    %v192 = vshrl.u32 %v191, 7
    %v193 = vsub.s32 %v190, %v192
    %v194 = vrot.slane %v180, %v193
    %v195 = vcombine.low %v73, %v79
    %v196 = vcombine.high %v73, %v79
    %v198 = vunpack.c.l.s4 1983009808
    %v199 = vunpack.c.0.s8 %v198
    %v200 = vlaneseq
    %v201 = vshrl.u32 %v200, 7
    %v202 = vsub.s32 %v199, %v201
    %v203 = vrot.slane %v195, %v202
    %v205 = vunpack.c.l.s4 1983009808
    %v206 = vunpack.c.0.s8 %v205
    %v207 = vlaneseq
    %v208 = vshrl.u32 %v207, 7
    %v209 = vsub.s32 %v206, %v208
    %v210 = vrot.slane %v196, %v209
    %v211 = vcombine.low %v155, %v171
    %v212 = vcombine.high %v155, %v171
    %v214 = vunpack.c.l.s4 1934713408
    %v215 = vunpack.c.0.s8 %v214
    %v216 = vlaneseq
    %v217 = vshrl.u32 %v216, 7
    %v218 = vsub.s32 %v215, %v217
    %v219 = vrot.slane %v211, %v218
    %v221 = vunpack.c.l.s4 1934713408
    %v222 = vunpack.c.0.s8 %v221
    %v223 = vlaneseq
    %v224 = vshrl.u32 %v223, 7
    %v225 = vsub.s32 %v222, %v224
    %v226 = vrot.slane %v212, %v225
    %v227 = vcombine.low %v162, %v178
    %v228 = vcombine.high %v162, %v178
    %v230 = vunpack.c.l.s4 1934713408
    %v231 = vunpack.c.0.s8 %v230
    %v232 = vlaneseq
    %v233 = vshrl.u32 %v232, 7
    %v234 = vsub.s32 %v231, %v233
    %v235 = vrot.slane %v227, %v234
    %v237 = vunpack.c.l.s4 1934713408
    %v238 = vunpack.c.0.s8 %v237
    %v239 = vlaneseq
    %v240 = vshrl.u32 %v239, 7
    %v241 = vsub.s32 %v238, %v240
    %v242 = vrot.slane %v228, %v241
    %v243 = vcombine.low %v187, %v203
    %v244 = vcombine.high %v187, %v203
    %v246 = vunpack.c.l.s4 1934713408
    %v247 = vunpack.c.0.s8 %v246
    %v248 = vlaneseq
    %v249 = vshrl.u32 %v248, 7
    %v250 = vsub.s32 %v247, %v249
    %v251 = vrot.slane %v243, %v250
    %v253 = vunpack.c.l.s4 1934713408
    %v254 = vunpack.c.0.s8 %v253
    %v255 = vlaneseq
    %v256 = vshrl.u32 %v255, 7
    %v257 = vsub.s32 %v254, %v256
    %v258 = vrot.slane %v244, %v257
    %v259 = vcombine.low %v194, %v210
    %v260 = vcombine.high %v194, %v210
    %v262 = vunpack.c.l.s4 1934713408
    %v263 = vunpack.c.0.s8 %v262
    %v264 = vlaneseq
    %v265 = vshrl.u32 %v264, 7
    %v266 = vsub.s32 %v263, %v265
    %v267 = vrot.slane %v259, %v266
    %v269 = vunpack.c.l.s4 1934713408
    %v270 = vunpack.c.0.s8 %v269
    %v271 = vlaneseq
    %v272 = vshrl.u32 %v271, 7
    %v273 = vsub.s32 %v270, %v272
    %v274 = vrot.slane %v260, %v273
    %v275 = vcombine.low %v219, %v251
    %v276 = vcombine.high %v219, %v251
    %v277 = vcombine.low %v226, %v258
    %v278 = vcombine.high %v226, %v258
    %v279 = vcombine.low %v235, %v267
    %v280 = vcombine.high %v235, %v267
    %v281 = vcombine.low %v242, %v274
    %v282 = vcombine.high %v242, %v274
    %v283 = vcombine.low %v56, %v86
    %v284 = vcombine.high %v56, %v86
    %v286 = vunpack.c.l.s4 1983009808
    %v287 = vunpack.c.0.s8 %v286
    %v288 = vlaneseq
    %v289 = vshrl.u32 %v288, 7
    %v290 = vsub.s32 %v287, %v289
    %v291 = vrot.slane %v283, %v290
    %v293 = vunpack.c.l.s4 1983009808
    %v294 = vunpack.c.0.s8 %v293
    %v295 = vlaneseq
    %v296 = vshrl.u32 %v295, 7
    %v297 = vsub.s32 %v294, %v296
    %v298 = vrot.slane %v284, %v297
    %v299 = vcombine.low %v83, %v89
    %v300 = vcombine.high %v83, %v89
    %v302 = vunpack.c.l.s4 1983009808
    %v303 = vunpack.c.0.s8 %v302
    %v304 = vlaneseq
    %v305 = vshrl.u32 %v304, 7
    %v306 = vsub.s32 %v303, %v305
    %v307 = vrot.slane %v299, %v306
    %v309 = vunpack.c.l.s4 1983009808
    %v310 = vunpack.c.0.s8 %v309
    %v311 = vlaneseq
    %v312 = vshrl.u32 %v311, 7
    %v313 = vsub.s32 %v310, %v312
    %v314 = vrot.slane %v300, %v313
    %v315 = vcombine.low %v92, %v98
    %v316 = vcombine.high %v92, %v98
    %v318 = vunpack.c.l.s4 1983009808
    %v319 = vunpack.c.0.s8 %v318
    %v320 = vlaneseq
    %v321 = vshrl.u32 %v320, 7
    %v322 = vsub.s32 %v319, %v321
    %v323 = vrot.slane %v315, %v322
    %v325 = vunpack.c.l.s4 1983009808
    %v326 = vunpack.c.0.s8 %v325
    %v327 = vlaneseq
    %v328 = vshrl.u32 %v327, 7
    %v329 = vsub.s32 %v326, %v328
    %v330 = vrot.slane %v316, %v329
    %v331 = vcombine.low %v95, %v101
    %v332 = vcombine.high %v95, %v101
    %v334 = vunpack.c.l.s4 1983009808
    %v335 = vunpack.c.0.s8 %v334
    %v336 = vlaneseq
    %v337 = vshrl.u32 %v336, 7
    %v338 = vsub.s32 %v335, %v337
    %v339 = vrot.slane %v331, %v338
    %v341 = vunpack.c.l.s4 1983009808
    %v342 = vunpack.c.0.s8 %v341
    %v343 = vlaneseq
    %v344 = vshrl.u32 %v343, 7
    %v345 = vsub.s32 %v342, %v344
    %v346 = vrot.slane %v332, %v345
    %v347 = vcombine.low %v291, %v307
    %v348 = vcombine.high %v291, %v307
    %v350 = vunpack.c.l.s4 1934713408
    %v351 = vunpack.c.0.s8 %v350
    %v352 = vlaneseq
    %v353 = vshrl.u32 %v352, 7
    %v354 = vsub.s32 %v351, %v353
    %v355 = vrot.slane %v347, %v354
    %v357 = vunpack.c.l.s4 1934713408
    %v358 = vunpack.c.0.s8 %v357
    %v359 = vlaneseq
    %v360 = vshrl.u32 %v359, 7
    %v361 = vsub.s32 %v358, %v360
    %v362 = vrot.slane %v348, %v361
    %v363 = vcombine.low %v298, %v314
    %v364 = vcombine.high %v298, %v314
    %v366 = vunpack.c.l.s4 1934713408
    %v367 = vunpack.c.0.s8 %v366
    %v368 = vlaneseq
    %v369 = vshrl.u32 %v368, 7
    %v370 = vsub.s32 %v367, %v369
    %v371 = vrot.slane %v363, %v370
    %v373 = vunpack.c.l.s4 1934713408
    %v374 = vunpack.c.0.s8 %v373
    %v375 = vlaneseq
    %v376 = vshrl.u32 %v375, 7
    %v377 = vsub.s32 %v374, %v376
    %v378 = vrot.slane %v364, %v377
    %v379 = vcombine.low %v323, %v339
    %v380 = vcombine.high %v323, %v339
    %v382 = vunpack.c.l.s4 1934713408
    %v383 = vunpack.c.0.s8 %v382
    %v384 = vlaneseq
    %v385 = vshrl.u32 %v384, 7
    %v386 = vsub.s32 %v383, %v385
    %v387 = vrot.slane %v379, %v386
    %v389 = vunpack.c.l.s4 1934713408
    %v390 = vunpack.c.0.s8 %v389
    %v391 = vlaneseq
    %v392 = vshrl.u32 %v391, 7
    %v393 = vsub.s32 %v390, %v392
    %v394 = vrot.slane %v380, %v393
    %v395 = vcombine.low %v330, %v346
    %v396 = vcombine.high %v330, %v346
    %v398 = vunpack.c.l.s4 1934713408
    %v399 = vunpack.c.0.s8 %v398
    %v400 = vlaneseq
    %v401 = vshrl.u32 %v400, 7
    %v402 = vsub.s32 %v399, %v401
    %v403 = vrot.slane %v395, %v402
    %v405 = vunpack.c.l.s4 1934713408
    %v406 = vunpack.c.0.s8 %v405
    %v407 = vlaneseq
    %v408 = vshrl.u32 %v407, 7
    %v409 = vsub.s32 %v406, %v408
    %v410 = vrot.slane %v396, %v409
    %v411 = vcombine.low %v355, %v387
    %v412 = vcombine.high %v355, %v387
    %v413 = vcombine.low %v362, %v394
    %v414 = vcombine.high %v362, %v394
    %v415 = vcombine.low %v371, %v403
    %v416 = vcombine.high %v371, %v403
    %v417 = vcombine.low %v378, %v410
    %v418 = vcombine.high %v378, %v410
    %v419 = vcombine.low %v57, %v108
    %v420 = vcombine.high %v57, %v108
    %v422 = vunpack.c.l.s4 1983009808
    %v423 = vunpack.c.0.s8 %v422
    %v424 = vlaneseq
    %v425 = vshrl.u32 %v424, 7
    %v426 = vsub.s32 %v423, %v425
    %v427 = vrot.slane %v419, %v426
    %v429 = vunpack.c.l.s4 1983009808
    %v430 = vunpack.c.0.s8 %v429
    %v431 = vlaneseq
    %v432 = vshrl.u32 %v431, 7
    %v433 = vsub.s32 %v430, %v432
    %v434 = vrot.slane %v420, %v433
    %v435 = vcombine.low %v105, %v111
    %v436 = vcombine.high %v105, %v111
    %v438 = vunpack.c.l.s4 1983009808
    %v439 = vunpack.c.0.s8 %v438
    %v440 = vlaneseq
    %v441 = vshrl.u32 %v440, 7
    %v442 = vsub.s32 %v439, %v441
    %v443 = vrot.slane %v435, %v442
    %v445 = vunpack.c.l.s4 1983009808
    %v446 = vunpack.c.0.s8 %v445
    %v447 = vlaneseq
    %v448 = vshrl.u32 %v447, 7
    %v449 = vsub.s32 %v446, %v448
    %v450 = vrot.slane %v436, %v449
    %v451 = vcombine.low %v114, %v120
    %v452 = vcombine.high %v114, %v120
    %v454 = vunpack.c.l.s4 1983009808
    %v455 = vunpack.c.0.s8 %v454
    %v456 = vlaneseq
    %v457 = vshrl.u32 %v456, 7
    %v458 = vsub.s32 %v455, %v457
    %v459 = vrot.slane %v451, %v458
    %v461 = vunpack.c.l.s4 1983009808
    %v462 = vunpack.c.0.s8 %v461
    %v463 = vlaneseq
    %v464 = vshrl.u32 %v463, 7
    %v465 = vsub.s32 %v462, %v464
    %v466 = vrot.slane %v452, %v465
    %v467 = vcombine.low %v117, %v123
    %v468 = vcombine.high %v117, %v123
    %v470 = vunpack.c.l.s4 1983009808
    %v471 = vunpack.c.0.s8 %v470
    %v472 = vlaneseq
    %v473 = vshrl.u32 %v472, 7
    %v474 = vsub.s32 %v471, %v473
    %v475 = vrot.slane %v467, %v474
    %v477 = vunpack.c.l.s4 1983009808
    %v478 = vunpack.c.0.s8 %v477
    %v479 = vlaneseq
    %v480 = vshrl.u32 %v479, 7
    %v481 = vsub.s32 %v478, %v480
    %v482 = vrot.slane %v468, %v481
    %v483 = vcombine.low %v427, %v443
    %v484 = vcombine.high %v427, %v443
    %v486 = vunpack.c.l.s4 1934713408
    %v487 = vunpack.c.0.s8 %v486
    %v488 = vlaneseq
    %v489 = vshrl.u32 %v488, 7
    %v490 = vsub.s32 %v487, %v489
    %v491 = vrot.slane %v483, %v490
    %v493 = vunpack.c.l.s4 1934713408
    %v494 = vunpack.c.0.s8 %v493
    %v495 = vlaneseq
    %v496 = vshrl.u32 %v495, 7
    %v497 = vsub.s32 %v494, %v496
    %v498 = vrot.slane %v484, %v497
    %v499 = vcombine.low %v434, %v450
    %v500 = vcombine.high %v434, %v450
    %v502 = vunpack.c.l.s4 1934713408
    %v503 = vunpack.c.0.s8 %v502
    %v504 = vlaneseq
    %v505 = vshrl.u32 %v504, 7
    %v506 = vsub.s32 %v503, %v505
    %v507 = vrot.slane %v499, %v506
    %v509 = vunpack.c.l.s4 1934713408
    %v510 = vunpack.c.0.s8 %v509
    %v511 = vlaneseq
    %v512 = vshrl.u32 %v511, 7
    %v513 = vsub.s32 %v510, %v512
    %v514 = vrot.slane %v500, %v513
    %v515 = vcombine.low %v459, %v475
    %v516 = vcombine.high %v459, %v475
    %v518 = vunpack.c.l.s4 1934713408
    %v519 = vunpack.c.0.s8 %v518
    %v520 = vlaneseq
    %v521 = vshrl.u32 %v520, 7
    %v522 = vsub.s32 %v519, %v521
    %v523 = vrot.slane %v515, %v522
    %v525 = vunpack.c.l.s4 1934713408
    %v526 = vunpack.c.0.s8 %v525
    %v527 = vlaneseq
    %v528 = vshrl.u32 %v527, 7
    %v529 = vsub.s32 %v526, %v528
    %v530 = vrot.slane %v516, %v529
    %v531 = vcombine.low %v466, %v482
    %v532 = vcombine.high %v466, %v482
    %v534 = vunpack.c.l.s4 1934713408
    %v535 = vunpack.c.0.s8 %v534
    %v536 = vlaneseq
    %v537 = vshrl.u32 %v536, 7
    %v538 = vsub.s32 %v535, %v537
    %v539 = vrot.slane %v531, %v538
    %v541 = vunpack.c.l.s4 1934713408
    %v542 = vunpack.c.0.s8 %v541
    %v543 = vlaneseq
    %v544 = vshrl.u32 %v543, 7
    %v545 = vsub.s32 %v542, %v544
    %v546 = vrot.slane %v532, %v545
    %v547 = vcombine.low %v491, %v523
    %v548 = vcombine.high %v491, %v523
    %v549 = vcombine.low %v498, %v530
    %v550 = vcombine.high %v498, %v530
    %v551 = vcombine.low %v507, %v539
    %v552 = vcombine.high %v507, %v539
    %v553 = vcombine.low %v514, %v546
    %v554 = vcombine.high %v514, %v546
    %v555 = vcombine.low %v58, %v130
    %v556 = vcombine.high %v58, %v130
    %v558 = vunpack.c.l.s4 1983009808
    %v559 = vunpack.c.0.s8 %v558
    %v560 = vlaneseq
    %v561 = vshrl.u32 %v560, 7
    %v562 = vsub.s32 %v559, %v561
    %v563 = vrot.slane %v555, %v562
    %v565 = vunpack.c.l.s4 1983009808
    %v566 = vunpack.c.0.s8 %v565
    %v567 = vlaneseq
    %v568 = vshrl.u32 %v567, 7
    %v569 = vsub.s32 %v566, %v568
    %v570 = vrot.slane %v556, %v569
    %v571 = vcombine.low %v127, %v133
    %v572 = vcombine.high %v127, %v133
    %v574 = vunpack.c.l.s4 1983009808
    %v575 = vunpack.c.0.s8 %v574
    %v576 = vlaneseq
    %v577 = vshrl.u32 %v576, 7
    %v578 = vsub.s32 %v575, %v577
    %v579 = vrot.slane %v571, %v578
    %v581 = vunpack.c.l.s4 1983009808
    %v582 = vunpack.c.0.s8 %v581
    %v583 = vlaneseq
    %v584 = vshrl.u32 %v583, 7
    %v585 = vsub.s32 %v582, %v584
    %v586 = vrot.slane %v572, %v585
    %v587 = vcombine.low %v136, %v142
    %v588 = vcombine.high %v136, %v142
    %v590 = vunpack.c.l.s4 1983009808
    %v591 = vunpack.c.0.s8 %v590
    %v592 = vlaneseq
    %v593 = vshrl.u32 %v592, 7
    %v594 = vsub.s32 %v591, %v593
    %v595 = vrot.slane %v587, %v594
    %v597 = vunpack.c.l.s4 1983009808
    %v598 = vunpack.c.0.s8 %v597
    %v599 = vlaneseq
    %v600 = vshrl.u32 %v599, 7
    %v601 = vsub.s32 %v598, %v600
    %v602 = vrot.slane %v588, %v601
    %v603 = vcombine.low %v139, %v145
    %v604 = vcombine.high %v139, %v145
    %v606 = vunpack.c.l.s4 1983009808
    %v607 = vunpack.c.0.s8 %v606
    %v608 = vlaneseq
    %v609 = vshrl.u32 %v608, 7
    %v610 = vsub.s32 %v607, %v609
    %v611 = vrot.slane %v603, %v610
    %v613 = vunpack.c.l.s4 1983009808
    %v614 = vunpack.c.0.s8 %v613
    %v615 = vlaneseq
    %v616 = vshrl.u32 %v615, 7
    %v617 = vsub.s32 %v614, %v616
    %v618 = vrot.slane %v604, %v617
    %v619 = vcombine.low %v563, %v579
    %v620 = vcombine.high %v563, %v579
    %v622 = vunpack.c.l.s4 1934713408
    %v623 = vunpack.c.0.s8 %v622
    %v624 = vlaneseq
    %v625 = vshrl.u32 %v624, 7
    %v626 = vsub.s32 %v623, %v625
    %v627 = vrot.slane %v619, %v626
    %v629 = vunpack.c.l.s4 1934713408
    %v630 = vunpack.c.0.s8 %v629
    %v631 = vlaneseq
    %v632 = vshrl.u32 %v631, 7
    %v633 = vsub.s32 %v630, %v632
    %v634 = vrot.slane %v620, %v633
    %v635 = vcombine.low %v570, %v586
    %v636 = vcombine.high %v570, %v586
    %v638 = vunpack.c.l.s4 1934713408
    %v639 = vunpack.c.0.s8 %v638
    %v640 = vlaneseq
    %v641 = vshrl.u32 %v640, 7
    %v642 = vsub.s32 %v639, %v641
    %v643 = vrot.slane %v635, %v642
    %v645 = vunpack.c.l.s4 1934713408
    %v646 = vunpack.c.0.s8 %v645
    %v647 = vlaneseq
    %v648 = vshrl.u32 %v647, 7
    %v649 = vsub.s32 %v646, %v648
    %v650 = vrot.slane %v636, %v649
    %v651 = vcombine.low %v595, %v611
    %v652 = vcombine.high %v595, %v611
    %v654 = vunpack.c.l.s4 1934713408
    %v655 = vunpack.c.0.s8 %v654
    %v656 = vlaneseq
    %v657 = vshrl.u32 %v656, 7
    %v658 = vsub.s32 %v655, %v657
    %v659 = vrot.slane %v651, %v658
    %v661 = vunpack.c.l.s4 1934713408
    %v662 = vunpack.c.0.s8 %v661
    %v663 = vlaneseq
    %v664 = vshrl.u32 %v663, 7
    %v665 = vsub.s32 %v662, %v664
    %v666 = vrot.slane %v652, %v665
    %v667 = vcombine.low %v602, %v618
    %v668 = vcombine.high %v602, %v618
    %v670 = vunpack.c.l.s4 1934713408
    %v671 = vunpack.c.0.s8 %v670
    %v672 = vlaneseq
    %v673 = vshrl.u32 %v672, 7
    %v674 = vsub.s32 %v671, %v673
    %v675 = vrot.slane %v667, %v674
    %v677 = vunpack.c.l.s4 1934713408
    %v678 = vunpack.c.0.s8 %v677
    %v679 = vlaneseq
    %v680 = vshrl.u32 %v679, 7
    %v681 = vsub.s32 %v678, %v680
    %v682 = vrot.slane %v668, %v681
    %v683 = vcombine.low %v627, %v659
    %v684 = vcombine.high %v627, %v659
    %v685 = vcombine.low %v634, %v666
    %v686 = vcombine.high %v634, %v666
    %v687 = vcombine.low %v643, %v675
    %v688 = vcombine.high %v643, %v675
    %v689 = vcombine.low %v650, %v682
    %v690 = vcombine.high %v650, %v682
    %691 = vxpose.xlu0.b32.start [1/16] %v275, 128
    %692 = vxpose.xlu0.b32.cont [2/16] %v411, 128
    %693 = vxpose.xlu0.b32.cont [3/16] %v547, 128
    %694 = vxpose.xlu0.b32.cont [4/16] %v683, 128
    %695 = vxpose.xlu0.b32.cont [5/16] 0.0, 128
    %696 = vxpose.xlu0.b32.cont [6/16] 0.0, 128
    %697 = vxpose.xlu0.b32.cont [7/16] 0.0, 128
    %698 = vxpose.xlu0.b32.cont [8/16] 0.0, 128
    %699 = vxpose.xlu0.b32.cont [9/16] 0.0, 128
    %700 = vxpose.xlu0.b32.cont [10/16] 0.0, 128
    %701 = vxpose.xlu0.b32.cont [11/16] 0.0, 128
    %702 = vxpose.xlu0.b32.cont [12/16] 0.0, 128
    %703 = vxpose.xlu0.b32.cont [13/16] 0.0, 128
    %704 = vxpose.xlu0.b32.cont [14/16] 0.0, 128
    %705 = vxpose.xlu0.b32.cont [15/16] 0.0, 128
    %706 = vxpose.xlu0.b32.end [16/16] 0.0, 128
    %v707 = vpop.trf.xlu0
    %v708 = vpop.trf.xlu0
    %v709 = vpop.trf.xlu0
    %v710 = vpop.trf.xlu0
    %v711 = vpop.trf.xlu0
    %v712 = vpop.trf.xlu0
    %v713 = vpop.trf.xlu0
    %v714 = vpop.trf.xlu0
    %v715 = vpop.trf.xlu0
    %v716 = vpop.trf.xlu0
    %v717 = vpop.trf.xlu0
    %v718 = vpop.trf.xlu0
    %v719 = vpop.trf.xlu0
    %v720 = vpop.trf.xlu0
    %v721 = vpop.trf.xlu0
    %v722 = vpop.trf.xlu0
    %723 = vxpose.xlu0.b32.start [1/16] %v276, 128
    %724 = vxpose.xlu0.b32.cont [2/16] %v412, 128
    %725 = vxpose.xlu0.b32.cont [3/16] %v548, 128
    %726 = vxpose.xlu0.b32.cont [4/16] %v684, 128
    %727 = vxpose.xlu0.b32.cont [5/16] 0.0, 128
    %728 = vxpose.xlu0.b32.cont [6/16] 0.0, 128
    %729 = vxpose.xlu0.b32.cont [7/16] 0.0, 128
    %730 = vxpose.xlu0.b32.cont [8/16] 0.0, 128
    %731 = vxpose.xlu0.b32.cont [9/16] 0.0, 128
    %732 = vxpose.xlu0.b32.cont [10/16] 0.0, 128
    %733 = vxpose.xlu0.b32.cont [11/16] 0.0, 128
    %734 = vxpose.xlu0.b32.cont [12/16] 0.0, 128
    %735 = vxpose.xlu0.b32.cont [13/16] 0.0, 128
    %736 = vxpose.xlu0.b32.cont [14/16] 0.0, 128
    %737 = vxpose.xlu0.b32.cont [15/16] 0.0, 128
    %738 = vxpose.xlu0.b32.end [16/16] 0.0, 128
    %v739 = vpop.trf.xlu0
    %v740 = vpop.trf.xlu0
    %v741 = vpop.trf.xlu0
    %v742 = vpop.trf.xlu0
    %v743 = vpop.trf.xlu0
    %v744 = vpop.trf.xlu0
    %v745 = vpop.trf.xlu0
    %v746 = vpop.trf.xlu0
    %v747 = vpop.trf.xlu0
    %v748 = vpop.trf.xlu0
    %v749 = vpop.trf.xlu0
    %v750 = vpop.trf.xlu0
    %v751 = vpop.trf.xlu0
    %v752 = vpop.trf.xlu0
    %v753 = vpop.trf.xlu0
    %v754 = vpop.trf.xlu0
    %755 = vxpose.xlu0.b32.start [1/16] %v277, 128
    %756 = vxpose.xlu0.b32.cont [2/16] %v413, 128
    %757 = vxpose.xlu0.b32.cont [3/16] %v549, 128
    %758 = vxpose.xlu0.b32.cont [4/16] %v685, 128
    %759 = vxpose.xlu0.b32.cont [5/16] 0.0, 128
    %760 = vxpose.xlu0.b32.cont [6/16] 0.0, 128
    %761 = vxpose.xlu0.b32.cont [7/16] 0.0, 128
    %762 = vxpose.xlu0.b32.cont [8/16] 0.0, 128
    %763 = vxpose.xlu0.b32.cont [9/16] 0.0, 128
    %764 = vxpose.xlu0.b32.cont [10/16] 0.0, 128
    %765 = vxpose.xlu0.b32.cont [11/16] 0.0, 128
    %766 = vxpose.xlu0.b32.cont [12/16] 0.0, 128
    %767 = vxpose.xlu0.b32.cont [13/16] 0.0, 128
    %768 = vxpose.xlu0.b32.cont [14/16] 0.0, 128
    %769 = vxpose.xlu0.b32.cont [15/16] 0.0, 128
    %770 = vxpose.xlu0.b32.end [16/16] 0.0, 128
    %v771 = vpop.trf.xlu0
    %v772 = vpop.trf.xlu0
    %v773 = vpop.trf.xlu0
    %v774 = vpop.trf.xlu0
    %v775 = vpop.trf.xlu0
    %v776 = vpop.trf.xlu0
    %v777 = vpop.trf.xlu0
    %v778 = vpop.trf.xlu0
    %v779 = vpop.trf.xlu0
    %v780 = vpop.trf.xlu0
    %v781 = vpop.trf.xlu0
    %v782 = vpop.trf.xlu0
    %v783 = vpop.trf.xlu0
    %v784 = vpop.trf.xlu0
    %v785 = vpop.trf.xlu0
    %v786 = vpop.trf.xlu0
    %787 = vxpose.xlu0.b32.start [1/16] %v278, 128
    %788 = vxpose.xlu0.b32.cont [2/16] %v414, 128
    %789 = vxpose.xlu0.b32.cont [3/16] %v550, 128
    %790 = vxpose.xlu0.b32.cont [4/16] %v686, 128
    %791 = vxpose.xlu0.b32.cont [5/16] 0.0, 128
    %792 = vxpose.xlu0.b32.cont [6/16] 0.0, 128
    %793 = vxpose.xlu0.b32.cont [7/16] 0.0, 128
    %794 = vxpose.xlu0.b32.cont [8/16] 0.0, 128
    %795 = vxpose.xlu0.b32.cont [9/16] 0.0, 128
    %796 = vxpose.xlu0.b32.cont [10/16] 0.0, 128
    %797 = vxpose.xlu0.b32.cont [11/16] 0.0, 128
    %798 = vxpose.xlu0.b32.cont [12/16] 0.0, 128
    %799 = vxpose.xlu0.b32.cont [13/16] 0.0, 128
    %800 = vxpose.xlu0.b32.cont [14/16] 0.0, 128
    %801 = vxpose.xlu0.b32.cont [15/16] 0.0, 128
    %802 = vxpose.xlu0.b32.end [16/16] 0.0, 128
    %v803 = vpop.trf.xlu0
    %v804 = vpop.trf.xlu0
    %v805 = vpop.trf.xlu0
    %v806 = vpop.trf.xlu0
    %v807 = vpop.trf.xlu0
    %v808 = vpop.trf.xlu0
    %v809 = vpop.trf.xlu0
    %v810 = vpop.trf.xlu0
    %v811 = vpop.trf.xlu0
    %v812 = vpop.trf.xlu0
    %v813 = vpop.trf.xlu0
    %v814 = vpop.trf.xlu0
    %v815 = vpop.trf.xlu0
    %v816 = vpop.trf.xlu0
    %v817 = vpop.trf.xlu0
    %v818 = vpop.trf.xlu0
    %819 = vxpose.xlu0.b32.start [1/16] %v279, 128
    %820 = vxpose.xlu0.b32.cont [2/16] %v415, 128
    %821 = vxpose.xlu0.b32.cont [3/16] %v551, 128
    %822 = vxpose.xlu0.b32.cont [4/16] %v687, 128
    %823 = vxpose.xlu0.b32.cont [5/16] 0.0, 128
    %824 = vxpose.xlu0.b32.cont [6/16] 0.0, 128
    %825 = vxpose.xlu0.b32.cont [7/16] 0.0, 128
    %826 = vxpose.xlu0.b32.cont [8/16] 0.0, 128
    %827 = vxpose.xlu0.b32.cont [9/16] 0.0, 128
    %828 = vxpose.xlu0.b32.cont [10/16] 0.0, 128
    %829 = vxpose.xlu0.b32.cont [11/16] 0.0, 128
    %830 = vxpose.xlu0.b32.cont [12/16] 0.0, 128
    %831 = vxpose.xlu0.b32.cont [13/16] 0.0, 128
    %832 = vxpose.xlu0.b32.cont [14/16] 0.0, 128
    %833 = vxpose.xlu0.b32.cont [15/16] 0.0, 128
    %834 = vxpose.xlu0.b32.end [16/16] 0.0, 128
    %v835 = vpop.trf.xlu0
    %v836 = vpop.trf.xlu0
    %v837 = vpop.trf.xlu0
    %v838 = vpop.trf.xlu0
    %v839 = vpop.trf.xlu0
    %v840 = vpop.trf.xlu0
    %v841 = vpop.trf.xlu0
    %v842 = vpop.trf.xlu0
    %v843 = vpop.trf.xlu0
    %v844 = vpop.trf.xlu0
    %v845 = vpop.trf.xlu0
    %v846 = vpop.trf.xlu0
    %v847 = vpop.trf.xlu0
    %v848 = vpop.trf.xlu0
    %v849 = vpop.trf.xlu0
    %v850 = vpop.trf.xlu0
    %851 = vxpose.xlu0.b32.start [1/16] %v280, 128
    %852 = vxpose.xlu0.b32.cont [2/16] %v416, 128
    %853 = vxpose.xlu0.b32.cont [3/16] %v552, 128
    %854 = vxpose.xlu0.b32.cont [4/16] %v688, 128
    %855 = vxpose.xlu0.b32.cont [5/16] 0.0, 128
    %856 = vxpose.xlu0.b32.cont [6/16] 0.0, 128
    %857 = vxpose.xlu0.b32.cont [7/16] 0.0, 128
    %858 = vxpose.xlu0.b32.cont [8/16] 0.0, 128
    %859 = vxpose.xlu0.b32.cont [9/16] 0.0, 128
    %860 = vxpose.xlu0.b32.cont [10/16] 0.0, 128
    %861 = vxpose.xlu0.b32.cont [11/16] 0.0, 128
    %862 = vxpose.xlu0.b32.cont [12/16] 0.0, 128
    %863 = vxpose.xlu0.b32.cont [13/16] 0.0, 128
    %864 = vxpose.xlu0.b32.cont [14/16] 0.0, 128
    %865 = vxpose.xlu0.b32.cont [15/16] 0.0, 128
    %866 = vxpose.xlu0.b32.end [16/16] 0.0, 128
    %v867 = vpop.trf.xlu0
    %v868 = vpop.trf.xlu0
    %v869 = vpop.trf.xlu0
    %v870 = vpop.trf.xlu0
    %v871 = vpop.trf.xlu0
    %v872 = vpop.trf.xlu0
    %v873 = vpop.trf.xlu0
    %v874 = vpop.trf.xlu0
    %v875 = vpop.trf.xlu0
    %v876 = vpop.trf.xlu0
    %v877 = vpop.trf.xlu0
    %v878 = vpop.trf.xlu0
    %v879 = vpop.trf.xlu0
    %v880 = vpop.trf.xlu0
    %v881 = vpop.trf.xlu0
    %v882 = vpop.trf.xlu0
    %883 = vxpose.xlu0.b32.start [1/16] %v281, 128
    %884 = vxpose.xlu0.b32.cont [2/16] %v417, 128
    %885 = vxpose.xlu0.b32.cont [3/16] %v553, 128
    %886 = vxpose.xlu0.b32.cont [4/16] %v689, 128
    %887 = vxpose.xlu0.b32.cont [5/16] 0.0, 128
    %888 = vxpose.xlu0.b32.cont [6/16] 0.0, 128
    %889 = vxpose.xlu0.b32.cont [7/16] 0.0, 128
    %890 = vxpose.xlu0.b32.cont [8/16] 0.0, 128
    %891 = vxpose.xlu0.b32.cont [9/16] 0.0, 128
    %892 = vxpose.xlu0.b32.cont [10/16] 0.0, 128
    %893 = vxpose.xlu0.b32.cont [11/16] 0.0, 128
    %894 = vxpose.xlu0.b32.cont [12/16] 0.0, 128
    %895 = vxpose.xlu0.b32.cont [13/16] 0.0, 128
    %896 = vxpose.xlu0.b32.cont [14/16] 0.0, 128
    %897 = vxpose.xlu0.b32.cont [15/16] 0.0, 128
    %898 = vxpose.xlu0.b32.end [16/16] 0.0, 128
    %v899 = vpop.trf.xlu0
    %v900 = vpop.trf.xlu0
    %v901 = vpop.trf.xlu0
    %v902 = vpop.trf.xlu0
    %v903 = vpop.trf.xlu0
    %v904 = vpop.trf.xlu0
    %v905 = vpop.trf.xlu0
    %v906 = vpop.trf.xlu0
    %v907 = vpop.trf.xlu0
    %v908 = vpop.trf.xlu0
    %v909 = vpop.trf.xlu0
    %v910 = vpop.trf.xlu0
    %v911 = vpop.trf.xlu0
    %v912 = vpop.trf.xlu0
    %v913 = vpop.trf.xlu0
    %v914 = vpop.trf.xlu0
    %915 = vxpose.xlu0.b32.start [1/16] %v282, 128
    %916 = vxpose.xlu0.b32.cont [2/16] %v418, 128
    %917 = vxpose.xlu0.b32.cont [3/16] %v554, 128
    %918 = vxpose.xlu0.b32.cont [4/16] %v690, 128
    %919 = vxpose.xlu0.b32.cont [5/16] 0.0, 128
    %920 = vxpose.xlu0.b32.cont [6/16] 0.0, 128
    %921 = vxpose.xlu0.b32.cont [7/16] 0.0, 128
    %922 = vxpose.xlu0.b32.cont [8/16] 0.0, 128
    %923 = vxpose.xlu0.b32.cont [9/16] 0.0, 128
    %924 = vxpose.xlu0.b32.cont [10/16] 0.0, 128
    %925 = vxpose.xlu0.b32.cont [11/16] 0.0, 128
    %926 = vxpose.xlu0.b32.cont [12/16] 0.0, 128
    %927 = vxpose.xlu0.b32.cont [13/16] 0.0, 128
    %928 = vxpose.xlu0.b32.cont [14/16] 0.0, 128
    %929 = vxpose.xlu0.b32.cont [15/16] 0.0, 128
    %930 = vxpose.xlu0.b32.end [16/16] 0.0, 128
    %v931 = vpop.trf.xlu0
    %v932 = vpop.trf.xlu0
    %v933 = vpop.trf.xlu0
    %v934 = vpop.trf.xlu0
    %v935 = vpop.trf.xlu0
    %v936 = vpop.trf.xlu0
    %v937 = vpop.trf.xlu0
    %v938 = vpop.trf.xlu0
    %v939 = vpop.trf.xlu0
    %v940 = vpop.trf.xlu0
    %v941 = vpop.trf.xlu0
    %v942 = vpop.trf.xlu0
    %v943 = vpop.trf.xlu0
    %v944 = vpop.trf.xlu0
    %v945 = vpop.trf.xlu0
    %v946 = vpop.trf.xlu0
    %vm947 = vcmask 261120
    %v948 = vsel %vm947, %v707, 0.0
    %949 = vadd.xlane.f32.xlu0 %v948
    %v950 = vpop.xlane.xlu0 %949
    %v951 = vsel %vm947, %v708, 0.0
    %952 = vadd.xlane.f32.xlu0 %v951
    %v953 = vpop.xlane.xlu0 %952
    %v954 = vsel %vm947, %v739, 0.0
    %955 = vadd.xlane.f32.xlu0 %v954
    %v956 = vpop.xlane.xlu0 %955
    %v957 = vsel %vm947, %v740, 0.0
    %958 = vadd.xlane.f32.xlu0 %v957
    %v959 = vpop.xlane.xlu0 %958
    %v960 = vsel %vm947, %v771, 0.0
    %961 = vadd.xlane.f32.xlu0 %v960
    %v962 = vpop.xlane.xlu0 %961
    %v963 = vsel %vm947, %v772, 0.0
    %964 = vadd.xlane.f32.xlu0 %v963
    %v965 = vpop.xlane.xlu0 %964
    %v966 = vsel %vm947, %v803, 0.0
    %967 = vadd.xlane.f32.xlu0 %v966
    %v968 = vpop.xlane.xlu0 %967
    %v969 = vsel %vm947, %v804, 0.0
    %970 = vadd.xlane.f32.xlu0 %v969
    %v971 = vpop.xlane.xlu0 %970
    %v972 = vsel %vm947, %v835, 0.0
    %973 = vadd.xlane.f32.xlu0 %v972
    %v974 = vpop.xlane.xlu0 %973
    %v975 = vsel %vm947, %v836, 0.0
    %976 = vadd.xlane.f32.xlu0 %v975
    %v977 = vpop.xlane.xlu0 %976
    %v978 = vsel %vm947, %v867, 0.0
    %979 = vadd.xlane.f32.xlu0 %v978
    %v980 = vpop.xlane.xlu0 %979
    %v981 = vsel %vm947, %v868, 0.0
    %982 = vadd.xlane.f32.xlu0 %v981
    %v983 = vpop.xlane.xlu0 %982
    %v984 = vsel %vm947, %v899, 0.0
    %985 = vadd.xlane.f32.xlu0 %v984
    %v986 = vpop.xlane.xlu0 %985
    %v987 = vsel %vm947, %v900, 0.0
    %988 = vadd.xlane.f32.xlu0 %v987
    %v989 = vpop.xlane.xlu0 %988
    %v990 = vsel %vm947, %v931, 0.0
    %991 = vadd.xlane.f32.xlu0 %v990
    %v992 = vpop.xlane.xlu0 %991
    %v993 = vsel %vm947, %v932, 0.0
    %994 = vadd.xlane.f32.xlu0 %v993
    %v995 = vpop.xlane.xlu0 %994
    %v996 = vrcp.pop 32.0
    %v997 = vmul.f32 %v950, %v996
    %v998 = vmul.f32 %v953, %v996
    %v999 = vmul.f32 %v956, %v996
    %v1000 = vmul.f32 %v959, %v996
    %v1001 = vmul.f32 %v962, %v996
    %v1002 = vmul.f32 %v965, %v996
    %v1003 = vmul.f32 %v968, %v996
    %v1004 = vmul.f32 %v971, %v996
    %v1005 = vmul.f32 %v974, %v996
    %v1006 = vmul.f32 %v977, %v996
    %v1007 = vmul.f32 %v980, %v996
    %v1008 = vmul.f32 %v983, %v996
    %v1009 = vmul.f32 %v986, %v996
    %v1010 = vmul.f32 %v989, %v996
    %v1011 = vmul.f32 %v992, %v996
    %v1012 = vmul.f32 %v995, %v996
    %v1013 = vmul.f32 %v707, %v707
    %v1014 = vmul.f32 %v708, %v708
    %v1015 = vmul.f32 %v739, %v739
    %v1016 = vmul.f32 %v740, %v740
    %v1017 = vmul.f32 %v771, %v771
    %v1018 = vmul.f32 %v772, %v772
    %v1019 = vmul.f32 %v803, %v803
    %v1020 = vmul.f32 %v804, %v804
    %v1021 = vmul.f32 %v835, %v835
    %v1022 = vmul.f32 %v836, %v836
    %v1023 = vmul.f32 %v867, %v867
    %v1024 = vmul.f32 %v868, %v868
    %v1025 = vmul.f32 %v899, %v899
    %v1026 = vmul.f32 %v900, %v900
    %v1027 = vmul.f32 %v931, %v931
    %v1028 = vmul.f32 %v932, %v932
    %v1029 = vsel %vm947, %v1013, 0.0
    %1030 = vadd.xlane.f32.xlu0 %v1029
    %v1031 = vpop.xlane.xlu0 %1030
    %v1032 = vsel %vm947, %v1014, 0.0
    %1033 = vadd.xlane.f32.xlu0 %v1032
    %v1034 = vpop.xlane.xlu0 %1033
    %v1035 = vsel %vm947, %v1015, 0.0
    %1036 = vadd.xlane.f32.xlu0 %v1035
    %v1037 = vpop.xlane.xlu0 %1036
    %v1038 = vsel %vm947, %v1016, 0.0
    %1039 = vadd.xlane.f32.xlu0 %v1038
    %v1040 = vpop.xlane.xlu0 %1039
    %v1041 = vsel %vm947, %v1017, 0.0
    %1042 = vadd.xlane.f32.xlu0 %v1041
    %v1043 = vpop.xlane.xlu0 %1042
    %v1044 = vsel %vm947, %v1018, 0.0
    %1045 = vadd.xlane.f32.xlu0 %v1044
    %v1046 = vpop.xlane.xlu0 %1045
    %v1047 = vsel %vm947, %v1019, 0.0
    %1048 = vadd.xlane.f32.xlu0 %v1047
    %v1049 = vpop.xlane.xlu0 %1048
    %v1050 = vsel %vm947, %v1020, 0.0
    %1051 = vadd.xlane.f32.xlu0 %v1050
    %v1052 = vpop.xlane.xlu0 %1051
    %v1053 = vsel %vm947, %v1021, 0.0
    %1054 = vadd.xlane.f32.xlu0 %v1053
    %v1055 = vpop.xlane.xlu0 %1054
    %v1056 = vsel %vm947, %v1022, 0.0
    %1057 = vadd.xlane.f32.xlu0 %v1056
    %v1058 = vpop.xlane.xlu0 %1057
    %v1059 = vsel %vm947, %v1023, 0.0
    %1060 = vadd.xlane.f32.xlu0 %v1059
    %v1061 = vpop.xlane.xlu0 %1060
    %v1062 = vsel %vm947, %v1024, 0.0
    %1063 = vadd.xlane.f32.xlu0 %v1062
    %v1064 = vpop.xlane.xlu0 %1063
    %v1065 = vsel %vm947, %v1025, 0.0
    %1066 = vadd.xlane.f32.xlu0 %v1065
    %v1067 = vpop.xlane.xlu0 %1066
    %v1068 = vsel %vm947, %v1026, 0.0
    %1069 = vadd.xlane.f32.xlu0 %v1068
    %v1070 = vpop.xlane.xlu0 %1069
    %v1071 = vsel %vm947, %v1027, 0.0
    %1072 = vadd.xlane.f32.xlu0 %v1071
    %v1073 = vpop.xlane.xlu0 %1072
    %v1074 = vsel %vm947, %v1028, 0.0
    %1075 = vadd.xlane.f32.xlu0 %v1074
    %v1076 = vpop.xlane.xlu0 %1075
    %v1077 = vmul.f32 %v1031, %v996
    %v1078 = vmul.f32 %v1034, %v996
    %v1079 = vmul.f32 %v1037, %v996
    %v1080 = vmul.f32 %v1040, %v996
    %v1081 = vmul.f32 %v1043, %v996
    %v1082 = vmul.f32 %v1046, %v996
    %v1083 = vmul.f32 %v1049, %v996
    %v1084 = vmul.f32 %v1052, %v996
    %v1085 = vmul.f32 %v1055, %v996
    %v1086 = vmul.f32 %v1058, %v996
    %v1087 = vmul.f32 %v1061, %v996
    %v1088 = vmul.f32 %v1064, %v996
    %v1089 = vmul.f32 %v1067, %v996
    %v1090 = vmul.f32 %v1070, %v996
    %v1091 = vmul.f32 %v1073, %v996
    %v1092 = vmul.f32 %v1076, %v996
    %v1093 = vmul.f32 %v997, %v997
    %v1094 = vmul.f32 %v998, %v998
    %v1095 = vmul.f32 %v999, %v999
    %v1096 = vmul.f32 %v1000, %v1000
    %v1097 = vmul.f32 %v1001, %v1001
    %v1098 = vmul.f32 %v1002, %v1002
    %v1099 = vmul.f32 %v1003, %v1003
    %v1100 = vmul.f32 %v1004, %v1004
    %v1101 = vmul.f32 %v1005, %v1005
    %v1102 = vmul.f32 %v1006, %v1006
    %v1103 = vmul.f32 %v1007, %v1007
    %v1104 = vmul.f32 %v1008, %v1008
    %v1105 = vmul.f32 %v1009, %v1009
    %v1106 = vmul.f32 %v1010, %v1010
    %v1107 = vmul.f32 %v1011, %v1011
    %v1108 = vmul.f32 %v1012, %v1012
    %v1109 = vsub.f32 %v1077, %v1093
    %v1110 = vsub.f32 %v1078, %v1094
    %v1111 = vsub.f32 %v1079, %v1095
    %v1112 = vsub.f32 %v1080, %v1096
    %v1113 = vsub.f32 %v1081, %v1097
    %v1114 = vsub.f32 %v1082, %v1098
    %v1115 = vsub.f32 %v1083, %v1099
    %v1116 = vsub.f32 %v1084, %v1100
    %v1117 = vsub.f32 %v1085, %v1101
    %v1118 = vsub.f32 %v1086, %v1102
    %v1119 = vsub.f32 %v1087, %v1103
    %v1120 = vsub.f32 %v1088, %v1104
    %v1121 = vsub.f32 %v1089, %v1105
    %v1122 = vsub.f32 %v1090, %v1106
    %v1123 = vsub.f32 %v1091, %v1107
    %v1124 = vsub.f32 %v1092, %v1108
    %v1125 = vsub.f32 %v707, %v997
    %v1126 = vsub.f32 %v708, %v998
    %v1127 = vsub.f32 %v739, %v999
    %v1128 = vsub.f32 %v740, %v1000
    %v1129 = vsub.f32 %v771, %v1001
    %v1130 = vsub.f32 %v772, %v1002
    %v1131 = vsub.f32 %v803, %v1003
    %v1132 = vsub.f32 %v804, %v1004
    %v1133 = vsub.f32 %v835, %v1005
    %v1134 = vsub.f32 %v836, %v1006
    %v1135 = vsub.f32 %v867, %v1007
    %v1136 = vsub.f32 %v868, %v1008
    %v1137 = vsub.f32 %v899, %v1009
    %v1138 = vsub.f32 %v900, %v1010
    %v1139 = vsub.f32 %v931, %v1011
    %v1140 = vsub.f32 %v932, %v1012
    %v1141 = vadd.f32 %v1109, 1e-05
    %v1142 = vadd.f32 %v1110, 1e-05
    %v1143 = vadd.f32 %v1111, 1e-05
    %v1144 = vadd.f32 %v1112, 1e-05
    %v1145 = vadd.f32 %v1113, 1e-05
    %v1146 = vadd.f32 %v1114, 1e-05
    %v1147 = vadd.f32 %v1115, 1e-05
    %v1148 = vadd.f32 %v1116, 1e-05
    %v1149 = vadd.f32 %v1117, 1e-05
    %v1150 = vadd.f32 %v1118, 1e-05
    %v1151 = vadd.f32 %v1119, 1e-05
    %v1152 = vadd.f32 %v1120, 1e-05
    %v1153 = vadd.f32 %v1121, 1e-05
    %v1154 = vadd.f32 %v1122, 1e-05
    %v1155 = vadd.f32 %v1123, 1e-05
    %v1156 = vadd.f32 %v1124, 1e-05
    %v1157 = vrsqrt.pop %v1141
    %v1158 = vrsqrt.pop %v1142
    %v1159 = vrsqrt.pop %v1143
    %v1160 = vrsqrt.pop %v1144
    %v1161 = vrsqrt.pop %v1145
    %v1162 = vrsqrt.pop %v1146
    %v1163 = vrsqrt.pop %v1147
    %v1164 = vrsqrt.pop %v1148
    %v1165 = vrsqrt.pop %v1149
    %v1166 = vrsqrt.pop %v1150
    %v1167 = vrsqrt.pop %v1151
    %v1168 = vrsqrt.pop %v1152
    %v1169 = vrsqrt.pop %v1153
    %v1170 = vrsqrt.pop %v1154
    %v1171 = vrsqrt.pop %v1155
    %v1172 = vrsqrt.pop %v1156
    %v1173 = vmul.f32 %v1125, %v1157
    %v1174 = vmul.f32 %v1126, %v1158
    %v1175 = vmul.f32 %v1127, %v1159
    %v1176 = vmul.f32 %v1128, %v1160
    %v1177 = vmul.f32 %v1129, %v1161
    %v1178 = vmul.f32 %v1130, %v1162
    %v1179 = vmul.f32 %v1131, %v1163
    %v1180 = vmul.f32 %v1132, %v1164
    %v1181 = vmul.f32 %v1133, %v1165
    %v1182 = vmul.f32 %v1134, %v1166
    %v1183 = vmul.f32 %v1135, %v1167
    %v1184 = vmul.f32 %v1136, %v1168
    %v1185 = vmul.f32 %v1137, %v1169
    %v1186 = vmul.f32 %v1138, %v1170
    %v1187 = vmul.f32 %v1139, %v1171
    %v1188 = vmul.f32 %v1140, %v1172
    %v1189 = vlaneseq
    %v1190 = vshrl.u32 %v1189, 7
    %v1191 = vsub.s32 0, %v1190
    %v1192 = vrot.slane %v54, %v1191
    %v1193 = vmul.f32 %v1173, %v1192
    %v1194 = vmul.f32 %v1174, %v1192
    %v1195 = vmul.f32 %v1175, %v1192
    %v1196 = vmul.f32 %v1176, %v1192
    %v1197 = vmul.f32 %v1177, %v1192
    %v1198 = vmul.f32 %v1178, %v1192
    %v1199 = vmul.f32 %v1179, %v1192
    %v1200 = vmul.f32 %v1180, %v1192
    %v1201 = vmul.f32 %v1181, %v1192
    %v1202 = vmul.f32 %v1182, %v1192
    %v1203 = vmul.f32 %v1183, %v1192
    %v1204 = vmul.f32 %v1184, %v1192
    %v1205 = vmul.f32 %v1185, %v1192
    %v1206 = vmul.f32 %v1186, %v1192
    %v1207 = vmul.f32 %v1187, %v1192
    %v1208 = vmul.f32 %v1188, %v1192
    %v1209 = vlaneseq
    %v1210 = vshrl.u32 %v1209, 7
    %v1211 = vsub.s32 1, %v1210
    %v1212 = vrot.slane %v54, %v1211
    %v1213 = vadd.f32 %v1193, %v1212
    %v1214 = vadd.f32 %v1194, %v1212
    %v1215 = vadd.f32 %v1195, %v1212
    %v1216 = vadd.f32 %v1196, %v1212
    %v1217 = vadd.f32 %v1197, %v1212
    %v1218 = vadd.f32 %v1198, %v1212
    %v1219 = vadd.f32 %v1199, %v1212
    %v1220 = vadd.f32 %v1200, %v1212
    %v1221 = vadd.f32 %v1201, %v1212
    %v1222 = vadd.f32 %v1202, %v1212
    %v1223 = vadd.f32 %v1203, %v1212
    %v1224 = vadd.f32 %v1204, %v1212
    %v1225 = vadd.f32 %v1205, %v1212
    %v1226 = vadd.f32 %v1206, %v1212
    %v1227 = vadd.f32 %v1207, %v1212
    %v1228 = vadd.f32 %v1208, %v1212
    %v1229 = vlaneseq
    %v1230 = vshrl.u32 %v1229, 7
    %v1231 = vsub.s32 2, %v1230
    %v1232 = vrot.slane %v54, %v1231
    %v1234 = vsel %vm947, %v1213, 0
    %v1237 = vsel %vm947, %v1214, 0
    %v1240 = vsel %vm947, %v1215, 0
    %v1243 = vsel %vm947, %v1216, 0
    %v1246 = vsel %vm947, %v1217, 0
    %v1249 = vsel %vm947, %v1218, 0
    %v1252 = vsel %vm947, %v1219, 0
    %v1255 = vsel %vm947, %v1220, 0
    %v1258 = vsel %vm947, %v1221, 0
    %v1261 = vsel %vm947, %v1222, 0
    %v1264 = vsel %vm947, %v1223, 0
    %v1267 = vsel %vm947, %v1224, 0
    %v1270 = vsel %vm947, %v1225, 0
    %v1273 = vsel %vm947, %v1226, 0
    %v1276 = vsel %vm947, %v1227, 0
    %v1279 = vsel %vm947, %v1228, 0
    %1281 = vmatprep.subr.mxu0 0.0
    %1282 = vmatpush1.msra.mxu0 0.0
    %1283 = vmatprep.subr.mxu0 0.0
    %1284 = vmatpush1.msra.mxu0 0.0
    %1285 = vmatprep.subr.mxu0 0.0
    %1286 = vmatpush1.msra.mxu0 0.0
    %1287 = vmatprep.subr.mxu0 0.0
    %1288 = vmatpush1.msra.mxu0 0.0
    %1289 = vmatprep.subr.mxu0 0.0
    %1290 = vmatpush1.msra.mxu0 0.0
    %1291 = vmatprep.subr.mxu0 0.0
    %1292 = vmatpush1.msra.mxu0 0.0
    %1293 = vmatprep.subr.mxu0 0.0
    %1294 = vmatpush1.msra.mxu0 0.0
    %1295 = vmatprep.subr.mxu0 0.0
    %1296 = vmatpush1.msra.mxu0 0.0
    %1297 = vmatprep.subr.mxu0 0.0
    %1298 = vmatpush1.msra.mxu0 0.0
    %1299 = vmatprep.subr.mxu0 0.0
    %1300 = vmatpush1.msra.mxu0 0.0
    %1301 = vmatprep.subr.mxu0 0.0
    %1302 = vmatpush1.msra.mxu0 0.0
    %1303 = vmatprep.subr.mxu0 0.0
    %1304 = vmatpush1.msra.mxu0 0.0
    %1305 = vmatprep.subr.mxu0 0.0
    %1306 = vmatpush1.msra.mxu0 %v41
    %1307 = vmatprep.subr.mxu0 0.0
    %1308 = vmatpush1.msra.mxu0 %v40
    %1309 = vmatprep.subr.mxu0 0.0
    %1310 = vmatpush1.msra.mxu0 %v39
    %1311 = vmatprep.subr.mxu0 0.0
    %1312 = vmatpush1.msra.mxu0 %v38
    %1313 = vmatprep.subr.mxu0 0.0
    %1314 = vmatpush2.msra.mxu0 0.0
    %1315 = vmatprep.subr.mxu0 0.0
    %1316 = vmatpush2.msra.mxu0 0.0
    %1317 = vmatprep.subr.mxu0 0.0
    %1318 = vmatpush2.msra.mxu0 0.0
    %1319 = vmatprep.subr.mxu0 0.0
    %1320 = vmatpush2.msra.mxu0 0.0
    %1321 = vmatprep.subr.mxu0 0.0
    %1322 = vmatpush2.msra.mxu0 0.0
    %1323 = vmatprep.subr.mxu0 0.0
    %1324 = vmatpush2.msra.mxu0 0.0
    %1325 = vmatprep.subr.mxu0 0.0
    %1326 = vmatpush2.msra.mxu0 0.0
    %1327 = vmatprep.subr.mxu0 0.0
    %1328 = vmatpush2.msra.mxu0 0.0
    %1329 = vmatprep.subr.mxu0 0.0
    %1330 = vmatpush2.msra.mxu0 0.0
    %1331 = vmatprep.subr.mxu0 0.0
    %1332 = vmatpush2.msra.mxu0 0.0
    %1333 = vmatprep.subr.mxu0 0.0
    %1334 = vmatpush2.msra.mxu0 0.0
    %1335 = vmatprep.subr.mxu0 0.0
    %1336 = vmatpush2.msra.mxu0 0.0
    %1337 = vmatprep.subr.mxu0 0.0
    %1338 = vmatpush2.msra.mxu0 0.0
    %1339 = vmatprep.subr.mxu0 0.0
    %1340 = vmatpush2.msra.mxu0 0.0
    %1341 = vmatprep.subr.mxu0 0.0
    %1342 = vmatpush2.msra.mxu0 0.0
    %1343 = vmatprep.subr.mxu0 0.0
    %1344 = vmatpush2.msra.mxu0 0.0
    %1345 = vmatprep.mubr.f32.mxu0 0.0
    %1346 = vmatmul.mubr.f32.gmra.mxu0 %v1234
    %v1347 = vpop.f32.mrf.mxu0
    %v1348 = vadd.f32 %v1232, %v1347
    %v1349 = vpop.f32.mrf.mxu0
    %1350 = vmatprep.mubr.f32.mxu0 0.0
    %1351 = vmatmul.mubr.f32.gmra.mxu0 %v1237
    %v1352 = vpop.f32.mrf.mxu0
    %v1353 = vadd.f32 %v1232, %v1352
    %v1354 = vpop.f32.mrf.mxu0
    %1355 = vmatprep.mubr.f32.mxu0 0.0
    %1356 = vmatmul.mubr.f32.gmra.mxu0 %v1240
    %v1357 = vpop.f32.mrf.mxu0
    %v1358 = vadd.f32 %v1232, %v1357
    %v1359 = vpop.f32.mrf.mxu0
    %1360 = vmatprep.mubr.f32.mxu0 0.0
    %1361 = vmatmul.mubr.f32.gmra.mxu0 %v1243
    %v1362 = vpop.f32.mrf.mxu0
    %v1363 = vadd.f32 %v1232, %v1362
    %v1364 = vpop.f32.mrf.mxu0
    %1365 = vmatprep.mubr.f32.mxu0 0.0
    %1366 = vmatmul.mubr.f32.gmra.mxu0 %v1246
    %v1367 = vpop.f32.mrf.mxu0
    %v1368 = vadd.f32 %v1232, %v1367
    %v1369 = vpop.f32.mrf.mxu0
    %1370 = vmatprep.mubr.f32.mxu0 0.0
    %1371 = vmatmul.mubr.f32.gmra.mxu0 %v1249
    %v1372 = vpop.f32.mrf.mxu0
    %v1373 = vadd.f32 %v1232, %v1372
    %v1374 = vpop.f32.mrf.mxu0
    %1375 = vmatprep.mubr.f32.mxu0 0.0
    %1376 = vmatmul.mubr.f32.gmra.mxu0 %v1252
    %v1377 = vpop.f32.mrf.mxu0
    %v1378 = vadd.f32 %v1232, %v1377
    %v1379 = vpop.f32.mrf.mxu0
    %1380 = vmatprep.mubr.f32.mxu0 0.0
    %1381 = vmatmul.mubr.f32.gmra.mxu0 %v1255
    %v1382 = vpop.f32.mrf.mxu0
    %v1383 = vadd.f32 %v1232, %v1382
    %v1384 = vpop.f32.mrf.mxu0
    %1385 = vmatprep.mubr.f32.mxu0 0.0
    %1386 = vmatmul.mubr.f32.gmra.mxu0 %v1258
    %v1387 = vpop.f32.mrf.mxu0
    %v1388 = vadd.f32 %v1232, %v1387
    %v1389 = vpop.f32.mrf.mxu0
    %1390 = vmatprep.mubr.f32.mxu0 0.0
    %1391 = vmatmul.mubr.f32.gmra.mxu0 %v1261
    %v1392 = vpop.f32.mrf.mxu0
    %v1393 = vadd.f32 %v1232, %v1392
    %v1394 = vpop.f32.mrf.mxu0
    %1395 = vmatprep.mubr.f32.mxu0 0.0
    %1396 = vmatmul.mubr.f32.gmra.mxu0 %v1264
    %v1397 = vpop.f32.mrf.mxu0
    %v1398 = vadd.f32 %v1232, %v1397
    %v1399 = vpop.f32.mrf.mxu0
    %1400 = vmatprep.mubr.f32.mxu0 0.0
    %1401 = vmatmul.mubr.f32.gmra.mxu0 %v1267
    %v1402 = vpop.f32.mrf.mxu0
    %v1403 = vadd.f32 %v1232, %v1402
    %v1404 = vpop.f32.mrf.mxu0
    %1405 = vmatprep.mubr.f32.mxu0 0.0
    %1406 = vmatmul.mubr.f32.gmra.mxu0 %v1270
    %v1407 = vpop.f32.mrf.mxu0
    %v1408 = vadd.f32 %v1232, %v1407
    %v1409 = vpop.f32.mrf.mxu0
    %1410 = vmatprep.mubr.f32.mxu0 0.0
    %1411 = vmatmul.mubr.f32.gmra.mxu0 %v1273
    %v1412 = vpop.f32.mrf.mxu0
    %v1413 = vadd.f32 %v1232, %v1412
    %v1414 = vpop.f32.mrf.mxu0
    %1415 = vmatprep.mubr.f32.mxu0 0.0
    %1416 = vmatmul.mubr.f32.gmra.mxu0 %v1276
    %v1417 = vpop.f32.mrf.mxu0
    %v1418 = vadd.f32 %v1232, %v1417
    %v1419 = vpop.f32.mrf.mxu0
    %1420 = vmatprep.mubr.f32.mxu0 0.0
    %1421 = vmatmul.mubr.f32.gmra.mxu0 %v1279
    %v1422 = vpop.f32.mrf.mxu0
    %v1423 = vadd.f32 %v1232, %v1422
    %v1424 = vpop.f32.mrf.mxu0
    %1425 = vdwg.mxu0
    %1428 = vrot.lane.b32.xlu0 %v1348, 96
    %v1429 = vpop.permute.xlu0 %1428
    %1430 = vrot.lane.b32.xlu0 %v1353, 96
    %v1431 = vpop.permute.xlu0 %1430
    %vm1432 = vcmask 64512
    %v1433 = vsel %vm1432, %v1348, 0
    %v1435 = vsel %vm1432, %v1353, 0
    %v1437 = vsel %vm1432, %v1429, 0
    %v1439 = vsel %vm1432, %v1431, 0
    %1441 = vmatprep.subr.mxu0 0.0
    %1442 = vmatpush1.xpose.msra.mxu0 0.0
    %1443 = vmatprep.subr.mxu0 0.0
    %1444 = vmatpush1.xpose.msra.mxu0 0.0
    %1445 = vmatprep.subr.mxu0 0.0
    %1446 = vmatpush1.xpose.msra.mxu0 0.0
    %1447 = vmatprep.subr.mxu0 0.0
    %1448 = vmatpush1.xpose.msra.mxu0 0.0
    %1449 = vmatprep.subr.mxu0 0.0
    %1450 = vmatpush1.xpose.msra.mxu0 0.0
    %1451 = vmatprep.subr.mxu0 0.0
    %1452 = vmatpush1.xpose.msra.mxu0 0.0
    %1453 = vmatprep.subr.mxu0 0.0
    %1454 = vmatpush1.xpose.msra.mxu0 0.0
    %1455 = vmatprep.subr.mxu0 0.0
    %1456 = vmatpush1.xpose.msra.mxu0 0.0
    %1457 = vmatprep.subr.mxu0 0.0
    %1458 = vmatpush1.xpose.msra.mxu0 0.0
    %1459 = vmatprep.subr.mxu0 0.0
    %1460 = vmatpush1.xpose.msra.mxu0 0.0
    %1461 = vmatprep.subr.mxu0 0.0
    %1462 = vmatpush1.xpose.msra.mxu0 0.0
    %1463 = vmatprep.subr.mxu0 0.0
    %1464 = vmatpush1.xpose.msra.mxu0 0.0
    %1465 = vmatprep.subr.mxu0 0.0
    %1466 = vmatpush1.xpose.msra.mxu0 0.0
    %1467 = vmatprep.subr.mxu0 0.0
    %1468 = vmatpush1.xpose.msra.mxu0 0.0
    %1469 = vmatprep.subr.mxu0 0.0
    %1470 = vmatpush1.xpose.msra.mxu0 %v1439
    %1471 = vmatprep.subr.mxu0 0.0
    %1472 = vmatpush1.xpose.msra.mxu0 %v1437
    %1473 = vmatprep.subr.mxu0 0.0
    %1474 = vmatpush2.xpose.msra.mxu0 0.0
    %1475 = vmatprep.subr.mxu0 0.0
    %1476 = vmatpush2.xpose.msra.mxu0 0.0
    %1477 = vmatprep.subr.mxu0 0.0
    %1478 = vmatpush2.xpose.msra.mxu0 0.0
    %1479 = vmatprep.subr.mxu0 0.0
    %1480 = vmatpush2.xpose.msra.mxu0 0.0
    %1481 = vmatprep.subr.mxu0 0.0
    %1482 = vmatpush2.xpose.msra.mxu0 0.0
    %1483 = vmatprep.subr.mxu0 0.0
    %1484 = vmatpush2.xpose.msra.mxu0 0.0
    %1485 = vmatprep.subr.mxu0 0.0
    %1486 = vmatpush2.xpose.msra.mxu0 0.0
    %1487 = vmatprep.subr.mxu0 0.0
    %1488 = vmatpush2.xpose.msra.mxu0 0.0
    %1489 = vmatprep.subr.mxu0 0.0
    %1490 = vmatpush2.xpose.msra.mxu0 0.0
    %1491 = vmatprep.subr.mxu0 0.0
    %1492 = vmatpush2.xpose.msra.mxu0 0.0
    %1493 = vmatprep.subr.mxu0 0.0
    %1494 = vmatpush2.xpose.msra.mxu0 0.0
    %1495 = vmatprep.subr.mxu0 0.0
    %1496 = vmatpush2.xpose.msra.mxu0 0.0
    %1497 = vmatprep.subr.mxu0 0.0
    %1498 = vmatpush2.xpose.msra.mxu0 0.0
    %1499 = vmatprep.subr.mxu0 0.0
    %1500 = vmatpush2.xpose.msra.mxu0 0.0
    %1501 = vmatprep.subr.mxu0 0.0
    %1502 = vmatpush2.xpose.msra.mxu0 0.0
    %1503 = vmatprep.subr.mxu0 0.0
    %1504 = vmatpush2.xpose.msra.mxu0 0.0
    %1505 = vmatprep.mubr.f32.mxu0 0.0
    %1506 = vmatmul.mubr.f32.gmra.mxu0 %v1433
    %v1507 = vpop.f32.mrf.mxu0
    %v1508 = vadd.f32 0.0, %v1507
    %v1509 = vpop.f32.mrf.mxu0
    %1510 = vmatprep.mubr.f32.mxu0 0.0
    %1511 = vmatmul.mubr.f32.gmra.mxu0 %v1435
    %v1512 = vpop.f32.mrf.mxu0
    %v1513 = vadd.f32 0.0, %v1512
    %v1514 = vpop.f32.mrf.mxu0
    %1515 = vdwg.mxu0
    %1518 = vrot.lane.b32.xlu0 %v1358, 96
    %v1519 = vpop.permute.xlu0 %1518
    %1520 = vrot.lane.b32.xlu0 %v1363, 96
    %v1521 = vpop.permute.xlu0 %1520
    %v1522 = vsel %vm1432, %v1358, 0
    %v1524 = vsel %vm1432, %v1363, 0
    %v1526 = vsel %vm1432, %v1519, 0
    %v1528 = vsel %vm1432, %v1521, 0
    %1530 = vmatprep.subr.mxu0 0.0
    %1531 = vmatpush1.xpose.msra.mxu0 0.0
    %1532 = vmatprep.subr.mxu0 0.0
    %1533 = vmatpush1.xpose.msra.mxu0 0.0
    %1534 = vmatprep.subr.mxu0 0.0
    %1535 = vmatpush1.xpose.msra.mxu0 0.0
    %1536 = vmatprep.subr.mxu0 0.0
    %1537 = vmatpush1.xpose.msra.mxu0 0.0
    %1538 = vmatprep.subr.mxu0 0.0
    %1539 = vmatpush1.xpose.msra.mxu0 0.0
    %1540 = vmatprep.subr.mxu0 0.0
    %1541 = vmatpush1.xpose.msra.mxu0 0.0
    %1542 = vmatprep.subr.mxu0 0.0
    %1543 = vmatpush1.xpose.msra.mxu0 0.0
    %1544 = vmatprep.subr.mxu0 0.0
    %1545 = vmatpush1.xpose.msra.mxu0 0.0
    %1546 = vmatprep.subr.mxu0 0.0
    %1547 = vmatpush1.xpose.msra.mxu0 0.0
    %1548 = vmatprep.subr.mxu0 0.0
    %1549 = vmatpush1.xpose.msra.mxu0 0.0
    %1550 = vmatprep.subr.mxu0 0.0
    %1551 = vmatpush1.xpose.msra.mxu0 0.0
    %1552 = vmatprep.subr.mxu0 0.0
    %1553 = vmatpush1.xpose.msra.mxu0 0.0
    %1554 = vmatprep.subr.mxu0 0.0
    %1555 = vmatpush1.xpose.msra.mxu0 0.0
    %1556 = vmatprep.subr.mxu0 0.0
    %1557 = vmatpush1.xpose.msra.mxu0 0.0
    %1558 = vmatprep.subr.mxu0 0.0
    %1559 = vmatpush1.xpose.msra.mxu0 %v1528
    %1560 = vmatprep.subr.mxu0 0.0
    %1561 = vmatpush1.xpose.msra.mxu0 %v1526
    %1562 = vmatprep.subr.mxu0 0.0
    %1563 = vmatpush2.xpose.msra.mxu0 0.0
    %1564 = vmatprep.subr.mxu0 0.0
    %1565 = vmatpush2.xpose.msra.mxu0 0.0
    %1566 = vmatprep.subr.mxu0 0.0
    %1567 = vmatpush2.xpose.msra.mxu0 0.0
    %1568 = vmatprep.subr.mxu0 0.0
    %1569 = vmatpush2.xpose.msra.mxu0 0.0
    %1570 = vmatprep.subr.mxu0 0.0
    %1571 = vmatpush2.xpose.msra.mxu0 0.0
    %1572 = vmatprep.subr.mxu0 0.0
    %1573 = vmatpush2.xpose.msra.mxu0 0.0
    %1574 = vmatprep.subr.mxu0 0.0
    %1575 = vmatpush2.xpose.msra.mxu0 0.0
    %1576 = vmatprep.subr.mxu0 0.0
    %1577 = vmatpush2.xpose.msra.mxu0 0.0
    %1578 = vmatprep.subr.mxu0 0.0
    %1579 = vmatpush2.xpose.msra.mxu0 0.0
    %1580 = vmatprep.subr.mxu0 0.0
    %1581 = vmatpush2.xpose.msra.mxu0 0.0
    %1582 = vmatprep.subr.mxu0 0.0
    %1583 = vmatpush2.xpose.msra.mxu0 0.0
    %1584 = vmatprep.subr.mxu0 0.0
    %1585 = vmatpush2.xpose.msra.mxu0 0.0
    %1586 = vmatprep.subr.mxu0 0.0
    %1587 = vmatpush2.xpose.msra.mxu0 0.0
    %1588 = vmatprep.subr.mxu0 0.0
    %1589 = vmatpush2.xpose.msra.mxu0 0.0
    %1590 = vmatprep.subr.mxu0 0.0
    %1591 = vmatpush2.xpose.msra.mxu0 0.0
    %1592 = vmatprep.subr.mxu0 0.0
    %1593 = vmatpush2.xpose.msra.mxu0 0.0
    %1594 = vmatprep.mubr.f32.mxu0 0.0
    %1595 = vmatmul.mubr.f32.gmra.mxu0 %v1522
    %v1596 = vpop.f32.mrf.mxu0
    %v1597 = vadd.f32 0.0, %v1596
    %v1598 = vpop.f32.mrf.mxu0
    %1599 = vmatprep.mubr.f32.mxu0 0.0
    %1600 = vmatmul.mubr.f32.gmra.mxu0 %v1524
    %v1601 = vpop.f32.mrf.mxu0
    %v1602 = vadd.f32 0.0, %v1601
    %v1603 = vpop.f32.mrf.mxu0
    %1604 = vdwg.mxu0
    %1607 = vrot.lane.b32.xlu0 %v1368, 96
    %v1608 = vpop.permute.xlu0 %1607
    %1609 = vrot.lane.b32.xlu0 %v1373, 96
    %v1610 = vpop.permute.xlu0 %1609
    %v1611 = vsel %vm1432, %v1368, 0
    %v1613 = vsel %vm1432, %v1373, 0
    %v1615 = vsel %vm1432, %v1608, 0
    %v1617 = vsel %vm1432, %v1610, 0
    %1619 = vmatprep.subr.mxu0 0.0
    %1620 = vmatpush1.xpose.msra.mxu0 0.0
    %1621 = vmatprep.subr.mxu0 0.0
    %1622 = vmatpush1.xpose.msra.mxu0 0.0
    %1623 = vmatprep.subr.mxu0 0.0
    %1624 = vmatpush1.xpose.msra.mxu0 0.0
    %1625 = vmatprep.subr.mxu0 0.0
    %1626 = vmatpush1.xpose.msra.mxu0 0.0
    %1627 = vmatprep.subr.mxu0 0.0
    %1628 = vmatpush1.xpose.msra.mxu0 0.0
    %1629 = vmatprep.subr.mxu0 0.0
    %1630 = vmatpush1.xpose.msra.mxu0 0.0
    %1631 = vmatprep.subr.mxu0 0.0
    %1632 = vmatpush1.xpose.msra.mxu0 0.0
    %1633 = vmatprep.subr.mxu0 0.0
    %1634 = vmatpush1.xpose.msra.mxu0 0.0
    %1635 = vmatprep.subr.mxu0 0.0
    %1636 = vmatpush1.xpose.msra.mxu0 0.0
    %1637 = vmatprep.subr.mxu0 0.0
    %1638 = vmatpush1.xpose.msra.mxu0 0.0
    %1639 = vmatprep.subr.mxu0 0.0
    %1640 = vmatpush1.xpose.msra.mxu0 0.0
    %1641 = vmatprep.subr.mxu0 0.0
    %1642 = vmatpush1.xpose.msra.mxu0 0.0
    %1643 = vmatprep.subr.mxu0 0.0
    %1644 = vmatpush1.xpose.msra.mxu0 0.0
    %1645 = vmatprep.subr.mxu0 0.0
    %1646 = vmatpush1.xpose.msra.mxu0 0.0
    %1647 = vmatprep.subr.mxu0 0.0
    %1648 = vmatpush1.xpose.msra.mxu0 %v1617
    %1649 = vmatprep.subr.mxu0 0.0
    %1650 = vmatpush1.xpose.msra.mxu0 %v1615
    %1651 = vmatprep.subr.mxu0 0.0
    %1652 = vmatpush2.xpose.msra.mxu0 0.0
    %1653 = vmatprep.subr.mxu0 0.0
    %1654 = vmatpush2.xpose.msra.mxu0 0.0
    %1655 = vmatprep.subr.mxu0 0.0
    %1656 = vmatpush2.xpose.msra.mxu0 0.0
    %1657 = vmatprep.subr.mxu0 0.0
    %1658 = vmatpush2.xpose.msra.mxu0 0.0
    %1659 = vmatprep.subr.mxu0 0.0
    %1660 = vmatpush2.xpose.msra.mxu0 0.0
    %1661 = vmatprep.subr.mxu0 0.0
    %1662 = vmatpush2.xpose.msra.mxu0 0.0
    %1663 = vmatprep.subr.mxu0 0.0
    %1664 = vmatpush2.xpose.msra.mxu0 0.0
    %1665 = vmatprep.subr.mxu0 0.0
    %1666 = vmatpush2.xpose.msra.mxu0 0.0
    %1667 = vmatprep.subr.mxu0 0.0
    %1668 = vmatpush2.xpose.msra.mxu0 0.0
    %1669 = vmatprep.subr.mxu0 0.0
    %1670 = vmatpush2.xpose.msra.mxu0 0.0
    %1671 = vmatprep.subr.mxu0 0.0
    %1672 = vmatpush2.xpose.msra.mxu0 0.0
    %1673 = vmatprep.subr.mxu0 0.0
    %1674 = vmatpush2.xpose.msra.mxu0 0.0
    %1675 = vmatprep.subr.mxu0 0.0
    %1676 = vmatpush2.xpose.msra.mxu0 0.0
    %1677 = vmatprep.subr.mxu0 0.0
    %1678 = vmatpush2.xpose.msra.mxu0 0.0
    %1679 = vmatprep.subr.mxu0 0.0
    %1680 = vmatpush2.xpose.msra.mxu0 0.0
    %1681 = vmatprep.subr.mxu0 0.0
    %1682 = vmatpush2.xpose.msra.mxu0 0.0
    %1683 = vmatprep.mubr.f32.mxu0 0.0
    %1684 = vmatmul.mubr.f32.gmra.mxu0 %v1611
    %v1685 = vpop.f32.mrf.mxu0
    %v1686 = vadd.f32 0.0, %v1685
    %v1687 = vpop.f32.mrf.mxu0
    %1688 = vmatprep.mubr.f32.mxu0 0.0
    %1689 = vmatmul.mubr.f32.gmra.mxu0 %v1613
    %v1690 = vpop.f32.mrf.mxu0
    %v1691 = vadd.f32 0.0, %v1690
    %v1692 = vpop.f32.mrf.mxu0
    %1693 = vdwg.mxu0
    %1696 = vrot.lane.b32.xlu0 %v1378, 96
    %v1697 = vpop.permute.xlu0 %1696
    %1698 = vrot.lane.b32.xlu0 %v1383, 96
    %v1699 = vpop.permute.xlu0 %1698
    %v1700 = vsel %vm1432, %v1378, 0
    %v1702 = vsel %vm1432, %v1383, 0
    %v1704 = vsel %vm1432, %v1697, 0
    %v1706 = vsel %vm1432, %v1699, 0
    %1708 = vmatprep.subr.mxu0 0.0
    %1709 = vmatpush1.xpose.msra.mxu0 0.0
    %1710 = vmatprep.subr.mxu0 0.0
    %1711 = vmatpush1.xpose.msra.mxu0 0.0
    %1712 = vmatprep.subr.mxu0 0.0
    %1713 = vmatpush1.xpose.msra.mxu0 0.0
    %1714 = vmatprep.subr.mxu0 0.0
    %1715 = vmatpush1.xpose.msra.mxu0 0.0
    %1716 = vmatprep.subr.mxu0 0.0
    %1717 = vmatpush1.xpose.msra.mxu0 0.0
    %1718 = vmatprep.subr.mxu0 0.0
    %1719 = vmatpush1.xpose.msra.mxu0 0.0
    %1720 = vmatprep.subr.mxu0 0.0
    %1721 = vmatpush1.xpose.msra.mxu0 0.0
    %1722 = vmatprep.subr.mxu0 0.0
    %1723 = vmatpush1.xpose.msra.mxu0 0.0
    %1724 = vmatprep.subr.mxu0 0.0
    %1725 = vmatpush1.xpose.msra.mxu0 0.0
    %1726 = vmatprep.subr.mxu0 0.0
    %1727 = vmatpush1.xpose.msra.mxu0 0.0
    %1728 = vmatprep.subr.mxu0 0.0
    %1729 = vmatpush1.xpose.msra.mxu0 0.0
    %1730 = vmatprep.subr.mxu0 0.0
    %1731 = vmatpush1.xpose.msra.mxu0 0.0
    %1732 = vmatprep.subr.mxu0 0.0
    %1733 = vmatpush1.xpose.msra.mxu0 0.0
    %1734 = vmatprep.subr.mxu0 0.0
    %1735 = vmatpush1.xpose.msra.mxu0 0.0
    %1736 = vmatprep.subr.mxu0 0.0
    %1737 = vmatpush1.xpose.msra.mxu0 %v1706
    %1738 = vmatprep.subr.mxu0 0.0
    %1739 = vmatpush1.xpose.msra.mxu0 %v1704
    %1740 = vmatprep.subr.mxu0 0.0
    %1741 = vmatpush2.xpose.msra.mxu0 0.0
    %1742 = vmatprep.subr.mxu0 0.0
    %1743 = vmatpush2.xpose.msra.mxu0 0.0
    %1744 = vmatprep.subr.mxu0 0.0
    %1745 = vmatpush2.xpose.msra.mxu0 0.0
    %1746 = vmatprep.subr.mxu0 0.0
    %1747 = vmatpush2.xpose.msra.mxu0 0.0
    %1748 = vmatprep.subr.mxu0 0.0
    %1749 = vmatpush2.xpose.msra.mxu0 0.0
    %1750 = vmatprep.subr.mxu0 0.0
    %1751 = vmatpush2.xpose.msra.mxu0 0.0
    %1752 = vmatprep.subr.mxu0 0.0
    %1753 = vmatpush2.xpose.msra.mxu0 0.0
    %1754 = vmatprep.subr.mxu0 0.0
    %1755 = vmatpush2.xpose.msra.mxu0 0.0
    %1756 = vmatprep.subr.mxu0 0.0
    %1757 = vmatpush2.xpose.msra.mxu0 0.0
    %1758 = vmatprep.subr.mxu0 0.0
    %1759 = vmatpush2.xpose.msra.mxu0 0.0
    %1760 = vmatprep.subr.mxu0 0.0
    %1761 = vmatpush2.xpose.msra.mxu0 0.0
    %1762 = vmatprep.subr.mxu0 0.0
    %1763 = vmatpush2.xpose.msra.mxu0 0.0
    %1764 = vmatprep.subr.mxu0 0.0
    %1765 = vmatpush2.xpose.msra.mxu0 0.0
    %1766 = vmatprep.subr.mxu0 0.0
    %1767 = vmatpush2.xpose.msra.mxu0 0.0
    %1768 = vmatprep.subr.mxu0 0.0
    %1769 = vmatpush2.xpose.msra.mxu0 0.0
    %1770 = vmatprep.subr.mxu0 0.0
    %1771 = vmatpush2.xpose.msra.mxu0 0.0
    %1772 = vmatprep.mubr.f32.mxu0 0.0
    %1773 = vmatmul.mubr.f32.gmra.mxu0 %v1700
    %v1774 = vpop.f32.mrf.mxu0
    %v1775 = vadd.f32 0.0, %v1774
    %v1776 = vpop.f32.mrf.mxu0
    %1777 = vmatprep.mubr.f32.mxu0 0.0
    %1778 = vmatmul.mubr.f32.gmra.mxu0 %v1702
    %v1779 = vpop.f32.mrf.mxu0
    %v1780 = vadd.f32 0.0, %v1779
    %v1781 = vpop.f32.mrf.mxu0
    %1782 = vdwg.mxu0
    %1785 = vrot.lane.b32.xlu0 %v1388, 96
    %v1786 = vpop.permute.xlu0 %1785
    %1787 = vrot.lane.b32.xlu0 %v1393, 96
    %v1788 = vpop.permute.xlu0 %1787
    %v1789 = vsel %vm1432, %v1388, 0
    %v1791 = vsel %vm1432, %v1393, 0
    %v1793 = vsel %vm1432, %v1786, 0
    %v1795 = vsel %vm1432, %v1788, 0
    %1797 = vmatprep.subr.mxu0 0.0
    %1798 = vmatpush1.xpose.msra.mxu0 0.0
    %1799 = vmatprep.subr.mxu0 0.0
    %1800 = vmatpush1.xpose.msra.mxu0 0.0
    %1801 = vmatprep.subr.mxu0 0.0
    %1802 = vmatpush1.xpose.msra.mxu0 0.0
    %1803 = vmatprep.subr.mxu0 0.0
    %1804 = vmatpush1.xpose.msra.mxu0 0.0
    %1805 = vmatprep.subr.mxu0 0.0
    %1806 = vmatpush1.xpose.msra.mxu0 0.0
    %1807 = vmatprep.subr.mxu0 0.0
    %1808 = vmatpush1.xpose.msra.mxu0 0.0
    %1809 = vmatprep.subr.mxu0 0.0
    %1810 = vmatpush1.xpose.msra.mxu0 0.0
    %1811 = vmatprep.subr.mxu0 0.0
    %1812 = vmatpush1.xpose.msra.mxu0 0.0
    %1813 = vmatprep.subr.mxu0 0.0
    %1814 = vmatpush1.xpose.msra.mxu0 0.0
    %1815 = vmatprep.subr.mxu0 0.0
    %1816 = vmatpush1.xpose.msra.mxu0 0.0
    %1817 = vmatprep.subr.mxu0 0.0
    %1818 = vmatpush1.xpose.msra.mxu0 0.0
    %1819 = vmatprep.subr.mxu0 0.0
    %1820 = vmatpush1.xpose.msra.mxu0 0.0
    %1821 = vmatprep.subr.mxu0 0.0
    %1822 = vmatpush1.xpose.msra.mxu0 0.0
    %1823 = vmatprep.subr.mxu0 0.0
    %1824 = vmatpush1.xpose.msra.mxu0 0.0
    %1825 = vmatprep.subr.mxu0 0.0
    %1826 = vmatpush1.xpose.msra.mxu0 %v1795
    %1827 = vmatprep.subr.mxu0 0.0
    %1828 = vmatpush1.xpose.msra.mxu0 %v1793
    %1829 = vmatprep.subr.mxu0 0.0
    %1830 = vmatpush2.xpose.msra.mxu0 0.0
    %1831 = vmatprep.subr.mxu0 0.0
    %1832 = vmatpush2.xpose.msra.mxu0 0.0
    %1833 = vmatprep.subr.mxu0 0.0
    %1834 = vmatpush2.xpose.msra.mxu0 0.0
    %1835 = vmatprep.subr.mxu0 0.0
    %1836 = vmatpush2.xpose.msra.mxu0 0.0
    %1837 = vmatprep.subr.mxu0 0.0
    %1838 = vmatpush2.xpose.msra.mxu0 0.0
    %1839 = vmatprep.subr.mxu0 0.0
    %1840 = vmatpush2.xpose.msra.mxu0 0.0
    %1841 = vmatprep.subr.mxu0 0.0
    %1842 = vmatpush2.xpose.msra.mxu0 0.0
    %1843 = vmatprep.subr.mxu0 0.0
    %1844 = vmatpush2.xpose.msra.mxu0 0.0
    %1845 = vmatprep.subr.mxu0 0.0
    %1846 = vmatpush2.xpose.msra.mxu0 0.0
    %1847 = vmatprep.subr.mxu0 0.0
    %1848 = vmatpush2.xpose.msra.mxu0 0.0
    %1849 = vmatprep.subr.mxu0 0.0
    %1850 = vmatpush2.xpose.msra.mxu0 0.0
    %1851 = vmatprep.subr.mxu0 0.0
    %1852 = vmatpush2.xpose.msra.mxu0 0.0
    %1853 = vmatprep.subr.mxu0 0.0
    %1854 = vmatpush2.xpose.msra.mxu0 0.0
    %1855 = vmatprep.subr.mxu0 0.0
    %1856 = vmatpush2.xpose.msra.mxu0 0.0
    %1857 = vmatprep.subr.mxu0 0.0
    %1858 = vmatpush2.xpose.msra.mxu0 0.0
    %1859 = vmatprep.subr.mxu0 0.0
    %1860 = vmatpush2.xpose.msra.mxu0 0.0
    %1861 = vmatprep.mubr.f32.mxu0 0.0
    %1862 = vmatmul.mubr.f32.gmra.mxu0 %v1789
    %v1863 = vpop.f32.mrf.mxu0
    %v1864 = vadd.f32 0.0, %v1863
    %v1865 = vpop.f32.mrf.mxu0
    %1866 = vmatprep.mubr.f32.mxu0 0.0
    %1867 = vmatmul.mubr.f32.gmra.mxu0 %v1791
    %v1868 = vpop.f32.mrf.mxu0
    %v1869 = vadd.f32 0.0, %v1868
    %v1870 = vpop.f32.mrf.mxu0
    %1871 = vdwg.mxu0
    %1874 = vrot.lane.b32.xlu0 %v1398, 96
    %v1875 = vpop.permute.xlu0 %1874
    %1876 = vrot.lane.b32.xlu0 %v1403, 96
    %v1877 = vpop.permute.xlu0 %1876
    %v1878 = vsel %vm1432, %v1398, 0
    %v1880 = vsel %vm1432, %v1403, 0
    %v1882 = vsel %vm1432, %v1875, 0
    %v1884 = vsel %vm1432, %v1877, 0
    %1886 = vmatprep.subr.mxu0 0.0
    %1887 = vmatpush1.xpose.msra.mxu0 0.0
    %1888 = vmatprep.subr.mxu0 0.0
    %1889 = vmatpush1.xpose.msra.mxu0 0.0
    %1890 = vmatprep.subr.mxu0 0.0
    %1891 = vmatpush1.xpose.msra.mxu0 0.0
    %1892 = vmatprep.subr.mxu0 0.0
    %1893 = vmatpush1.xpose.msra.mxu0 0.0
    %1894 = vmatprep.subr.mxu0 0.0
    %1895 = vmatpush1.xpose.msra.mxu0 0.0
    %1896 = vmatprep.subr.mxu0 0.0
    %1897 = vmatpush1.xpose.msra.mxu0 0.0
    %1898 = vmatprep.subr.mxu0 0.0
    %1899 = vmatpush1.xpose.msra.mxu0 0.0
    %1900 = vmatprep.subr.mxu0 0.0
    %1901 = vmatpush1.xpose.msra.mxu0 0.0
    %1902 = vmatprep.subr.mxu0 0.0
    %1903 = vmatpush1.xpose.msra.mxu0 0.0
    %1904 = vmatprep.subr.mxu0 0.0
    %1905 = vmatpush1.xpose.msra.mxu0 0.0
    %1906 = vmatprep.subr.mxu0 0.0
    %1907 = vmatpush1.xpose.msra.mxu0 0.0
    %1908 = vmatprep.subr.mxu0 0.0
    %1909 = vmatpush1.xpose.msra.mxu0 0.0
    %1910 = vmatprep.subr.mxu0 0.0
    %1911 = vmatpush1.xpose.msra.mxu0 0.0
    %1912 = vmatprep.subr.mxu0 0.0
    %1913 = vmatpush1.xpose.msra.mxu0 0.0
    %1914 = vmatprep.subr.mxu0 0.0
    %1915 = vmatpush1.xpose.msra.mxu0 %v1884
    %1916 = vmatprep.subr.mxu0 0.0
    %1917 = vmatpush1.xpose.msra.mxu0 %v1882
    %1918 = vmatprep.subr.mxu0 0.0
    %1919 = vmatpush2.xpose.msra.mxu0 0.0
    %1920 = vmatprep.subr.mxu0 0.0
    %1921 = vmatpush2.xpose.msra.mxu0 0.0
    %1922 = vmatprep.subr.mxu0 0.0
    %1923 = vmatpush2.xpose.msra.mxu0 0.0
    %1924 = vmatprep.subr.mxu0 0.0
    %1925 = vmatpush2.xpose.msra.mxu0 0.0
    %1926 = vmatprep.subr.mxu0 0.0
    %1927 = vmatpush2.xpose.msra.mxu0 0.0
    %1928 = vmatprep.subr.mxu0 0.0
    %1929 = vmatpush2.xpose.msra.mxu0 0.0
    %1930 = vmatprep.subr.mxu0 0.0
    %1931 = vmatpush2.xpose.msra.mxu0 0.0
    %1932 = vmatprep.subr.mxu0 0.0
    %1933 = vmatpush2.xpose.msra.mxu0 0.0
    %1934 = vmatprep.subr.mxu0 0.0
    %1935 = vmatpush2.xpose.msra.mxu0 0.0
    %1936 = vmatprep.subr.mxu0 0.0
    %1937 = vmatpush2.xpose.msra.mxu0 0.0
    %1938 = vmatprep.subr.mxu0 0.0
    %1939 = vmatpush2.xpose.msra.mxu0 0.0
    %1940 = vmatprep.subr.mxu0 0.0
    %1941 = vmatpush2.xpose.msra.mxu0 0.0
    %1942 = vmatprep.subr.mxu0 0.0
    %1943 = vmatpush2.xpose.msra.mxu0 0.0
    %1944 = vmatprep.subr.mxu0 0.0
    %1945 = vmatpush2.xpose.msra.mxu0 0.0
    %1946 = vmatprep.subr.mxu0 0.0
    %1947 = vmatpush2.xpose.msra.mxu0 0.0
    %1948 = vmatprep.subr.mxu0 0.0
    %1949 = vmatpush2.xpose.msra.mxu0 0.0
    %1950 = vmatprep.mubr.f32.mxu0 0.0
    %1951 = vmatmul.mubr.f32.gmra.mxu0 %v1878
    %v1952 = vpop.f32.mrf.mxu0
    %v1953 = vadd.f32 0.0, %v1952
    %v1954 = vpop.f32.mrf.mxu0
    %1955 = vmatprep.mubr.f32.mxu0 0.0
    %1956 = vmatmul.mubr.f32.gmra.mxu0 %v1880
    %v1957 = vpop.f32.mrf.mxu0
    %v1958 = vadd.f32 0.0, %v1957
    %v1959 = vpop.f32.mrf.mxu0
    %1960 = vdwg.mxu0
    %1963 = vrot.lane.b32.xlu0 %v1408, 96
    %v1964 = vpop.permute.xlu0 %1963
    %1965 = vrot.lane.b32.xlu0 %v1413, 96
    %v1966 = vpop.permute.xlu0 %1965
    %v1967 = vsel %vm1432, %v1408, 0
    %v1969 = vsel %vm1432, %v1413, 0
    %v1971 = vsel %vm1432, %v1964, 0
    %v1973 = vsel %vm1432, %v1966, 0
    %1975 = vmatprep.subr.mxu0 0.0
    %1976 = vmatpush1.xpose.msra.mxu0 0.0
    %1977 = vmatprep.subr.mxu0 0.0
    %1978 = vmatpush1.xpose.msra.mxu0 0.0
    %1979 = vmatprep.subr.mxu0 0.0
    %1980 = vmatpush1.xpose.msra.mxu0 0.0
    %1981 = vmatprep.subr.mxu0 0.0
    %1982 = vmatpush1.xpose.msra.mxu0 0.0
    %1983 = vmatprep.subr.mxu0 0.0
    %1984 = vmatpush1.xpose.msra.mxu0 0.0
    %1985 = vmatprep.subr.mxu0 0.0
    %1986 = vmatpush1.xpose.msra.mxu0 0.0
    %1987 = vmatprep.subr.mxu0 0.0
    %1988 = vmatpush1.xpose.msra.mxu0 0.0
    %1989 = vmatprep.subr.mxu0 0.0
    %1990 = vmatpush1.xpose.msra.mxu0 0.0
    %1991 = vmatprep.subr.mxu0 0.0
    %1992 = vmatpush1.xpose.msra.mxu0 0.0
    %1993 = vmatprep.subr.mxu0 0.0
    %1994 = vmatpush1.xpose.msra.mxu0 0.0
    %1995 = vmatprep.subr.mxu0 0.0
    %1996 = vmatpush1.xpose.msra.mxu0 0.0
    %1997 = vmatprep.subr.mxu0 0.0
    %1998 = vmatpush1.xpose.msra.mxu0 0.0
    %1999 = vmatprep.subr.mxu0 0.0
    %2000 = vmatpush1.xpose.msra.mxu0 0.0
    %2001 = vmatprep.subr.mxu0 0.0
    %2002 = vmatpush1.xpose.msra.mxu0 0.0
    %2003 = vmatprep.subr.mxu0 0.0
    %2004 = vmatpush1.xpose.msra.mxu0 %v1973
    %2005 = vmatprep.subr.mxu0 0.0
    %2006 = vmatpush1.xpose.msra.mxu0 %v1971
    %2007 = vmatprep.subr.mxu0 0.0
    %2008 = vmatpush2.xpose.msra.mxu0 0.0
    %2009 = vmatprep.subr.mxu0 0.0
    %2010 = vmatpush2.xpose.msra.mxu0 0.0
    %2011 = vmatprep.subr.mxu0 0.0
    %2012 = vmatpush2.xpose.msra.mxu0 0.0
    %2013 = vmatprep.subr.mxu0 0.0
    %2014 = vmatpush2.xpose.msra.mxu0 0.0
    %2015 = vmatprep.subr.mxu0 0.0
    %2016 = vmatpush2.xpose.msra.mxu0 0.0
    %2017 = vmatprep.subr.mxu0 0.0
    %2018 = vmatpush2.xpose.msra.mxu0 0.0
    %2019 = vmatprep.subr.mxu0 0.0
    %2020 = vmatpush2.xpose.msra.mxu0 0.0
    %2021 = vmatprep.subr.mxu0 0.0
    %2022 = vmatpush2.xpose.msra.mxu0 0.0
    %2023 = vmatprep.subr.mxu0 0.0
    %2024 = vmatpush2.xpose.msra.mxu0 0.0
    %2025 = vmatprep.subr.mxu0 0.0
    %2026 = vmatpush2.xpose.msra.mxu0 0.0
    %2027 = vmatprep.subr.mxu0 0.0
    %2028 = vmatpush2.xpose.msra.mxu0 0.0
    %2029 = vmatprep.subr.mxu0 0.0
    %2030 = vmatpush2.xpose.msra.mxu0 0.0
    %2031 = vmatprep.subr.mxu0 0.0
    %2032 = vmatpush2.xpose.msra.mxu0 0.0
    %2033 = vmatprep.subr.mxu0 0.0
    %2034 = vmatpush2.xpose.msra.mxu0 0.0
    %2035 = vmatprep.subr.mxu0 0.0
    %2036 = vmatpush2.xpose.msra.mxu0 0.0
    %2037 = vmatprep.subr.mxu0 0.0
    %2038 = vmatpush2.xpose.msra.mxu0 0.0
    %2039 = vmatprep.mubr.f32.mxu0 0.0
    %2040 = vmatmul.mubr.f32.gmra.mxu0 %v1967
    %v2041 = vpop.f32.mrf.mxu0
    %v2042 = vadd.f32 0.0, %v2041
    %v2043 = vpop.f32.mrf.mxu0
    %2044 = vmatprep.mubr.f32.mxu0 0.0
    %2045 = vmatmul.mubr.f32.gmra.mxu0 %v1969
    %v2046 = vpop.f32.mrf.mxu0
    %v2047 = vadd.f32 0.0, %v2046
    %v2048 = vpop.f32.mrf.mxu0
    %2049 = vdwg.mxu0
    %2052 = vrot.lane.b32.xlu0 %v1418, 96
    %v2053 = vpop.permute.xlu0 %2052
    %2054 = vrot.lane.b32.xlu0 %v1423, 96
    %v2055 = vpop.permute.xlu0 %2054
    %v2056 = vsel %vm1432, %v1418, 0
    %v2058 = vsel %vm1432, %v1423, 0
    %v2060 = vsel %vm1432, %v2053, 0
    %v2062 = vsel %vm1432, %v2055, 0
    %2064 = vmatprep.subr.mxu0 0.0
    %2065 = vmatpush1.xpose.msra.mxu0 0.0
    %2066 = vmatprep.subr.mxu0 0.0
    %2067 = vmatpush1.xpose.msra.mxu0 0.0
    %2068 = vmatprep.subr.mxu0 0.0
    %2069 = vmatpush1.xpose.msra.mxu0 0.0
    %2070 = vmatprep.subr.mxu0 0.0
    %2071 = vmatpush1.xpose.msra.mxu0 0.0
    %2072 = vmatprep.subr.mxu0 0.0
    %2073 = vmatpush1.xpose.msra.mxu0 0.0
    %2074 = vmatprep.subr.mxu0 0.0
    %2075 = vmatpush1.xpose.msra.mxu0 0.0
    %2076 = vmatprep.subr.mxu0 0.0
    %2077 = vmatpush1.xpose.msra.mxu0 0.0
    %2078 = vmatprep.subr.mxu0 0.0
    %2079 = vmatpush1.xpose.msra.mxu0 0.0
    %2080 = vmatprep.subr.mxu0 0.0
    %2081 = vmatpush1.xpose.msra.mxu0 0.0
    %2082 = vmatprep.subr.mxu0 0.0
    %2083 = vmatpush1.xpose.msra.mxu0 0.0
    %2084 = vmatprep.subr.mxu0 0.0
    %2085 = vmatpush1.xpose.msra.mxu0 0.0
    %2086 = vmatprep.subr.mxu0 0.0
    %2087 = vmatpush1.xpose.msra.mxu0 0.0
    %2088 = vmatprep.subr.mxu0 0.0
    %2089 = vmatpush1.xpose.msra.mxu0 0.0
    %2090 = vmatprep.subr.mxu0 0.0
    %2091 = vmatpush1.xpose.msra.mxu0 0.0
    %2092 = vmatprep.subr.mxu0 0.0
    %2093 = vmatpush1.xpose.msra.mxu0 %v2062
    %2094 = vmatprep.subr.mxu0 0.0
    %2095 = vmatpush1.xpose.msra.mxu0 %v2060
    %2096 = vmatprep.subr.mxu0 0.0
    %2097 = vmatpush2.xpose.msra.mxu0 0.0
    %2098 = vmatprep.subr.mxu0 0.0
    %2099 = vmatpush2.xpose.msra.mxu0 0.0
    %2100 = vmatprep.subr.mxu0 0.0
    %2101 = vmatpush2.xpose.msra.mxu0 0.0
    %2102 = vmatprep.subr.mxu0 0.0
    %2103 = vmatpush2.xpose.msra.mxu0 0.0
    %2104 = vmatprep.subr.mxu0 0.0
    %2105 = vmatpush2.xpose.msra.mxu0 0.0
    %2106 = vmatprep.subr.mxu0 0.0
    %2107 = vmatpush2.xpose.msra.mxu0 0.0
    %2108 = vmatprep.subr.mxu0 0.0
    %2109 = vmatpush2.xpose.msra.mxu0 0.0
    %2110 = vmatprep.subr.mxu0 0.0
    %2111 = vmatpush2.xpose.msra.mxu0 0.0
    %2112 = vmatprep.subr.mxu0 0.0
    %2113 = vmatpush2.xpose.msra.mxu0 0.0
    %2114 = vmatprep.subr.mxu0 0.0
    %2115 = vmatpush2.xpose.msra.mxu0 0.0
    %2116 = vmatprep.subr.mxu0 0.0
    %2117 = vmatpush2.xpose.msra.mxu0 0.0
    %2118 = vmatprep.subr.mxu0 0.0
    %2119 = vmatpush2.xpose.msra.mxu0 0.0
    %2120 = vmatprep.subr.mxu0 0.0
    %2121 = vmatpush2.xpose.msra.mxu0 0.0
    %2122 = vmatprep.subr.mxu0 0.0
    %2123 = vmatpush2.xpose.msra.mxu0 0.0
    %2124 = vmatprep.subr.mxu0 0.0
    %2125 = vmatpush2.xpose.msra.mxu0 0.0
    %2126 = vmatprep.subr.mxu0 0.0
    %2127 = vmatpush2.xpose.msra.mxu0 0.0
    %2128 = vmatprep.mubr.f32.mxu0 0.0
    %2129 = vmatmul.mubr.f32.gmra.mxu0 %v2056
    %v2130 = vpop.f32.mrf.mxu0
    %v2131 = vadd.f32 0.0, %v2130
    %v2132 = vpop.f32.mrf.mxu0
    %2133 = vmatprep.mubr.f32.mxu0 0.0
    %2134 = vmatmul.mubr.f32.gmra.mxu0 %v2058
    %v2135 = vpop.f32.mrf.mxu0
    %v2136 = vadd.f32 0.0, %v2135
    %v2137 = vpop.f32.mrf.mxu0
    %2138 = vdwg.mxu0
    %vm2139 = vcmask 130048
    %v2140 = vsel %vm2139, %v1508, -inf
    %2141 = vmax.xlane.f32.xlu0 %v2140
    %v2142 = vpop.xlane.xlu0 %2141
    %v2143 = vsel %vm2139, %v1513, -inf
    %2144 = vmax.xlane.f32.xlu0 %v2143
    %v2145 = vpop.xlane.xlu0 %2144
    %v2146 = vsel %vm2139, %v1597, -inf
    %2147 = vmax.xlane.f32.xlu0 %v2146
    %v2148 = vpop.xlane.xlu0 %2147
    %v2149 = vsel %vm2139, %v1602, -inf
    %2150 = vmax.xlane.f32.xlu0 %v2149
    %v2151 = vpop.xlane.xlu0 %2150
    %v2152 = vsel %vm2139, %v1686, -inf
    %2153 = vmax.xlane.f32.xlu0 %v2152
    %v2154 = vpop.xlane.xlu0 %2153
    %v2155 = vsel %vm2139, %v1691, -inf
    %2156 = vmax.xlane.f32.xlu0 %v2155
    %v2157 = vpop.xlane.xlu0 %2156
    %v2158 = vsel %vm2139, %v1775, -inf
    %2159 = vmax.xlane.f32.xlu0 %v2158
    %v2160 = vpop.xlane.xlu0 %2159
    %v2161 = vsel %vm2139, %v1780, -inf
    %2162 = vmax.xlane.f32.xlu0 %v2161
    %v2163 = vpop.xlane.xlu0 %2162
    %v2164 = vsel %vm2139, %v1864, -inf
    %2165 = vmax.xlane.f32.xlu0 %v2164
    %v2166 = vpop.xlane.xlu0 %2165
    %v2167 = vsel %vm2139, %v1869, -inf
    %2168 = vmax.xlane.f32.xlu0 %v2167
    %v2169 = vpop.xlane.xlu0 %2168
    %v2170 = vsel %vm2139, %v1953, -inf
    %2171 = vmax.xlane.f32.xlu0 %v2170
    %v2172 = vpop.xlane.xlu0 %2171
    %v2173 = vsel %vm2139, %v1958, -inf
    %2174 = vmax.xlane.f32.xlu0 %v2173
    %v2175 = vpop.xlane.xlu0 %2174
    %v2176 = vsel %vm2139, %v2042, -inf
    %2177 = vmax.xlane.f32.xlu0 %v2176
    %v2178 = vpop.xlane.xlu0 %2177
    %v2179 = vsel %vm2139, %v2047, -inf
    %2180 = vmax.xlane.f32.xlu0 %v2179
    %v2181 = vpop.xlane.xlu0 %2180
    %v2182 = vsel %vm2139, %v2131, -inf
    %2183 = vmax.xlane.f32.xlu0 %v2182
    %v2184 = vpop.xlane.xlu0 %2183
    %v2185 = vsel %vm2139, %v2136, -inf
    %2186 = vmax.xlane.f32.xlu0 %v2185
    %v2187 = vpop.xlane.xlu0 %2186
    %v2188 = vsub.f32 %v1508, %v2142
    %v2189 = vsub.f32 %v1513, %v2145
    %v2190 = vsub.f32 %v1597, %v2148
    %v2191 = vsub.f32 %v1602, %v2151
    %v2192 = vsub.f32 %v1686, %v2154
    %v2193 = vsub.f32 %v1691, %v2157
    %v2194 = vsub.f32 %v1775, %v2160
    %v2195 = vsub.f32 %v1780, %v2163
    %v2196 = vsub.f32 %v1864, %v2166
    %v2197 = vsub.f32 %v1869, %v2169
    %v2198 = vsub.f32 %v1953, %v2172
    %v2199 = vsub.f32 %v1958, %v2175
    %v2200 = vsub.f32 %v2042, %v2178
    %v2201 = vsub.f32 %v2047, %v2181
    %v2202 = vsub.f32 %v2131, %v2184
    %v2203 = vsub.f32 %v2136, %v2187
    %v2204 = vmul.f32 %v2188, 1.442695
    %v2205 = vpow.pop %v2204
    %v2206 = vmul.f32 %v2189, 1.442695
    %v2207 = vpow.pop %v2206
    %v2208 = vmul.f32 %v2190, 1.442695
    %v2209 = vpow.pop %v2208
    %v2210 = vmul.f32 %v2191, 1.442695
    %v2211 = vpow.pop %v2210
    %v2212 = vmul.f32 %v2192, 1.442695
    %v2213 = vpow.pop %v2212
    %v2214 = vmul.f32 %v2193, 1.442695
    %v2215 = vpow.pop %v2214
    %v2216 = vmul.f32 %v2194, 1.442695
    %v2217 = vpow.pop %v2216
    %v2218 = vmul.f32 %v2195, 1.442695
    %v2219 = vpow.pop %v2218
    %v2220 = vmul.f32 %v2196, 1.442695
    %v2221 = vpow.pop %v2220
    %v2222 = vmul.f32 %v2197, 1.442695
    %v2223 = vpow.pop %v2222
    %v2224 = vmul.f32 %v2198, 1.442695
    %v2225 = vpow.pop %v2224
    %v2226 = vmul.f32 %v2199, 1.442695
    %v2227 = vpow.pop %v2226
    %v2228 = vmul.f32 %v2200, 1.442695
    %v2229 = vpow.pop %v2228
    %v2230 = vmul.f32 %v2201, 1.442695
    %v2231 = vpow.pop %v2230
    %v2232 = vmul.f32 %v2202, 1.442695
    %v2233 = vpow.pop %v2232
    %v2234 = vmul.f32 %v2203, 1.442695
    %v2235 = vpow.pop %v2234
    %v2236 = vsel %vm2139, %v2205, 0.0
    %2237 = vadd.xlane.f32.xlu0 %v2236
    %v2238 = vpop.xlane.xlu0 %2237
    %v2239 = vsel %vm2139, %v2207, 0.0
    %2240 = vadd.xlane.f32.xlu0 %v2239
    %v2241 = vpop.xlane.xlu0 %2240
    %v2242 = vsel %vm2139, %v2209, 0.0
    %2243 = vadd.xlane.f32.xlu0 %v2242
    %v2244 = vpop.xlane.xlu0 %2243
    %v2245 = vsel %vm2139, %v2211, 0.0
    %2246 = vadd.xlane.f32.xlu0 %v2245
    %v2247 = vpop.xlane.xlu0 %2246
    %v2248 = vsel %vm2139, %v2213, 0.0
    %2249 = vadd.xlane.f32.xlu0 %v2248
    %v2250 = vpop.xlane.xlu0 %2249
    %v2251 = vsel %vm2139, %v2215, 0.0
    %2252 = vadd.xlane.f32.xlu0 %v2251
    %v2253 = vpop.xlane.xlu0 %2252
    %v2254 = vsel %vm2139, %v2217, 0.0
    %2255 = vadd.xlane.f32.xlu0 %v2254
    %v2256 = vpop.xlane.xlu0 %2255
    %v2257 = vsel %vm2139, %v2219, 0.0
    %2258 = vadd.xlane.f32.xlu0 %v2257
    %v2259 = vpop.xlane.xlu0 %2258
    %v2260 = vsel %vm2139, %v2221, 0.0
    %2261 = vadd.xlane.f32.xlu0 %v2260
    %v2262 = vpop.xlane.xlu0 %2261
    %v2263 = vsel %vm2139, %v2223, 0.0
    %2264 = vadd.xlane.f32.xlu0 %v2263
    %v2265 = vpop.xlane.xlu0 %2264
    %v2266 = vsel %vm2139, %v2225, 0.0
    %2267 = vadd.xlane.f32.xlu0 %v2266
    %v2268 = vpop.xlane.xlu0 %2267
    %v2269 = vsel %vm2139, %v2227, 0.0
    %2270 = vadd.xlane.f32.xlu0 %v2269
    %v2271 = vpop.xlane.xlu0 %2270
    %v2272 = vsel %vm2139, %v2229, 0.0
    %2273 = vadd.xlane.f32.xlu0 %v2272
    %v2274 = vpop.xlane.xlu0 %2273
    %v2275 = vsel %vm2139, %v2231, 0.0
    %2276 = vadd.xlane.f32.xlu0 %v2275
    %v2277 = vpop.xlane.xlu0 %2276
    %v2278 = vsel %vm2139, %v2233, 0.0
    %2279 = vadd.xlane.f32.xlu0 %v2278
    %v2280 = vpop.xlane.xlu0 %2279
    %v2281 = vsel %vm2139, %v2235, 0.0
    %2282 = vadd.xlane.f32.xlu0 %v2281
    %v2283 = vpop.xlane.xlu0 %2282
    %v2284 = vrcp.pop %v2238
    %v2285 = vrcp.pop %v2241
    %v2286 = vrcp.pop %v2244
    %v2287 = vrcp.pop %v2247
    %v2288 = vrcp.pop %v2250
    %v2289 = vrcp.pop %v2253
    %v2290 = vrcp.pop %v2256
    %v2291 = vrcp.pop %v2259
    %v2292 = vrcp.pop %v2262
    %v2293 = vrcp.pop %v2265
    %v2294 = vrcp.pop %v2268
    %v2295 = vrcp.pop %v2271
    %v2296 = vrcp.pop %v2274
    %v2297 = vrcp.pop %v2277
    %v2298 = vrcp.pop %v2280
    %v2299 = vrcp.pop %v2283
    %v2300 = vmul.f32 %v2205, %v2284
    %v2301 = vmul.f32 %v2207, %v2285
    %v2302 = vmul.f32 %v2209, %v2286
    %v2303 = vmul.f32 %v2211, %v2287
    %v2304 = vmul.f32 %v2213, %v2288
    %v2305 = vmul.f32 %v2215, %v2289
    %v2306 = vmul.f32 %v2217, %v2290
    %v2307 = vmul.f32 %v2219, %v2291
    %v2308 = vmul.f32 %v2221, %v2292
    %v2309 = vmul.f32 %v2223, %v2293
    %v2310 = vmul.f32 %v2225, %v2294
    %v2311 = vmul.f32 %v2227, %v2295
    %v2312 = vmul.f32 %v2229, %v2296
    %v2313 = vmul.f32 %v2231, %v2297
    %v2314 = vmul.f32 %v2233, %v2298
    %v2315 = vmul.f32 %v2235, %v2299
    %2316 = vrot.lane.b32.xlu0 %v1348, 64
    %v2317 = vpop.permute.xlu0 %2316
    %2318 = vrot.lane.b32.xlu0 %v1353, 64
    %v2319 = vpop.permute.xlu0 %2318
    %v2323 = vsel %vm2139, %v2300, 0
    %v2326 = vsel %vm2139, %v2301, 0
    %2328 = vmatprep.subr.mxu0 0.0
    %2329 = vmatpush1.msra.mxu0 0.0
    %2330 = vmatprep.subr.mxu0 0.0
    %2331 = vmatpush1.msra.mxu0 0.0
    %2332 = vmatprep.subr.mxu0 0.0
    %2333 = vmatpush1.msra.mxu0 0.0
    %2334 = vmatprep.subr.mxu0 0.0
    %2335 = vmatpush1.msra.mxu0 0.0
    %2336 = vmatprep.subr.mxu0 0.0
    %2337 = vmatpush1.msra.mxu0 0.0
    %2338 = vmatprep.subr.mxu0 0.0
    %2339 = vmatpush1.msra.mxu0 0.0
    %2340 = vmatprep.subr.mxu0 0.0
    %2341 = vmatpush1.msra.mxu0 0.0
    %2342 = vmatprep.subr.mxu0 0.0
    %2343 = vmatpush1.msra.mxu0 0.0
    %2344 = vmatprep.subr.mxu0 0.0
    %2345 = vmatpush1.msra.mxu0 0.0
    %2346 = vmatprep.subr.mxu0 0.0
    %2347 = vmatpush1.msra.mxu0 0.0
    %2348 = vmatprep.subr.mxu0 0.0
    %2349 = vmatpush1.msra.mxu0 0.0
    %2350 = vmatprep.subr.mxu0 0.0
    %2351 = vmatpush1.msra.mxu0 0.0
    %2352 = vmatprep.subr.mxu0 0.0
    %2353 = vmatpush1.msra.mxu0 0.0
    %2354 = vmatprep.subr.mxu0 0.0
    %2355 = vmatpush1.msra.mxu0 0.0
    %2356 = vmatprep.subr.mxu0 0.0
    %2357 = vmatpush1.msra.mxu0 %v2319
    %2358 = vmatprep.subr.mxu0 0.0
    %2359 = vmatpush1.msra.mxu0 %v2317
    %2360 = vmatprep.subr.mxu0 0.0
    %2361 = vmatpush2.msra.mxu0 0.0
    %2362 = vmatprep.subr.mxu0 0.0
    %2363 = vmatpush2.msra.mxu0 0.0
    %2364 = vmatprep.subr.mxu0 0.0
    %2365 = vmatpush2.msra.mxu0 0.0
    %2366 = vmatprep.subr.mxu0 0.0
    %2367 = vmatpush2.msra.mxu0 0.0
    %2368 = vmatprep.subr.mxu0 0.0
    %2369 = vmatpush2.msra.mxu0 0.0
    %2370 = vmatprep.subr.mxu0 0.0
    %2371 = vmatpush2.msra.mxu0 0.0
    %2372 = vmatprep.subr.mxu0 0.0
    %2373 = vmatpush2.msra.mxu0 0.0
    %2374 = vmatprep.subr.mxu0 0.0
    %2375 = vmatpush2.msra.mxu0 0.0
    %2376 = vmatprep.subr.mxu0 0.0
    %2377 = vmatpush2.msra.mxu0 0.0
    %2378 = vmatprep.subr.mxu0 0.0
    %2379 = vmatpush2.msra.mxu0 0.0
    %2380 = vmatprep.subr.mxu0 0.0
    %2381 = vmatpush2.msra.mxu0 0.0
    %2382 = vmatprep.subr.mxu0 0.0
    %2383 = vmatpush2.msra.mxu0 0.0
    %2384 = vmatprep.subr.mxu0 0.0
    %2385 = vmatpush2.msra.mxu0 0.0
    %2386 = vmatprep.subr.mxu0 0.0
    %2387 = vmatpush2.msra.mxu0 0.0
    %2388 = vmatprep.subr.mxu0 0.0
    %2389 = vmatpush2.msra.mxu0 0.0
    %2390 = vmatprep.subr.mxu0 0.0
    %2391 = vmatpush2.msra.mxu0 0.0
    %2392 = vmatprep.mubr.f32.mxu0 0.0
    %2393 = vmatmul.mubr.f32.gmra.mxu0 %v2323
    %v2394 = vpop.f32.mrf.mxu0
    %v2395 = vadd.f32 0.0, %v2394
    %v2396 = vpop.f32.mrf.mxu0
    %2397 = vmatprep.mubr.f32.mxu0 0.0
    %2398 = vmatmul.mubr.f32.gmra.mxu0 %v2326
    %v2399 = vpop.f32.mrf.mxu0
    %v2400 = vadd.f32 0.0, %v2399
    %v2401 = vpop.f32.mrf.mxu0
    %2402 = vdwg.mxu0
    %2403 = vrot.lane.b32.xlu0 %v1358, 64
    %v2404 = vpop.permute.xlu0 %2403
    %2405 = vrot.lane.b32.xlu0 %v1363, 64
    %v2406 = vpop.permute.xlu0 %2405
    %v2410 = vsel %vm2139, %v2302, 0
    %v2413 = vsel %vm2139, %v2303, 0
    %2415 = vmatprep.subr.mxu0 0.0
    %2416 = vmatpush1.msra.mxu0 0.0
    %2417 = vmatprep.subr.mxu0 0.0
    %2418 = vmatpush1.msra.mxu0 0.0
    %2419 = vmatprep.subr.mxu0 0.0
    %2420 = vmatpush1.msra.mxu0 0.0
    %2421 = vmatprep.subr.mxu0 0.0
    %2422 = vmatpush1.msra.mxu0 0.0
    %2423 = vmatprep.subr.mxu0 0.0
    %2424 = vmatpush1.msra.mxu0 0.0
    %2425 = vmatprep.subr.mxu0 0.0
    %2426 = vmatpush1.msra.mxu0 0.0
    %2427 = vmatprep.subr.mxu0 0.0
    %2428 = vmatpush1.msra.mxu0 0.0
    %2429 = vmatprep.subr.mxu0 0.0
    %2430 = vmatpush1.msra.mxu0 0.0
    %2431 = vmatprep.subr.mxu0 0.0
    %2432 = vmatpush1.msra.mxu0 0.0
    %2433 = vmatprep.subr.mxu0 0.0
    %2434 = vmatpush1.msra.mxu0 0.0
    %2435 = vmatprep.subr.mxu0 0.0
    %2436 = vmatpush1.msra.mxu0 0.0
    %2437 = vmatprep.subr.mxu0 0.0
    %2438 = vmatpush1.msra.mxu0 0.0
    %2439 = vmatprep.subr.mxu0 0.0
    %2440 = vmatpush1.msra.mxu0 0.0
    %2441 = vmatprep.subr.mxu0 0.0
    %2442 = vmatpush1.msra.mxu0 0.0
    %2443 = vmatprep.subr.mxu0 0.0
    %2444 = vmatpush1.msra.mxu0 %v2406
    %2445 = vmatprep.subr.mxu0 0.0
    %2446 = vmatpush1.msra.mxu0 %v2404
    %2447 = vmatprep.subr.mxu0 0.0
    %2448 = vmatpush2.msra.mxu0 0.0
    %2449 = vmatprep.subr.mxu0 0.0
    %2450 = vmatpush2.msra.mxu0 0.0
    %2451 = vmatprep.subr.mxu0 0.0
    %2452 = vmatpush2.msra.mxu0 0.0
    %2453 = vmatprep.subr.mxu0 0.0
    %2454 = vmatpush2.msra.mxu0 0.0
    %2455 = vmatprep.subr.mxu0 0.0
    %2456 = vmatpush2.msra.mxu0 0.0
    %2457 = vmatprep.subr.mxu0 0.0
    %2458 = vmatpush2.msra.mxu0 0.0
    %2459 = vmatprep.subr.mxu0 0.0
    %2460 = vmatpush2.msra.mxu0 0.0
    %2461 = vmatprep.subr.mxu0 0.0
    %2462 = vmatpush2.msra.mxu0 0.0
    %2463 = vmatprep.subr.mxu0 0.0
    %2464 = vmatpush2.msra.mxu0 0.0
    %2465 = vmatprep.subr.mxu0 0.0
    %2466 = vmatpush2.msra.mxu0 0.0
    %2467 = vmatprep.subr.mxu0 0.0
    %2468 = vmatpush2.msra.mxu0 0.0
    %2469 = vmatprep.subr.mxu0 0.0
    %2470 = vmatpush2.msra.mxu0 0.0
    %2471 = vmatprep.subr.mxu0 0.0
    %2472 = vmatpush2.msra.mxu0 0.0
    %2473 = vmatprep.subr.mxu0 0.0
    %2474 = vmatpush2.msra.mxu0 0.0
    %2475 = vmatprep.subr.mxu0 0.0
    %2476 = vmatpush2.msra.mxu0 0.0
    %2477 = vmatprep.subr.mxu0 0.0
    %2478 = vmatpush2.msra.mxu0 0.0
    %2479 = vmatprep.mubr.f32.mxu0 0.0
    %2480 = vmatmul.mubr.f32.gmra.mxu0 %v2410
    %v2481 = vpop.f32.mrf.mxu0
    %v2482 = vadd.f32 0.0, %v2481
    %v2483 = vpop.f32.mrf.mxu0
    %2484 = vmatprep.mubr.f32.mxu0 0.0
    %2485 = vmatmul.mubr.f32.gmra.mxu0 %v2413
    %v2486 = vpop.f32.mrf.mxu0
    %v2487 = vadd.f32 0.0, %v2486
    %v2488 = vpop.f32.mrf.mxu0
    %2489 = vdwg.mxu0
    %2490 = vrot.lane.b32.xlu0 %v1368, 64
    %v2491 = vpop.permute.xlu0 %2490
    %2492 = vrot.lane.b32.xlu0 %v1373, 64
    %v2493 = vpop.permute.xlu0 %2492
    %v2497 = vsel %vm2139, %v2304, 0
    %v2500 = vsel %vm2139, %v2305, 0
    %2502 = vmatprep.subr.mxu0 0.0
    %2503 = vmatpush1.msra.mxu0 0.0
    %2504 = vmatprep.subr.mxu0 0.0
    %2505 = vmatpush1.msra.mxu0 0.0
    %2506 = vmatprep.subr.mxu0 0.0
    %2507 = vmatpush1.msra.mxu0 0.0
    %2508 = vmatprep.subr.mxu0 0.0
    %2509 = vmatpush1.msra.mxu0 0.0
    %2510 = vmatprep.subr.mxu0 0.0
    %2511 = vmatpush1.msra.mxu0 0.0
    %2512 = vmatprep.subr.mxu0 0.0
    %2513 = vmatpush1.msra.mxu0 0.0
    %2514 = vmatprep.subr.mxu0 0.0
    %2515 = vmatpush1.msra.mxu0 0.0
    %2516 = vmatprep.subr.mxu0 0.0
    %2517 = vmatpush1.msra.mxu0 0.0
    %2518 = vmatprep.subr.mxu0 0.0
    %2519 = vmatpush1.msra.mxu0 0.0
    %2520 = vmatprep.subr.mxu0 0.0
    %2521 = vmatpush1.msra.mxu0 0.0
    %2522 = vmatprep.subr.mxu0 0.0
    %2523 = vmatpush1.msra.mxu0 0.0
    %2524 = vmatprep.subr.mxu0 0.0
    %2525 = vmatpush1.msra.mxu0 0.0
    %2526 = vmatprep.subr.mxu0 0.0
    %2527 = vmatpush1.msra.mxu0 0.0
    %2528 = vmatprep.subr.mxu0 0.0
    %2529 = vmatpush1.msra.mxu0 0.0
    %2530 = vmatprep.subr.mxu0 0.0
    %2531 = vmatpush1.msra.mxu0 %v2493
    %2532 = vmatprep.subr.mxu0 0.0
    %2533 = vmatpush1.msra.mxu0 %v2491
    %2534 = vmatprep.subr.mxu0 0.0
    %2535 = vmatpush2.msra.mxu0 0.0
    %2536 = vmatprep.subr.mxu0 0.0
    %2537 = vmatpush2.msra.mxu0 0.0
    %2538 = vmatprep.subr.mxu0 0.0
    %2539 = vmatpush2.msra.mxu0 0.0
    %2540 = vmatprep.subr.mxu0 0.0
    %2541 = vmatpush2.msra.mxu0 0.0
    %2542 = vmatprep.subr.mxu0 0.0
    %2543 = vmatpush2.msra.mxu0 0.0
    %2544 = vmatprep.subr.mxu0 0.0
    %2545 = vmatpush2.msra.mxu0 0.0
    %2546 = vmatprep.subr.mxu0 0.0
    %2547 = vmatpush2.msra.mxu0 0.0
    %2548 = vmatprep.subr.mxu0 0.0
    %2549 = vmatpush2.msra.mxu0 0.0
    %2550 = vmatprep.subr.mxu0 0.0
    %2551 = vmatpush2.msra.mxu0 0.0
    %2552 = vmatprep.subr.mxu0 0.0
    %2553 = vmatpush2.msra.mxu0 0.0
    %2554 = vmatprep.subr.mxu0 0.0
    %2555 = vmatpush2.msra.mxu0 0.0
    %2556 = vmatprep.subr.mxu0 0.0
    %2557 = vmatpush2.msra.mxu0 0.0
    %2558 = vmatprep.subr.mxu0 0.0
    %2559 = vmatpush2.msra.mxu0 0.0
    %2560 = vmatprep.subr.mxu0 0.0
    %2561 = vmatpush2.msra.mxu0 0.0
    %2562 = vmatprep.subr.mxu0 0.0
    %2563 = vmatpush2.msra.mxu0 0.0
    %2564 = vmatprep.subr.mxu0 0.0
    %2565 = vmatpush2.msra.mxu0 0.0
    %2566 = vmatprep.mubr.f32.mxu0 0.0
    %2567 = vmatmul.mubr.f32.gmra.mxu0 %v2497
    %v2568 = vpop.f32.mrf.mxu0
    %v2569 = vadd.f32 0.0, %v2568
    %v2570 = vpop.f32.mrf.mxu0
    %2571 = vmatprep.mubr.f32.mxu0 0.0
    %2572 = vmatmul.mubr.f32.gmra.mxu0 %v2500
    %v2573 = vpop.f32.mrf.mxu0
    %v2574 = vadd.f32 0.0, %v2573
    %v2575 = vpop.f32.mrf.mxu0
    %2576 = vdwg.mxu0
    %2577 = vrot.lane.b32.xlu0 %v1378, 64
    %v2578 = vpop.permute.xlu0 %2577
    %2579 = vrot.lane.b32.xlu0 %v1383, 64
    %v2580 = vpop.permute.xlu0 %2579
    %v2584 = vsel %vm2139, %v2306, 0
    %v2587 = vsel %vm2139, %v2307, 0
    %2589 = vmatprep.subr.mxu0 0.0
    %2590 = vmatpush1.msra.mxu0 0.0
    %2591 = vmatprep.subr.mxu0 0.0
    %2592 = vmatpush1.msra.mxu0 0.0
    %2593 = vmatprep.subr.mxu0 0.0
    %2594 = vmatpush1.msra.mxu0 0.0
    %2595 = vmatprep.subr.mxu0 0.0
    %2596 = vmatpush1.msra.mxu0 0.0
    %2597 = vmatprep.subr.mxu0 0.0
    %2598 = vmatpush1.msra.mxu0 0.0
    %2599 = vmatprep.subr.mxu0 0.0
    %2600 = vmatpush1.msra.mxu0 0.0
    %2601 = vmatprep.subr.mxu0 0.0
    %2602 = vmatpush1.msra.mxu0 0.0
    %2603 = vmatprep.subr.mxu0 0.0
    %2604 = vmatpush1.msra.mxu0 0.0
    %2605 = vmatprep.subr.mxu0 0.0
    %2606 = vmatpush1.msra.mxu0 0.0
    %2607 = vmatprep.subr.mxu0 0.0
    %2608 = vmatpush1.msra.mxu0 0.0
    %2609 = vmatprep.subr.mxu0 0.0
    %2610 = vmatpush1.msra.mxu0 0.0
    %2611 = vmatprep.subr.mxu0 0.0
    %2612 = vmatpush1.msra.mxu0 0.0
    %2613 = vmatprep.subr.mxu0 0.0
    %2614 = vmatpush1.msra.mxu0 0.0
    %2615 = vmatprep.subr.mxu0 0.0
    %2616 = vmatpush1.msra.mxu0 0.0
    %2617 = vmatprep.subr.mxu0 0.0
    %2618 = vmatpush1.msra.mxu0 %v2580
    %2619 = vmatprep.subr.mxu0 0.0
    %2620 = vmatpush1.msra.mxu0 %v2578
    %2621 = vmatprep.subr.mxu0 0.0
    %2622 = vmatpush2.msra.mxu0 0.0
    %2623 = vmatprep.subr.mxu0 0.0
    %2624 = vmatpush2.msra.mxu0 0.0
    %2625 = vmatprep.subr.mxu0 0.0
    %2626 = vmatpush2.msra.mxu0 0.0
    %2627 = vmatprep.subr.mxu0 0.0
    %2628 = vmatpush2.msra.mxu0 0.0
    %2629 = vmatprep.subr.mxu0 0.0
    %2630 = vmatpush2.msra.mxu0 0.0
    %2631 = vmatprep.subr.mxu0 0.0
    %2632 = vmatpush2.msra.mxu0 0.0
    %2633 = vmatprep.subr.mxu0 0.0
    %2634 = vmatpush2.msra.mxu0 0.0
    %2635 = vmatprep.subr.mxu0 0.0
    %2636 = vmatpush2.msra.mxu0 0.0
    %2637 = vmatprep.subr.mxu0 0.0
    %2638 = vmatpush2.msra.mxu0 0.0
    %2639 = vmatprep.subr.mxu0 0.0
    %2640 = vmatpush2.msra.mxu0 0.0
    %2641 = vmatprep.subr.mxu0 0.0
    %2642 = vmatpush2.msra.mxu0 0.0
    %2643 = vmatprep.subr.mxu0 0.0
    %2644 = vmatpush2.msra.mxu0 0.0
    %2645 = vmatprep.subr.mxu0 0.0
    %2646 = vmatpush2.msra.mxu0 0.0
    %2647 = vmatprep.subr.mxu0 0.0
    %2648 = vmatpush2.msra.mxu0 0.0
    %2649 = vmatprep.subr.mxu0 0.0
    %2650 = vmatpush2.msra.mxu0 0.0
    %2651 = vmatprep.subr.mxu0 0.0
    %2652 = vmatpush2.msra.mxu0 0.0
    %2653 = vmatprep.mubr.f32.mxu0 0.0
    %2654 = vmatmul.mubr.f32.gmra.mxu0 %v2584
    %v2655 = vpop.f32.mrf.mxu0
    %v2656 = vadd.f32 0.0, %v2655
    %v2657 = vpop.f32.mrf.mxu0
    %2658 = vmatprep.mubr.f32.mxu0 0.0
    %2659 = vmatmul.mubr.f32.gmra.mxu0 %v2587
    %v2660 = vpop.f32.mrf.mxu0
    %v2661 = vadd.f32 0.0, %v2660
    %v2662 = vpop.f32.mrf.mxu0
    %2663 = vdwg.mxu0
    %2664 = vrot.lane.b32.xlu0 %v1388, 64
    %v2665 = vpop.permute.xlu0 %2664
    %2666 = vrot.lane.b32.xlu0 %v1393, 64
    %v2667 = vpop.permute.xlu0 %2666
    %v2671 = vsel %vm2139, %v2308, 0
    %v2674 = vsel %vm2139, %v2309, 0
    %2676 = vmatprep.subr.mxu0 0.0
    %2677 = vmatpush1.msra.mxu0 0.0
    %2678 = vmatprep.subr.mxu0 0.0
    %2679 = vmatpush1.msra.mxu0 0.0
    %2680 = vmatprep.subr.mxu0 0.0
    %2681 = vmatpush1.msra.mxu0 0.0
    %2682 = vmatprep.subr.mxu0 0.0
    %2683 = vmatpush1.msra.mxu0 0.0
    %2684 = vmatprep.subr.mxu0 0.0
    %2685 = vmatpush1.msra.mxu0 0.0
    %2686 = vmatprep.subr.mxu0 0.0
    %2687 = vmatpush1.msra.mxu0 0.0
    %2688 = vmatprep.subr.mxu0 0.0
    %2689 = vmatpush1.msra.mxu0 0.0
    %2690 = vmatprep.subr.mxu0 0.0
    %2691 = vmatpush1.msra.mxu0 0.0
    %2692 = vmatprep.subr.mxu0 0.0
    %2693 = vmatpush1.msra.mxu0 0.0
    %2694 = vmatprep.subr.mxu0 0.0
    %2695 = vmatpush1.msra.mxu0 0.0
    %2696 = vmatprep.subr.mxu0 0.0
    %2697 = vmatpush1.msra.mxu0 0.0
    %2698 = vmatprep.subr.mxu0 0.0
    %2699 = vmatpush1.msra.mxu0 0.0
    %2700 = vmatprep.subr.mxu0 0.0
    %2701 = vmatpush1.msra.mxu0 0.0
    %2702 = vmatprep.subr.mxu0 0.0
    %2703 = vmatpush1.msra.mxu0 0.0
    %2704 = vmatprep.subr.mxu0 0.0
    %2705 = vmatpush1.msra.mxu0 %v2667
    %2706 = vmatprep.subr.mxu0 0.0
    %2707 = vmatpush1.msra.mxu0 %v2665
    %2708 = vmatprep.subr.mxu0 0.0
    %2709 = vmatpush2.msra.mxu0 0.0
    %2710 = vmatprep.subr.mxu0 0.0
    %2711 = vmatpush2.msra.mxu0 0.0
    %2712 = vmatprep.subr.mxu0 0.0
    %2713 = vmatpush2.msra.mxu0 0.0
    %2714 = vmatprep.subr.mxu0 0.0
    %2715 = vmatpush2.msra.mxu0 0.0
    %2716 = vmatprep.subr.mxu0 0.0
    %2717 = vmatpush2.msra.mxu0 0.0
    %2718 = vmatprep.subr.mxu0 0.0
    %2719 = vmatpush2.msra.mxu0 0.0
    %2720 = vmatprep.subr.mxu0 0.0
    %2721 = vmatpush2.msra.mxu0 0.0
    %2722 = vmatprep.subr.mxu0 0.0
    %2723 = vmatpush2.msra.mxu0 0.0
    %2724 = vmatprep.subr.mxu0 0.0
    %2725 = vmatpush2.msra.mxu0 0.0
    %2726 = vmatprep.subr.mxu0 0.0
    %2727 = vmatpush2.msra.mxu0 0.0
    %2728 = vmatprep.subr.mxu0 0.0
    %2729 = vmatpush2.msra.mxu0 0.0
    %2730 = vmatprep.subr.mxu0 0.0
    %2731 = vmatpush2.msra.mxu0 0.0
    %2732 = vmatprep.subr.mxu0 0.0
    %2733 = vmatpush2.msra.mxu0 0.0
    %2734 = vmatprep.subr.mxu0 0.0
    %2735 = vmatpush2.msra.mxu0 0.0
    %2736 = vmatprep.subr.mxu0 0.0
    %2737 = vmatpush2.msra.mxu0 0.0
    %2738 = vmatprep.subr.mxu0 0.0
    %2739 = vmatpush2.msra.mxu0 0.0
    %2740 = vmatprep.mubr.f32.mxu0 0.0
    %2741 = vmatmul.mubr.f32.gmra.mxu0 %v2671
    %v2742 = vpop.f32.mrf.mxu0
    %v2743 = vadd.f32 0.0, %v2742
    %v2744 = vpop.f32.mrf.mxu0
    %2745 = vmatprep.mubr.f32.mxu0 0.0
    %2746 = vmatmul.mubr.f32.gmra.mxu0 %v2674
    %v2747 = vpop.f32.mrf.mxu0
    %v2748 = vadd.f32 0.0, %v2747
    %v2749 = vpop.f32.mrf.mxu0
    %2750 = vdwg.mxu0
    %2751 = vrot.lane.b32.xlu0 %v1398, 64
    %v2752 = vpop.permute.xlu0 %2751
    %2753 = vrot.lane.b32.xlu0 %v1403, 64
    %v2754 = vpop.permute.xlu0 %2753
    %v2758 = vsel %vm2139, %v2310, 0
    %v2761 = vsel %vm2139, %v2311, 0
    %2763 = vmatprep.subr.mxu0 0.0
    %2764 = vmatpush1.msra.mxu0 0.0
    %2765 = vmatprep.subr.mxu0 0.0
    %2766 = vmatpush1.msra.mxu0 0.0
    %2767 = vmatprep.subr.mxu0 0.0
    %2768 = vmatpush1.msra.mxu0 0.0
    %2769 = vmatprep.subr.mxu0 0.0
    %2770 = vmatpush1.msra.mxu0 0.0
    %2771 = vmatprep.subr.mxu0 0.0
    %2772 = vmatpush1.msra.mxu0 0.0
    %2773 = vmatprep.subr.mxu0 0.0
    %2774 = vmatpush1.msra.mxu0 0.0
    %2775 = vmatprep.subr.mxu0 0.0
    %2776 = vmatpush1.msra.mxu0 0.0
    %2777 = vmatprep.subr.mxu0 0.0
    %2778 = vmatpush1.msra.mxu0 0.0
    %2779 = vmatprep.subr.mxu0 0.0
    %2780 = vmatpush1.msra.mxu0 0.0
    %2781 = vmatprep.subr.mxu0 0.0
    %2782 = vmatpush1.msra.mxu0 0.0
    %2783 = vmatprep.subr.mxu0 0.0
    %2784 = vmatpush1.msra.mxu0 0.0
    %2785 = vmatprep.subr.mxu0 0.0
    %2786 = vmatpush1.msra.mxu0 0.0
    %2787 = vmatprep.subr.mxu0 0.0
    %2788 = vmatpush1.msra.mxu0 0.0
    %2789 = vmatprep.subr.mxu0 0.0
    %2790 = vmatpush1.msra.mxu0 0.0
    %2791 = vmatprep.subr.mxu0 0.0
    %2792 = vmatpush1.msra.mxu0 %v2754
    %2793 = vmatprep.subr.mxu0 0.0
    %2794 = vmatpush1.msra.mxu0 %v2752
    %2795 = vmatprep.subr.mxu0 0.0
    %2796 = vmatpush2.msra.mxu0 0.0
    %2797 = vmatprep.subr.mxu0 0.0
    %2798 = vmatpush2.msra.mxu0 0.0
    %2799 = vmatprep.subr.mxu0 0.0
    %2800 = vmatpush2.msra.mxu0 0.0
    %2801 = vmatprep.subr.mxu0 0.0
    %2802 = vmatpush2.msra.mxu0 0.0
    %2803 = vmatprep.subr.mxu0 0.0
    %2804 = vmatpush2.msra.mxu0 0.0
    %2805 = vmatprep.subr.mxu0 0.0
    %2806 = vmatpush2.msra.mxu0 0.0
    %2807 = vmatprep.subr.mxu0 0.0
    %2808 = vmatpush2.msra.mxu0 0.0
    %2809 = vmatprep.subr.mxu0 0.0
    %2810 = vmatpush2.msra.mxu0 0.0
    %2811 = vmatprep.subr.mxu0 0.0
    %2812 = vmatpush2.msra.mxu0 0.0
    %2813 = vmatprep.subr.mxu0 0.0
    %2814 = vmatpush2.msra.mxu0 0.0
    %2815 = vmatprep.subr.mxu0 0.0
    %2816 = vmatpush2.msra.mxu0 0.0
    %2817 = vmatprep.subr.mxu0 0.0
    %2818 = vmatpush2.msra.mxu0 0.0
    %2819 = vmatprep.subr.mxu0 0.0
    %2820 = vmatpush2.msra.mxu0 0.0
    %2821 = vmatprep.subr.mxu0 0.0
    %2822 = vmatpush2.msra.mxu0 0.0
    %2823 = vmatprep.subr.mxu0 0.0
    %2824 = vmatpush2.msra.mxu0 0.0
    %2825 = vmatprep.subr.mxu0 0.0
    %2826 = vmatpush2.msra.mxu0 0.0
    %2827 = vmatprep.mubr.f32.mxu0 0.0
    %2828 = vmatmul.mubr.f32.gmra.mxu0 %v2758
    %v2829 = vpop.f32.mrf.mxu0
    %v2830 = vadd.f32 0.0, %v2829
    %v2831 = vpop.f32.mrf.mxu0
    %2832 = vmatprep.mubr.f32.mxu0 0.0
    %2833 = vmatmul.mubr.f32.gmra.mxu0 %v2761
    %v2834 = vpop.f32.mrf.mxu0
    %v2835 = vadd.f32 0.0, %v2834
    %v2836 = vpop.f32.mrf.mxu0
    %2837 = vdwg.mxu0
    %2838 = vrot.lane.b32.xlu0 %v1408, 64
    %v2839 = vpop.permute.xlu0 %2838
    %2840 = vrot.lane.b32.xlu0 %v1413, 64
    %v2841 = vpop.permute.xlu0 %2840
    %v2845 = vsel %vm2139, %v2312, 0
    %v2848 = vsel %vm2139, %v2313, 0
    %2850 = vmatprep.subr.mxu0 0.0
    %2851 = vmatpush1.msra.mxu0 0.0
    %2852 = vmatprep.subr.mxu0 0.0
    %2853 = vmatpush1.msra.mxu0 0.0
    %2854 = vmatprep.subr.mxu0 0.0
    %2855 = vmatpush1.msra.mxu0 0.0
    %2856 = vmatprep.subr.mxu0 0.0
    %2857 = vmatpush1.msra.mxu0 0.0
    %2858 = vmatprep.subr.mxu0 0.0
    %2859 = vmatpush1.msra.mxu0 0.0
    %2860 = vmatprep.subr.mxu0 0.0
    %2861 = vmatpush1.msra.mxu0 0.0
    %2862 = vmatprep.subr.mxu0 0.0
    %2863 = vmatpush1.msra.mxu0 0.0
    %2864 = vmatprep.subr.mxu0 0.0
    %2865 = vmatpush1.msra.mxu0 0.0
    %2866 = vmatprep.subr.mxu0 0.0
    %2867 = vmatpush1.msra.mxu0 0.0
    %2868 = vmatprep.subr.mxu0 0.0
    %2869 = vmatpush1.msra.mxu0 0.0
    %2870 = vmatprep.subr.mxu0 0.0
    %2871 = vmatpush1.msra.mxu0 0.0
    %2872 = vmatprep.subr.mxu0 0.0
    %2873 = vmatpush1.msra.mxu0 0.0
    %2874 = vmatprep.subr.mxu0 0.0
    %2875 = vmatpush1.msra.mxu0 0.0
    %2876 = vmatprep.subr.mxu0 0.0
    %2877 = vmatpush1.msra.mxu0 0.0
    %2878 = vmatprep.subr.mxu0 0.0
    %2879 = vmatpush1.msra.mxu0 %v2841
    %2880 = vmatprep.subr.mxu0 0.0
    %2881 = vmatpush1.msra.mxu0 %v2839
    %2882 = vmatprep.subr.mxu0 0.0
    %2883 = vmatpush2.msra.mxu0 0.0
    %2884 = vmatprep.subr.mxu0 0.0
    %2885 = vmatpush2.msra.mxu0 0.0
    %2886 = vmatprep.subr.mxu0 0.0
    %2887 = vmatpush2.msra.mxu0 0.0
    %2888 = vmatprep.subr.mxu0 0.0
    %2889 = vmatpush2.msra.mxu0 0.0
    %2890 = vmatprep.subr.mxu0 0.0
    %2891 = vmatpush2.msra.mxu0 0.0
    %2892 = vmatprep.subr.mxu0 0.0
    %2893 = vmatpush2.msra.mxu0 0.0
    %2894 = vmatprep.subr.mxu0 0.0
    %2895 = vmatpush2.msra.mxu0 0.0
    %2896 = vmatprep.subr.mxu0 0.0
    %2897 = vmatpush2.msra.mxu0 0.0
    %2898 = vmatprep.subr.mxu0 0.0
    %2899 = vmatpush2.msra.mxu0 0.0
    %2900 = vmatprep.subr.mxu0 0.0
    %2901 = vmatpush2.msra.mxu0 0.0
    %2902 = vmatprep.subr.mxu0 0.0
    %2903 = vmatpush2.msra.mxu0 0.0
    %2904 = vmatprep.subr.mxu0 0.0
    %2905 = vmatpush2.msra.mxu0 0.0
    %2906 = vmatprep.subr.mxu0 0.0
    %2907 = vmatpush2.msra.mxu0 0.0
    %2908 = vmatprep.subr.mxu0 0.0
    %2909 = vmatpush2.msra.mxu0 0.0
    %2910 = vmatprep.subr.mxu0 0.0
    %2911 = vmatpush2.msra.mxu0 0.0
    %2912 = vmatprep.subr.mxu0 0.0
    %2913 = vmatpush2.msra.mxu0 0.0
    %2914 = vmatprep.mubr.f32.mxu0 0.0
    %2915 = vmatmul.mubr.f32.gmra.mxu0 %v2845
    %v2916 = vpop.f32.mrf.mxu0
    %v2917 = vadd.f32 0.0, %v2916
    %v2918 = vpop.f32.mrf.mxu0
    %2919 = vmatprep.mubr.f32.mxu0 0.0
    %2920 = vmatmul.mubr.f32.gmra.mxu0 %v2848
    %v2921 = vpop.f32.mrf.mxu0
    %v2922 = vadd.f32 0.0, %v2921
    %v2923 = vpop.f32.mrf.mxu0
    %2924 = vdwg.mxu0
    %2925 = vrot.lane.b32.xlu0 %v1418, 64
    %v2926 = vpop.permute.xlu0 %2925
    %2927 = vrot.lane.b32.xlu0 %v1423, 64
    %v2928 = vpop.permute.xlu0 %2927
    %v2932 = vsel %vm2139, %v2314, 0
    %v2935 = vsel %vm2139, %v2315, 0
    %2937 = vmatprep.subr.mxu0 0.0
    %2938 = vmatpush1.msra.mxu0 0.0
    %2939 = vmatprep.subr.mxu0 0.0
    %2940 = vmatpush1.msra.mxu0 0.0
    %2941 = vmatprep.subr.mxu0 0.0
    %2942 = vmatpush1.msra.mxu0 0.0
    %2943 = vmatprep.subr.mxu0 0.0
    %2944 = vmatpush1.msra.mxu0 0.0
    %2945 = vmatprep.subr.mxu0 0.0
    %2946 = vmatpush1.msra.mxu0 0.0
    %2947 = vmatprep.subr.mxu0 0.0
    %2948 = vmatpush1.msra.mxu0 0.0
    %2949 = vmatprep.subr.mxu0 0.0
    %2950 = vmatpush1.msra.mxu0 0.0
    %2951 = vmatprep.subr.mxu0 0.0
    %2952 = vmatpush1.msra.mxu0 0.0
    %2953 = vmatprep.subr.mxu0 0.0
    %2954 = vmatpush1.msra.mxu0 0.0
    %2955 = vmatprep.subr.mxu0 0.0
    %2956 = vmatpush1.msra.mxu0 0.0
    %2957 = vmatprep.subr.mxu0 0.0
    %2958 = vmatpush1.msra.mxu0 0.0
    %2959 = vmatprep.subr.mxu0 0.0
    %2960 = vmatpush1.msra.mxu0 0.0
    %2961 = vmatprep.subr.mxu0 0.0
    %2962 = vmatpush1.msra.mxu0 0.0
    %2963 = vmatprep.subr.mxu0 0.0
    %2964 = vmatpush1.msra.mxu0 0.0
    %2965 = vmatprep.subr.mxu0 0.0
    %2966 = vmatpush1.msra.mxu0 %v2928
    %2967 = vmatprep.subr.mxu0 0.0
    %2968 = vmatpush1.msra.mxu0 %v2926
    %2969 = vmatprep.subr.mxu0 0.0
    %2970 = vmatpush2.msra.mxu0 0.0
    %2971 = vmatprep.subr.mxu0 0.0
    %2972 = vmatpush2.msra.mxu0 0.0
    %2973 = vmatprep.subr.mxu0 0.0
    %2974 = vmatpush2.msra.mxu0 0.0
    %2975 = vmatprep.subr.mxu0 0.0
    %2976 = vmatpush2.msra.mxu0 0.0
    %2977 = vmatprep.subr.mxu0 0.0
    %2978 = vmatpush2.msra.mxu0 0.0
    %2979 = vmatprep.subr.mxu0 0.0
    %2980 = vmatpush2.msra.mxu0 0.0
    %2981 = vmatprep.subr.mxu0 0.0
    %2982 = vmatpush2.msra.mxu0 0.0
    %2983 = vmatprep.subr.mxu0 0.0
    %2984 = vmatpush2.msra.mxu0 0.0
    %2985 = vmatprep.subr.mxu0 0.0
    %2986 = vmatpush2.msra.mxu0 0.0
    %2987 = vmatprep.subr.mxu0 0.0
    %2988 = vmatpush2.msra.mxu0 0.0
    %2989 = vmatprep.subr.mxu0 0.0
    %2990 = vmatpush2.msra.mxu0 0.0
    %2991 = vmatprep.subr.mxu0 0.0
    %2992 = vmatpush2.msra.mxu0 0.0
    %2993 = vmatprep.subr.mxu0 0.0
    %2994 = vmatpush2.msra.mxu0 0.0
    %2995 = vmatprep.subr.mxu0 0.0
    %2996 = vmatpush2.msra.mxu0 0.0
    %2997 = vmatprep.subr.mxu0 0.0
    %2998 = vmatpush2.msra.mxu0 0.0
    %2999 = vmatprep.subr.mxu0 0.0
    %3000 = vmatpush2.msra.mxu0 0.0
    %3001 = vmatprep.mubr.f32.mxu0 0.0
    %3002 = vmatmul.mubr.f32.gmra.mxu0 %v2932
    %v3003 = vpop.f32.mrf.mxu0
    %v3004 = vadd.f32 0.0, %v3003
    %v3005 = vpop.f32.mrf.mxu0
    %3006 = vmatprep.mubr.f32.mxu0 0.0
    %3007 = vmatmul.mubr.f32.gmra.mxu0 %v2935
    %v3008 = vpop.f32.mrf.mxu0
    %v3009 = vadd.f32 0.0, %v3008
    %v3010 = vpop.f32.mrf.mxu0
    %3011 = vdwg.mxu0
    %3012 = vrot.lane.b32.xlu0 %v1348, 120
    %v3013 = vpop.permute.xlu0 %3012
    %3014 = vrot.lane.b32.xlu0 %v1353, 120
    %v3015 = vpop.permute.xlu0 %3014
    %3016 = vrot.lane.b32.xlu0 %v1348, 88
    %v3017 = vpop.permute.xlu0 %3016
    %3018 = vrot.lane.b32.xlu0 %v1353, 88
    %v3019 = vpop.permute.xlu0 %3018
    %v3020 = vsel %vm1432, %v3013, 0
    %v3022 = vsel %vm1432, %v3015, 0
    %v3024 = vsel %vm1432, %v3017, 0
    %v3026 = vsel %vm1432, %v3019, 0
    %3028 = vmatprep.subr.mxu0 0.0
    %3029 = vmatpush1.xpose.msra.mxu0 0.0
    %3030 = vmatprep.subr.mxu0 0.0
    %3031 = vmatpush1.xpose.msra.mxu0 0.0
    %3032 = vmatprep.subr.mxu0 0.0
    %3033 = vmatpush1.xpose.msra.mxu0 0.0
    %3034 = vmatprep.subr.mxu0 0.0
    %3035 = vmatpush1.xpose.msra.mxu0 0.0
    %3036 = vmatprep.subr.mxu0 0.0
    %3037 = vmatpush1.xpose.msra.mxu0 0.0
    %3038 = vmatprep.subr.mxu0 0.0
    %3039 = vmatpush1.xpose.msra.mxu0 0.0
    %3040 = vmatprep.subr.mxu0 0.0
    %3041 = vmatpush1.xpose.msra.mxu0 0.0
    %3042 = vmatprep.subr.mxu0 0.0
    %3043 = vmatpush1.xpose.msra.mxu0 0.0
    %3044 = vmatprep.subr.mxu0 0.0
    %3045 = vmatpush1.xpose.msra.mxu0 0.0
    %3046 = vmatprep.subr.mxu0 0.0
    %3047 = vmatpush1.xpose.msra.mxu0 0.0
    %3048 = vmatprep.subr.mxu0 0.0
    %3049 = vmatpush1.xpose.msra.mxu0 0.0
    %3050 = vmatprep.subr.mxu0 0.0
    %3051 = vmatpush1.xpose.msra.mxu0 0.0
    %3052 = vmatprep.subr.mxu0 0.0
    %3053 = vmatpush1.xpose.msra.mxu0 0.0
    %3054 = vmatprep.subr.mxu0 0.0
    %3055 = vmatpush1.xpose.msra.mxu0 0.0
    %3056 = vmatprep.subr.mxu0 0.0
    %3057 = vmatpush1.xpose.msra.mxu0 %v3026
    %3058 = vmatprep.subr.mxu0 0.0
    %3059 = vmatpush1.xpose.msra.mxu0 %v3024
    %3060 = vmatprep.subr.mxu0 0.0
    %3061 = vmatpush2.xpose.msra.mxu0 0.0
    %3062 = vmatprep.subr.mxu0 0.0
    %3063 = vmatpush2.xpose.msra.mxu0 0.0
    %3064 = vmatprep.subr.mxu0 0.0
    %3065 = vmatpush2.xpose.msra.mxu0 0.0
    %3066 = vmatprep.subr.mxu0 0.0
    %3067 = vmatpush2.xpose.msra.mxu0 0.0
    %3068 = vmatprep.subr.mxu0 0.0
    %3069 = vmatpush2.xpose.msra.mxu0 0.0
    %3070 = vmatprep.subr.mxu0 0.0
    %3071 = vmatpush2.xpose.msra.mxu0 0.0
    %3072 = vmatprep.subr.mxu0 0.0
    %3073 = vmatpush2.xpose.msra.mxu0 0.0
    %3074 = vmatprep.subr.mxu0 0.0
    %3075 = vmatpush2.xpose.msra.mxu0 0.0
    %3076 = vmatprep.subr.mxu0 0.0
    %3077 = vmatpush2.xpose.msra.mxu0 0.0
    %3078 = vmatprep.subr.mxu0 0.0
    %3079 = vmatpush2.xpose.msra.mxu0 0.0
    %3080 = vmatprep.subr.mxu0 0.0
    %3081 = vmatpush2.xpose.msra.mxu0 0.0
    %3082 = vmatprep.subr.mxu0 0.0
    %3083 = vmatpush2.xpose.msra.mxu0 0.0
    %3084 = vmatprep.subr.mxu0 0.0
    %3085 = vmatpush2.xpose.msra.mxu0 0.0
    %3086 = vmatprep.subr.mxu0 0.0
    %3087 = vmatpush2.xpose.msra.mxu0 0.0
    %3088 = vmatprep.subr.mxu0 0.0
    %3089 = vmatpush2.xpose.msra.mxu0 0.0
    %3090 = vmatprep.subr.mxu0 0.0
    %3091 = vmatpush2.xpose.msra.mxu0 0.0
    %3092 = vmatprep.mubr.f32.mxu0 0.0
    %3093 = vmatmul.mubr.f32.gmra.mxu0 %v3020
    %v3094 = vpop.f32.mrf.mxu0
    %v3095 = vadd.f32 0.0, %v3094
    %v3096 = vpop.f32.mrf.mxu0
    %3097 = vmatprep.mubr.f32.mxu0 0.0
    %3098 = vmatmul.mubr.f32.gmra.mxu0 %v3022
    %v3099 = vpop.f32.mrf.mxu0
    %v3100 = vadd.f32 0.0, %v3099
    %v3101 = vpop.f32.mrf.mxu0
    %3102 = vdwg.mxu0
    %3103 = vrot.lane.b32.xlu0 %v1358, 120
    %v3104 = vpop.permute.xlu0 %3103
    %3105 = vrot.lane.b32.xlu0 %v1363, 120
    %v3106 = vpop.permute.xlu0 %3105
    %3107 = vrot.lane.b32.xlu0 %v1358, 88
    %v3108 = vpop.permute.xlu0 %3107
    %3109 = vrot.lane.b32.xlu0 %v1363, 88
    %v3110 = vpop.permute.xlu0 %3109
    %v3111 = vsel %vm1432, %v3104, 0
    %v3113 = vsel %vm1432, %v3106, 0
    %v3115 = vsel %vm1432, %v3108, 0
    %v3117 = vsel %vm1432, %v3110, 0
    %3119 = vmatprep.subr.mxu0 0.0
    %3120 = vmatpush1.xpose.msra.mxu0 0.0
    %3121 = vmatprep.subr.mxu0 0.0
    %3122 = vmatpush1.xpose.msra.mxu0 0.0
    %3123 = vmatprep.subr.mxu0 0.0
    %3124 = vmatpush1.xpose.msra.mxu0 0.0
    %3125 = vmatprep.subr.mxu0 0.0
    %3126 = vmatpush1.xpose.msra.mxu0 0.0
    %3127 = vmatprep.subr.mxu0 0.0
    %3128 = vmatpush1.xpose.msra.mxu0 0.0
    %3129 = vmatprep.subr.mxu0 0.0
    %3130 = vmatpush1.xpose.msra.mxu0 0.0
    %3131 = vmatprep.subr.mxu0 0.0
    %3132 = vmatpush1.xpose.msra.mxu0 0.0
    %3133 = vmatprep.subr.mxu0 0.0
    %3134 = vmatpush1.xpose.msra.mxu0 0.0
    %3135 = vmatprep.subr.mxu0 0.0
    %3136 = vmatpush1.xpose.msra.mxu0 0.0
    %3137 = vmatprep.subr.mxu0 0.0
    %3138 = vmatpush1.xpose.msra.mxu0 0.0
    %3139 = vmatprep.subr.mxu0 0.0
    %3140 = vmatpush1.xpose.msra.mxu0 0.0
    %3141 = vmatprep.subr.mxu0 0.0
    %3142 = vmatpush1.xpose.msra.mxu0 0.0
    %3143 = vmatprep.subr.mxu0 0.0
    %3144 = vmatpush1.xpose.msra.mxu0 0.0
    %3145 = vmatprep.subr.mxu0 0.0
    %3146 = vmatpush1.xpose.msra.mxu0 0.0
    %3147 = vmatprep.subr.mxu0 0.0
    %3148 = vmatpush1.xpose.msra.mxu0 %v3117
    %3149 = vmatprep.subr.mxu0 0.0
    %3150 = vmatpush1.xpose.msra.mxu0 %v3115
    %3151 = vmatprep.subr.mxu0 0.0
    %3152 = vmatpush2.xpose.msra.mxu0 0.0
    %3153 = vmatprep.subr.mxu0 0.0
    %3154 = vmatpush2.xpose.msra.mxu0 0.0
    %3155 = vmatprep.subr.mxu0 0.0
    %3156 = vmatpush2.xpose.msra.mxu0 0.0
    %3157 = vmatprep.subr.mxu0 0.0
    %3158 = vmatpush2.xpose.msra.mxu0 0.0
    %3159 = vmatprep.subr.mxu0 0.0
    %3160 = vmatpush2.xpose.msra.mxu0 0.0
    %3161 = vmatprep.subr.mxu0 0.0
    %3162 = vmatpush2.xpose.msra.mxu0 0.0
    %3163 = vmatprep.subr.mxu0 0.0
    %3164 = vmatpush2.xpose.msra.mxu0 0.0
    %3165 = vmatprep.subr.mxu0 0.0
    %3166 = vmatpush2.xpose.msra.mxu0 0.0
    %3167 = vmatprep.subr.mxu0 0.0
    %3168 = vmatpush2.xpose.msra.mxu0 0.0
    %3169 = vmatprep.subr.mxu0 0.0
    %3170 = vmatpush2.xpose.msra.mxu0 0.0
    %3171 = vmatprep.subr.mxu0 0.0
    %3172 = vmatpush2.xpose.msra.mxu0 0.0
    %3173 = vmatprep.subr.mxu0 0.0
    %3174 = vmatpush2.xpose.msra.mxu0 0.0
    %3175 = vmatprep.subr.mxu0 0.0
    %3176 = vmatpush2.xpose.msra.mxu0 0.0
    %3177 = vmatprep.subr.mxu0 0.0
    %3178 = vmatpush2.xpose.msra.mxu0 0.0
    %3179 = vmatprep.subr.mxu0 0.0
    %3180 = vmatpush2.xpose.msra.mxu0 0.0
    %3181 = vmatprep.subr.mxu0 0.0
    %3182 = vmatpush2.xpose.msra.mxu0 0.0
    %3183 = vmatprep.mubr.f32.mxu0 0.0
    %3184 = vmatmul.mubr.f32.gmra.mxu0 %v3111
    %v3185 = vpop.f32.mrf.mxu0
    %v3186 = vadd.f32 0.0, %v3185
    %v3187 = vpop.f32.mrf.mxu0
    %3188 = vmatprep.mubr.f32.mxu0 0.0
    %3189 = vmatmul.mubr.f32.gmra.mxu0 %v3113
    %v3190 = vpop.f32.mrf.mxu0
    %v3191 = vadd.f32 0.0, %v3190
    %v3192 = vpop.f32.mrf.mxu0
    %3193 = vdwg.mxu0
    %3194 = vrot.lane.b32.xlu0 %v1368, 120
    %v3195 = vpop.permute.xlu0 %3194
    %3196 = vrot.lane.b32.xlu0 %v1373, 120
    %v3197 = vpop.permute.xlu0 %3196
    %3198 = vrot.lane.b32.xlu0 %v1368, 88
    %v3199 = vpop.permute.xlu0 %3198
    %3200 = vrot.lane.b32.xlu0 %v1373, 88
    %v3201 = vpop.permute.xlu0 %3200
    %v3202 = vsel %vm1432, %v3195, 0
    %v3204 = vsel %vm1432, %v3197, 0
    %v3206 = vsel %vm1432, %v3199, 0
    %v3208 = vsel %vm1432, %v3201, 0
    %3210 = vmatprep.subr.mxu0 0.0
    %3211 = vmatpush1.xpose.msra.mxu0 0.0
    %3212 = vmatprep.subr.mxu0 0.0
    %3213 = vmatpush1.xpose.msra.mxu0 0.0
    %3214 = vmatprep.subr.mxu0 0.0
    %3215 = vmatpush1.xpose.msra.mxu0 0.0
    %3216 = vmatprep.subr.mxu0 0.0
    %3217 = vmatpush1.xpose.msra.mxu0 0.0
    %3218 = vmatprep.subr.mxu0 0.0
    %3219 = vmatpush1.xpose.msra.mxu0 0.0
    %3220 = vmatprep.subr.mxu0 0.0
    %3221 = vmatpush1.xpose.msra.mxu0 0.0
    %3222 = vmatprep.subr.mxu0 0.0
    %3223 = vmatpush1.xpose.msra.mxu0 0.0
    %3224 = vmatprep.subr.mxu0 0.0
    %3225 = vmatpush1.xpose.msra.mxu0 0.0
    %3226 = vmatprep.subr.mxu0 0.0
    %3227 = vmatpush1.xpose.msra.mxu0 0.0
    %3228 = vmatprep.subr.mxu0 0.0
    %3229 = vmatpush1.xpose.msra.mxu0 0.0
    %3230 = vmatprep.subr.mxu0 0.0
    %3231 = vmatpush1.xpose.msra.mxu0 0.0
    %3232 = vmatprep.subr.mxu0 0.0
    %3233 = vmatpush1.xpose.msra.mxu0 0.0
    %3234 = vmatprep.subr.mxu0 0.0
    %3235 = vmatpush1.xpose.msra.mxu0 0.0
    %3236 = vmatprep.subr.mxu0 0.0
    %3237 = vmatpush1.xpose.msra.mxu0 0.0
    %3238 = vmatprep.subr.mxu0 0.0
    %3239 = vmatpush1.xpose.msra.mxu0 %v3208
    %3240 = vmatprep.subr.mxu0 0.0
    %3241 = vmatpush1.xpose.msra.mxu0 %v3206
    %3242 = vmatprep.subr.mxu0 0.0
    %3243 = vmatpush2.xpose.msra.mxu0 0.0
    %3244 = vmatprep.subr.mxu0 0.0
    %3245 = vmatpush2.xpose.msra.mxu0 0.0
    %3246 = vmatprep.subr.mxu0 0.0
    %3247 = vmatpush2.xpose.msra.mxu0 0.0
    %3248 = vmatprep.subr.mxu0 0.0
    %3249 = vmatpush2.xpose.msra.mxu0 0.0
    %3250 = vmatprep.subr.mxu0 0.0
    %3251 = vmatpush2.xpose.msra.mxu0 0.0
    %3252 = vmatprep.subr.mxu0 0.0
    %3253 = vmatpush2.xpose.msra.mxu0 0.0
    %3254 = vmatprep.subr.mxu0 0.0
    %3255 = vmatpush2.xpose.msra.mxu0 0.0
    %3256 = vmatprep.subr.mxu0 0.0
    %3257 = vmatpush2.xpose.msra.mxu0 0.0
    %3258 = vmatprep.subr.mxu0 0.0
    %3259 = vmatpush2.xpose.msra.mxu0 0.0
    %3260 = vmatprep.subr.mxu0 0.0
    %3261 = vmatpush2.xpose.msra.mxu0 0.0
    %3262 = vmatprep.subr.mxu0 0.0
    %3263 = vmatpush2.xpose.msra.mxu0 0.0
    %3264 = vmatprep.subr.mxu0 0.0
    %3265 = vmatpush2.xpose.msra.mxu0 0.0
    %3266 = vmatprep.subr.mxu0 0.0
    %3267 = vmatpush2.xpose.msra.mxu0 0.0
    %3268 = vmatprep.subr.mxu0 0.0
    %3269 = vmatpush2.xpose.msra.mxu0 0.0
    %3270 = vmatprep.subr.mxu0 0.0
    %3271 = vmatpush2.xpose.msra.mxu0 0.0
    %3272 = vmatprep.subr.mxu0 0.0
    %3273 = vmatpush2.xpose.msra.mxu0 0.0
    %3274 = vmatprep.mubr.f32.mxu0 0.0
    %3275 = vmatmul.mubr.f32.gmra.mxu0 %v3202
    %v3276 = vpop.f32.mrf.mxu0
    %v3277 = vadd.f32 0.0, %v3276
    %v3278 = vpop.f32.mrf.mxu0
    %3279 = vmatprep.mubr.f32.mxu0 0.0
    %3280 = vmatmul.mubr.f32.gmra.mxu0 %v3204
    %v3281 = vpop.f32.mrf.mxu0
    %v3282 = vadd.f32 0.0, %v3281
    %v3283 = vpop.f32.mrf.mxu0
    %3284 = vdwg.mxu0
    %3285 = vrot.lane.b32.xlu0 %v1378, 120
    %v3286 = vpop.permute.xlu0 %3285
    %3287 = vrot.lane.b32.xlu0 %v1383, 120
    %v3288 = vpop.permute.xlu0 %3287
    %3289 = vrot.lane.b32.xlu0 %v1378, 88
    %v3290 = vpop.permute.xlu0 %3289
    %3291 = vrot.lane.b32.xlu0 %v1383, 88
    %v3292 = vpop.permute.xlu0 %3291
    %v3293 = vsel %vm1432, %v3286, 0
    %v3295 = vsel %vm1432, %v3288, 0
    %v3297 = vsel %vm1432, %v3290, 0
    %v3299 = vsel %vm1432, %v3292, 0
    %3301 = vmatprep.subr.mxu0 0.0
    %3302 = vmatpush1.xpose.msra.mxu0 0.0
    %3303 = vmatprep.subr.mxu0 0.0
    %3304 = vmatpush1.xpose.msra.mxu0 0.0
    %3305 = vmatprep.subr.mxu0 0.0
    %3306 = vmatpush1.xpose.msra.mxu0 0.0
    %3307 = vmatprep.subr.mxu0 0.0
    %3308 = vmatpush1.xpose.msra.mxu0 0.0
    %3309 = vmatprep.subr.mxu0 0.0
    %3310 = vmatpush1.xpose.msra.mxu0 0.0
    %3311 = vmatprep.subr.mxu0 0.0
    %3312 = vmatpush1.xpose.msra.mxu0 0.0
    %3313 = vmatprep.subr.mxu0 0.0
    %3314 = vmatpush1.xpose.msra.mxu0 0.0
    %3315 = vmatprep.subr.mxu0 0.0
    %3316 = vmatpush1.xpose.msra.mxu0 0.0
    %3317 = vmatprep.subr.mxu0 0.0
    %3318 = vmatpush1.xpose.msra.mxu0 0.0
    %3319 = vmatprep.subr.mxu0 0.0
    %3320 = vmatpush1.xpose.msra.mxu0 0.0
    %3321 = vmatprep.subr.mxu0 0.0
    %3322 = vmatpush1.xpose.msra.mxu0 0.0
    %3323 = vmatprep.subr.mxu0 0.0
    %3324 = vmatpush1.xpose.msra.mxu0 0.0
    %3325 = vmatprep.subr.mxu0 0.0
    %3326 = vmatpush1.xpose.msra.mxu0 0.0
    %3327 = vmatprep.subr.mxu0 0.0
    %3328 = vmatpush1.xpose.msra.mxu0 0.0
    %3329 = vmatprep.subr.mxu0 0.0
    %3330 = vmatpush1.xpose.msra.mxu0 %v3299
    %3331 = vmatprep.subr.mxu0 0.0
    %3332 = vmatpush1.xpose.msra.mxu0 %v3297
    %3333 = vmatprep.subr.mxu0 0.0
    %3334 = vmatpush2.xpose.msra.mxu0 0.0
    %3335 = vmatprep.subr.mxu0 0.0
    %3336 = vmatpush2.xpose.msra.mxu0 0.0
    %3337 = vmatprep.subr.mxu0 0.0
    %3338 = vmatpush2.xpose.msra.mxu0 0.0
    %3339 = vmatprep.subr.mxu0 0.0
    %3340 = vmatpush2.xpose.msra.mxu0 0.0
    %3341 = vmatprep.subr.mxu0 0.0
    %3342 = vmatpush2.xpose.msra.mxu0 0.0
    %3343 = vmatprep.subr.mxu0 0.0
    %3344 = vmatpush2.xpose.msra.mxu0 0.0
    %3345 = vmatprep.subr.mxu0 0.0
    %3346 = vmatpush2.xpose.msra.mxu0 0.0
    %3347 = vmatprep.subr.mxu0 0.0
    %3348 = vmatpush2.xpose.msra.mxu0 0.0
    %3349 = vmatprep.subr.mxu0 0.0
    %3350 = vmatpush2.xpose.msra.mxu0 0.0
    %3351 = vmatprep.subr.mxu0 0.0
    %3352 = vmatpush2.xpose.msra.mxu0 0.0
    %3353 = vmatprep.subr.mxu0 0.0
    %3354 = vmatpush2.xpose.msra.mxu0 0.0
    %3355 = vmatprep.subr.mxu0 0.0
    %3356 = vmatpush2.xpose.msra.mxu0 0.0
    %3357 = vmatprep.subr.mxu0 0.0
    %3358 = vmatpush2.xpose.msra.mxu0 0.0
    %3359 = vmatprep.subr.mxu0 0.0
    %3360 = vmatpush2.xpose.msra.mxu0 0.0
    %3361 = vmatprep.subr.mxu0 0.0
    %3362 = vmatpush2.xpose.msra.mxu0 0.0
    %3363 = vmatprep.subr.mxu0 0.0
    %3364 = vmatpush2.xpose.msra.mxu0 0.0
    %3365 = vmatprep.mubr.f32.mxu0 0.0
    %3366 = vmatmul.mubr.f32.gmra.mxu0 %v3293
    %v3367 = vpop.f32.mrf.mxu0
    %v3368 = vadd.f32 0.0, %v3367
    %v3369 = vpop.f32.mrf.mxu0
    %3370 = vmatprep.mubr.f32.mxu0 0.0
    %3371 = vmatmul.mubr.f32.gmra.mxu0 %v3295
    %v3372 = vpop.f32.mrf.mxu0
    %v3373 = vadd.f32 0.0, %v3372
    %v3374 = vpop.f32.mrf.mxu0
    %3375 = vdwg.mxu0
    %3376 = vrot.lane.b32.xlu0 %v1388, 120
    %v3377 = vpop.permute.xlu0 %3376
    %3378 = vrot.lane.b32.xlu0 %v1393, 120
    %v3379 = vpop.permute.xlu0 %3378
    %3380 = vrot.lane.b32.xlu0 %v1388, 88
    %v3381 = vpop.permute.xlu0 %3380
    %3382 = vrot.lane.b32.xlu0 %v1393, 88
    %v3383 = vpop.permute.xlu0 %3382
    %v3384 = vsel %vm1432, %v3377, 0
    %v3386 = vsel %vm1432, %v3379, 0
    %v3388 = vsel %vm1432, %v3381, 0
    %v3390 = vsel %vm1432, %v3383, 0
    %3392 = vmatprep.subr.mxu0 0.0
    %3393 = vmatpush1.xpose.msra.mxu0 0.0
    %3394 = vmatprep.subr.mxu0 0.0
    %3395 = vmatpush1.xpose.msra.mxu0 0.0
    %3396 = vmatprep.subr.mxu0 0.0
    %3397 = vmatpush1.xpose.msra.mxu0 0.0
    %3398 = vmatprep.subr.mxu0 0.0
    %3399 = vmatpush1.xpose.msra.mxu0 0.0
    %3400 = vmatprep.subr.mxu0 0.0
    %3401 = vmatpush1.xpose.msra.mxu0 0.0
    %3402 = vmatprep.subr.mxu0 0.0
    %3403 = vmatpush1.xpose.msra.mxu0 0.0
    %3404 = vmatprep.subr.mxu0 0.0
    %3405 = vmatpush1.xpose.msra.mxu0 0.0
    %3406 = vmatprep.subr.mxu0 0.0
    %3407 = vmatpush1.xpose.msra.mxu0 0.0
    %3408 = vmatprep.subr.mxu0 0.0
    %3409 = vmatpush1.xpose.msra.mxu0 0.0
    %3410 = vmatprep.subr.mxu0 0.0
    %3411 = vmatpush1.xpose.msra.mxu0 0.0
    %3412 = vmatprep.subr.mxu0 0.0
    %3413 = vmatpush1.xpose.msra.mxu0 0.0
    %3414 = vmatprep.subr.mxu0 0.0
    %3415 = vmatpush1.xpose.msra.mxu0 0.0
    %3416 = vmatprep.subr.mxu0 0.0
    %3417 = vmatpush1.xpose.msra.mxu0 0.0
    %3418 = vmatprep.subr.mxu0 0.0
    %3419 = vmatpush1.xpose.msra.mxu0 0.0
    %3420 = vmatprep.subr.mxu0 0.0
    %3421 = vmatpush1.xpose.msra.mxu0 %v3390
    %3422 = vmatprep.subr.mxu0 0.0
    %3423 = vmatpush1.xpose.msra.mxu0 %v3388
    %3424 = vmatprep.subr.mxu0 0.0
    %3425 = vmatpush2.xpose.msra.mxu0 0.0
    %3426 = vmatprep.subr.mxu0 0.0
    %3427 = vmatpush2.xpose.msra.mxu0 0.0
    %3428 = vmatprep.subr.mxu0 0.0
    %3429 = vmatpush2.xpose.msra.mxu0 0.0
    %3430 = vmatprep.subr.mxu0 0.0
    %3431 = vmatpush2.xpose.msra.mxu0 0.0
    %3432 = vmatprep.subr.mxu0 0.0
    %3433 = vmatpush2.xpose.msra.mxu0 0.0
    %3434 = vmatprep.subr.mxu0 0.0
    %3435 = vmatpush2.xpose.msra.mxu0 0.0
    %3436 = vmatprep.subr.mxu0 0.0
    %3437 = vmatpush2.xpose.msra.mxu0 0.0
    %3438 = vmatprep.subr.mxu0 0.0
    %3439 = vmatpush2.xpose.msra.mxu0 0.0
    %3440 = vmatprep.subr.mxu0 0.0
    %3441 = vmatpush2.xpose.msra.mxu0 0.0
    %3442 = vmatprep.subr.mxu0 0.0
    %3443 = vmatpush2.xpose.msra.mxu0 0.0
    %3444 = vmatprep.subr.mxu0 0.0
    %3445 = vmatpush2.xpose.msra.mxu0 0.0
    %3446 = vmatprep.subr.mxu0 0.0
    %3447 = vmatpush2.xpose.msra.mxu0 0.0
    %3448 = vmatprep.subr.mxu0 0.0
    %3449 = vmatpush2.xpose.msra.mxu0 0.0
    %3450 = vmatprep.subr.mxu0 0.0
    %3451 = vmatpush2.xpose.msra.mxu0 0.0
    %3452 = vmatprep.subr.mxu0 0.0
    %3453 = vmatpush2.xpose.msra.mxu0 0.0
    %3454 = vmatprep.subr.mxu0 0.0
    %3455 = vmatpush2.xpose.msra.mxu0 0.0
    %3456 = vmatprep.mubr.f32.mxu0 0.0
    %3457 = vmatmul.mubr.f32.gmra.mxu0 %v3384
    %v3458 = vpop.f32.mrf.mxu0
    %v3459 = vadd.f32 0.0, %v3458
    %v3460 = vpop.f32.mrf.mxu0
    %3461 = vmatprep.mubr.f32.mxu0 0.0
    %3462 = vmatmul.mubr.f32.gmra.mxu0 %v3386
    %v3463 = vpop.f32.mrf.mxu0
    %v3464 = vadd.f32 0.0, %v3463
    %v3465 = vpop.f32.mrf.mxu0
    %3466 = vdwg.mxu0
    %3467 = vrot.lane.b32.xlu0 %v1398, 120
    %v3468 = vpop.permute.xlu0 %3467
    %3469 = vrot.lane.b32.xlu0 %v1403, 120
    %v3470 = vpop.permute.xlu0 %3469
    %3471 = vrot.lane.b32.xlu0 %v1398, 88
    %v3472 = vpop.permute.xlu0 %3471
    %3473 = vrot.lane.b32.xlu0 %v1403, 88
    %v3474 = vpop.permute.xlu0 %3473
    %v3475 = vsel %vm1432, %v3468, 0
    %v3477 = vsel %vm1432, %v3470, 0
    %v3479 = vsel %vm1432, %v3472, 0
    %v3481 = vsel %vm1432, %v3474, 0
    %3483 = vmatprep.subr.mxu0 0.0
    %3484 = vmatpush1.xpose.msra.mxu0 0.0
    %3485 = vmatprep.subr.mxu0 0.0
    %3486 = vmatpush1.xpose.msra.mxu0 0.0
    %3487 = vmatprep.subr.mxu0 0.0
    %3488 = vmatpush1.xpose.msra.mxu0 0.0
    %3489 = vmatprep.subr.mxu0 0.0
    %3490 = vmatpush1.xpose.msra.mxu0 0.0
    %3491 = vmatprep.subr.mxu0 0.0
    %3492 = vmatpush1.xpose.msra.mxu0 0.0
    %3493 = vmatprep.subr.mxu0 0.0
    %3494 = vmatpush1.xpose.msra.mxu0 0.0
    %3495 = vmatprep.subr.mxu0 0.0
    %3496 = vmatpush1.xpose.msra.mxu0 0.0
    %3497 = vmatprep.subr.mxu0 0.0
    %3498 = vmatpush1.xpose.msra.mxu0 0.0
    %3499 = vmatprep.subr.mxu0 0.0
    %3500 = vmatpush1.xpose.msra.mxu0 0.0
    %3501 = vmatprep.subr.mxu0 0.0
    %3502 = vmatpush1.xpose.msra.mxu0 0.0
    %3503 = vmatprep.subr.mxu0 0.0
    %3504 = vmatpush1.xpose.msra.mxu0 0.0
    %3505 = vmatprep.subr.mxu0 0.0
    %3506 = vmatpush1.xpose.msra.mxu0 0.0
    %3507 = vmatprep.subr.mxu0 0.0
    %3508 = vmatpush1.xpose.msra.mxu0 0.0
    %3509 = vmatprep.subr.mxu0 0.0
    %3510 = vmatpush1.xpose.msra.mxu0 0.0
    %3511 = vmatprep.subr.mxu0 0.0
    %3512 = vmatpush1.xpose.msra.mxu0 %v3481
    %3513 = vmatprep.subr.mxu0 0.0
    %3514 = vmatpush1.xpose.msra.mxu0 %v3479
    %3515 = vmatprep.subr.mxu0 0.0
    %3516 = vmatpush2.xpose.msra.mxu0 0.0
    %3517 = vmatprep.subr.mxu0 0.0
    %3518 = vmatpush2.xpose.msra.mxu0 0.0
    %3519 = vmatprep.subr.mxu0 0.0
    %3520 = vmatpush2.xpose.msra.mxu0 0.0
    %3521 = vmatprep.subr.mxu0 0.0
    %3522 = vmatpush2.xpose.msra.mxu0 0.0
    %3523 = vmatprep.subr.mxu0 0.0
    %3524 = vmatpush2.xpose.msra.mxu0 0.0
    %3525 = vmatprep.subr.mxu0 0.0
    %3526 = vmatpush2.xpose.msra.mxu0 0.0
    %3527 = vmatprep.subr.mxu0 0.0
    %3528 = vmatpush2.xpose.msra.mxu0 0.0
    %3529 = vmatprep.subr.mxu0 0.0
    %3530 = vmatpush2.xpose.msra.mxu0 0.0
    %3531 = vmatprep.subr.mxu0 0.0
    %3532 = vmatpush2.xpose.msra.mxu0 0.0
    %3533 = vmatprep.subr.mxu0 0.0
    %3534 = vmatpush2.xpose.msra.mxu0 0.0
    %3535 = vmatprep.subr.mxu0 0.0
    %3536 = vmatpush2.xpose.msra.mxu0 0.0
    %3537 = vmatprep.subr.mxu0 0.0
    %3538 = vmatpush2.xpose.msra.mxu0 0.0
    %3539 = vmatprep.subr.mxu0 0.0
    %3540 = vmatpush2.xpose.msra.mxu0 0.0
    %3541 = vmatprep.subr.mxu0 0.0
    %3542 = vmatpush2.xpose.msra.mxu0 0.0
    %3543 = vmatprep.subr.mxu0 0.0
    %3544 = vmatpush2.xpose.msra.mxu0 0.0
    %3545 = vmatprep.subr.mxu0 0.0
    %3546 = vmatpush2.xpose.msra.mxu0 0.0
    %3547 = vmatprep.mubr.f32.mxu0 0.0
    %3548 = vmatmul.mubr.f32.gmra.mxu0 %v3475
    %v3549 = vpop.f32.mrf.mxu0
    %v3550 = vadd.f32 0.0, %v3549
    %v3551 = vpop.f32.mrf.mxu0
    %3552 = vmatprep.mubr.f32.mxu0 0.0
    %3553 = vmatmul.mubr.f32.gmra.mxu0 %v3477
    %v3554 = vpop.f32.mrf.mxu0
    %v3555 = vadd.f32 0.0, %v3554
    %v3556 = vpop.f32.mrf.mxu0
    %3557 = vdwg.mxu0
    %3558 = vrot.lane.b32.xlu0 %v1408, 120
    %v3559 = vpop.permute.xlu0 %3558
    %3560 = vrot.lane.b32.xlu0 %v1413, 120
    %v3561 = vpop.permute.xlu0 %3560
    %3562 = vrot.lane.b32.xlu0 %v1408, 88
    %v3563 = vpop.permute.xlu0 %3562
    %3564 = vrot.lane.b32.xlu0 %v1413, 88
    %v3565 = vpop.permute.xlu0 %3564
    %v3566 = vsel %vm1432, %v3559, 0
    %v3568 = vsel %vm1432, %v3561, 0
    %v3570 = vsel %vm1432, %v3563, 0
    %v3572 = vsel %vm1432, %v3565, 0
    %3574 = vmatprep.subr.mxu0 0.0
    %3575 = vmatpush1.xpose.msra.mxu0 0.0
    %3576 = vmatprep.subr.mxu0 0.0
    %3577 = vmatpush1.xpose.msra.mxu0 0.0
    %3578 = vmatprep.subr.mxu0 0.0
    %3579 = vmatpush1.xpose.msra.mxu0 0.0
    %3580 = vmatprep.subr.mxu0 0.0
    %3581 = vmatpush1.xpose.msra.mxu0 0.0
    %3582 = vmatprep.subr.mxu0 0.0
    %3583 = vmatpush1.xpose.msra.mxu0 0.0
    %3584 = vmatprep.subr.mxu0 0.0
    %3585 = vmatpush1.xpose.msra.mxu0 0.0
    %3586 = vmatprep.subr.mxu0 0.0
    %3587 = vmatpush1.xpose.msra.mxu0 0.0
    %3588 = vmatprep.subr.mxu0 0.0
    %3589 = vmatpush1.xpose.msra.mxu0 0.0
    %3590 = vmatprep.subr.mxu0 0.0
    %3591 = vmatpush1.xpose.msra.mxu0 0.0
    %3592 = vmatprep.subr.mxu0 0.0
    %3593 = vmatpush1.xpose.msra.mxu0 0.0
    %3594 = vmatprep.subr.mxu0 0.0
    %3595 = vmatpush1.xpose.msra.mxu0 0.0
    %3596 = vmatprep.subr.mxu0 0.0
    %3597 = vmatpush1.xpose.msra.mxu0 0.0
    %3598 = vmatprep.subr.mxu0 0.0
    %3599 = vmatpush1.xpose.msra.mxu0 0.0
    %3600 = vmatprep.subr.mxu0 0.0
    %3601 = vmatpush1.xpose.msra.mxu0 0.0
    %3602 = vmatprep.subr.mxu0 0.0
    %3603 = vmatpush1.xpose.msra.mxu0 %v3572
    %3604 = vmatprep.subr.mxu0 0.0
    %3605 = vmatpush1.xpose.msra.mxu0 %v3570
    %3606 = vmatprep.subr.mxu0 0.0
    %3607 = vmatpush2.xpose.msra.mxu0 0.0
    %3608 = vmatprep.subr.mxu0 0.0
    %3609 = vmatpush2.xpose.msra.mxu0 0.0
    %3610 = vmatprep.subr.mxu0 0.0
    %3611 = vmatpush2.xpose.msra.mxu0 0.0
    %3612 = vmatprep.subr.mxu0 0.0
    %3613 = vmatpush2.xpose.msra.mxu0 0.0
    %3614 = vmatprep.subr.mxu0 0.0
    %3615 = vmatpush2.xpose.msra.mxu0 0.0
    %3616 = vmatprep.subr.mxu0 0.0
    %3617 = vmatpush2.xpose.msra.mxu0 0.0
    %3618 = vmatprep.subr.mxu0 0.0
    %3619 = vmatpush2.xpose.msra.mxu0 0.0
    %3620 = vmatprep.subr.mxu0 0.0
    %3621 = vmatpush2.xpose.msra.mxu0 0.0
    %3622 = vmatprep.subr.mxu0 0.0
    %3623 = vmatpush2.xpose.msra.mxu0 0.0
    %3624 = vmatprep.subr.mxu0 0.0
    %3625 = vmatpush2.xpose.msra.mxu0 0.0
    %3626 = vmatprep.subr.mxu0 0.0
    %3627 = vmatpush2.xpose.msra.mxu0 0.0
    %3628 = vmatprep.subr.mxu0 0.0
    %3629 = vmatpush2.xpose.msra.mxu0 0.0
    %3630 = vmatprep.subr.mxu0 0.0
    %3631 = vmatpush2.xpose.msra.mxu0 0.0
    %3632 = vmatprep.subr.mxu0 0.0
    %3633 = vmatpush2.xpose.msra.mxu0 0.0
    %3634 = vmatprep.subr.mxu0 0.0
    %3635 = vmatpush2.xpose.msra.mxu0 0.0
    %3636 = vmatprep.subr.mxu0 0.0
    %3637 = vmatpush2.xpose.msra.mxu0 0.0
    %3638 = vmatprep.mubr.f32.mxu0 0.0
    %3639 = vmatmul.mubr.f32.gmra.mxu0 %v3566
    %v3640 = vpop.f32.mrf.mxu0
    %v3641 = vadd.f32 0.0, %v3640
    %v3642 = vpop.f32.mrf.mxu0
    %3643 = vmatprep.mubr.f32.mxu0 0.0
    %3644 = vmatmul.mubr.f32.gmra.mxu0 %v3568
    %v3645 = vpop.f32.mrf.mxu0
    %v3646 = vadd.f32 0.0, %v3645
    %v3647 = vpop.f32.mrf.mxu0
    %3648 = vdwg.mxu0
    %3649 = vrot.lane.b32.xlu0 %v1418, 120
    %v3650 = vpop.permute.xlu0 %3649
    %3651 = vrot.lane.b32.xlu0 %v1423, 120
    %v3652 = vpop.permute.xlu0 %3651
    %3653 = vrot.lane.b32.xlu0 %v1418, 88
    %v3654 = vpop.permute.xlu0 %3653
    %3655 = vrot.lane.b32.xlu0 %v1423, 88
    %v3656 = vpop.permute.xlu0 %3655
    %v3657 = vsel %vm1432, %v3650, 0
    %v3659 = vsel %vm1432, %v3652, 0
    %v3661 = vsel %vm1432, %v3654, 0
    %v3663 = vsel %vm1432, %v3656, 0
    %3665 = vmatprep.subr.mxu0 0.0
    %3666 = vmatpush1.xpose.msra.mxu0 0.0
    %3667 = vmatprep.subr.mxu0 0.0
    %3668 = vmatpush1.xpose.msra.mxu0 0.0
    %3669 = vmatprep.subr.mxu0 0.0
    %3670 = vmatpush1.xpose.msra.mxu0 0.0
    %3671 = vmatprep.subr.mxu0 0.0
    %3672 = vmatpush1.xpose.msra.mxu0 0.0
    %3673 = vmatprep.subr.mxu0 0.0
    %3674 = vmatpush1.xpose.msra.mxu0 0.0
    %3675 = vmatprep.subr.mxu0 0.0
    %3676 = vmatpush1.xpose.msra.mxu0 0.0
    %3677 = vmatprep.subr.mxu0 0.0
    %3678 = vmatpush1.xpose.msra.mxu0 0.0
    %3679 = vmatprep.subr.mxu0 0.0
    %3680 = vmatpush1.xpose.msra.mxu0 0.0
    %3681 = vmatprep.subr.mxu0 0.0
    %3682 = vmatpush1.xpose.msra.mxu0 0.0
    %3683 = vmatprep.subr.mxu0 0.0
    %3684 = vmatpush1.xpose.msra.mxu0 0.0
    %3685 = vmatprep.subr.mxu0 0.0
    %3686 = vmatpush1.xpose.msra.mxu0 0.0
    %3687 = vmatprep.subr.mxu0 0.0
    %3688 = vmatpush1.xpose.msra.mxu0 0.0
    %3689 = vmatprep.subr.mxu0 0.0
    %3690 = vmatpush1.xpose.msra.mxu0 0.0
    %3691 = vmatprep.subr.mxu0 0.0
    %3692 = vmatpush1.xpose.msra.mxu0 0.0
    %3693 = vmatprep.subr.mxu0 0.0
    %3694 = vmatpush1.xpose.msra.mxu0 %v3663
    %3695 = vmatprep.subr.mxu0 0.0
    %3696 = vmatpush1.xpose.msra.mxu0 %v3661
    %3697 = vmatprep.subr.mxu0 0.0
    %3698 = vmatpush2.xpose.msra.mxu0 0.0
    %3699 = vmatprep.subr.mxu0 0.0
    %3700 = vmatpush2.xpose.msra.mxu0 0.0
    %3701 = vmatprep.subr.mxu0 0.0
    %3702 = vmatpush2.xpose.msra.mxu0 0.0
    %3703 = vmatprep.subr.mxu0 0.0
    %3704 = vmatpush2.xpose.msra.mxu0 0.0
    %3705 = vmatprep.subr.mxu0 0.0
    %3706 = vmatpush2.xpose.msra.mxu0 0.0
    %3707 = vmatprep.subr.mxu0 0.0
    %3708 = vmatpush2.xpose.msra.mxu0 0.0
    %3709 = vmatprep.subr.mxu0 0.0
    %3710 = vmatpush2.xpose.msra.mxu0 0.0
    %3711 = vmatprep.subr.mxu0 0.0
    %3712 = vmatpush2.xpose.msra.mxu0 0.0
    %3713 = vmatprep.subr.mxu0 0.0
    %3714 = vmatpush2.xpose.msra.mxu0 0.0
    %3715 = vmatprep.subr.mxu0 0.0
    %3716 = vmatpush2.xpose.msra.mxu0 0.0
    %3717 = vmatprep.subr.mxu0 0.0
    %3718 = vmatpush2.xpose.msra.mxu0 0.0
    %3719 = vmatprep.subr.mxu0 0.0
    %3720 = vmatpush2.xpose.msra.mxu0 0.0
    %3721 = vmatprep.subr.mxu0 0.0
    %3722 = vmatpush2.xpose.msra.mxu0 0.0
    %3723 = vmatprep.subr.mxu0 0.0
    %3724 = vmatpush2.xpose.msra.mxu0 0.0
    %3725 = vmatprep.subr.mxu0 0.0
    %3726 = vmatpush2.xpose.msra.mxu0 0.0
    %3727 = vmatprep.subr.mxu0 0.0
    %3728 = vmatpush2.xpose.msra.mxu0 0.0
    %3729 = vmatprep.mubr.f32.mxu0 0.0
    %3730 = vmatmul.mubr.f32.gmra.mxu0 %v3657
    %v3731 = vpop.f32.mrf.mxu0
    %v3732 = vadd.f32 0.0, %v3731
    %v3733 = vpop.f32.mrf.mxu0
    %3734 = vmatprep.mubr.f32.mxu0 0.0
    %3735 = vmatmul.mubr.f32.gmra.mxu0 %v3659
    %v3736 = vpop.f32.mrf.mxu0
    %v3737 = vadd.f32 0.0, %v3736
    %v3738 = vpop.f32.mrf.mxu0
    %3739 = vdwg.mxu0
    %v3740 = vsel %vm2139, %v3095, -inf
    %3741 = vmax.xlane.f32.xlu0 %v3740
    %v3742 = vpop.xlane.xlu0 %3741
    %v3743 = vsel %vm2139, %v3100, -inf
    %3744 = vmax.xlane.f32.xlu0 %v3743
    %v3745 = vpop.xlane.xlu0 %3744
    %v3746 = vsel %vm2139, %v3186, -inf
    %3747 = vmax.xlane.f32.xlu0 %v3746
    %v3748 = vpop.xlane.xlu0 %3747
    %v3749 = vsel %vm2139, %v3191, -inf
    %3750 = vmax.xlane.f32.xlu0 %v3749
    %v3751 = vpop.xlane.xlu0 %3750
    %v3752 = vsel %vm2139, %v3277, -inf
    %3753 = vmax.xlane.f32.xlu0 %v3752
    %v3754 = vpop.xlane.xlu0 %3753
    %v3755 = vsel %vm2139, %v3282, -inf
    %3756 = vmax.xlane.f32.xlu0 %v3755
    %v3757 = vpop.xlane.xlu0 %3756
    %v3758 = vsel %vm2139, %v3368, -inf
    %3759 = vmax.xlane.f32.xlu0 %v3758
    %v3760 = vpop.xlane.xlu0 %3759
    %v3761 = vsel %vm2139, %v3373, -inf
    %3762 = vmax.xlane.f32.xlu0 %v3761
    %v3763 = vpop.xlane.xlu0 %3762
    %v3764 = vsel %vm2139, %v3459, -inf
    %3765 = vmax.xlane.f32.xlu0 %v3764
    %v3766 = vpop.xlane.xlu0 %3765
    %v3767 = vsel %vm2139, %v3464, -inf
    %3768 = vmax.xlane.f32.xlu0 %v3767
    %v3769 = vpop.xlane.xlu0 %3768
    %v3770 = vsel %vm2139, %v3550, -inf
    %3771 = vmax.xlane.f32.xlu0 %v3770
    %v3772 = vpop.xlane.xlu0 %3771
    %v3773 = vsel %vm2139, %v3555, -inf
    %3774 = vmax.xlane.f32.xlu0 %v3773
    %v3775 = vpop.xlane.xlu0 %3774
    %v3776 = vsel %vm2139, %v3641, -inf
    %3777 = vmax.xlane.f32.xlu0 %v3776
    %v3778 = vpop.xlane.xlu0 %3777
    %v3779 = vsel %vm2139, %v3646, -inf
    %3780 = vmax.xlane.f32.xlu0 %v3779
    %v3781 = vpop.xlane.xlu0 %3780
    %v3782 = vsel %vm2139, %v3732, -inf
    %3783 = vmax.xlane.f32.xlu0 %v3782
    %v3784 = vpop.xlane.xlu0 %3783
    %v3785 = vsel %vm2139, %v3737, -inf
    %3786 = vmax.xlane.f32.xlu0 %v3785
    %v3787 = vpop.xlane.xlu0 %3786
    %v3788 = vsub.f32 %v3095, %v3742
    %v3789 = vsub.f32 %v3100, %v3745
    %v3790 = vsub.f32 %v3186, %v3748
    %v3791 = vsub.f32 %v3191, %v3751
    %v3792 = vsub.f32 %v3277, %v3754
    %v3793 = vsub.f32 %v3282, %v3757
    %v3794 = vsub.f32 %v3368, %v3760
    %v3795 = vsub.f32 %v3373, %v3763
    %v3796 = vsub.f32 %v3459, %v3766
    %v3797 = vsub.f32 %v3464, %v3769
    %v3798 = vsub.f32 %v3550, %v3772
    %v3799 = vsub.f32 %v3555, %v3775
    %v3800 = vsub.f32 %v3641, %v3778
    %v3801 = vsub.f32 %v3646, %v3781
    %v3802 = vsub.f32 %v3732, %v3784
    %v3803 = vsub.f32 %v3737, %v3787
    %v3804 = vmul.f32 %v3788, 1.442695
    %v3805 = vpow.pop %v3804
    %v3806 = vmul.f32 %v3789, 1.442695
    %v3807 = vpow.pop %v3806
    %v3808 = vmul.f32 %v3790, 1.442695
    %v3809 = vpow.pop %v3808
    %v3810 = vmul.f32 %v3791, 1.442695
    %v3811 = vpow.pop %v3810
    %v3812 = vmul.f32 %v3792, 1.442695
    %v3813 = vpow.pop %v3812
    %v3814 = vmul.f32 %v3793, 1.442695
    %v3815 = vpow.pop %v3814
    %v3816 = vmul.f32 %v3794, 1.442695
    %v3817 = vpow.pop %v3816
    %v3818 = vmul.f32 %v3795, 1.442695
    %v3819 = vpow.pop %v3818
    %v3820 = vmul.f32 %v3796, 1.442695
    %v3821 = vpow.pop %v3820
    %v3822 = vmul.f32 %v3797, 1.442695
    %v3823 = vpow.pop %v3822
    %v3824 = vmul.f32 %v3798, 1.442695
    %v3825 = vpow.pop %v3824
    %v3826 = vmul.f32 %v3799, 1.442695
    %v3827 = vpow.pop %v3826
    %v3828 = vmul.f32 %v3800, 1.442695
    %v3829 = vpow.pop %v3828
    %v3830 = vmul.f32 %v3801, 1.442695
    %v3831 = vpow.pop %v3830
    %v3832 = vmul.f32 %v3802, 1.442695
    %v3833 = vpow.pop %v3832
    %v3834 = vmul.f32 %v3803, 1.442695
    %v3835 = vpow.pop %v3834
    %v3836 = vsel %vm2139, %v3805, 0.0
    %3837 = vadd.xlane.f32.xlu0 %v3836
    %v3838 = vpop.xlane.xlu0 %3837
    %v3839 = vsel %vm2139, %v3807, 0.0
    %3840 = vadd.xlane.f32.xlu0 %v3839
    %v3841 = vpop.xlane.xlu0 %3840
    %v3842 = vsel %vm2139, %v3809, 0.0
    %3843 = vadd.xlane.f32.xlu0 %v3842
    %v3844 = vpop.xlane.xlu0 %3843
    %v3845 = vsel %vm2139, %v3811, 0.0
    %3846 = vadd.xlane.f32.xlu0 %v3845
    %v3847 = vpop.xlane.xlu0 %3846
    %v3848 = vsel %vm2139, %v3813, 0.0
    %3849 = vadd.xlane.f32.xlu0 %v3848
    %v3850 = vpop.xlane.xlu0 %3849
    %v3851 = vsel %vm2139, %v3815, 0.0
    %3852 = vadd.xlane.f32.xlu0 %v3851
    %v3853 = vpop.xlane.xlu0 %3852
    %v3854 = vsel %vm2139, %v3817, 0.0
    %3855 = vadd.xlane.f32.xlu0 %v3854
    %v3856 = vpop.xlane.xlu0 %3855
    %v3857 = vsel %vm2139, %v3819, 0.0
    %3858 = vadd.xlane.f32.xlu0 %v3857
    %v3859 = vpop.xlane.xlu0 %3858
    %v3860 = vsel %vm2139, %v3821, 0.0
    %3861 = vadd.xlane.f32.xlu0 %v3860
    %v3862 = vpop.xlane.xlu0 %3861
    %v3863 = vsel %vm2139, %v3823, 0.0
    %3864 = vadd.xlane.f32.xlu0 %v3863
    %v3865 = vpop.xlane.xlu0 %3864
    %v3866 = vsel %vm2139, %v3825, 0.0
    %3867 = vadd.xlane.f32.xlu0 %v3866
    %v3868 = vpop.xlane.xlu0 %3867
    %v3869 = vsel %vm2139, %v3827, 0.0
    %3870 = vadd.xlane.f32.xlu0 %v3869
    %v3871 = vpop.xlane.xlu0 %3870
    %v3872 = vsel %vm2139, %v3829, 0.0
    %3873 = vadd.xlane.f32.xlu0 %v3872
    %v3874 = vpop.xlane.xlu0 %3873
    %v3875 = vsel %vm2139, %v3831, 0.0
    %3876 = vadd.xlane.f32.xlu0 %v3875
    %v3877 = vpop.xlane.xlu0 %3876
    %v3878 = vsel %vm2139, %v3833, 0.0
    %3879 = vadd.xlane.f32.xlu0 %v3878
    %v3880 = vpop.xlane.xlu0 %3879
    %v3881 = vsel %vm2139, %v3835, 0.0
    %3882 = vadd.xlane.f32.xlu0 %v3881
    %v3883 = vpop.xlane.xlu0 %3882
    %v3884 = vrcp.pop %v3838
    %v3885 = vrcp.pop %v3841
    %v3886 = vrcp.pop %v3844
    %v3887 = vrcp.pop %v3847
    %v3888 = vrcp.pop %v3850
    %v3889 = vrcp.pop %v3853
    %v3890 = vrcp.pop %v3856
    %v3891 = vrcp.pop %v3859
    %v3892 = vrcp.pop %v3862
    %v3893 = vrcp.pop %v3865
    %v3894 = vrcp.pop %v3868
    %v3895 = vrcp.pop %v3871
    %v3896 = vrcp.pop %v3874
    %v3897 = vrcp.pop %v3877
    %v3898 = vrcp.pop %v3880
    %v3899 = vrcp.pop %v3883
    %v3900 = vmul.f32 %v3805, %v3884
    %v3901 = vmul.f32 %v3807, %v3885
    %v3902 = vmul.f32 %v3809, %v3886
    %v3903 = vmul.f32 %v3811, %v3887
    %v3904 = vmul.f32 %v3813, %v3888
    %v3905 = vmul.f32 %v3815, %v3889
    %v3906 = vmul.f32 %v3817, %v3890
    %v3907 = vmul.f32 %v3819, %v3891
    %v3908 = vmul.f32 %v3821, %v3892
    %v3909 = vmul.f32 %v3823, %v3893
    %v3910 = vmul.f32 %v3825, %v3894
    %v3911 = vmul.f32 %v3827, %v3895
    %v3912 = vmul.f32 %v3829, %v3896
    %v3913 = vmul.f32 %v3831, %v3897
    %v3914 = vmul.f32 %v3833, %v3898
    %v3915 = vmul.f32 %v3835, %v3899
    %3916 = vrot.lane.b32.xlu0 %v1348, 56
    %v3917 = vpop.permute.xlu0 %3916
    %3918 = vrot.lane.b32.xlu0 %v1353, 56
    %v3919 = vpop.permute.xlu0 %3918
    %v3923 = vsel %vm2139, %v3900, 0
    %v3926 = vsel %vm2139, %v3901, 0
    %3928 = vmatprep.subr.mxu0 0.0
    %3929 = vmatpush1.msra.mxu0 0.0
    %3930 = vmatprep.subr.mxu0 0.0
    %3931 = vmatpush1.msra.mxu0 0.0
    %3932 = vmatprep.subr.mxu0 0.0
    %3933 = vmatpush1.msra.mxu0 0.0
    %3934 = vmatprep.subr.mxu0 0.0
    %3935 = vmatpush1.msra.mxu0 0.0
    %3936 = vmatprep.subr.mxu0 0.0
    %3937 = vmatpush1.msra.mxu0 0.0
    %3938 = vmatprep.subr.mxu0 0.0
    %3939 = vmatpush1.msra.mxu0 0.0
    %3940 = vmatprep.subr.mxu0 0.0
    %3941 = vmatpush1.msra.mxu0 0.0
    %3942 = vmatprep.subr.mxu0 0.0
    %3943 = vmatpush1.msra.mxu0 0.0
    %3944 = vmatprep.subr.mxu0 0.0
    %3945 = vmatpush1.msra.mxu0 0.0
    %3946 = vmatprep.subr.mxu0 0.0
    %3947 = vmatpush1.msra.mxu0 0.0
    %3948 = vmatprep.subr.mxu0 0.0
    %3949 = vmatpush1.msra.mxu0 0.0
    %3950 = vmatprep.subr.mxu0 0.0
    %3951 = vmatpush1.msra.mxu0 0.0
    %3952 = vmatprep.subr.mxu0 0.0
    %3953 = vmatpush1.msra.mxu0 0.0
    %3954 = vmatprep.subr.mxu0 0.0
    %3955 = vmatpush1.msra.mxu0 0.0
    %3956 = vmatprep.subr.mxu0 0.0
    %3957 = vmatpush1.msra.mxu0 %v3919
    %3958 = vmatprep.subr.mxu0 0.0
    %3959 = vmatpush1.msra.mxu0 %v3917
    %3960 = vmatprep.subr.mxu0 0.0
    %3961 = vmatpush2.msra.mxu0 0.0
    %3962 = vmatprep.subr.mxu0 0.0
    %3963 = vmatpush2.msra.mxu0 0.0
    %3964 = vmatprep.subr.mxu0 0.0
    %3965 = vmatpush2.msra.mxu0 0.0
    %3966 = vmatprep.subr.mxu0 0.0
    %3967 = vmatpush2.msra.mxu0 0.0
    %3968 = vmatprep.subr.mxu0 0.0
    %3969 = vmatpush2.msra.mxu0 0.0
    %3970 = vmatprep.subr.mxu0 0.0
    %3971 = vmatpush2.msra.mxu0 0.0
    %3972 = vmatprep.subr.mxu0 0.0
    %3973 = vmatpush2.msra.mxu0 0.0
    %3974 = vmatprep.subr.mxu0 0.0
    %3975 = vmatpush2.msra.mxu0 0.0
    %3976 = vmatprep.subr.mxu0 0.0
    %3977 = vmatpush2.msra.mxu0 0.0
    %3978 = vmatprep.subr.mxu0 0.0
    %3979 = vmatpush2.msra.mxu0 0.0
    %3980 = vmatprep.subr.mxu0 0.0
    %3981 = vmatpush2.msra.mxu0 0.0
    %3982 = vmatprep.subr.mxu0 0.0
    %3983 = vmatpush2.msra.mxu0 0.0
    %3984 = vmatprep.subr.mxu0 0.0
    %3985 = vmatpush2.msra.mxu0 0.0
    %3986 = vmatprep.subr.mxu0 0.0
    %3987 = vmatpush2.msra.mxu0 0.0
    %3988 = vmatprep.subr.mxu0 0.0
    %3989 = vmatpush2.msra.mxu0 0.0
    %3990 = vmatprep.subr.mxu0 0.0
    %3991 = vmatpush2.msra.mxu0 0.0
    %3992 = vmatprep.mubr.f32.mxu0 0.0
    %3993 = vmatmul.mubr.f32.gmra.mxu0 %v3923
    %v3994 = vpop.f32.mrf.mxu0
    %v3995 = vadd.f32 0.0, %v3994
    %v3996 = vpop.f32.mrf.mxu0
    %3997 = vmatprep.mubr.f32.mxu0 0.0
    %3998 = vmatmul.mubr.f32.gmra.mxu0 %v3926
    %v3999 = vpop.f32.mrf.mxu0
    %v4000 = vadd.f32 0.0, %v3999
    %v4001 = vpop.f32.mrf.mxu0
    %4002 = vdwg.mxu0
    %4003 = vrot.lane.b32.xlu0 %v1358, 56
    %v4004 = vpop.permute.xlu0 %4003
    %4005 = vrot.lane.b32.xlu0 %v1363, 56
    %v4006 = vpop.permute.xlu0 %4005
    %v4010 = vsel %vm2139, %v3902, 0
    %v4013 = vsel %vm2139, %v3903, 0
    %4015 = vmatprep.subr.mxu0 0.0
    %4016 = vmatpush1.msra.mxu0 0.0
    %4017 = vmatprep.subr.mxu0 0.0
    %4018 = vmatpush1.msra.mxu0 0.0
    %4019 = vmatprep.subr.mxu0 0.0
    %4020 = vmatpush1.msra.mxu0 0.0
    %4021 = vmatprep.subr.mxu0 0.0
    %4022 = vmatpush1.msra.mxu0 0.0
    %4023 = vmatprep.subr.mxu0 0.0
    %4024 = vmatpush1.msra.mxu0 0.0
    %4025 = vmatprep.subr.mxu0 0.0
    %4026 = vmatpush1.msra.mxu0 0.0
    %4027 = vmatprep.subr.mxu0 0.0
    %4028 = vmatpush1.msra.mxu0 0.0
    %4029 = vmatprep.subr.mxu0 0.0
    %4030 = vmatpush1.msra.mxu0 0.0
    %4031 = vmatprep.subr.mxu0 0.0
    %4032 = vmatpush1.msra.mxu0 0.0
    %4033 = vmatprep.subr.mxu0 0.0
    %4034 = vmatpush1.msra.mxu0 0.0
    %4035 = vmatprep.subr.mxu0 0.0
    %4036 = vmatpush1.msra.mxu0 0.0
    %4037 = vmatprep.subr.mxu0 0.0
    %4038 = vmatpush1.msra.mxu0 0.0
    %4039 = vmatprep.subr.mxu0 0.0
    %4040 = vmatpush1.msra.mxu0 0.0
    %4041 = vmatprep.subr.mxu0 0.0
    %4042 = vmatpush1.msra.mxu0 0.0
    %4043 = vmatprep.subr.mxu0 0.0
    %4044 = vmatpush1.msra.mxu0 %v4006
    %4045 = vmatprep.subr.mxu0 0.0
    %4046 = vmatpush1.msra.mxu0 %v4004
    %4047 = vmatprep.subr.mxu0 0.0
    %4048 = vmatpush2.msra.mxu0 0.0
    %4049 = vmatprep.subr.mxu0 0.0
    %4050 = vmatpush2.msra.mxu0 0.0
    %4051 = vmatprep.subr.mxu0 0.0
    %4052 = vmatpush2.msra.mxu0 0.0
    %4053 = vmatprep.subr.mxu0 0.0
    %4054 = vmatpush2.msra.mxu0 0.0
    %4055 = vmatprep.subr.mxu0 0.0
    %4056 = vmatpush2.msra.mxu0 0.0
    %4057 = vmatprep.subr.mxu0 0.0
    %4058 = vmatpush2.msra.mxu0 0.0
    %4059 = vmatprep.subr.mxu0 0.0
    %4060 = vmatpush2.msra.mxu0 0.0
    %4061 = vmatprep.subr.mxu0 0.0
    %4062 = vmatpush2.msra.mxu0 0.0
    %4063 = vmatprep.subr.mxu0 0.0
    %4064 = vmatpush2.msra.mxu0 0.0
    %4065 = vmatprep.subr.mxu0 0.0
    %4066 = vmatpush2.msra.mxu0 0.0
    %4067 = vmatprep.subr.mxu0 0.0
    %4068 = vmatpush2.msra.mxu0 0.0
    %4069 = vmatprep.subr.mxu0 0.0
    %4070 = vmatpush2.msra.mxu0 0.0
    %4071 = vmatprep.subr.mxu0 0.0
    %4072 = vmatpush2.msra.mxu0 0.0
    %4073 = vmatprep.subr.mxu0 0.0
    %4074 = vmatpush2.msra.mxu0 0.0
    %4075 = vmatprep.subr.mxu0 0.0
    %4076 = vmatpush2.msra.mxu0 0.0
    %4077 = vmatprep.subr.mxu0 0.0
    %4078 = vmatpush2.msra.mxu0 0.0
    %4079 = vmatprep.mubr.f32.mxu0 0.0
    %4080 = vmatmul.mubr.f32.gmra.mxu0 %v4010
    %v4081 = vpop.f32.mrf.mxu0
    %v4082 = vadd.f32 0.0, %v4081
    %v4083 = vpop.f32.mrf.mxu0
    %4084 = vmatprep.mubr.f32.mxu0 0.0
    %4085 = vmatmul.mubr.f32.gmra.mxu0 %v4013
    %v4086 = vpop.f32.mrf.mxu0
    %v4087 = vadd.f32 0.0, %v4086
    %v4088 = vpop.f32.mrf.mxu0
    %4089 = vdwg.mxu0
    %4090 = vrot.lane.b32.xlu0 %v1368, 56
    %v4091 = vpop.permute.xlu0 %4090
    %4092 = vrot.lane.b32.xlu0 %v1373, 56
    %v4093 = vpop.permute.xlu0 %4092
    %v4097 = vsel %vm2139, %v3904, 0
    %v4100 = vsel %vm2139, %v3905, 0
    %4102 = vmatprep.subr.mxu0 0.0
    %4103 = vmatpush1.msra.mxu0 0.0
    %4104 = vmatprep.subr.mxu0 0.0
    %4105 = vmatpush1.msra.mxu0 0.0
    %4106 = vmatprep.subr.mxu0 0.0
    %4107 = vmatpush1.msra.mxu0 0.0
    %4108 = vmatprep.subr.mxu0 0.0
    %4109 = vmatpush1.msra.mxu0 0.0
    %4110 = vmatprep.subr.mxu0 0.0
    %4111 = vmatpush1.msra.mxu0 0.0
    %4112 = vmatprep.subr.mxu0 0.0
    %4113 = vmatpush1.msra.mxu0 0.0
    %4114 = vmatprep.subr.mxu0 0.0
    %4115 = vmatpush1.msra.mxu0 0.0
    %4116 = vmatprep.subr.mxu0 0.0
    %4117 = vmatpush1.msra.mxu0 0.0
    %4118 = vmatprep.subr.mxu0 0.0
    %4119 = vmatpush1.msra.mxu0 0.0
    %4120 = vmatprep.subr.mxu0 0.0
    %4121 = vmatpush1.msra.mxu0 0.0
    %4122 = vmatprep.subr.mxu0 0.0
    %4123 = vmatpush1.msra.mxu0 0.0
    %4124 = vmatprep.subr.mxu0 0.0
    %4125 = vmatpush1.msra.mxu0 0.0
    %4126 = vmatprep.subr.mxu0 0.0
    %4127 = vmatpush1.msra.mxu0 0.0
    %4128 = vmatprep.subr.mxu0 0.0
    %4129 = vmatpush1.msra.mxu0 0.0
    %4130 = vmatprep.subr.mxu0 0.0
    %4131 = vmatpush1.msra.mxu0 %v4093
    %4132 = vmatprep.subr.mxu0 0.0
    %4133 = vmatpush1.msra.mxu0 %v4091
    %4134 = vmatprep.subr.mxu0 0.0
    %4135 = vmatpush2.msra.mxu0 0.0
    %4136 = vmatprep.subr.mxu0 0.0
    %4137 = vmatpush2.msra.mxu0 0.0
    %4138 = vmatprep.subr.mxu0 0.0
    %4139 = vmatpush2.msra.mxu0 0.0
    %4140 = vmatprep.subr.mxu0 0.0
    %4141 = vmatpush2.msra.mxu0 0.0
    %4142 = vmatprep.subr.mxu0 0.0
    %4143 = vmatpush2.msra.mxu0 0.0
    %4144 = vmatprep.subr.mxu0 0.0
    %4145 = vmatpush2.msra.mxu0 0.0
    %4146 = vmatprep.subr.mxu0 0.0
    %4147 = vmatpush2.msra.mxu0 0.0
    %4148 = vmatprep.subr.mxu0 0.0
    %4149 = vmatpush2.msra.mxu0 0.0
    %4150 = vmatprep.subr.mxu0 0.0
    %4151 = vmatpush2.msra.mxu0 0.0
    %4152 = vmatprep.subr.mxu0 0.0
    %4153 = vmatpush2.msra.mxu0 0.0
    %4154 = vmatprep.subr.mxu0 0.0
    %4155 = vmatpush2.msra.mxu0 0.0
    %4156 = vmatprep.subr.mxu0 0.0
    %4157 = vmatpush2.msra.mxu0 0.0
    %4158 = vmatprep.subr.mxu0 0.0
    %4159 = vmatpush2.msra.mxu0 0.0
    %4160 = vmatprep.subr.mxu0 0.0
    %4161 = vmatpush2.msra.mxu0 0.0
    %4162 = vmatprep.subr.mxu0 0.0
    %4163 = vmatpush2.msra.mxu0 0.0
    %4164 = vmatprep.subr.mxu0 0.0
    %4165 = vmatpush2.msra.mxu0 0.0
    %4166 = vmatprep.mubr.f32.mxu0 0.0
    %4167 = vmatmul.mubr.f32.gmra.mxu0 %v4097
    %v4168 = vpop.f32.mrf.mxu0
    %v4169 = vadd.f32 0.0, %v4168
    %v4170 = vpop.f32.mrf.mxu0
    %4171 = vmatprep.mubr.f32.mxu0 0.0
    %4172 = vmatmul.mubr.f32.gmra.mxu0 %v4100
    %v4173 = vpop.f32.mrf.mxu0
    %v4174 = vadd.f32 0.0, %v4173
    %v4175 = vpop.f32.mrf.mxu0
    %4176 = vdwg.mxu0
    %4177 = vrot.lane.b32.xlu0 %v1378, 56
    %v4178 = vpop.permute.xlu0 %4177
    %4179 = vrot.lane.b32.xlu0 %v1383, 56
    %v4180 = vpop.permute.xlu0 %4179
    %v4184 = vsel %vm2139, %v3906, 0
    %v4187 = vsel %vm2139, %v3907, 0
    %4189 = vmatprep.subr.mxu0 0.0
    %4190 = vmatpush1.msra.mxu0 0.0
    %4191 = vmatprep.subr.mxu0 0.0
    %4192 = vmatpush1.msra.mxu0 0.0
    %4193 = vmatprep.subr.mxu0 0.0
    %4194 = vmatpush1.msra.mxu0 0.0
    %4195 = vmatprep.subr.mxu0 0.0
    %4196 = vmatpush1.msra.mxu0 0.0
    %4197 = vmatprep.subr.mxu0 0.0
    %4198 = vmatpush1.msra.mxu0 0.0
    %4199 = vmatprep.subr.mxu0 0.0
    %4200 = vmatpush1.msra.mxu0 0.0
    %4201 = vmatprep.subr.mxu0 0.0
    %4202 = vmatpush1.msra.mxu0 0.0
    %4203 = vmatprep.subr.mxu0 0.0
    %4204 = vmatpush1.msra.mxu0 0.0
    %4205 = vmatprep.subr.mxu0 0.0
    %4206 = vmatpush1.msra.mxu0 0.0
    %4207 = vmatprep.subr.mxu0 0.0
    %4208 = vmatpush1.msra.mxu0 0.0
    %4209 = vmatprep.subr.mxu0 0.0
    %4210 = vmatpush1.msra.mxu0 0.0
    %4211 = vmatprep.subr.mxu0 0.0
    %4212 = vmatpush1.msra.mxu0 0.0
    %4213 = vmatprep.subr.mxu0 0.0
    %4214 = vmatpush1.msra.mxu0 0.0
    %4215 = vmatprep.subr.mxu0 0.0
    %4216 = vmatpush1.msra.mxu0 0.0
    %4217 = vmatprep.subr.mxu0 0.0
    %4218 = vmatpush1.msra.mxu0 %v4180
    %4219 = vmatprep.subr.mxu0 0.0
    %4220 = vmatpush1.msra.mxu0 %v4178
    %4221 = vmatprep.subr.mxu0 0.0
    %4222 = vmatpush2.msra.mxu0 0.0
    %4223 = vmatprep.subr.mxu0 0.0
    %4224 = vmatpush2.msra.mxu0 0.0
    %4225 = vmatprep.subr.mxu0 0.0
    %4226 = vmatpush2.msra.mxu0 0.0
    %4227 = vmatprep.subr.mxu0 0.0
    %4228 = vmatpush2.msra.mxu0 0.0
    %4229 = vmatprep.subr.mxu0 0.0
    %4230 = vmatpush2.msra.mxu0 0.0
    %4231 = vmatprep.subr.mxu0 0.0
    %4232 = vmatpush2.msra.mxu0 0.0
    %4233 = vmatprep.subr.mxu0 0.0
    %4234 = vmatpush2.msra.mxu0 0.0
    %4235 = vmatprep.subr.mxu0 0.0
    %4236 = vmatpush2.msra.mxu0 0.0
    %4237 = vmatprep.subr.mxu0 0.0
    %4238 = vmatpush2.msra.mxu0 0.0
    %4239 = vmatprep.subr.mxu0 0.0
    %4240 = vmatpush2.msra.mxu0 0.0
    %4241 = vmatprep.subr.mxu0 0.0
    %4242 = vmatpush2.msra.mxu0 0.0
    %4243 = vmatprep.subr.mxu0 0.0
    %4244 = vmatpush2.msra.mxu0 0.0
    %4245 = vmatprep.subr.mxu0 0.0
    %4246 = vmatpush2.msra.mxu0 0.0
    %4247 = vmatprep.subr.mxu0 0.0
    %4248 = vmatpush2.msra.mxu0 0.0
    %4249 = vmatprep.subr.mxu0 0.0
    %4250 = vmatpush2.msra.mxu0 0.0
    %4251 = vmatprep.subr.mxu0 0.0
    %4252 = vmatpush2.msra.mxu0 0.0
    %4253 = vmatprep.mubr.f32.mxu0 0.0
    %4254 = vmatmul.mubr.f32.gmra.mxu0 %v4184
    %v4255 = vpop.f32.mrf.mxu0
    %v4256 = vadd.f32 0.0, %v4255
    %v4257 = vpop.f32.mrf.mxu0
    %4258 = vmatprep.mubr.f32.mxu0 0.0
    %4259 = vmatmul.mubr.f32.gmra.mxu0 %v4187
    %v4260 = vpop.f32.mrf.mxu0
    %v4261 = vadd.f32 0.0, %v4260
    %v4262 = vpop.f32.mrf.mxu0
    %4263 = vdwg.mxu0
    %4264 = vrot.lane.b32.xlu0 %v1388, 56
    %v4265 = vpop.permute.xlu0 %4264
    %4266 = vrot.lane.b32.xlu0 %v1393, 56
    %v4267 = vpop.permute.xlu0 %4266
    %v4271 = vsel %vm2139, %v3908, 0
    %v4274 = vsel %vm2139, %v3909, 0
    %4276 = vmatprep.subr.mxu0 0.0
    %4277 = vmatpush1.msra.mxu0 0.0
    %4278 = vmatprep.subr.mxu0 0.0
    %4279 = vmatpush1.msra.mxu0 0.0
    %4280 = vmatprep.subr.mxu0 0.0
    %4281 = vmatpush1.msra.mxu0 0.0
    %4282 = vmatprep.subr.mxu0 0.0
    %4283 = vmatpush1.msra.mxu0 0.0
    %4284 = vmatprep.subr.mxu0 0.0
    %4285 = vmatpush1.msra.mxu0 0.0
    %4286 = vmatprep.subr.mxu0 0.0
    %4287 = vmatpush1.msra.mxu0 0.0
    %4288 = vmatprep.subr.mxu0 0.0
    %4289 = vmatpush1.msra.mxu0 0.0
    %4290 = vmatprep.subr.mxu0 0.0
    %4291 = vmatpush1.msra.mxu0 0.0
    %4292 = vmatprep.subr.mxu0 0.0
    %4293 = vmatpush1.msra.mxu0 0.0
    %4294 = vmatprep.subr.mxu0 0.0
    %4295 = vmatpush1.msra.mxu0 0.0
    %4296 = vmatprep.subr.mxu0 0.0
    %4297 = vmatpush1.msra.mxu0 0.0
    %4298 = vmatprep.subr.mxu0 0.0
    %4299 = vmatpush1.msra.mxu0 0.0
    %4300 = vmatprep.subr.mxu0 0.0
    %4301 = vmatpush1.msra.mxu0 0.0
    %4302 = vmatprep.subr.mxu0 0.0
    %4303 = vmatpush1.msra.mxu0 0.0
    %4304 = vmatprep.subr.mxu0 0.0
    %4305 = vmatpush1.msra.mxu0 %v4267
    %4306 = vmatprep.subr.mxu0 0.0
    %4307 = vmatpush1.msra.mxu0 %v4265
    %4308 = vmatprep.subr.mxu0 0.0
    %4309 = vmatpush2.msra.mxu0 0.0
    %4310 = vmatprep.subr.mxu0 0.0
    %4311 = vmatpush2.msra.mxu0 0.0
    %4312 = vmatprep.subr.mxu0 0.0
    %4313 = vmatpush2.msra.mxu0 0.0
    %4314 = vmatprep.subr.mxu0 0.0
    %4315 = vmatpush2.msra.mxu0 0.0
    %4316 = vmatprep.subr.mxu0 0.0
    %4317 = vmatpush2.msra.mxu0 0.0
    %4318 = vmatprep.subr.mxu0 0.0
    %4319 = vmatpush2.msra.mxu0 0.0
    %4320 = vmatprep.subr.mxu0 0.0
    %4321 = vmatpush2.msra.mxu0 0.0
    %4322 = vmatprep.subr.mxu0 0.0
    %4323 = vmatpush2.msra.mxu0 0.0
    %4324 = vmatprep.subr.mxu0 0.0
    %4325 = vmatpush2.msra.mxu0 0.0
    %4326 = vmatprep.subr.mxu0 0.0
    %4327 = vmatpush2.msra.mxu0 0.0
    %4328 = vmatprep.subr.mxu0 0.0
    %4329 = vmatpush2.msra.mxu0 0.0
    %4330 = vmatprep.subr.mxu0 0.0
    %4331 = vmatpush2.msra.mxu0 0.0
    %4332 = vmatprep.subr.mxu0 0.0
    %4333 = vmatpush2.msra.mxu0 0.0
    %4334 = vmatprep.subr.mxu0 0.0
    %4335 = vmatpush2.msra.mxu0 0.0
    %4336 = vmatprep.subr.mxu0 0.0
    %4337 = vmatpush2.msra.mxu0 0.0
    %4338 = vmatprep.subr.mxu0 0.0
    %4339 = vmatpush2.msra.mxu0 0.0
    %4340 = vmatprep.mubr.f32.mxu0 0.0
    %4341 = vmatmul.mubr.f32.gmra.mxu0 %v4271
    %v4342 = vpop.f32.mrf.mxu0
    %v4343 = vadd.f32 0.0, %v4342
    %v4344 = vpop.f32.mrf.mxu0
    %4345 = vmatprep.mubr.f32.mxu0 0.0
    %4346 = vmatmul.mubr.f32.gmra.mxu0 %v4274
    %v4347 = vpop.f32.mrf.mxu0
    %v4348 = vadd.f32 0.0, %v4347
    %v4349 = vpop.f32.mrf.mxu0
    %4350 = vdwg.mxu0
    %4351 = vrot.lane.b32.xlu0 %v1398, 56
    %v4352 = vpop.permute.xlu0 %4351
    %4353 = vrot.lane.b32.xlu0 %v1403, 56
    %v4354 = vpop.permute.xlu0 %4353
    %v4358 = vsel %vm2139, %v3910, 0
    %v4361 = vsel %vm2139, %v3911, 0
    %4363 = vmatprep.subr.mxu0 0.0
    %4364 = vmatpush1.msra.mxu0 0.0
    %4365 = vmatprep.subr.mxu0 0.0
    %4366 = vmatpush1.msra.mxu0 0.0
    %4367 = vmatprep.subr.mxu0 0.0
    %4368 = vmatpush1.msra.mxu0 0.0
    %4369 = vmatprep.subr.mxu0 0.0
    %4370 = vmatpush1.msra.mxu0 0.0
    %4371 = vmatprep.subr.mxu0 0.0
    %4372 = vmatpush1.msra.mxu0 0.0
    %4373 = vmatprep.subr.mxu0 0.0
    %4374 = vmatpush1.msra.mxu0 0.0
    %4375 = vmatprep.subr.mxu0 0.0
    %4376 = vmatpush1.msra.mxu0 0.0
    %4377 = vmatprep.subr.mxu0 0.0
    %4378 = vmatpush1.msra.mxu0 0.0
    %4379 = vmatprep.subr.mxu0 0.0
    %4380 = vmatpush1.msra.mxu0 0.0
    %4381 = vmatprep.subr.mxu0 0.0
    %4382 = vmatpush1.msra.mxu0 0.0
    %4383 = vmatprep.subr.mxu0 0.0
    %4384 = vmatpush1.msra.mxu0 0.0
    %4385 = vmatprep.subr.mxu0 0.0
    %4386 = vmatpush1.msra.mxu0 0.0
    %4387 = vmatprep.subr.mxu0 0.0
    %4388 = vmatpush1.msra.mxu0 0.0
    %4389 = vmatprep.subr.mxu0 0.0
    %4390 = vmatpush1.msra.mxu0 0.0
    %4391 = vmatprep.subr.mxu0 0.0
    %4392 = vmatpush1.msra.mxu0 %v4354
    %4393 = vmatprep.subr.mxu0 0.0
    %4394 = vmatpush1.msra.mxu0 %v4352
    %4395 = vmatprep.subr.mxu0 0.0
    %4396 = vmatpush2.msra.mxu0 0.0
    %4397 = vmatprep.subr.mxu0 0.0
    %4398 = vmatpush2.msra.mxu0 0.0
    %4399 = vmatprep.subr.mxu0 0.0
    %4400 = vmatpush2.msra.mxu0 0.0
    %4401 = vmatprep.subr.mxu0 0.0
    %4402 = vmatpush2.msra.mxu0 0.0
    %4403 = vmatprep.subr.mxu0 0.0
    %4404 = vmatpush2.msra.mxu0 0.0
    %4405 = vmatprep.subr.mxu0 0.0
    %4406 = vmatpush2.msra.mxu0 0.0
    %4407 = vmatprep.subr.mxu0 0.0
    %4408 = vmatpush2.msra.mxu0 0.0
    %4409 = vmatprep.subr.mxu0 0.0
    %4410 = vmatpush2.msra.mxu0 0.0
    %4411 = vmatprep.subr.mxu0 0.0
    %4412 = vmatpush2.msra.mxu0 0.0
    %4413 = vmatprep.subr.mxu0 0.0
    %4414 = vmatpush2.msra.mxu0 0.0
    %4415 = vmatprep.subr.mxu0 0.0
    %4416 = vmatpush2.msra.mxu0 0.0
    %4417 = vmatprep.subr.mxu0 0.0
    %4418 = vmatpush2.msra.mxu0 0.0
    %4419 = vmatprep.subr.mxu0 0.0
    %4420 = vmatpush2.msra.mxu0 0.0
    %4421 = vmatprep.subr.mxu0 0.0
    %4422 = vmatpush2.msra.mxu0 0.0
    %4423 = vmatprep.subr.mxu0 0.0
    %4424 = vmatpush2.msra.mxu0 0.0
    %4425 = vmatprep.subr.mxu0 0.0
    %4426 = vmatpush2.msra.mxu0 0.0
    %4427 = vmatprep.mubr.f32.mxu0 0.0
    %4428 = vmatmul.mubr.f32.gmra.mxu0 %v4358
    %v4429 = vpop.f32.mrf.mxu0
    %v4430 = vadd.f32 0.0, %v4429
    %v4431 = vpop.f32.mrf.mxu0
    %4432 = vmatprep.mubr.f32.mxu0 0.0
    %4433 = vmatmul.mubr.f32.gmra.mxu0 %v4361
    %v4434 = vpop.f32.mrf.mxu0
    %v4435 = vadd.f32 0.0, %v4434
    %v4436 = vpop.f32.mrf.mxu0
    %4437 = vdwg.mxu0
    %4438 = vrot.lane.b32.xlu0 %v1408, 56
    %v4439 = vpop.permute.xlu0 %4438
    %4440 = vrot.lane.b32.xlu0 %v1413, 56
    %v4441 = vpop.permute.xlu0 %4440
    %v4445 = vsel %vm2139, %v3912, 0
    %v4448 = vsel %vm2139, %v3913, 0
    %4450 = vmatprep.subr.mxu0 0.0
    %4451 = vmatpush1.msra.mxu0 0.0
    %4452 = vmatprep.subr.mxu0 0.0
    %4453 = vmatpush1.msra.mxu0 0.0
    %4454 = vmatprep.subr.mxu0 0.0
    %4455 = vmatpush1.msra.mxu0 0.0
    %4456 = vmatprep.subr.mxu0 0.0
    %4457 = vmatpush1.msra.mxu0 0.0
    %4458 = vmatprep.subr.mxu0 0.0
    %4459 = vmatpush1.msra.mxu0 0.0
    %4460 = vmatprep.subr.mxu0 0.0
    %4461 = vmatpush1.msra.mxu0 0.0
    %4462 = vmatprep.subr.mxu0 0.0
    %4463 = vmatpush1.msra.mxu0 0.0
    %4464 = vmatprep.subr.mxu0 0.0
    %4465 = vmatpush1.msra.mxu0 0.0
    %4466 = vmatprep.subr.mxu0 0.0
    %4467 = vmatpush1.msra.mxu0 0.0
    %4468 = vmatprep.subr.mxu0 0.0
    %4469 = vmatpush1.msra.mxu0 0.0
    %4470 = vmatprep.subr.mxu0 0.0
    %4471 = vmatpush1.msra.mxu0 0.0
    %4472 = vmatprep.subr.mxu0 0.0
    %4473 = vmatpush1.msra.mxu0 0.0
    %4474 = vmatprep.subr.mxu0 0.0
    %4475 = vmatpush1.msra.mxu0 0.0
    %4476 = vmatprep.subr.mxu0 0.0
    %4477 = vmatpush1.msra.mxu0 0.0
    %4478 = vmatprep.subr.mxu0 0.0
    %4479 = vmatpush1.msra.mxu0 %v4441
    %4480 = vmatprep.subr.mxu0 0.0
    %4481 = vmatpush1.msra.mxu0 %v4439
    %4482 = vmatprep.subr.mxu0 0.0
    %4483 = vmatpush2.msra.mxu0 0.0
    %4484 = vmatprep.subr.mxu0 0.0
    %4485 = vmatpush2.msra.mxu0 0.0
    %4486 = vmatprep.subr.mxu0 0.0
    %4487 = vmatpush2.msra.mxu0 0.0
    %4488 = vmatprep.subr.mxu0 0.0
    %4489 = vmatpush2.msra.mxu0 0.0
    %4490 = vmatprep.subr.mxu0 0.0
    %4491 = vmatpush2.msra.mxu0 0.0
    %4492 = vmatprep.subr.mxu0 0.0
    %4493 = vmatpush2.msra.mxu0 0.0
    %4494 = vmatprep.subr.mxu0 0.0
    %4495 = vmatpush2.msra.mxu0 0.0
    %4496 = vmatprep.subr.mxu0 0.0
    %4497 = vmatpush2.msra.mxu0 0.0
    %4498 = vmatprep.subr.mxu0 0.0
    %4499 = vmatpush2.msra.mxu0 0.0
    %4500 = vmatprep.subr.mxu0 0.0
    %4501 = vmatpush2.msra.mxu0 0.0
    %4502 = vmatprep.subr.mxu0 0.0
    %4503 = vmatpush2.msra.mxu0 0.0
    %4504 = vmatprep.subr.mxu0 0.0
    %4505 = vmatpush2.msra.mxu0 0.0
    %4506 = vmatprep.subr.mxu0 0.0
    %4507 = vmatpush2.msra.mxu0 0.0
    %4508 = vmatprep.subr.mxu0 0.0
    %4509 = vmatpush2.msra.mxu0 0.0
    %4510 = vmatprep.subr.mxu0 0.0
    %4511 = vmatpush2.msra.mxu0 0.0
    %4512 = vmatprep.subr.mxu0 0.0
    %4513 = vmatpush2.msra.mxu0 0.0
    %4514 = vmatprep.mubr.f32.mxu0 0.0
    %4515 = vmatmul.mubr.f32.gmra.mxu0 %v4445
    %v4516 = vpop.f32.mrf.mxu0
    %v4517 = vadd.f32 0.0, %v4516
    %v4518 = vpop.f32.mrf.mxu0
    %4519 = vmatprep.mubr.f32.mxu0 0.0
    %4520 = vmatmul.mubr.f32.gmra.mxu0 %v4448
    %v4521 = vpop.f32.mrf.mxu0
    %v4522 = vadd.f32 0.0, %v4521
    %v4523 = vpop.f32.mrf.mxu0
    %4524 = vdwg.mxu0
    %4525 = vrot.lane.b32.xlu0 %v1418, 56
    %v4526 = vpop.permute.xlu0 %4525
    %4527 = vrot.lane.b32.xlu0 %v1423, 56
    %v4528 = vpop.permute.xlu0 %4527
    %v4532 = vsel %vm2139, %v3914, 0
    %v4535 = vsel %vm2139, %v3915, 0
    %4537 = vmatprep.subr.mxu0 0.0
    %4538 = vmatpush1.msra.mxu0 0.0
    %4539 = vmatprep.subr.mxu0 0.0
    %4540 = vmatpush1.msra.mxu0 0.0
    %4541 = vmatprep.subr.mxu0 0.0
    %4542 = vmatpush1.msra.mxu0 0.0
    %4543 = vmatprep.subr.mxu0 0.0
    %4544 = vmatpush1.msra.mxu0 0.0
    %4545 = vmatprep.subr.mxu0 0.0
    %4546 = vmatpush1.msra.mxu0 0.0
    %4547 = vmatprep.subr.mxu0 0.0
    %4548 = vmatpush1.msra.mxu0 0.0
    %4549 = vmatprep.subr.mxu0 0.0
    %4550 = vmatpush1.msra.mxu0 0.0
    %4551 = vmatprep.subr.mxu0 0.0
    %4552 = vmatpush1.msra.mxu0 0.0
    %4553 = vmatprep.subr.mxu0 0.0
    %4554 = vmatpush1.msra.mxu0 0.0
    %4555 = vmatprep.subr.mxu0 0.0
    %4556 = vmatpush1.msra.mxu0 0.0
    %4557 = vmatprep.subr.mxu0 0.0
    %4558 = vmatpush1.msra.mxu0 0.0
    %4559 = vmatprep.subr.mxu0 0.0
    %4560 = vmatpush1.msra.mxu0 0.0
    %4561 = vmatprep.subr.mxu0 0.0
    %4562 = vmatpush1.msra.mxu0 0.0
    %4563 = vmatprep.subr.mxu0 0.0
    %4564 = vmatpush1.msra.mxu0 0.0
    %4565 = vmatprep.subr.mxu0 0.0
    %4566 = vmatpush1.msra.mxu0 %v4528
    %4567 = vmatprep.subr.mxu0 0.0
    %4568 = vmatpush1.msra.mxu0 %v4526
    %4569 = vmatprep.subr.mxu0 0.0
    %4570 = vmatpush2.msra.mxu0 0.0
    %4571 = vmatprep.subr.mxu0 0.0
    %4572 = vmatpush2.msra.mxu0 0.0
    %4573 = vmatprep.subr.mxu0 0.0
    %4574 = vmatpush2.msra.mxu0 0.0
    %4575 = vmatprep.subr.mxu0 0.0
    %4576 = vmatpush2.msra.mxu0 0.0
    %4577 = vmatprep.subr.mxu0 0.0
    %4578 = vmatpush2.msra.mxu0 0.0
    %4579 = vmatprep.subr.mxu0 0.0
    %4580 = vmatpush2.msra.mxu0 0.0
    %4581 = vmatprep.subr.mxu0 0.0
    %4582 = vmatpush2.msra.mxu0 0.0
    %4583 = vmatprep.subr.mxu0 0.0
    %4584 = vmatpush2.msra.mxu0 0.0
    %4585 = vmatprep.subr.mxu0 0.0
    %4586 = vmatpush2.msra.mxu0 0.0
    %4587 = vmatprep.subr.mxu0 0.0
    %4588 = vmatpush2.msra.mxu0 0.0
    %4589 = vmatprep.subr.mxu0 0.0
    %4590 = vmatpush2.msra.mxu0 0.0
    %4591 = vmatprep.subr.mxu0 0.0
    %4592 = vmatpush2.msra.mxu0 0.0
    %4593 = vmatprep.subr.mxu0 0.0
    %4594 = vmatpush2.msra.mxu0 0.0
    %4595 = vmatprep.subr.mxu0 0.0
    %4596 = vmatpush2.msra.mxu0 0.0
    %4597 = vmatprep.subr.mxu0 0.0
    %4598 = vmatpush2.msra.mxu0 0.0
    %4599 = vmatprep.subr.mxu0 0.0
    %4600 = vmatpush2.msra.mxu0 0.0
    %4601 = vmatprep.mubr.f32.mxu0 0.0
    %4602 = vmatmul.mubr.f32.gmra.mxu0 %v4532
    %v4603 = vpop.f32.mrf.mxu0
    %v4604 = vadd.f32 0.0, %v4603
    %v4605 = vpop.f32.mrf.mxu0
    %4606 = vmatprep.mubr.f32.mxu0 0.0
    %4607 = vmatmul.mubr.f32.gmra.mxu0 %v4535
    %v4608 = vpop.f32.mrf.mxu0
    %v4609 = vadd.f32 0.0, %v4608
    %v4610 = vpop.f32.mrf.mxu0
    %4611 = vdwg.mxu0
    %4612 = vrot.lane.b32.xlu0 %v1348, 112
    %v4613 = vpop.permute.xlu0 %4612
    %4614 = vrot.lane.b32.xlu0 %v1353, 112
    %v4615 = vpop.permute.xlu0 %4614
    %4616 = vrot.lane.b32.xlu0 %v1348, 80
    %v4617 = vpop.permute.xlu0 %4616
    %4618 = vrot.lane.b32.xlu0 %v1353, 80
    %v4619 = vpop.permute.xlu0 %4618
    %v4620 = vsel %vm1432, %v4613, 0
    %v4622 = vsel %vm1432, %v4615, 0
    %v4624 = vsel %vm1432, %v4617, 0
    %v4626 = vsel %vm1432, %v4619, 0
    %4628 = vmatprep.subr.mxu0 0.0
    %4629 = vmatpush1.xpose.msra.mxu0 0.0
    %4630 = vmatprep.subr.mxu0 0.0
    %4631 = vmatpush1.xpose.msra.mxu0 0.0
    %4632 = vmatprep.subr.mxu0 0.0
    %4633 = vmatpush1.xpose.msra.mxu0 0.0
    %4634 = vmatprep.subr.mxu0 0.0
    %4635 = vmatpush1.xpose.msra.mxu0 0.0
    %4636 = vmatprep.subr.mxu0 0.0
    %4637 = vmatpush1.xpose.msra.mxu0 0.0
    %4638 = vmatprep.subr.mxu0 0.0
    %4639 = vmatpush1.xpose.msra.mxu0 0.0
    %4640 = vmatprep.subr.mxu0 0.0
    %4641 = vmatpush1.xpose.msra.mxu0 0.0
    %4642 = vmatprep.subr.mxu0 0.0
    %4643 = vmatpush1.xpose.msra.mxu0 0.0
    %4644 = vmatprep.subr.mxu0 0.0
    %4645 = vmatpush1.xpose.msra.mxu0 0.0
    %4646 = vmatprep.subr.mxu0 0.0
    %4647 = vmatpush1.xpose.msra.mxu0 0.0
    %4648 = vmatprep.subr.mxu0 0.0
    %4649 = vmatpush1.xpose.msra.mxu0 0.0
    %4650 = vmatprep.subr.mxu0 0.0
    %4651 = vmatpush1.xpose.msra.mxu0 0.0
    %4652 = vmatprep.subr.mxu0 0.0
    %4653 = vmatpush1.xpose.msra.mxu0 0.0
    %4654 = vmatprep.subr.mxu0 0.0
    %4655 = vmatpush1.xpose.msra.mxu0 0.0
    %4656 = vmatprep.subr.mxu0 0.0
    %4657 = vmatpush1.xpose.msra.mxu0 %v4626
    %4658 = vmatprep.subr.mxu0 0.0
    %4659 = vmatpush1.xpose.msra.mxu0 %v4624
    %4660 = vmatprep.subr.mxu0 0.0
    %4661 = vmatpush2.xpose.msra.mxu0 0.0
    %4662 = vmatprep.subr.mxu0 0.0
    %4663 = vmatpush2.xpose.msra.mxu0 0.0
    %4664 = vmatprep.subr.mxu0 0.0
    %4665 = vmatpush2.xpose.msra.mxu0 0.0
    %4666 = vmatprep.subr.mxu0 0.0
    %4667 = vmatpush2.xpose.msra.mxu0 0.0
    %4668 = vmatprep.subr.mxu0 0.0
    %4669 = vmatpush2.xpose.msra.mxu0 0.0
    %4670 = vmatprep.subr.mxu0 0.0
    %4671 = vmatpush2.xpose.msra.mxu0 0.0
    %4672 = vmatprep.subr.mxu0 0.0
    %4673 = vmatpush2.xpose.msra.mxu0 0.0
    %4674 = vmatprep.subr.mxu0 0.0
    %4675 = vmatpush2.xpose.msra.mxu0 0.0
    %4676 = vmatprep.subr.mxu0 0.0
    %4677 = vmatpush2.xpose.msra.mxu0 0.0
    %4678 = vmatprep.subr.mxu0 0.0
    %4679 = vmatpush2.xpose.msra.mxu0 0.0
    %4680 = vmatprep.subr.mxu0 0.0
    %4681 = vmatpush2.xpose.msra.mxu0 0.0
    %4682 = vmatprep.subr.mxu0 0.0
    %4683 = vmatpush2.xpose.msra.mxu0 0.0
    %4684 = vmatprep.subr.mxu0 0.0
    %4685 = vmatpush2.xpose.msra.mxu0 0.0
    %4686 = vmatprep.subr.mxu0 0.0
    %4687 = vmatpush2.xpose.msra.mxu0 0.0
    %4688 = vmatprep.subr.mxu0 0.0
    %4689 = vmatpush2.xpose.msra.mxu0 0.0
    %4690 = vmatprep.subr.mxu0 0.0
    %4691 = vmatpush2.xpose.msra.mxu0 0.0
    %4692 = vmatprep.mubr.f32.mxu0 0.0
    %4693 = vmatmul.mubr.f32.gmra.mxu0 %v4620
    %v4694 = vpop.f32.mrf.mxu0
    %v4695 = vadd.f32 0.0, %v4694
    %v4696 = vpop.f32.mrf.mxu0
    %4697 = vmatprep.mubr.f32.mxu0 0.0
    %4698 = vmatmul.mubr.f32.gmra.mxu0 %v4622
    %v4699 = vpop.f32.mrf.mxu0
    %v4700 = vadd.f32 0.0, %v4699
    %v4701 = vpop.f32.mrf.mxu0
    %4702 = vdwg.mxu0
    %4703 = vrot.lane.b32.xlu0 %v1358, 112
    %v4704 = vpop.permute.xlu0 %4703
    %4705 = vrot.lane.b32.xlu0 %v1363, 112
    %v4706 = vpop.permute.xlu0 %4705
    %4707 = vrot.lane.b32.xlu0 %v1358, 80
    %v4708 = vpop.permute.xlu0 %4707
    %4709 = vrot.lane.b32.xlu0 %v1363, 80
    %v4710 = vpop.permute.xlu0 %4709
    %v4711 = vsel %vm1432, %v4704, 0
    %v4713 = vsel %vm1432, %v4706, 0
    %v4715 = vsel %vm1432, %v4708, 0
    %v4717 = vsel %vm1432, %v4710, 0
    %4719 = vmatprep.subr.mxu0 0.0
    %4720 = vmatpush1.xpose.msra.mxu0 0.0
    %4721 = vmatprep.subr.mxu0 0.0
    %4722 = vmatpush1.xpose.msra.mxu0 0.0
    %4723 = vmatprep.subr.mxu0 0.0
    %4724 = vmatpush1.xpose.msra.mxu0 0.0
    %4725 = vmatprep.subr.mxu0 0.0
    %4726 = vmatpush1.xpose.msra.mxu0 0.0
    %4727 = vmatprep.subr.mxu0 0.0
    %4728 = vmatpush1.xpose.msra.mxu0 0.0
    %4729 = vmatprep.subr.mxu0 0.0
    %4730 = vmatpush1.xpose.msra.mxu0 0.0
    %4731 = vmatprep.subr.mxu0 0.0
    %4732 = vmatpush1.xpose.msra.mxu0 0.0
    %4733 = vmatprep.subr.mxu0 0.0
    %4734 = vmatpush1.xpose.msra.mxu0 0.0
    %4735 = vmatprep.subr.mxu0 0.0
    %4736 = vmatpush1.xpose.msra.mxu0 0.0
    %4737 = vmatprep.subr.mxu0 0.0
    %4738 = vmatpush1.xpose.msra.mxu0 0.0
    %4739 = vmatprep.subr.mxu0 0.0
    %4740 = vmatpush1.xpose.msra.mxu0 0.0
    %4741 = vmatprep.subr.mxu0 0.0
    %4742 = vmatpush1.xpose.msra.mxu0 0.0
    %4743 = vmatprep.subr.mxu0 0.0
    %4744 = vmatpush1.xpose.msra.mxu0 0.0
    %4745 = vmatprep.subr.mxu0 0.0
    %4746 = vmatpush1.xpose.msra.mxu0 0.0
    %4747 = vmatprep.subr.mxu0 0.0
    %4748 = vmatpush1.xpose.msra.mxu0 %v4717
    %4749 = vmatprep.subr.mxu0 0.0
    %4750 = vmatpush1.xpose.msra.mxu0 %v4715
    %4751 = vmatprep.subr.mxu0 0.0
    %4752 = vmatpush2.xpose.msra.mxu0 0.0
    %4753 = vmatprep.subr.mxu0 0.0
    %4754 = vmatpush2.xpose.msra.mxu0 0.0
    %4755 = vmatprep.subr.mxu0 0.0
    %4756 = vmatpush2.xpose.msra.mxu0 0.0
    %4757 = vmatprep.subr.mxu0 0.0
    %4758 = vmatpush2.xpose.msra.mxu0 0.0
    %4759 = vmatprep.subr.mxu0 0.0
    %4760 = vmatpush2.xpose.msra.mxu0 0.0
    %4761 = vmatprep.subr.mxu0 0.0
    %4762 = vmatpush2.xpose.msra.mxu0 0.0
    %4763 = vmatprep.subr.mxu0 0.0
    %4764 = vmatpush2.xpose.msra.mxu0 0.0
    %4765 = vmatprep.subr.mxu0 0.0
    %4766 = vmatpush2.xpose.msra.mxu0 0.0
    %4767 = vmatprep.subr.mxu0 0.0
    %4768 = vmatpush2.xpose.msra.mxu0 0.0
    %4769 = vmatprep.subr.mxu0 0.0
    %4770 = vmatpush2.xpose.msra.mxu0 0.0
    %4771 = vmatprep.subr.mxu0 0.0
    %4772 = vmatpush2.xpose.msra.mxu0 0.0
    %4773 = vmatprep.subr.mxu0 0.0
    %4774 = vmatpush2.xpose.msra.mxu0 0.0
    %4775 = vmatprep.subr.mxu0 0.0
    %4776 = vmatpush2.xpose.msra.mxu0 0.0
    %4777 = vmatprep.subr.mxu0 0.0
    %4778 = vmatpush2.xpose.msra.mxu0 0.0
    %4779 = vmatprep.subr.mxu0 0.0
    %4780 = vmatpush2.xpose.msra.mxu0 0.0
    %4781 = vmatprep.subr.mxu0 0.0
    %4782 = vmatpush2.xpose.msra.mxu0 0.0
    %4783 = vmatprep.mubr.f32.mxu0 0.0
    %4784 = vmatmul.mubr.f32.gmra.mxu0 %v4711
    %v4785 = vpop.f32.mrf.mxu0
    %v4786 = vadd.f32 0.0, %v4785
    %v4787 = vpop.f32.mrf.mxu0
    %4788 = vmatprep.mubr.f32.mxu0 0.0
    %4789 = vmatmul.mubr.f32.gmra.mxu0 %v4713
    %v4790 = vpop.f32.mrf.mxu0
    %v4791 = vadd.f32 0.0, %v4790
    %v4792 = vpop.f32.mrf.mxu0
    %4793 = vdwg.mxu0
    %4794 = vrot.lane.b32.xlu0 %v1368, 112
    %v4795 = vpop.permute.xlu0 %4794
    %4796 = vrot.lane.b32.xlu0 %v1373, 112
    %v4797 = vpop.permute.xlu0 %4796
    %4798 = vrot.lane.b32.xlu0 %v1368, 80
    %v4799 = vpop.permute.xlu0 %4798
    %4800 = vrot.lane.b32.xlu0 %v1373, 80
    %v4801 = vpop.permute.xlu0 %4800
    %v4802 = vsel %vm1432, %v4795, 0
    %v4804 = vsel %vm1432, %v4797, 0
    %v4806 = vsel %vm1432, %v4799, 0
    %v4808 = vsel %vm1432, %v4801, 0
    %4810 = vmatprep.subr.mxu0 0.0
    %4811 = vmatpush1.xpose.msra.mxu0 0.0
    %4812 = vmatprep.subr.mxu0 0.0
    %4813 = vmatpush1.xpose.msra.mxu0 0.0
    %4814 = vmatprep.subr.mxu0 0.0
    %4815 = vmatpush1.xpose.msra.mxu0 0.0
    %4816 = vmatprep.subr.mxu0 0.0
    %4817 = vmatpush1.xpose.msra.mxu0 0.0
    %4818 = vmatprep.subr.mxu0 0.0
    %4819 = vmatpush1.xpose.msra.mxu0 0.0
    %4820 = vmatprep.subr.mxu0 0.0
    %4821 = vmatpush1.xpose.msra.mxu0 0.0
    %4822 = vmatprep.subr.mxu0 0.0
    %4823 = vmatpush1.xpose.msra.mxu0 0.0
    %4824 = vmatprep.subr.mxu0 0.0
    %4825 = vmatpush1.xpose.msra.mxu0 0.0
    %4826 = vmatprep.subr.mxu0 0.0
    %4827 = vmatpush1.xpose.msra.mxu0 0.0
    %4828 = vmatprep.subr.mxu0 0.0
    %4829 = vmatpush1.xpose.msra.mxu0 0.0
    %4830 = vmatprep.subr.mxu0 0.0
    %4831 = vmatpush1.xpose.msra.mxu0 0.0
    %4832 = vmatprep.subr.mxu0 0.0
    %4833 = vmatpush1.xpose.msra.mxu0 0.0
    %4834 = vmatprep.subr.mxu0 0.0
    %4835 = vmatpush1.xpose.msra.mxu0 0.0
    %4836 = vmatprep.subr.mxu0 0.0
    %4837 = vmatpush1.xpose.msra.mxu0 0.0
    %4838 = vmatprep.subr.mxu0 0.0
    %4839 = vmatpush1.xpose.msra.mxu0 %v4808
    %4840 = vmatprep.subr.mxu0 0.0
    %4841 = vmatpush1.xpose.msra.mxu0 %v4806
    %4842 = vmatprep.subr.mxu0 0.0
    %4843 = vmatpush2.xpose.msra.mxu0 0.0
    %4844 = vmatprep.subr.mxu0 0.0
    %4845 = vmatpush2.xpose.msra.mxu0 0.0
    %4846 = vmatprep.subr.mxu0 0.0
    %4847 = vmatpush2.xpose.msra.mxu0 0.0
    %4848 = vmatprep.subr.mxu0 0.0
    %4849 = vmatpush2.xpose.msra.mxu0 0.0
    %4850 = vmatprep.subr.mxu0 0.0
    %4851 = vmatpush2.xpose.msra.mxu0 0.0
    %4852 = vmatprep.subr.mxu0 0.0
    %4853 = vmatpush2.xpose.msra.mxu0 0.0
    %4854 = vmatprep.subr.mxu0 0.0
    %4855 = vmatpush2.xpose.msra.mxu0 0.0
    %4856 = vmatprep.subr.mxu0 0.0
    %4857 = vmatpush2.xpose.msra.mxu0 0.0
    %4858 = vmatprep.subr.mxu0 0.0
    %4859 = vmatpush2.xpose.msra.mxu0 0.0
    %4860 = vmatprep.subr.mxu0 0.0
    %4861 = vmatpush2.xpose.msra.mxu0 0.0
    %4862 = vmatprep.subr.mxu0 0.0
    %4863 = vmatpush2.xpose.msra.mxu0 0.0
    %4864 = vmatprep.subr.mxu0 0.0
    %4865 = vmatpush2.xpose.msra.mxu0 0.0
    %4866 = vmatprep.subr.mxu0 0.0
    %4867 = vmatpush2.xpose.msra.mxu0 0.0
    %4868 = vmatprep.subr.mxu0 0.0
    %4869 = vmatpush2.xpose.msra.mxu0 0.0
    %4870 = vmatprep.subr.mxu0 0.0
    %4871 = vmatpush2.xpose.msra.mxu0 0.0
    %4872 = vmatprep.subr.mxu0 0.0
    %4873 = vmatpush2.xpose.msra.mxu0 0.0
    %4874 = vmatprep.mubr.f32.mxu0 0.0
    %4875 = vmatmul.mubr.f32.gmra.mxu0 %v4802
    %v4876 = vpop.f32.mrf.mxu0
    %v4877 = vadd.f32 0.0, %v4876
    %v4878 = vpop.f32.mrf.mxu0
    %4879 = vmatprep.mubr.f32.mxu0 0.0
    %4880 = vmatmul.mubr.f32.gmra.mxu0 %v4804
    %v4881 = vpop.f32.mrf.mxu0
    %v4882 = vadd.f32 0.0, %v4881
    %v4883 = vpop.f32.mrf.mxu0
    %4884 = vdwg.mxu0
    %4885 = vrot.lane.b32.xlu0 %v1378, 112
    %v4886 = vpop.permute.xlu0 %4885
    %4887 = vrot.lane.b32.xlu0 %v1383, 112
    %v4888 = vpop.permute.xlu0 %4887
    %4889 = vrot.lane.b32.xlu0 %v1378, 80
    %v4890 = vpop.permute.xlu0 %4889
    %4891 = vrot.lane.b32.xlu0 %v1383, 80
    %v4892 = vpop.permute.xlu0 %4891
    %v4893 = vsel %vm1432, %v4886, 0
    %v4895 = vsel %vm1432, %v4888, 0
    %v4897 = vsel %vm1432, %v4890, 0
    %v4899 = vsel %vm1432, %v4892, 0
    %4901 = vmatprep.subr.mxu0 0.0
    %4902 = vmatpush1.xpose.msra.mxu0 0.0
    %4903 = vmatprep.subr.mxu0 0.0
    %4904 = vmatpush1.xpose.msra.mxu0 0.0
    %4905 = vmatprep.subr.mxu0 0.0
    %4906 = vmatpush1.xpose.msra.mxu0 0.0
    %4907 = vmatprep.subr.mxu0 0.0
    %4908 = vmatpush1.xpose.msra.mxu0 0.0
    %4909 = vmatprep.subr.mxu0 0.0
    %4910 = vmatpush1.xpose.msra.mxu0 0.0
    %4911 = vmatprep.subr.mxu0 0.0
    %4912 = vmatpush1.xpose.msra.mxu0 0.0
    %4913 = vmatprep.subr.mxu0 0.0
    %4914 = vmatpush1.xpose.msra.mxu0 0.0
    %4915 = vmatprep.subr.mxu0 0.0
    %4916 = vmatpush1.xpose.msra.mxu0 0.0
    %4917 = vmatprep.subr.mxu0 0.0
    %4918 = vmatpush1.xpose.msra.mxu0 0.0
    %4919 = vmatprep.subr.mxu0 0.0
    %4920 = vmatpush1.xpose.msra.mxu0 0.0
    %4921 = vmatprep.subr.mxu0 0.0
    %4922 = vmatpush1.xpose.msra.mxu0 0.0
    %4923 = vmatprep.subr.mxu0 0.0
    %4924 = vmatpush1.xpose.msra.mxu0 0.0
    %4925 = vmatprep.subr.mxu0 0.0
    %4926 = vmatpush1.xpose.msra.mxu0 0.0
    %4927 = vmatprep.subr.mxu0 0.0
    %4928 = vmatpush1.xpose.msra.mxu0 0.0
    %4929 = vmatprep.subr.mxu0 0.0
    %4930 = vmatpush1.xpose.msra.mxu0 %v4899
    %4931 = vmatprep.subr.mxu0 0.0
    %4932 = vmatpush1.xpose.msra.mxu0 %v4897
    %4933 = vmatprep.subr.mxu0 0.0
    %4934 = vmatpush2.xpose.msra.mxu0 0.0
    %4935 = vmatprep.subr.mxu0 0.0
    %4936 = vmatpush2.xpose.msra.mxu0 0.0
    %4937 = vmatprep.subr.mxu0 0.0
    %4938 = vmatpush2.xpose.msra.mxu0 0.0
    %4939 = vmatprep.subr.mxu0 0.0
    %4940 = vmatpush2.xpose.msra.mxu0 0.0
    %4941 = vmatprep.subr.mxu0 0.0
    %4942 = vmatpush2.xpose.msra.mxu0 0.0
    %4943 = vmatprep.subr.mxu0 0.0
    %4944 = vmatpush2.xpose.msra.mxu0 0.0
    %4945 = vmatprep.subr.mxu0 0.0
    %4946 = vmatpush2.xpose.msra.mxu0 0.0
    %4947 = vmatprep.subr.mxu0 0.0
    %4948 = vmatpush2.xpose.msra.mxu0 0.0
    %4949 = vmatprep.subr.mxu0 0.0
    %4950 = vmatpush2.xpose.msra.mxu0 0.0
    %4951 = vmatprep.subr.mxu0 0.0
    %4952 = vmatpush2.xpose.msra.mxu0 0.0
    %4953 = vmatprep.subr.mxu0 0.0
    %4954 = vmatpush2.xpose.msra.mxu0 0.0
    %4955 = vmatprep.subr.mxu0 0.0
    %4956 = vmatpush2.xpose.msra.mxu0 0.0
    %4957 = vmatprep.subr.mxu0 0.0
    %4958 = vmatpush2.xpose.msra.mxu0 0.0
    %4959 = vmatprep.subr.mxu0 0.0
    %4960 = vmatpush2.xpose.msra.mxu0 0.0
    %4961 = vmatprep.subr.mxu0 0.0
    %4962 = vmatpush2.xpose.msra.mxu0 0.0
    %4963 = vmatprep.subr.mxu0 0.0
    %4964 = vmatpush2.xpose.msra.mxu0 0.0
    %4965 = vmatprep.mubr.f32.mxu0 0.0
    %4966 = vmatmul.mubr.f32.gmra.mxu0 %v4893
    %v4967 = vpop.f32.mrf.mxu0
    %v4968 = vadd.f32 0.0, %v4967
    %v4969 = vpop.f32.mrf.mxu0
    %4970 = vmatprep.mubr.f32.mxu0 0.0
    %4971 = vmatmul.mubr.f32.gmra.mxu0 %v4895
    %v4972 = vpop.f32.mrf.mxu0
    %v4973 = vadd.f32 0.0, %v4972
    %v4974 = vpop.f32.mrf.mxu0
    %4975 = vdwg.mxu0
    %4976 = vrot.lane.b32.xlu0 %v1388, 112
    %v4977 = vpop.permute.xlu0 %4976
    %4978 = vrot.lane.b32.xlu0 %v1393, 112
    %v4979 = vpop.permute.xlu0 %4978
    %4980 = vrot.lane.b32.xlu0 %v1388, 80
    %v4981 = vpop.permute.xlu0 %4980
    %4982 = vrot.lane.b32.xlu0 %v1393, 80
    %v4983 = vpop.permute.xlu0 %4982
    %v4984 = vsel %vm1432, %v4977, 0
    %v4986 = vsel %vm1432, %v4979, 0
    %v4988 = vsel %vm1432, %v4981, 0
    %v4990 = vsel %vm1432, %v4983, 0
    %4992 = vmatprep.subr.mxu0 0.0
    %4993 = vmatpush1.xpose.msra.mxu0 0.0
    %4994 = vmatprep.subr.mxu0 0.0
    %4995 = vmatpush1.xpose.msra.mxu0 0.0
    %4996 = vmatprep.subr.mxu0 0.0
    %4997 = vmatpush1.xpose.msra.mxu0 0.0
    %4998 = vmatprep.subr.mxu0 0.0
    %4999 = vmatpush1.xpose.msra.mxu0 0.0
    %5000 = vmatprep.subr.mxu0 0.0
    %5001 = vmatpush1.xpose.msra.mxu0 0.0
    %5002 = vmatprep.subr.mxu0 0.0
    %5003 = vmatpush1.xpose.msra.mxu0 0.0
    %5004 = vmatprep.subr.mxu0 0.0
    %5005 = vmatpush1.xpose.msra.mxu0 0.0
    %5006 = vmatprep.subr.mxu0 0.0
    %5007 = vmatpush1.xpose.msra.mxu0 0.0
    %5008 = vmatprep.subr.mxu0 0.0
    %5009 = vmatpush1.xpose.msra.mxu0 0.0
    %5010 = vmatprep.subr.mxu0 0.0
    %5011 = vmatpush1.xpose.msra.mxu0 0.0
    %5012 = vmatprep.subr.mxu0 0.0
    %5013 = vmatpush1.xpose.msra.mxu0 0.0
    %5014 = vmatprep.subr.mxu0 0.0
    %5015 = vmatpush1.xpose.msra.mxu0 0.0
    %5016 = vmatprep.subr.mxu0 0.0
    %5017 = vmatpush1.xpose.msra.mxu0 0.0
    %5018 = vmatprep.subr.mxu0 0.0
    %5019 = vmatpush1.xpose.msra.mxu0 0.0
    %5020 = vmatprep.subr.mxu0 0.0
    %5021 = vmatpush1.xpose.msra.mxu0 %v4990
    %5022 = vmatprep.subr.mxu0 0.0
    %5023 = vmatpush1.xpose.msra.mxu0 %v4988
    %5024 = vmatprep.subr.mxu0 0.0
    %5025 = vmatpush2.xpose.msra.mxu0 0.0
    %5026 = vmatprep.subr.mxu0 0.0
    %5027 = vmatpush2.xpose.msra.mxu0 0.0
    %5028 = vmatprep.subr.mxu0 0.0
    %5029 = vmatpush2.xpose.msra.mxu0 0.0
    %5030 = vmatprep.subr.mxu0 0.0
    %5031 = vmatpush2.xpose.msra.mxu0 0.0
    %5032 = vmatprep.subr.mxu0 0.0
    %5033 = vmatpush2.xpose.msra.mxu0 0.0
    %5034 = vmatprep.subr.mxu0 0.0
    %5035 = vmatpush2.xpose.msra.mxu0 0.0
    %5036 = vmatprep.subr.mxu0 0.0
    %5037 = vmatpush2.xpose.msra.mxu0 0.0
    %5038 = vmatprep.subr.mxu0 0.0
    %5039 = vmatpush2.xpose.msra.mxu0 0.0
    %5040 = vmatprep.subr.mxu0 0.0
    %5041 = vmatpush2.xpose.msra.mxu0 0.0
    %5042 = vmatprep.subr.mxu0 0.0
    %5043 = vmatpush2.xpose.msra.mxu0 0.0
    %5044 = vmatprep.subr.mxu0 0.0
    %5045 = vmatpush2.xpose.msra.mxu0 0.0
    %5046 = vmatprep.subr.mxu0 0.0
    %5047 = vmatpush2.xpose.msra.mxu0 0.0
    %5048 = vmatprep.subr.mxu0 0.0
    %5049 = vmatpush2.xpose.msra.mxu0 0.0
    %5050 = vmatprep.subr.mxu0 0.0
    %5051 = vmatpush2.xpose.msra.mxu0 0.0
    %5052 = vmatprep.subr.mxu0 0.0
    %5053 = vmatpush2.xpose.msra.mxu0 0.0
    %5054 = vmatprep.subr.mxu0 0.0
    %5055 = vmatpush2.xpose.msra.mxu0 0.0
    %5056 = vmatprep.mubr.f32.mxu0 0.0
    %5057 = vmatmul.mubr.f32.gmra.mxu0 %v4984
    %v5058 = vpop.f32.mrf.mxu0
    %v5059 = vadd.f32 0.0, %v5058
    %v5060 = vpop.f32.mrf.mxu0
    %5061 = vmatprep.mubr.f32.mxu0 0.0
    %5062 = vmatmul.mubr.f32.gmra.mxu0 %v4986
    %v5063 = vpop.f32.mrf.mxu0
    %v5064 = vadd.f32 0.0, %v5063
    %v5065 = vpop.f32.mrf.mxu0
    %5066 = vdwg.mxu0
    %5067 = vrot.lane.b32.xlu0 %v1398, 112
    %v5068 = vpop.permute.xlu0 %5067
    %5069 = vrot.lane.b32.xlu0 %v1403, 112
    %v5070 = vpop.permute.xlu0 %5069
    %5071 = vrot.lane.b32.xlu0 %v1398, 80
    %v5072 = vpop.permute.xlu0 %5071
    %5073 = vrot.lane.b32.xlu0 %v1403, 80
    %v5074 = vpop.permute.xlu0 %5073
    %v5075 = vsel %vm1432, %v5068, 0
    %v5077 = vsel %vm1432, %v5070, 0
    %v5079 = vsel %vm1432, %v5072, 0
    %v5081 = vsel %vm1432, %v5074, 0
    %5083 = vmatprep.subr.mxu0 0.0
    %5084 = vmatpush1.xpose.msra.mxu0 0.0
    %5085 = vmatprep.subr.mxu0 0.0
    %5086 = vmatpush1.xpose.msra.mxu0 0.0
    %5087 = vmatprep.subr.mxu0 0.0
    %5088 = vmatpush1.xpose.msra.mxu0 0.0
    %5089 = vmatprep.subr.mxu0 0.0
    %5090 = vmatpush1.xpose.msra.mxu0 0.0
    %5091 = vmatprep.subr.mxu0 0.0
    %5092 = vmatpush1.xpose.msra.mxu0 0.0
    %5093 = vmatprep.subr.mxu0 0.0
    %5094 = vmatpush1.xpose.msra.mxu0 0.0
    %5095 = vmatprep.subr.mxu0 0.0
    %5096 = vmatpush1.xpose.msra.mxu0 0.0
    %5097 = vmatprep.subr.mxu0 0.0
    %5098 = vmatpush1.xpose.msra.mxu0 0.0
    %5099 = vmatprep.subr.mxu0 0.0
    %5100 = vmatpush1.xpose.msra.mxu0 0.0
    %5101 = vmatprep.subr.mxu0 0.0
    %5102 = vmatpush1.xpose.msra.mxu0 0.0
    %5103 = vmatprep.subr.mxu0 0.0
    %5104 = vmatpush1.xpose.msra.mxu0 0.0
    %5105 = vmatprep.subr.mxu0 0.0
    %5106 = vmatpush1.xpose.msra.mxu0 0.0
    %5107 = vmatprep.subr.mxu0 0.0
    %5108 = vmatpush1.xpose.msra.mxu0 0.0
    %5109 = vmatprep.subr.mxu0 0.0
    %5110 = vmatpush1.xpose.msra.mxu0 0.0
    %5111 = vmatprep.subr.mxu0 0.0
    %5112 = vmatpush1.xpose.msra.mxu0 %v5081
    %5113 = vmatprep.subr.mxu0 0.0
    %5114 = vmatpush1.xpose.msra.mxu0 %v5079
    %5115 = vmatprep.subr.mxu0 0.0
    %5116 = vmatpush2.xpose.msra.mxu0 0.0
    %5117 = vmatprep.subr.mxu0 0.0
    %5118 = vmatpush2.xpose.msra.mxu0 0.0
    %5119 = vmatprep.subr.mxu0 0.0
    %5120 = vmatpush2.xpose.msra.mxu0 0.0
    %5121 = vmatprep.subr.mxu0 0.0
    %5122 = vmatpush2.xpose.msra.mxu0 0.0
    %5123 = vmatprep.subr.mxu0 0.0
    %5124 = vmatpush2.xpose.msra.mxu0 0.0
    %5125 = vmatprep.subr.mxu0 0.0
    %5126 = vmatpush2.xpose.msra.mxu0 0.0
    %5127 = vmatprep.subr.mxu0 0.0
    %5128 = vmatpush2.xpose.msra.mxu0 0.0
    %5129 = vmatprep.subr.mxu0 0.0
    %5130 = vmatpush2.xpose.msra.mxu0 0.0
    %5131 = vmatprep.subr.mxu0 0.0
    %5132 = vmatpush2.xpose.msra.mxu0 0.0
    %5133 = vmatprep.subr.mxu0 0.0
    %5134 = vmatpush2.xpose.msra.mxu0 0.0
    %5135 = vmatprep.subr.mxu0 0.0
    %5136 = vmatpush2.xpose.msra.mxu0 0.0
    %5137 = vmatprep.subr.mxu0 0.0
    %5138 = vmatpush2.xpose.msra.mxu0 0.0
    %5139 = vmatprep.subr.mxu0 0.0
    %5140 = vmatpush2.xpose.msra.mxu0 0.0
    %5141 = vmatprep.subr.mxu0 0.0
    %5142 = vmatpush2.xpose.msra.mxu0 0.0
    %5143 = vmatprep.subr.mxu0 0.0
    %5144 = vmatpush2.xpose.msra.mxu0 0.0
    %5145 = vmatprep.subr.mxu0 0.0
    %5146 = vmatpush2.xpose.msra.mxu0 0.0
    %5147 = vmatprep.mubr.f32.mxu0 0.0
    %5148 = vmatmul.mubr.f32.gmra.mxu0 %v5075
    %v5149 = vpop.f32.mrf.mxu0
    %v5150 = vadd.f32 0.0, %v5149
    %v5151 = vpop.f32.mrf.mxu0
    %5152 = vmatprep.mubr.f32.mxu0 0.0
    %5153 = vmatmul.mubr.f32.gmra.mxu0 %v5077
    %v5154 = vpop.f32.mrf.mxu0
    %v5155 = vadd.f32 0.0, %v5154
    %v5156 = vpop.f32.mrf.mxu0
    %5157 = vdwg.mxu0
    %5158 = vrot.lane.b32.xlu0 %v1408, 112
    %v5159 = vpop.permute.xlu0 %5158
    %5160 = vrot.lane.b32.xlu0 %v1413, 112
    %v5161 = vpop.permute.xlu0 %5160
    %5162 = vrot.lane.b32.xlu0 %v1408, 80
    %v5163 = vpop.permute.xlu0 %5162
    %5164 = vrot.lane.b32.xlu0 %v1413, 80
    %v5165 = vpop.permute.xlu0 %5164
    %v5166 = vsel %vm1432, %v5159, 0
    %v5168 = vsel %vm1432, %v5161, 0
    %v5170 = vsel %vm1432, %v5163, 0
    %v5172 = vsel %vm1432, %v5165, 0
    %5174 = vmatprep.subr.mxu0 0.0
    %5175 = vmatpush1.xpose.msra.mxu0 0.0
    %5176 = vmatprep.subr.mxu0 0.0
    %5177 = vmatpush1.xpose.msra.mxu0 0.0
    %5178 = vmatprep.subr.mxu0 0.0
    %5179 = vmatpush1.xpose.msra.mxu0 0.0
    %5180 = vmatprep.subr.mxu0 0.0
    %5181 = vmatpush1.xpose.msra.mxu0 0.0
    %5182 = vmatprep.subr.mxu0 0.0
    %5183 = vmatpush1.xpose.msra.mxu0 0.0
    %5184 = vmatprep.subr.mxu0 0.0
    %5185 = vmatpush1.xpose.msra.mxu0 0.0
    %5186 = vmatprep.subr.mxu0 0.0
    %5187 = vmatpush1.xpose.msra.mxu0 0.0
    %5188 = vmatprep.subr.mxu0 0.0
    %5189 = vmatpush1.xpose.msra.mxu0 0.0
    %5190 = vmatprep.subr.mxu0 0.0
    %5191 = vmatpush1.xpose.msra.mxu0 0.0
    %5192 = vmatprep.subr.mxu0 0.0
    %5193 = vmatpush1.xpose.msra.mxu0 0.0
    %5194 = vmatprep.subr.mxu0 0.0
    %5195 = vmatpush1.xpose.msra.mxu0 0.0
    %5196 = vmatprep.subr.mxu0 0.0
    %5197 = vmatpush1.xpose.msra.mxu0 0.0
    %5198 = vmatprep.subr.mxu0 0.0
    %5199 = vmatpush1.xpose.msra.mxu0 0.0
    %5200 = vmatprep.subr.mxu0 0.0
    %5201 = vmatpush1.xpose.msra.mxu0 0.0
    %5202 = vmatprep.subr.mxu0 0.0
    %5203 = vmatpush1.xpose.msra.mxu0 %v5172
    %5204 = vmatprep.subr.mxu0 0.0
    %5205 = vmatpush1.xpose.msra.mxu0 %v5170
    %5206 = vmatprep.subr.mxu0 0.0
    %5207 = vmatpush2.xpose.msra.mxu0 0.0
    %5208 = vmatprep.subr.mxu0 0.0
    %5209 = vmatpush2.xpose.msra.mxu0 0.0
    %5210 = vmatprep.subr.mxu0 0.0
    %5211 = vmatpush2.xpose.msra.mxu0 0.0
    %5212 = vmatprep.subr.mxu0 0.0
    %5213 = vmatpush2.xpose.msra.mxu0 0.0
    %5214 = vmatprep.subr.mxu0 0.0
    %5215 = vmatpush2.xpose.msra.mxu0 0.0
    %5216 = vmatprep.subr.mxu0 0.0
    %5217 = vmatpush2.xpose.msra.mxu0 0.0
    %5218 = vmatprep.subr.mxu0 0.0
    %5219 = vmatpush2.xpose.msra.mxu0 0.0
    %5220 = vmatprep.subr.mxu0 0.0
    %5221 = vmatpush2.xpose.msra.mxu0 0.0
    %5222 = vmatprep.subr.mxu0 0.0
    %5223 = vmatpush2.xpose.msra.mxu0 0.0
    %5224 = vmatprep.subr.mxu0 0.0
    %5225 = vmatpush2.xpose.msra.mxu0 0.0
    %5226 = vmatprep.subr.mxu0 0.0
    %5227 = vmatpush2.xpose.msra.mxu0 0.0
    %5228 = vmatprep.subr.mxu0 0.0
    %5229 = vmatpush2.xpose.msra.mxu0 0.0
    %5230 = vmatprep.subr.mxu0 0.0
    %5231 = vmatpush2.xpose.msra.mxu0 0.0
    %5232 = vmatprep.subr.mxu0 0.0
    %5233 = vmatpush2.xpose.msra.mxu0 0.0
    %5234 = vmatprep.subr.mxu0 0.0
    %5235 = vmatpush2.xpose.msra.mxu0 0.0
    %5236 = vmatprep.subr.mxu0 0.0
    %5237 = vmatpush2.xpose.msra.mxu0 0.0
    %5238 = vmatprep.mubr.f32.mxu0 0.0
    %5239 = vmatmul.mubr.f32.gmra.mxu0 %v5166
    %v5240 = vpop.f32.mrf.mxu0
    %v5241 = vadd.f32 0.0, %v5240
    %v5242 = vpop.f32.mrf.mxu0
    %5243 = vmatprep.mubr.f32.mxu0 0.0
    %5244 = vmatmul.mubr.f32.gmra.mxu0 %v5168
    %v5245 = vpop.f32.mrf.mxu0
    %v5246 = vadd.f32 0.0, %v5245
    %v5247 = vpop.f32.mrf.mxu0
    %5248 = vdwg.mxu0
    %5249 = vrot.lane.b32.xlu0 %v1418, 112
    %v5250 = vpop.permute.xlu0 %5249
    %5251 = vrot.lane.b32.xlu0 %v1423, 112
    %v5252 = vpop.permute.xlu0 %5251
    %5253 = vrot.lane.b32.xlu0 %v1418, 80
    %v5254 = vpop.permute.xlu0 %5253
    %5255 = vrot.lane.b32.xlu0 %v1423, 80
    %v5256 = vpop.permute.xlu0 %5255
    %v5257 = vsel %vm1432, %v5250, 0
    %v5259 = vsel %vm1432, %v5252, 0
    %v5261 = vsel %vm1432, %v5254, 0
    %v5263 = vsel %vm1432, %v5256, 0
    %5265 = vmatprep.subr.mxu0 0.0
    %5266 = vmatpush1.xpose.msra.mxu0 0.0
    %5267 = vmatprep.subr.mxu0 0.0
    %5268 = vmatpush1.xpose.msra.mxu0 0.0
    %5269 = vmatprep.subr.mxu0 0.0
    %5270 = vmatpush1.xpose.msra.mxu0 0.0
    %5271 = vmatprep.subr.mxu0 0.0
    %5272 = vmatpush1.xpose.msra.mxu0 0.0
    %5273 = vmatprep.subr.mxu0 0.0
    %5274 = vmatpush1.xpose.msra.mxu0 0.0
    %5275 = vmatprep.subr.mxu0 0.0
    %5276 = vmatpush1.xpose.msra.mxu0 0.0
    %5277 = vmatprep.subr.mxu0 0.0
    %5278 = vmatpush1.xpose.msra.mxu0 0.0
    %5279 = vmatprep.subr.mxu0 0.0
    %5280 = vmatpush1.xpose.msra.mxu0 0.0
    %5281 = vmatprep.subr.mxu0 0.0
    %5282 = vmatpush1.xpose.msra.mxu0 0.0
    %5283 = vmatprep.subr.mxu0 0.0
    %5284 = vmatpush1.xpose.msra.mxu0 0.0
    %5285 = vmatprep.subr.mxu0 0.0
    %5286 = vmatpush1.xpose.msra.mxu0 0.0
    %5287 = vmatprep.subr.mxu0 0.0
    %5288 = vmatpush1.xpose.msra.mxu0 0.0
    %5289 = vmatprep.subr.mxu0 0.0
    %5290 = vmatpush1.xpose.msra.mxu0 0.0
    %5291 = vmatprep.subr.mxu0 0.0
    %5292 = vmatpush1.xpose.msra.mxu0 0.0
    %5293 = vmatprep.subr.mxu0 0.0
    %5294 = vmatpush1.xpose.msra.mxu0 %v5263
    %5295 = vmatprep.subr.mxu0 0.0
    %5296 = vmatpush1.xpose.msra.mxu0 %v5261
    %5297 = vmatprep.subr.mxu0 0.0
    %5298 = vmatpush2.xpose.msra.mxu0 0.0
    %5299 = vmatprep.subr.mxu0 0.0
    %5300 = vmatpush2.xpose.msra.mxu0 0.0
    %5301 = vmatprep.subr.mxu0 0.0
    %5302 = vmatpush2.xpose.msra.mxu0 0.0
    %5303 = vmatprep.subr.mxu0 0.0
    %5304 = vmatpush2.xpose.msra.mxu0 0.0
    %5305 = vmatprep.subr.mxu0 0.0
    %5306 = vmatpush2.xpose.msra.mxu0 0.0
    %5307 = vmatprep.subr.mxu0 0.0
    %5308 = vmatpush2.xpose.msra.mxu0 0.0
    %5309 = vmatprep.subr.mxu0 0.0
    %5310 = vmatpush2.xpose.msra.mxu0 0.0
    %5311 = vmatprep.subr.mxu0 0.0
    %5312 = vmatpush2.xpose.msra.mxu0 0.0
    %5313 = vmatprep.subr.mxu0 0.0
    %5314 = vmatpush2.xpose.msra.mxu0 0.0
    %5315 = vmatprep.subr.mxu0 0.0
    %5316 = vmatpush2.xpose.msra.mxu0 0.0
    %5317 = vmatprep.subr.mxu0 0.0
    %5318 = vmatpush2.xpose.msra.mxu0 0.0
    %5319 = vmatprep.subr.mxu0 0.0
    %5320 = vmatpush2.xpose.msra.mxu0 0.0
    %5321 = vmatprep.subr.mxu0 0.0
    %5322 = vmatpush2.xpose.msra.mxu0 0.0
    %5323 = vmatprep.subr.mxu0 0.0
    %5324 = vmatpush2.xpose.msra.mxu0 0.0
    %5325 = vmatprep.subr.mxu0 0.0
    %5326 = vmatpush2.xpose.msra.mxu0 0.0
    %5327 = vmatprep.subr.mxu0 0.0
    %5328 = vmatpush2.xpose.msra.mxu0 0.0
    %5329 = vmatprep.mubr.f32.mxu0 0.0
    %5330 = vmatmul.mubr.f32.gmra.mxu0 %v5257
    %v5331 = vpop.f32.mrf.mxu0
    %v5332 = vadd.f32 0.0, %v5331
    %v5333 = vpop.f32.mrf.mxu0
    %5334 = vmatprep.mubr.f32.mxu0 0.0
    %5335 = vmatmul.mubr.f32.gmra.mxu0 %v5259
    %v5336 = vpop.f32.mrf.mxu0
    %v5337 = vadd.f32 0.0, %v5336
    %v5338 = vpop.f32.mrf.mxu0
    %5339 = vdwg.mxu0
    %v5340 = vsel %vm2139, %v4695, -inf
    %5341 = vmax.xlane.f32.xlu0 %v5340
    %v5342 = vpop.xlane.xlu0 %5341
    %v5343 = vsel %vm2139, %v4700, -inf
    %5344 = vmax.xlane.f32.xlu0 %v5343
    %v5345 = vpop.xlane.xlu0 %5344
    %v5346 = vsel %vm2139, %v4786, -inf
    %5347 = vmax.xlane.f32.xlu0 %v5346
    %v5348 = vpop.xlane.xlu0 %5347
    %v5349 = vsel %vm2139, %v4791, -inf
    %5350 = vmax.xlane.f32.xlu0 %v5349
    %v5351 = vpop.xlane.xlu0 %5350
    %v5352 = vsel %vm2139, %v4877, -inf
    %5353 = vmax.xlane.f32.xlu0 %v5352
    %v5354 = vpop.xlane.xlu0 %5353
    %v5355 = vsel %vm2139, %v4882, -inf
    %5356 = vmax.xlane.f32.xlu0 %v5355
    %v5357 = vpop.xlane.xlu0 %5356
    %v5358 = vsel %vm2139, %v4968, -inf
    %5359 = vmax.xlane.f32.xlu0 %v5358
    %v5360 = vpop.xlane.xlu0 %5359
    %v5361 = vsel %vm2139, %v4973, -inf
    %5362 = vmax.xlane.f32.xlu0 %v5361
    %v5363 = vpop.xlane.xlu0 %5362
    %v5364 = vsel %vm2139, %v5059, -inf
    %5365 = vmax.xlane.f32.xlu0 %v5364
    %v5366 = vpop.xlane.xlu0 %5365
    %v5367 = vsel %vm2139, %v5064, -inf
    %5368 = vmax.xlane.f32.xlu0 %v5367
    %v5369 = vpop.xlane.xlu0 %5368
    %v5370 = vsel %vm2139, %v5150, -inf
    %5371 = vmax.xlane.f32.xlu0 %v5370
    %v5372 = vpop.xlane.xlu0 %5371
    %v5373 = vsel %vm2139, %v5155, -inf
    %5374 = vmax.xlane.f32.xlu0 %v5373
    %v5375 = vpop.xlane.xlu0 %5374
    %v5376 = vsel %vm2139, %v5241, -inf
    %5377 = vmax.xlane.f32.xlu0 %v5376
    %v5378 = vpop.xlane.xlu0 %5377
    %v5379 = vsel %vm2139, %v5246, -inf
    %5380 = vmax.xlane.f32.xlu0 %v5379
    %v5381 = vpop.xlane.xlu0 %5380
    %v5382 = vsel %vm2139, %v5332, -inf
    %5383 = vmax.xlane.f32.xlu0 %v5382
    %v5384 = vpop.xlane.xlu0 %5383
    %v5385 = vsel %vm2139, %v5337, -inf
    %5386 = vmax.xlane.f32.xlu0 %v5385
    %v5387 = vpop.xlane.xlu0 %5386
    %v5388 = vsub.f32 %v4695, %v5342
    %v5389 = vsub.f32 %v4700, %v5345
    %v5390 = vsub.f32 %v4786, %v5348
    %v5391 = vsub.f32 %v4791, %v5351
    %v5392 = vsub.f32 %v4877, %v5354
    %v5393 = vsub.f32 %v4882, %v5357
    %v5394 = vsub.f32 %v4968, %v5360
    %v5395 = vsub.f32 %v4973, %v5363
    %v5396 = vsub.f32 %v5059, %v5366
    %v5397 = vsub.f32 %v5064, %v5369
    %v5398 = vsub.f32 %v5150, %v5372
    %v5399 = vsub.f32 %v5155, %v5375
    %v5400 = vsub.f32 %v5241, %v5378
    %v5401 = vsub.f32 %v5246, %v5381
    %v5402 = vsub.f32 %v5332, %v5384
    %v5403 = vsub.f32 %v5337, %v5387
    %v5404 = vmul.f32 %v5388, 1.442695
    %v5405 = vpow.pop %v5404
    %v5406 = vmul.f32 %v5389, 1.442695
    %v5407 = vpow.pop %v5406
    %v5408 = vmul.f32 %v5390, 1.442695
    %v5409 = vpow.pop %v5408
    %v5410 = vmul.f32 %v5391, 1.442695
    %v5411 = vpow.pop %v5410
    %v5412 = vmul.f32 %v5392, 1.442695
    %v5413 = vpow.pop %v5412
    %v5414 = vmul.f32 %v5393, 1.442695
    %v5415 = vpow.pop %v5414
    %v5416 = vmul.f32 %v5394, 1.442695
    %v5417 = vpow.pop %v5416
    %v5418 = vmul.f32 %v5395, 1.442695
    %v5419 = vpow.pop %v5418
    %v5420 = vmul.f32 %v5396, 1.442695
    %v5421 = vpow.pop %v5420
    %v5422 = vmul.f32 %v5397, 1.442695
    %v5423 = vpow.pop %v5422
    %v5424 = vmul.f32 %v5398, 1.442695
    %v5425 = vpow.pop %v5424
    %v5426 = vmul.f32 %v5399, 1.442695
    %v5427 = vpow.pop %v5426
    %v5428 = vmul.f32 %v5400, 1.442695
    %v5429 = vpow.pop %v5428
    %v5430 = vmul.f32 %v5401, 1.442695
    %v5431 = vpow.pop %v5430
    %v5432 = vmul.f32 %v5402, 1.442695
    %v5433 = vpow.pop %v5432
    %v5434 = vmul.f32 %v5403, 1.442695
    %v5435 = vpow.pop %v5434
    %v5436 = vsel %vm2139, %v5405, 0.0
    %5437 = vadd.xlane.f32.xlu0 %v5436
    %v5438 = vpop.xlane.xlu0 %5437
    %v5439 = vsel %vm2139, %v5407, 0.0
    %5440 = vadd.xlane.f32.xlu0 %v5439
    %v5441 = vpop.xlane.xlu0 %5440
    %v5442 = vsel %vm2139, %v5409, 0.0
    %5443 = vadd.xlane.f32.xlu0 %v5442
    %v5444 = vpop.xlane.xlu0 %5443
    %v5445 = vsel %vm2139, %v5411, 0.0
    %5446 = vadd.xlane.f32.xlu0 %v5445
    %v5447 = vpop.xlane.xlu0 %5446
    %v5448 = vsel %vm2139, %v5413, 0.0
    %5449 = vadd.xlane.f32.xlu0 %v5448
    %v5450 = vpop.xlane.xlu0 %5449
    %v5451 = vsel %vm2139, %v5415, 0.0
    %5452 = vadd.xlane.f32.xlu0 %v5451
    %v5453 = vpop.xlane.xlu0 %5452
    %v5454 = vsel %vm2139, %v5417, 0.0
    %5455 = vadd.xlane.f32.xlu0 %v5454
    %v5456 = vpop.xlane.xlu0 %5455
    %v5457 = vsel %vm2139, %v5419, 0.0
    %5458 = vadd.xlane.f32.xlu0 %v5457
    %v5459 = vpop.xlane.xlu0 %5458
    %v5460 = vsel %vm2139, %v5421, 0.0
    %5461 = vadd.xlane.f32.xlu0 %v5460
    %v5462 = vpop.xlane.xlu0 %5461
    %v5463 = vsel %vm2139, %v5423, 0.0
    %5464 = vadd.xlane.f32.xlu0 %v5463
    %v5465 = vpop.xlane.xlu0 %5464
    %v5466 = vsel %vm2139, %v5425, 0.0
    %5467 = vadd.xlane.f32.xlu0 %v5466
    %v5468 = vpop.xlane.xlu0 %5467
    %v5469 = vsel %vm2139, %v5427, 0.0
    %5470 = vadd.xlane.f32.xlu0 %v5469
    %v5471 = vpop.xlane.xlu0 %5470
    %v5472 = vsel %vm2139, %v5429, 0.0
    %5473 = vadd.xlane.f32.xlu0 %v5472
    %v5474 = vpop.xlane.xlu0 %5473
    %v5475 = vsel %vm2139, %v5431, 0.0
    %5476 = vadd.xlane.f32.xlu0 %v5475
    %v5477 = vpop.xlane.xlu0 %5476
    %v5478 = vsel %vm2139, %v5433, 0.0
    %5479 = vadd.xlane.f32.xlu0 %v5478
    %v5480 = vpop.xlane.xlu0 %5479
    %v5481 = vsel %vm2139, %v5435, 0.0
    %5482 = vadd.xlane.f32.xlu0 %v5481
    %v5483 = vpop.xlane.xlu0 %5482
    %v5484 = vrcp.pop %v5438
    %v5485 = vrcp.pop %v5441
    %v5486 = vrcp.pop %v5444
    %v5487 = vrcp.pop %v5447
    %v5488 = vrcp.pop %v5450
    %v5489 = vrcp.pop %v5453
    %v5490 = vrcp.pop %v5456
    %v5491 = vrcp.pop %v5459
    %v5492 = vrcp.pop %v5462
    %v5493 = vrcp.pop %v5465
    %v5494 = vrcp.pop %v5468
    %v5495 = vrcp.pop %v5471
    %v5496 = vrcp.pop %v5474
    %v5497 = vrcp.pop %v5477
    %v5498 = vrcp.pop %v5480
    %v5499 = vrcp.pop %v5483
    %v5500 = vmul.f32 %v5405, %v5484
    %v5501 = vmul.f32 %v5407, %v5485
    %v5502 = vmul.f32 %v5409, %v5486
    %v5503 = vmul.f32 %v5411, %v5487
    %v5504 = vmul.f32 %v5413, %v5488
    %v5505 = vmul.f32 %v5415, %v5489
    %v5506 = vmul.f32 %v5417, %v5490
    %v5507 = vmul.f32 %v5419, %v5491
    %v5508 = vmul.f32 %v5421, %v5492
    %v5509 = vmul.f32 %v5423, %v5493
    %v5510 = vmul.f32 %v5425, %v5494
    %v5511 = vmul.f32 %v5427, %v5495
    %v5512 = vmul.f32 %v5429, %v5496
    %v5513 = vmul.f32 %v5431, %v5497
    %v5514 = vmul.f32 %v5433, %v5498
    %v5515 = vmul.f32 %v5435, %v5499
    %5516 = vrot.lane.b32.xlu0 %v1348, 48
    %v5517 = vpop.permute.xlu0 %5516
    %5518 = vrot.lane.b32.xlu0 %v1353, 48
    %v5519 = vpop.permute.xlu0 %5518
    %v5523 = vsel %vm2139, %v5500, 0
    %v5526 = vsel %vm2139, %v5501, 0
    %5528 = vmatprep.subr.mxu0 0.0
    %5529 = vmatpush1.msra.mxu0 0.0
    %5530 = vmatprep.subr.mxu0 0.0
    %5531 = vmatpush1.msra.mxu0 0.0
    %5532 = vmatprep.subr.mxu0 0.0
    %5533 = vmatpush1.msra.mxu0 0.0
    %5534 = vmatprep.subr.mxu0 0.0
    %5535 = vmatpush1.msra.mxu0 0.0
    %5536 = vmatprep.subr.mxu0 0.0
    %5537 = vmatpush1.msra.mxu0 0.0
    %5538 = vmatprep.subr.mxu0 0.0
    %5539 = vmatpush1.msra.mxu0 0.0
    %5540 = vmatprep.subr.mxu0 0.0
    %5541 = vmatpush1.msra.mxu0 0.0
    %5542 = vmatprep.subr.mxu0 0.0
    %5543 = vmatpush1.msra.mxu0 0.0
    %5544 = vmatprep.subr.mxu0 0.0
    %5545 = vmatpush1.msra.mxu0 0.0
    %5546 = vmatprep.subr.mxu0 0.0
    %5547 = vmatpush1.msra.mxu0 0.0
    %5548 = vmatprep.subr.mxu0 0.0
    %5549 = vmatpush1.msra.mxu0 0.0
    %5550 = vmatprep.subr.mxu0 0.0
    %5551 = vmatpush1.msra.mxu0 0.0
    %5552 = vmatprep.subr.mxu0 0.0
    %5553 = vmatpush1.msra.mxu0 0.0
    %5554 = vmatprep.subr.mxu0 0.0
    %5555 = vmatpush1.msra.mxu0 0.0
    %5556 = vmatprep.subr.mxu0 0.0
    %5557 = vmatpush1.msra.mxu0 %v5519
    %5558 = vmatprep.subr.mxu0 0.0
    %5559 = vmatpush1.msra.mxu0 %v5517
    %5560 = vmatprep.subr.mxu0 0.0
    %5561 = vmatpush2.msra.mxu0 0.0
    %5562 = vmatprep.subr.mxu0 0.0
    %5563 = vmatpush2.msra.mxu0 0.0
    %5564 = vmatprep.subr.mxu0 0.0
    %5565 = vmatpush2.msra.mxu0 0.0
    %5566 = vmatprep.subr.mxu0 0.0
    %5567 = vmatpush2.msra.mxu0 0.0
    %5568 = vmatprep.subr.mxu0 0.0
    %5569 = vmatpush2.msra.mxu0 0.0
    %5570 = vmatprep.subr.mxu0 0.0
    %5571 = vmatpush2.msra.mxu0 0.0
    %5572 = vmatprep.subr.mxu0 0.0
    %5573 = vmatpush2.msra.mxu0 0.0
    %5574 = vmatprep.subr.mxu0 0.0
    %5575 = vmatpush2.msra.mxu0 0.0
    %5576 = vmatprep.subr.mxu0 0.0
    %5577 = vmatpush2.msra.mxu0 0.0
    %5578 = vmatprep.subr.mxu0 0.0
    %5579 = vmatpush2.msra.mxu0 0.0
    %5580 = vmatprep.subr.mxu0 0.0
    %5581 = vmatpush2.msra.mxu0 0.0
    %5582 = vmatprep.subr.mxu0 0.0
    %5583 = vmatpush2.msra.mxu0 0.0
    %5584 = vmatprep.subr.mxu0 0.0
    %5585 = vmatpush2.msra.mxu0 0.0
    %5586 = vmatprep.subr.mxu0 0.0
    %5587 = vmatpush2.msra.mxu0 0.0
    %5588 = vmatprep.subr.mxu0 0.0
    %5589 = vmatpush2.msra.mxu0 0.0
    %5590 = vmatprep.subr.mxu0 0.0
    %5591 = vmatpush2.msra.mxu0 0.0
    %5592 = vmatprep.mubr.f32.mxu0 0.0
    %5593 = vmatmul.mubr.f32.gmra.mxu0 %v5523
    %v5594 = vpop.f32.mrf.mxu0
    %v5595 = vadd.f32 0.0, %v5594
    %v5596 = vpop.f32.mrf.mxu0
    %5597 = vmatprep.mubr.f32.mxu0 0.0
    %5598 = vmatmul.mubr.f32.gmra.mxu0 %v5526
    %v5599 = vpop.f32.mrf.mxu0
    %v5600 = vadd.f32 0.0, %v5599
    %v5601 = vpop.f32.mrf.mxu0
    %5602 = vdwg.mxu0
    %5603 = vrot.lane.b32.xlu0 %v1358, 48
    %v5604 = vpop.permute.xlu0 %5603
    %5605 = vrot.lane.b32.xlu0 %v1363, 48
    %v5606 = vpop.permute.xlu0 %5605
    %v5610 = vsel %vm2139, %v5502, 0
    %v5613 = vsel %vm2139, %v5503, 0
    %5615 = vmatprep.subr.mxu0 0.0
    %5616 = vmatpush1.msra.mxu0 0.0
    %5617 = vmatprep.subr.mxu0 0.0
    %5618 = vmatpush1.msra.mxu0 0.0
    %5619 = vmatprep.subr.mxu0 0.0
    %5620 = vmatpush1.msra.mxu0 0.0
    %5621 = vmatprep.subr.mxu0 0.0
    %5622 = vmatpush1.msra.mxu0 0.0
    %5623 = vmatprep.subr.mxu0 0.0
    %5624 = vmatpush1.msra.mxu0 0.0
    %5625 = vmatprep.subr.mxu0 0.0
    %5626 = vmatpush1.msra.mxu0 0.0
    %5627 = vmatprep.subr.mxu0 0.0
    %5628 = vmatpush1.msra.mxu0 0.0
    %5629 = vmatprep.subr.mxu0 0.0
    %5630 = vmatpush1.msra.mxu0 0.0
    %5631 = vmatprep.subr.mxu0 0.0
    %5632 = vmatpush1.msra.mxu0 0.0
    %5633 = vmatprep.subr.mxu0 0.0
    %5634 = vmatpush1.msra.mxu0 0.0
    %5635 = vmatprep.subr.mxu0 0.0
    %5636 = vmatpush1.msra.mxu0 0.0
    %5637 = vmatprep.subr.mxu0 0.0
    %5638 = vmatpush1.msra.mxu0 0.0
    %5639 = vmatprep.subr.mxu0 0.0
    %5640 = vmatpush1.msra.mxu0 0.0
    %5641 = vmatprep.subr.mxu0 0.0
    %5642 = vmatpush1.msra.mxu0 0.0
    %5643 = vmatprep.subr.mxu0 0.0
    %5644 = vmatpush1.msra.mxu0 %v5606
    %5645 = vmatprep.subr.mxu0 0.0
    %5646 = vmatpush1.msra.mxu0 %v5604
    %5647 = vmatprep.subr.mxu0 0.0
    %5648 = vmatpush2.msra.mxu0 0.0
    %5649 = vmatprep.subr.mxu0 0.0
    %5650 = vmatpush2.msra.mxu0 0.0
    %5651 = vmatprep.subr.mxu0 0.0
    %5652 = vmatpush2.msra.mxu0 0.0
    %5653 = vmatprep.subr.mxu0 0.0
    %5654 = vmatpush2.msra.mxu0 0.0
    %5655 = vmatprep.subr.mxu0 0.0
    %5656 = vmatpush2.msra.mxu0 0.0
    %5657 = vmatprep.subr.mxu0 0.0
    %5658 = vmatpush2.msra.mxu0 0.0
    %5659 = vmatprep.subr.mxu0 0.0
    %5660 = vmatpush2.msra.mxu0 0.0
    %5661 = vmatprep.subr.mxu0 0.0
    %5662 = vmatpush2.msra.mxu0 0.0
    %5663 = vmatprep.subr.mxu0 0.0
    %5664 = vmatpush2.msra.mxu0 0.0
    %5665 = vmatprep.subr.mxu0 0.0
    %5666 = vmatpush2.msra.mxu0 0.0
    %5667 = vmatprep.subr.mxu0 0.0
    %5668 = vmatpush2.msra.mxu0 0.0
    %5669 = vmatprep.subr.mxu0 0.0
    %5670 = vmatpush2.msra.mxu0 0.0
    %5671 = vmatprep.subr.mxu0 0.0
    %5672 = vmatpush2.msra.mxu0 0.0
    %5673 = vmatprep.subr.mxu0 0.0
    %5674 = vmatpush2.msra.mxu0 0.0
    %5675 = vmatprep.subr.mxu0 0.0
    %5676 = vmatpush2.msra.mxu0 0.0
    %5677 = vmatprep.subr.mxu0 0.0
    %5678 = vmatpush2.msra.mxu0 0.0
    %5679 = vmatprep.mubr.f32.mxu0 0.0
    %5680 = vmatmul.mubr.f32.gmra.mxu0 %v5610
    %v5681 = vpop.f32.mrf.mxu0
    %v5682 = vadd.f32 0.0, %v5681
    %v5683 = vpop.f32.mrf.mxu0
    %5684 = vmatprep.mubr.f32.mxu0 0.0
    %5685 = vmatmul.mubr.f32.gmra.mxu0 %v5613
    %v5686 = vpop.f32.mrf.mxu0
    %v5687 = vadd.f32 0.0, %v5686
    %v5688 = vpop.f32.mrf.mxu0
    %5689 = vdwg.mxu0
    %5690 = vrot.lane.b32.xlu0 %v1368, 48
    %v5691 = vpop.permute.xlu0 %5690
    %5692 = vrot.lane.b32.xlu0 %v1373, 48
    %v5693 = vpop.permute.xlu0 %5692
    %v5697 = vsel %vm2139, %v5504, 0
    %v5700 = vsel %vm2139, %v5505, 0
    %5702 = vmatprep.subr.mxu0 0.0
    %5703 = vmatpush1.msra.mxu0 0.0
    %5704 = vmatprep.subr.mxu0 0.0
    %5705 = vmatpush1.msra.mxu0 0.0
    %5706 = vmatprep.subr.mxu0 0.0
    %5707 = vmatpush1.msra.mxu0 0.0
    %5708 = vmatprep.subr.mxu0 0.0
    %5709 = vmatpush1.msra.mxu0 0.0
    %5710 = vmatprep.subr.mxu0 0.0
    %5711 = vmatpush1.msra.mxu0 0.0
    %5712 = vmatprep.subr.mxu0 0.0
    %5713 = vmatpush1.msra.mxu0 0.0
    %5714 = vmatprep.subr.mxu0 0.0
    %5715 = vmatpush1.msra.mxu0 0.0
    %5716 = vmatprep.subr.mxu0 0.0
    %5717 = vmatpush1.msra.mxu0 0.0
    %5718 = vmatprep.subr.mxu0 0.0
    %5719 = vmatpush1.msra.mxu0 0.0
    %5720 = vmatprep.subr.mxu0 0.0
    %5721 = vmatpush1.msra.mxu0 0.0
    %5722 = vmatprep.subr.mxu0 0.0
    %5723 = vmatpush1.msra.mxu0 0.0
    %5724 = vmatprep.subr.mxu0 0.0
    %5725 = vmatpush1.msra.mxu0 0.0
    %5726 = vmatprep.subr.mxu0 0.0
    %5727 = vmatpush1.msra.mxu0 0.0
    %5728 = vmatprep.subr.mxu0 0.0
    %5729 = vmatpush1.msra.mxu0 0.0
    %5730 = vmatprep.subr.mxu0 0.0
    %5731 = vmatpush1.msra.mxu0 %v5693
    %5732 = vmatprep.subr.mxu0 0.0
    %5733 = vmatpush1.msra.mxu0 %v5691
    %5734 = vmatprep.subr.mxu0 0.0
    %5735 = vmatpush2.msra.mxu0 0.0
    %5736 = vmatprep.subr.mxu0 0.0
    %5737 = vmatpush2.msra.mxu0 0.0
    %5738 = vmatprep.subr.mxu0 0.0
    %5739 = vmatpush2.msra.mxu0 0.0
    %5740 = vmatprep.subr.mxu0 0.0
    %5741 = vmatpush2.msra.mxu0 0.0
    %5742 = vmatprep.subr.mxu0 0.0
    %5743 = vmatpush2.msra.mxu0 0.0
    %5744 = vmatprep.subr.mxu0 0.0
    %5745 = vmatpush2.msra.mxu0 0.0
    %5746 = vmatprep.subr.mxu0 0.0
    %5747 = vmatpush2.msra.mxu0 0.0
    %5748 = vmatprep.subr.mxu0 0.0
    %5749 = vmatpush2.msra.mxu0 0.0
    %5750 = vmatprep.subr.mxu0 0.0
    %5751 = vmatpush2.msra.mxu0 0.0
    %5752 = vmatprep.subr.mxu0 0.0
    %5753 = vmatpush2.msra.mxu0 0.0
    %5754 = vmatprep.subr.mxu0 0.0
    %5755 = vmatpush2.msra.mxu0 0.0
    %5756 = vmatprep.subr.mxu0 0.0
    %5757 = vmatpush2.msra.mxu0 0.0
    %5758 = vmatprep.subr.mxu0 0.0
    %5759 = vmatpush2.msra.mxu0 0.0
    %5760 = vmatprep.subr.mxu0 0.0
    %5761 = vmatpush2.msra.mxu0 0.0
    %5762 = vmatprep.subr.mxu0 0.0
    %5763 = vmatpush2.msra.mxu0 0.0
    %5764 = vmatprep.subr.mxu0 0.0
    %5765 = vmatpush2.msra.mxu0 0.0
    %5766 = vmatprep.mubr.f32.mxu0 0.0
    %5767 = vmatmul.mubr.f32.gmra.mxu0 %v5697
    %v5768 = vpop.f32.mrf.mxu0
    %v5769 = vadd.f32 0.0, %v5768
    %v5770 = vpop.f32.mrf.mxu0
    %5771 = vmatprep.mubr.f32.mxu0 0.0
    %5772 = vmatmul.mubr.f32.gmra.mxu0 %v5700
    %v5773 = vpop.f32.mrf.mxu0
    %v5774 = vadd.f32 0.0, %v5773
    %v5775 = vpop.f32.mrf.mxu0
    %5776 = vdwg.mxu0
    %5777 = vrot.lane.b32.xlu0 %v1378, 48
    %v5778 = vpop.permute.xlu0 %5777
    %5779 = vrot.lane.b32.xlu0 %v1383, 48
    %v5780 = vpop.permute.xlu0 %5779
    %v5784 = vsel %vm2139, %v5506, 0
    %v5787 = vsel %vm2139, %v5507, 0
    %5789 = vmatprep.subr.mxu0 0.0
    %5790 = vmatpush1.msra.mxu0 0.0
    %5791 = vmatprep.subr.mxu0 0.0
    %5792 = vmatpush1.msra.mxu0 0.0
    %5793 = vmatprep.subr.mxu0 0.0
    %5794 = vmatpush1.msra.mxu0 0.0
    %5795 = vmatprep.subr.mxu0 0.0
    %5796 = vmatpush1.msra.mxu0 0.0
    %5797 = vmatprep.subr.mxu0 0.0
    %5798 = vmatpush1.msra.mxu0 0.0
    %5799 = vmatprep.subr.mxu0 0.0
    %5800 = vmatpush1.msra.mxu0 0.0
    %5801 = vmatprep.subr.mxu0 0.0
    %5802 = vmatpush1.msra.mxu0 0.0
    %5803 = vmatprep.subr.mxu0 0.0
    %5804 = vmatpush1.msra.mxu0 0.0
    %5805 = vmatprep.subr.mxu0 0.0
    %5806 = vmatpush1.msra.mxu0 0.0
    %5807 = vmatprep.subr.mxu0 0.0
    %5808 = vmatpush1.msra.mxu0 0.0
    %5809 = vmatprep.subr.mxu0 0.0
    %5810 = vmatpush1.msra.mxu0 0.0
    %5811 = vmatprep.subr.mxu0 0.0
    %5812 = vmatpush1.msra.mxu0 0.0
    %5813 = vmatprep.subr.mxu0 0.0
    %5814 = vmatpush1.msra.mxu0 0.0
    %5815 = vmatprep.subr.mxu0 0.0
    %5816 = vmatpush1.msra.mxu0 0.0
    %5817 = vmatprep.subr.mxu0 0.0
    %5818 = vmatpush1.msra.mxu0 %v5780
    %5819 = vmatprep.subr.mxu0 0.0
    %5820 = vmatpush1.msra.mxu0 %v5778
    %5821 = vmatprep.subr.mxu0 0.0
    %5822 = vmatpush2.msra.mxu0 0.0
    %5823 = vmatprep.subr.mxu0 0.0
    %5824 = vmatpush2.msra.mxu0 0.0
    %5825 = vmatprep.subr.mxu0 0.0
    %5826 = vmatpush2.msra.mxu0 0.0
    %5827 = vmatprep.subr.mxu0 0.0
    %5828 = vmatpush2.msra.mxu0 0.0
    %5829 = vmatprep.subr.mxu0 0.0
    %5830 = vmatpush2.msra.mxu0 0.0
    %5831 = vmatprep.subr.mxu0 0.0
    %5832 = vmatpush2.msra.mxu0 0.0
    %5833 = vmatprep.subr.mxu0 0.0
    %5834 = vmatpush2.msra.mxu0 0.0
    %5835 = vmatprep.subr.mxu0 0.0
    %5836 = vmatpush2.msra.mxu0 0.0
    %5837 = vmatprep.subr.mxu0 0.0
    %5838 = vmatpush2.msra.mxu0 0.0
    %5839 = vmatprep.subr.mxu0 0.0
    %5840 = vmatpush2.msra.mxu0 0.0
    %5841 = vmatprep.subr.mxu0 0.0
    %5842 = vmatpush2.msra.mxu0 0.0
    %5843 = vmatprep.subr.mxu0 0.0
    %5844 = vmatpush2.msra.mxu0 0.0
    %5845 = vmatprep.subr.mxu0 0.0
    %5846 = vmatpush2.msra.mxu0 0.0
    %5847 = vmatprep.subr.mxu0 0.0
    %5848 = vmatpush2.msra.mxu0 0.0
    %5849 = vmatprep.subr.mxu0 0.0
    %5850 = vmatpush2.msra.mxu0 0.0
    %5851 = vmatprep.subr.mxu0 0.0
    %5852 = vmatpush2.msra.mxu0 0.0
    %5853 = vmatprep.mubr.f32.mxu0 0.0
    %5854 = vmatmul.mubr.f32.gmra.mxu0 %v5784
    %v5855 = vpop.f32.mrf.mxu0
    %v5856 = vadd.f32 0.0, %v5855
    %v5857 = vpop.f32.mrf.mxu0
    %5858 = vmatprep.mubr.f32.mxu0 0.0
    %5859 = vmatmul.mubr.f32.gmra.mxu0 %v5787
    %v5860 = vpop.f32.mrf.mxu0
    %v5861 = vadd.f32 0.0, %v5860
    %v5862 = vpop.f32.mrf.mxu0
    %5863 = vdwg.mxu0
    %5864 = vrot.lane.b32.xlu0 %v1388, 48
    %v5865 = vpop.permute.xlu0 %5864
    %5866 = vrot.lane.b32.xlu0 %v1393, 48
    %v5867 = vpop.permute.xlu0 %5866
    %v5871 = vsel %vm2139, %v5508, 0
    %v5874 = vsel %vm2139, %v5509, 0
    %5876 = vmatprep.subr.mxu0 0.0
    %5877 = vmatpush1.msra.mxu0 0.0
    %5878 = vmatprep.subr.mxu0 0.0
    %5879 = vmatpush1.msra.mxu0 0.0
    %5880 = vmatprep.subr.mxu0 0.0
    %5881 = vmatpush1.msra.mxu0 0.0
    %5882 = vmatprep.subr.mxu0 0.0
    %5883 = vmatpush1.msra.mxu0 0.0
    %5884 = vmatprep.subr.mxu0 0.0
    %5885 = vmatpush1.msra.mxu0 0.0
    %5886 = vmatprep.subr.mxu0 0.0
    %5887 = vmatpush1.msra.mxu0 0.0
    %5888 = vmatprep.subr.mxu0 0.0
    %5889 = vmatpush1.msra.mxu0 0.0
    %5890 = vmatprep.subr.mxu0 0.0
    %5891 = vmatpush1.msra.mxu0 0.0
    %5892 = vmatprep.subr.mxu0 0.0
    %5893 = vmatpush1.msra.mxu0 0.0
    %5894 = vmatprep.subr.mxu0 0.0
    %5895 = vmatpush1.msra.mxu0 0.0
    %5896 = vmatprep.subr.mxu0 0.0
    %5897 = vmatpush1.msra.mxu0 0.0
    %5898 = vmatprep.subr.mxu0 0.0
    %5899 = vmatpush1.msra.mxu0 0.0
    %5900 = vmatprep.subr.mxu0 0.0
    %5901 = vmatpush1.msra.mxu0 0.0
    %5902 = vmatprep.subr.mxu0 0.0
    %5903 = vmatpush1.msra.mxu0 0.0
    %5904 = vmatprep.subr.mxu0 0.0
    %5905 = vmatpush1.msra.mxu0 %v5867
    %5906 = vmatprep.subr.mxu0 0.0
    %5907 = vmatpush1.msra.mxu0 %v5865
    %5908 = vmatprep.subr.mxu0 0.0
    %5909 = vmatpush2.msra.mxu0 0.0
    %5910 = vmatprep.subr.mxu0 0.0
    %5911 = vmatpush2.msra.mxu0 0.0
    %5912 = vmatprep.subr.mxu0 0.0
    %5913 = vmatpush2.msra.mxu0 0.0
    %5914 = vmatprep.subr.mxu0 0.0
    %5915 = vmatpush2.msra.mxu0 0.0
    %5916 = vmatprep.subr.mxu0 0.0
    %5917 = vmatpush2.msra.mxu0 0.0
    %5918 = vmatprep.subr.mxu0 0.0
    %5919 = vmatpush2.msra.mxu0 0.0
    %5920 = vmatprep.subr.mxu0 0.0
    %5921 = vmatpush2.msra.mxu0 0.0
    %5922 = vmatprep.subr.mxu0 0.0
    %5923 = vmatpush2.msra.mxu0 0.0
    %5924 = vmatprep.subr.mxu0 0.0
    %5925 = vmatpush2.msra.mxu0 0.0
    %5926 = vmatprep.subr.mxu0 0.0
    %5927 = vmatpush2.msra.mxu0 0.0
    %5928 = vmatprep.subr.mxu0 0.0
    %5929 = vmatpush2.msra.mxu0 0.0
    %5930 = vmatprep.subr.mxu0 0.0
    %5931 = vmatpush2.msra.mxu0 0.0
    %5932 = vmatprep.subr.mxu0 0.0
    %5933 = vmatpush2.msra.mxu0 0.0
    %5934 = vmatprep.subr.mxu0 0.0
    %5935 = vmatpush2.msra.mxu0 0.0
    %5936 = vmatprep.subr.mxu0 0.0
    %5937 = vmatpush2.msra.mxu0 0.0
    %5938 = vmatprep.subr.mxu0 0.0
    %5939 = vmatpush2.msra.mxu0 0.0
    %5940 = vmatprep.mubr.f32.mxu0 0.0
    %5941 = vmatmul.mubr.f32.gmra.mxu0 %v5871
    %v5942 = vpop.f32.mrf.mxu0
    %v5943 = vadd.f32 0.0, %v5942
    %v5944 = vpop.f32.mrf.mxu0
    %5945 = vmatprep.mubr.f32.mxu0 0.0
    %5946 = vmatmul.mubr.f32.gmra.mxu0 %v5874
    %v5947 = vpop.f32.mrf.mxu0
    %v5948 = vadd.f32 0.0, %v5947
    %v5949 = vpop.f32.mrf.mxu0
    %5950 = vdwg.mxu0
    %5951 = vrot.lane.b32.xlu0 %v1398, 48
    %v5952 = vpop.permute.xlu0 %5951
    %5953 = vrot.lane.b32.xlu0 %v1403, 48
    %v5954 = vpop.permute.xlu0 %5953
    %v5958 = vsel %vm2139, %v5510, 0
    %v5961 = vsel %vm2139, %v5511, 0
    %5963 = vmatprep.subr.mxu0 0.0
    %5964 = vmatpush1.msra.mxu0 0.0
    %5965 = vmatprep.subr.mxu0 0.0
    %5966 = vmatpush1.msra.mxu0 0.0
    %5967 = vmatprep.subr.mxu0 0.0
    %5968 = vmatpush1.msra.mxu0 0.0
    %5969 = vmatprep.subr.mxu0 0.0
    %5970 = vmatpush1.msra.mxu0 0.0
    %5971 = vmatprep.subr.mxu0 0.0
    %5972 = vmatpush1.msra.mxu0 0.0
    %5973 = vmatprep.subr.mxu0 0.0
    %5974 = vmatpush1.msra.mxu0 0.0
    %5975 = vmatprep.subr.mxu0 0.0
    %5976 = vmatpush1.msra.mxu0 0.0
    %5977 = vmatprep.subr.mxu0 0.0
    %5978 = vmatpush1.msra.mxu0 0.0
    %5979 = vmatprep.subr.mxu0 0.0
    %5980 = vmatpush1.msra.mxu0 0.0
    %5981 = vmatprep.subr.mxu0 0.0
    %5982 = vmatpush1.msra.mxu0 0.0
    %5983 = vmatprep.subr.mxu0 0.0
    %5984 = vmatpush1.msra.mxu0 0.0
    %5985 = vmatprep.subr.mxu0 0.0
    %5986 = vmatpush1.msra.mxu0 0.0
    %5987 = vmatprep.subr.mxu0 0.0
    %5988 = vmatpush1.msra.mxu0 0.0
    %5989 = vmatprep.subr.mxu0 0.0
    %5990 = vmatpush1.msra.mxu0 0.0
    %5991 = vmatprep.subr.mxu0 0.0
    %5992 = vmatpush1.msra.mxu0 %v5954
    %5993 = vmatprep.subr.mxu0 0.0
    %5994 = vmatpush1.msra.mxu0 %v5952
    %5995 = vmatprep.subr.mxu0 0.0
    %5996 = vmatpush2.msra.mxu0 0.0
    %5997 = vmatprep.subr.mxu0 0.0
    %5998 = vmatpush2.msra.mxu0 0.0
    %5999 = vmatprep.subr.mxu0 0.0
    %6000 = vmatpush2.msra.mxu0 0.0
    %6001 = vmatprep.subr.mxu0 0.0
    %6002 = vmatpush2.msra.mxu0 0.0
    %6003 = vmatprep.subr.mxu0 0.0
    %6004 = vmatpush2.msra.mxu0 0.0
    %6005 = vmatprep.subr.mxu0 0.0
    %6006 = vmatpush2.msra.mxu0 0.0
    %6007 = vmatprep.subr.mxu0 0.0
    %6008 = vmatpush2.msra.mxu0 0.0
    %6009 = vmatprep.subr.mxu0 0.0
    %6010 = vmatpush2.msra.mxu0 0.0
    %6011 = vmatprep.subr.mxu0 0.0
    %6012 = vmatpush2.msra.mxu0 0.0
    %6013 = vmatprep.subr.mxu0 0.0
    %6014 = vmatpush2.msra.mxu0 0.0
    %6015 = vmatprep.subr.mxu0 0.0
    %6016 = vmatpush2.msra.mxu0 0.0
    %6017 = vmatprep.subr.mxu0 0.0
    %6018 = vmatpush2.msra.mxu0 0.0
    %6019 = vmatprep.subr.mxu0 0.0
    %6020 = vmatpush2.msra.mxu0 0.0
    %6021 = vmatprep.subr.mxu0 0.0
    %6022 = vmatpush2.msra.mxu0 0.0
    %6023 = vmatprep.subr.mxu0 0.0
    %6024 = vmatpush2.msra.mxu0 0.0
    %6025 = vmatprep.subr.mxu0 0.0
    %6026 = vmatpush2.msra.mxu0 0.0
    %6027 = vmatprep.mubr.f32.mxu0 0.0
    %6028 = vmatmul.mubr.f32.gmra.mxu0 %v5958
    %v6029 = vpop.f32.mrf.mxu0
    %v6030 = vadd.f32 0.0, %v6029
    %v6031 = vpop.f32.mrf.mxu0
    %6032 = vmatprep.mubr.f32.mxu0 0.0
    %6033 = vmatmul.mubr.f32.gmra.mxu0 %v5961
    %v6034 = vpop.f32.mrf.mxu0
    %v6035 = vadd.f32 0.0, %v6034
    %v6036 = vpop.f32.mrf.mxu0
    %6037 = vdwg.mxu0
    %6038 = vrot.lane.b32.xlu0 %v1408, 48
    %v6039 = vpop.permute.xlu0 %6038
    %6040 = vrot.lane.b32.xlu0 %v1413, 48
    %v6041 = vpop.permute.xlu0 %6040
    %v6045 = vsel %vm2139, %v5512, 0
    %v6048 = vsel %vm2139, %v5513, 0
    %6050 = vmatprep.subr.mxu0 0.0
    %6051 = vmatpush1.msra.mxu0 0.0
    %6052 = vmatprep.subr.mxu0 0.0
    %6053 = vmatpush1.msra.mxu0 0.0
    %6054 = vmatprep.subr.mxu0 0.0
    %6055 = vmatpush1.msra.mxu0 0.0
    %6056 = vmatprep.subr.mxu0 0.0
    %6057 = vmatpush1.msra.mxu0 0.0
    %6058 = vmatprep.subr.mxu0 0.0
    %6059 = vmatpush1.msra.mxu0 0.0
    %6060 = vmatprep.subr.mxu0 0.0
    %6061 = vmatpush1.msra.mxu0 0.0
    %6062 = vmatprep.subr.mxu0 0.0
    %6063 = vmatpush1.msra.mxu0 0.0
    %6064 = vmatprep.subr.mxu0 0.0
    %6065 = vmatpush1.msra.mxu0 0.0
    %6066 = vmatprep.subr.mxu0 0.0
    %6067 = vmatpush1.msra.mxu0 0.0
    %6068 = vmatprep.subr.mxu0 0.0
    %6069 = vmatpush1.msra.mxu0 0.0
    %6070 = vmatprep.subr.mxu0 0.0
    %6071 = vmatpush1.msra.mxu0 0.0
    %6072 = vmatprep.subr.mxu0 0.0
    %6073 = vmatpush1.msra.mxu0 0.0
    %6074 = vmatprep.subr.mxu0 0.0
    %6075 = vmatpush1.msra.mxu0 0.0
    %6076 = vmatprep.subr.mxu0 0.0
    %6077 = vmatpush1.msra.mxu0 0.0
    %6078 = vmatprep.subr.mxu0 0.0
    %6079 = vmatpush1.msra.mxu0 %v6041
    %6080 = vmatprep.subr.mxu0 0.0
    %6081 = vmatpush1.msra.mxu0 %v6039
    %6082 = vmatprep.subr.mxu0 0.0
    %6083 = vmatpush2.msra.mxu0 0.0
    %6084 = vmatprep.subr.mxu0 0.0
    %6085 = vmatpush2.msra.mxu0 0.0
    %6086 = vmatprep.subr.mxu0 0.0
    %6087 = vmatpush2.msra.mxu0 0.0
    %6088 = vmatprep.subr.mxu0 0.0
    %6089 = vmatpush2.msra.mxu0 0.0
    %6090 = vmatprep.subr.mxu0 0.0
    %6091 = vmatpush2.msra.mxu0 0.0
    %6092 = vmatprep.subr.mxu0 0.0
    %6093 = vmatpush2.msra.mxu0 0.0
    %6094 = vmatprep.subr.mxu0 0.0
    %6095 = vmatpush2.msra.mxu0 0.0
    %6096 = vmatprep.subr.mxu0 0.0
    %6097 = vmatpush2.msra.mxu0 0.0
    %6098 = vmatprep.subr.mxu0 0.0
    %6099 = vmatpush2.msra.mxu0 0.0
    %6100 = vmatprep.subr.mxu0 0.0
    %6101 = vmatpush2.msra.mxu0 0.0
    %6102 = vmatprep.subr.mxu0 0.0
    %6103 = vmatpush2.msra.mxu0 0.0
    %6104 = vmatprep.subr.mxu0 0.0
    %6105 = vmatpush2.msra.mxu0 0.0
    %6106 = vmatprep.subr.mxu0 0.0
    %6107 = vmatpush2.msra.mxu0 0.0
    %6108 = vmatprep.subr.mxu0 0.0
    %6109 = vmatpush2.msra.mxu0 0.0
    %6110 = vmatprep.subr.mxu0 0.0
    %6111 = vmatpush2.msra.mxu0 0.0
    %6112 = vmatprep.subr.mxu0 0.0
    %6113 = vmatpush2.msra.mxu0 0.0
    %6114 = vmatprep.mubr.f32.mxu0 0.0
    %6115 = vmatmul.mubr.f32.gmra.mxu0 %v6045
    %v6116 = vpop.f32.mrf.mxu0
    %v6117 = vadd.f32 0.0, %v6116
    %v6118 = vpop.f32.mrf.mxu0
    %6119 = vmatprep.mubr.f32.mxu0 0.0
    %6120 = vmatmul.mubr.f32.gmra.mxu0 %v6048
    %v6121 = vpop.f32.mrf.mxu0
    %v6122 = vadd.f32 0.0, %v6121
    %v6123 = vpop.f32.mrf.mxu0
    %6124 = vdwg.mxu0
    %6125 = vrot.lane.b32.xlu0 %v1418, 48
    %v6126 = vpop.permute.xlu0 %6125
    %6127 = vrot.lane.b32.xlu0 %v1423, 48
    %v6128 = vpop.permute.xlu0 %6127
    %v6132 = vsel %vm2139, %v5514, 0
    %v6135 = vsel %vm2139, %v5515, 0
    %6137 = vmatprep.subr.mxu0 0.0
    %6138 = vmatpush1.msra.mxu0 0.0
    %6139 = vmatprep.subr.mxu0 0.0
    %6140 = vmatpush1.msra.mxu0 0.0
    %6141 = vmatprep.subr.mxu0 0.0
    %6142 = vmatpush1.msra.mxu0 0.0
    %6143 = vmatprep.subr.mxu0 0.0
    %6144 = vmatpush1.msra.mxu0 0.0
    %6145 = vmatprep.subr.mxu0 0.0
    %6146 = vmatpush1.msra.mxu0 0.0
    %6147 = vmatprep.subr.mxu0 0.0
    %6148 = vmatpush1.msra.mxu0 0.0
    %6149 = vmatprep.subr.mxu0 0.0
    %6150 = vmatpush1.msra.mxu0 0.0
    %6151 = vmatprep.subr.mxu0 0.0
    %6152 = vmatpush1.msra.mxu0 0.0
    %6153 = vmatprep.subr.mxu0 0.0
    %6154 = vmatpush1.msra.mxu0 0.0
    %6155 = vmatprep.subr.mxu0 0.0
    %6156 = vmatpush1.msra.mxu0 0.0
    %6157 = vmatprep.subr.mxu0 0.0
    %6158 = vmatpush1.msra.mxu0 0.0
    %6159 = vmatprep.subr.mxu0 0.0
    %6160 = vmatpush1.msra.mxu0 0.0
    %6161 = vmatprep.subr.mxu0 0.0
    %6162 = vmatpush1.msra.mxu0 0.0
    %6163 = vmatprep.subr.mxu0 0.0
    %6164 = vmatpush1.msra.mxu0 0.0
    %6165 = vmatprep.subr.mxu0 0.0
    %6166 = vmatpush1.msra.mxu0 %v6128
    %6167 = vmatprep.subr.mxu0 0.0
    %6168 = vmatpush1.msra.mxu0 %v6126
    %6169 = vmatprep.subr.mxu0 0.0
    %6170 = vmatpush2.msra.mxu0 0.0
    %6171 = vmatprep.subr.mxu0 0.0
    %6172 = vmatpush2.msra.mxu0 0.0
    %6173 = vmatprep.subr.mxu0 0.0
    %6174 = vmatpush2.msra.mxu0 0.0
    %6175 = vmatprep.subr.mxu0 0.0
    %6176 = vmatpush2.msra.mxu0 0.0
    %6177 = vmatprep.subr.mxu0 0.0
    %6178 = vmatpush2.msra.mxu0 0.0
    %6179 = vmatprep.subr.mxu0 0.0
    %6180 = vmatpush2.msra.mxu0 0.0
    %6181 = vmatprep.subr.mxu0 0.0
    %6182 = vmatpush2.msra.mxu0 0.0
    %6183 = vmatprep.subr.mxu0 0.0
    %6184 = vmatpush2.msra.mxu0 0.0
    %6185 = vmatprep.subr.mxu0 0.0
    %6186 = vmatpush2.msra.mxu0 0.0
    %6187 = vmatprep.subr.mxu0 0.0
    %6188 = vmatpush2.msra.mxu0 0.0
    %6189 = vmatprep.subr.mxu0 0.0
    %6190 = vmatpush2.msra.mxu0 0.0
    %6191 = vmatprep.subr.mxu0 0.0
    %6192 = vmatpush2.msra.mxu0 0.0
    %6193 = vmatprep.subr.mxu0 0.0
    %6194 = vmatpush2.msra.mxu0 0.0
    %6195 = vmatprep.subr.mxu0 0.0
    %6196 = vmatpush2.msra.mxu0 0.0
    %6197 = vmatprep.subr.mxu0 0.0
    %6198 = vmatpush2.msra.mxu0 0.0
    %6199 = vmatprep.subr.mxu0 0.0
    %6200 = vmatpush2.msra.mxu0 0.0
    %6201 = vmatprep.mubr.f32.mxu0 0.0
    %6202 = vmatmul.mubr.f32.gmra.mxu0 %v6132
    %v6203 = vpop.f32.mrf.mxu0
    %v6204 = vadd.f32 0.0, %v6203
    %v6205 = vpop.f32.mrf.mxu0
    %6206 = vmatprep.mubr.f32.mxu0 0.0
    %6207 = vmatmul.mubr.f32.gmra.mxu0 %v6135
    %v6208 = vpop.f32.mrf.mxu0
    %v6209 = vadd.f32 0.0, %v6208
    %v6210 = vpop.f32.mrf.mxu0
    %6211 = vdwg.mxu0
    %6212 = vrot.lane.b32.xlu0 %v1348, 104
    %v6213 = vpop.permute.xlu0 %6212
    %6214 = vrot.lane.b32.xlu0 %v1353, 104
    %v6215 = vpop.permute.xlu0 %6214
    %6216 = vrot.lane.b32.xlu0 %v1348, 72
    %v6217 = vpop.permute.xlu0 %6216
    %6218 = vrot.lane.b32.xlu0 %v1353, 72
    %v6219 = vpop.permute.xlu0 %6218
    %v6220 = vsel %vm1432, %v6213, 0
    %v6222 = vsel %vm1432, %v6215, 0
    %v6224 = vsel %vm1432, %v6217, 0
    %v6226 = vsel %vm1432, %v6219, 0
    %6228 = vmatprep.subr.mxu0 0.0
    %6229 = vmatpush1.xpose.msra.mxu0 0.0
    %6230 = vmatprep.subr.mxu0 0.0
    %6231 = vmatpush1.xpose.msra.mxu0 0.0
    %6232 = vmatprep.subr.mxu0 0.0
    %6233 = vmatpush1.xpose.msra.mxu0 0.0
    %6234 = vmatprep.subr.mxu0 0.0
    %6235 = vmatpush1.xpose.msra.mxu0 0.0
    %6236 = vmatprep.subr.mxu0 0.0
    %6237 = vmatpush1.xpose.msra.mxu0 0.0
    %6238 = vmatprep.subr.mxu0 0.0
    %6239 = vmatpush1.xpose.msra.mxu0 0.0
    %6240 = vmatprep.subr.mxu0 0.0
    %6241 = vmatpush1.xpose.msra.mxu0 0.0
    %6242 = vmatprep.subr.mxu0 0.0
    %6243 = vmatpush1.xpose.msra.mxu0 0.0
    %6244 = vmatprep.subr.mxu0 0.0
    %6245 = vmatpush1.xpose.msra.mxu0 0.0
    %6246 = vmatprep.subr.mxu0 0.0
    %6247 = vmatpush1.xpose.msra.mxu0 0.0
    %6248 = vmatprep.subr.mxu0 0.0
    %6249 = vmatpush1.xpose.msra.mxu0 0.0
    %6250 = vmatprep.subr.mxu0 0.0
    %6251 = vmatpush1.xpose.msra.mxu0 0.0
    %6252 = vmatprep.subr.mxu0 0.0
    %6253 = vmatpush1.xpose.msra.mxu0 0.0
    %6254 = vmatprep.subr.mxu0 0.0
    %6255 = vmatpush1.xpose.msra.mxu0 0.0
    %6256 = vmatprep.subr.mxu0 0.0
    %6257 = vmatpush1.xpose.msra.mxu0 %v6226
    %6258 = vmatprep.subr.mxu0 0.0
    %6259 = vmatpush1.xpose.msra.mxu0 %v6224
    %6260 = vmatprep.subr.mxu0 0.0
    %6261 = vmatpush2.xpose.msra.mxu0 0.0
    %6262 = vmatprep.subr.mxu0 0.0
    %6263 = vmatpush2.xpose.msra.mxu0 0.0
    %6264 = vmatprep.subr.mxu0 0.0
    %6265 = vmatpush2.xpose.msra.mxu0 0.0
    %6266 = vmatprep.subr.mxu0 0.0
    %6267 = vmatpush2.xpose.msra.mxu0 0.0
    %6268 = vmatprep.subr.mxu0 0.0
    %6269 = vmatpush2.xpose.msra.mxu0 0.0
    %6270 = vmatprep.subr.mxu0 0.0
    %6271 = vmatpush2.xpose.msra.mxu0 0.0
    %6272 = vmatprep.subr.mxu0 0.0
    %6273 = vmatpush2.xpose.msra.mxu0 0.0
    %6274 = vmatprep.subr.mxu0 0.0
    %6275 = vmatpush2.xpose.msra.mxu0 0.0
    %6276 = vmatprep.subr.mxu0 0.0
    %6277 = vmatpush2.xpose.msra.mxu0 0.0
    %6278 = vmatprep.subr.mxu0 0.0
    %6279 = vmatpush2.xpose.msra.mxu0 0.0
    %6280 = vmatprep.subr.mxu0 0.0
    %6281 = vmatpush2.xpose.msra.mxu0 0.0
    %6282 = vmatprep.subr.mxu0 0.0
    %6283 = vmatpush2.xpose.msra.mxu0 0.0
    %6284 = vmatprep.subr.mxu0 0.0
    %6285 = vmatpush2.xpose.msra.mxu0 0.0
    %6286 = vmatprep.subr.mxu0 0.0
    %6287 = vmatpush2.xpose.msra.mxu0 0.0
    %6288 = vmatprep.subr.mxu0 0.0
    %6289 = vmatpush2.xpose.msra.mxu0 0.0
    %6290 = vmatprep.subr.mxu0 0.0
    %6291 = vmatpush2.xpose.msra.mxu0 0.0
    %6292 = vmatprep.mubr.f32.mxu0 0.0
    %6293 = vmatmul.mubr.f32.gmra.mxu0 %v6220
    %v6294 = vpop.f32.mrf.mxu0
    %v6295 = vadd.f32 0.0, %v6294
    %v6296 = vpop.f32.mrf.mxu0
    %6297 = vmatprep.mubr.f32.mxu0 0.0
    %6298 = vmatmul.mubr.f32.gmra.mxu0 %v6222
    %v6299 = vpop.f32.mrf.mxu0
    %v6300 = vadd.f32 0.0, %v6299
    %v6301 = vpop.f32.mrf.mxu0
    %6302 = vdwg.mxu0
    %6303 = vrot.lane.b32.xlu0 %v1358, 104
    %v6304 = vpop.permute.xlu0 %6303
    %6305 = vrot.lane.b32.xlu0 %v1363, 104
    %v6306 = vpop.permute.xlu0 %6305
    %6307 = vrot.lane.b32.xlu0 %v1358, 72
    %v6308 = vpop.permute.xlu0 %6307
    %6309 = vrot.lane.b32.xlu0 %v1363, 72
    %v6310 = vpop.permute.xlu0 %6309
    %v6311 = vsel %vm1432, %v6304, 0
    %v6313 = vsel %vm1432, %v6306, 0
    %v6315 = vsel %vm1432, %v6308, 0
    %v6317 = vsel %vm1432, %v6310, 0
    %6319 = vmatprep.subr.mxu0 0.0
    %6320 = vmatpush1.xpose.msra.mxu0 0.0
    %6321 = vmatprep.subr.mxu0 0.0
    %6322 = vmatpush1.xpose.msra.mxu0 0.0
    %6323 = vmatprep.subr.mxu0 0.0
    %6324 = vmatpush1.xpose.msra.mxu0 0.0
    %6325 = vmatprep.subr.mxu0 0.0
    %6326 = vmatpush1.xpose.msra.mxu0 0.0
    %6327 = vmatprep.subr.mxu0 0.0
    %6328 = vmatpush1.xpose.msra.mxu0 0.0
    %6329 = vmatprep.subr.mxu0 0.0
    %6330 = vmatpush1.xpose.msra.mxu0 0.0
    %6331 = vmatprep.subr.mxu0 0.0
    %6332 = vmatpush1.xpose.msra.mxu0 0.0
    %6333 = vmatprep.subr.mxu0 0.0
    %6334 = vmatpush1.xpose.msra.mxu0 0.0
    %6335 = vmatprep.subr.mxu0 0.0
    %6336 = vmatpush1.xpose.msra.mxu0 0.0
    %6337 = vmatprep.subr.mxu0 0.0
    %6338 = vmatpush1.xpose.msra.mxu0 0.0
    %6339 = vmatprep.subr.mxu0 0.0
    %6340 = vmatpush1.xpose.msra.mxu0 0.0
    %6341 = vmatprep.subr.mxu0 0.0
    %6342 = vmatpush1.xpose.msra.mxu0 0.0
    %6343 = vmatprep.subr.mxu0 0.0
    %6344 = vmatpush1.xpose.msra.mxu0 0.0
    %6345 = vmatprep.subr.mxu0 0.0
    %6346 = vmatpush1.xpose.msra.mxu0 0.0
    %6347 = vmatprep.subr.mxu0 0.0
    %6348 = vmatpush1.xpose.msra.mxu0 %v6317
    %6349 = vmatprep.subr.mxu0 0.0
    %6350 = vmatpush1.xpose.msra.mxu0 %v6315
    %6351 = vmatprep.subr.mxu0 0.0
    %6352 = vmatpush2.xpose.msra.mxu0 0.0
    %6353 = vmatprep.subr.mxu0 0.0
    %6354 = vmatpush2.xpose.msra.mxu0 0.0
    %6355 = vmatprep.subr.mxu0 0.0
    %6356 = vmatpush2.xpose.msra.mxu0 0.0
    %6357 = vmatprep.subr.mxu0 0.0
    %6358 = vmatpush2.xpose.msra.mxu0 0.0
    %6359 = vmatprep.subr.mxu0 0.0
    %6360 = vmatpush2.xpose.msra.mxu0 0.0
    %6361 = vmatprep.subr.mxu0 0.0
    %6362 = vmatpush2.xpose.msra.mxu0 0.0
    %6363 = vmatprep.subr.mxu0 0.0
    %6364 = vmatpush2.xpose.msra.mxu0 0.0
    %6365 = vmatprep.subr.mxu0 0.0
    %6366 = vmatpush2.xpose.msra.mxu0 0.0
    %6367 = vmatprep.subr.mxu0 0.0
    %6368 = vmatpush2.xpose.msra.mxu0 0.0
    %6369 = vmatprep.subr.mxu0 0.0
    %6370 = vmatpush2.xpose.msra.mxu0 0.0
    %6371 = vmatprep.subr.mxu0 0.0
    %6372 = vmatpush2.xpose.msra.mxu0 0.0
    %6373 = vmatprep.subr.mxu0 0.0
    %6374 = vmatpush2.xpose.msra.mxu0 0.0
    %6375 = vmatprep.subr.mxu0 0.0
    %6376 = vmatpush2.xpose.msra.mxu0 0.0
    %6377 = vmatprep.subr.mxu0 0.0
    %6378 = vmatpush2.xpose.msra.mxu0 0.0
    %6379 = vmatprep.subr.mxu0 0.0
    %6380 = vmatpush2.xpose.msra.mxu0 0.0
    %6381 = vmatprep.subr.mxu0 0.0
    %6382 = vmatpush2.xpose.msra.mxu0 0.0
    %6383 = vmatprep.mubr.f32.mxu0 0.0
    %6384 = vmatmul.mubr.f32.gmra.mxu0 %v6311
    %v6385 = vpop.f32.mrf.mxu0
    %v6386 = vadd.f32 0.0, %v6385
    %v6387 = vpop.f32.mrf.mxu0
    %6388 = vmatprep.mubr.f32.mxu0 0.0
    %6389 = vmatmul.mubr.f32.gmra.mxu0 %v6313
    %v6390 = vpop.f32.mrf.mxu0
    %v6391 = vadd.f32 0.0, %v6390
    %v6392 = vpop.f32.mrf.mxu0
    %6393 = vdwg.mxu0
    %6394 = vrot.lane.b32.xlu0 %v1368, 104
    %v6395 = vpop.permute.xlu0 %6394
    %6396 = vrot.lane.b32.xlu0 %v1373, 104
    %v6397 = vpop.permute.xlu0 %6396
    %6398 = vrot.lane.b32.xlu0 %v1368, 72
    %v6399 = vpop.permute.xlu0 %6398
    %6400 = vrot.lane.b32.xlu0 %v1373, 72
    %v6401 = vpop.permute.xlu0 %6400
    %v6402 = vsel %vm1432, %v6395, 0
    %v6404 = vsel %vm1432, %v6397, 0
    %v6406 = vsel %vm1432, %v6399, 0
    %v6408 = vsel %vm1432, %v6401, 0
    %6410 = vmatprep.subr.mxu0 0.0
    %6411 = vmatpush1.xpose.msra.mxu0 0.0
    %6412 = vmatprep.subr.mxu0 0.0
    %6413 = vmatpush1.xpose.msra.mxu0 0.0
    %6414 = vmatprep.subr.mxu0 0.0
    %6415 = vmatpush1.xpose.msra.mxu0 0.0
    %6416 = vmatprep.subr.mxu0 0.0
    %6417 = vmatpush1.xpose.msra.mxu0 0.0
    %6418 = vmatprep.subr.mxu0 0.0
    %6419 = vmatpush1.xpose.msra.mxu0 0.0
    %6420 = vmatprep.subr.mxu0 0.0
    %6421 = vmatpush1.xpose.msra.mxu0 0.0
    %6422 = vmatprep.subr.mxu0 0.0
    %6423 = vmatpush1.xpose.msra.mxu0 0.0
    %6424 = vmatprep.subr.mxu0 0.0
    %6425 = vmatpush1.xpose.msra.mxu0 0.0
    %6426 = vmatprep.subr.mxu0 0.0
    %6427 = vmatpush1.xpose.msra.mxu0 0.0
    %6428 = vmatprep.subr.mxu0 0.0
    %6429 = vmatpush1.xpose.msra.mxu0 0.0
    %6430 = vmatprep.subr.mxu0 0.0
    %6431 = vmatpush1.xpose.msra.mxu0 0.0
    %6432 = vmatprep.subr.mxu0 0.0
    %6433 = vmatpush1.xpose.msra.mxu0 0.0
    %6434 = vmatprep.subr.mxu0 0.0
    %6435 = vmatpush1.xpose.msra.mxu0 0.0
    %6436 = vmatprep.subr.mxu0 0.0
    %6437 = vmatpush1.xpose.msra.mxu0 0.0
    %6438 = vmatprep.subr.mxu0 0.0
    %6439 = vmatpush1.xpose.msra.mxu0 %v6408
    %6440 = vmatprep.subr.mxu0 0.0
    %6441 = vmatpush1.xpose.msra.mxu0 %v6406
    %6442 = vmatprep.subr.mxu0 0.0
    %6443 = vmatpush2.xpose.msra.mxu0 0.0
    %6444 = vmatprep.subr.mxu0 0.0
    %6445 = vmatpush2.xpose.msra.mxu0 0.0
    %6446 = vmatprep.subr.mxu0 0.0
    %6447 = vmatpush2.xpose.msra.mxu0 0.0
    %6448 = vmatprep.subr.mxu0 0.0
    %6449 = vmatpush2.xpose.msra.mxu0 0.0
    %6450 = vmatprep.subr.mxu0 0.0
    %6451 = vmatpush2.xpose.msra.mxu0 0.0
    %6452 = vmatprep.subr.mxu0 0.0
    %6453 = vmatpush2.xpose.msra.mxu0 0.0
    %6454 = vmatprep.subr.mxu0 0.0
    %6455 = vmatpush2.xpose.msra.mxu0 0.0
    %6456 = vmatprep.subr.mxu0 0.0
    %6457 = vmatpush2.xpose.msra.mxu0 0.0
    %6458 = vmatprep.subr.mxu0 0.0
    %6459 = vmatpush2.xpose.msra.mxu0 0.0
    %6460 = vmatprep.subr.mxu0 0.0
    %6461 = vmatpush2.xpose.msra.mxu0 0.0
    %6462 = vmatprep.subr.mxu0 0.0
    %6463 = vmatpush2.xpose.msra.mxu0 0.0
    %6464 = vmatprep.subr.mxu0 0.0
    %6465 = vmatpush2.xpose.msra.mxu0 0.0
    %6466 = vmatprep.subr.mxu0 0.0
    %6467 = vmatpush2.xpose.msra.mxu0 0.0
    %6468 = vmatprep.subr.mxu0 0.0
    %6469 = vmatpush2.xpose.msra.mxu0 0.0
    %6470 = vmatprep.subr.mxu0 0.0
    %6471 = vmatpush2.xpose.msra.mxu0 0.0
    %6472 = vmatprep.subr.mxu0 0.0
    %6473 = vmatpush2.xpose.msra.mxu0 0.0
    %6474 = vmatprep.mubr.f32.mxu0 0.0
    %6475 = vmatmul.mubr.f32.gmra.mxu0 %v6402
    %v6476 = vpop.f32.mrf.mxu0
    %v6477 = vadd.f32 0.0, %v6476
    %v6478 = vpop.f32.mrf.mxu0
    %6479 = vmatprep.mubr.f32.mxu0 0.0
    %6480 = vmatmul.mubr.f32.gmra.mxu0 %v6404
    %v6481 = vpop.f32.mrf.mxu0
    %v6482 = vadd.f32 0.0, %v6481
    %v6483 = vpop.f32.mrf.mxu0
    %6484 = vdwg.mxu0
    %6485 = vrot.lane.b32.xlu0 %v1378, 104
    %v6486 = vpop.permute.xlu0 %6485
    %6487 = vrot.lane.b32.xlu0 %v1383, 104
    %v6488 = vpop.permute.xlu0 %6487
    %6489 = vrot.lane.b32.xlu0 %v1378, 72
    %v6490 = vpop.permute.xlu0 %6489
    %6491 = vrot.lane.b32.xlu0 %v1383, 72
    %v6492 = vpop.permute.xlu0 %6491
    %v6493 = vsel %vm1432, %v6486, 0
    %v6495 = vsel %vm1432, %v6488, 0
    %v6497 = vsel %vm1432, %v6490, 0
    %v6499 = vsel %vm1432, %v6492, 0
    %6501 = vmatprep.subr.mxu0 0.0
    %6502 = vmatpush1.xpose.msra.mxu0 0.0
    %6503 = vmatprep.subr.mxu0 0.0
    %6504 = vmatpush1.xpose.msra.mxu0 0.0
    %6505 = vmatprep.subr.mxu0 0.0
    %6506 = vmatpush1.xpose.msra.mxu0 0.0
    %6507 = vmatprep.subr.mxu0 0.0
    %6508 = vmatpush1.xpose.msra.mxu0 0.0
    %6509 = vmatprep.subr.mxu0 0.0
    %6510 = vmatpush1.xpose.msra.mxu0 0.0
    %6511 = vmatprep.subr.mxu0 0.0
    %6512 = vmatpush1.xpose.msra.mxu0 0.0
    %6513 = vmatprep.subr.mxu0 0.0
    %6514 = vmatpush1.xpose.msra.mxu0 0.0
    %6515 = vmatprep.subr.mxu0 0.0
    %6516 = vmatpush1.xpose.msra.mxu0 0.0
    %6517 = vmatprep.subr.mxu0 0.0
    %6518 = vmatpush1.xpose.msra.mxu0 0.0
    %6519 = vmatprep.subr.mxu0 0.0
    %6520 = vmatpush1.xpose.msra.mxu0 0.0
    %6521 = vmatprep.subr.mxu0 0.0
    %6522 = vmatpush1.xpose.msra.mxu0 0.0
    %6523 = vmatprep.subr.mxu0 0.0
    %6524 = vmatpush1.xpose.msra.mxu0 0.0
    %6525 = vmatprep.subr.mxu0 0.0
    %6526 = vmatpush1.xpose.msra.mxu0 0.0
    %6527 = vmatprep.subr.mxu0 0.0
    %6528 = vmatpush1.xpose.msra.mxu0 0.0
    %6529 = vmatprep.subr.mxu0 0.0
    %6530 = vmatpush1.xpose.msra.mxu0 %v6499
    %6531 = vmatprep.subr.mxu0 0.0
    %6532 = vmatpush1.xpose.msra.mxu0 %v6497
    %6533 = vmatprep.subr.mxu0 0.0
    %6534 = vmatpush2.xpose.msra.mxu0 0.0
    %6535 = vmatprep.subr.mxu0 0.0
    %6536 = vmatpush2.xpose.msra.mxu0 0.0
    %6537 = vmatprep.subr.mxu0 0.0
    %6538 = vmatpush2.xpose.msra.mxu0 0.0
    %6539 = vmatprep.subr.mxu0 0.0
    %6540 = vmatpush2.xpose.msra.mxu0 0.0
    %6541 = vmatprep.subr.mxu0 0.0
    %6542 = vmatpush2.xpose.msra.mxu0 0.0
    %6543 = vmatprep.subr.mxu0 0.0
    %6544 = vmatpush2.xpose.msra.mxu0 0.0
    %6545 = vmatprep.subr.mxu0 0.0
    %6546 = vmatpush2.xpose.msra.mxu0 0.0
    %6547 = vmatprep.subr.mxu0 0.0
    %6548 = vmatpush2.xpose.msra.mxu0 0.0
    %6549 = vmatprep.subr.mxu0 0.0
    %6550 = vmatpush2.xpose.msra.mxu0 0.0
    %6551 = vmatprep.subr.mxu0 0.0
    %6552 = vmatpush2.xpose.msra.mxu0 0.0
    %6553 = vmatprep.subr.mxu0 0.0
    %6554 = vmatpush2.xpose.msra.mxu0 0.0
    %6555 = vmatprep.subr.mxu0 0.0
    %6556 = vmatpush2.xpose.msra.mxu0 0.0
    %6557 = vmatprep.subr.mxu0 0.0
    %6558 = vmatpush2.xpose.msra.mxu0 0.0
    %6559 = vmatprep.subr.mxu0 0.0
    %6560 = vmatpush2.xpose.msra.mxu0 0.0
    %6561 = vmatprep.subr.mxu0 0.0
    %6562 = vmatpush2.xpose.msra.mxu0 0.0
    %6563 = vmatprep.subr.mxu0 0.0
    %6564 = vmatpush2.xpose.msra.mxu0 0.0
    %6565 = vmatprep.mubr.f32.mxu0 0.0
    %6566 = vmatmul.mubr.f32.gmra.mxu0 %v6493
    %v6567 = vpop.f32.mrf.mxu0
    %v6568 = vadd.f32 0.0, %v6567
    %v6569 = vpop.f32.mrf.mxu0
    %6570 = vmatprep.mubr.f32.mxu0 0.0
    %6571 = vmatmul.mubr.f32.gmra.mxu0 %v6495
    %v6572 = vpop.f32.mrf.mxu0
    %v6573 = vadd.f32 0.0, %v6572
    %v6574 = vpop.f32.mrf.mxu0
    %6575 = vdwg.mxu0
    %6576 = vrot.lane.b32.xlu0 %v1388, 104
    %v6577 = vpop.permute.xlu0 %6576
    %6578 = vrot.lane.b32.xlu0 %v1393, 104
    %v6579 = vpop.permute.xlu0 %6578
    %6580 = vrot.lane.b32.xlu0 %v1388, 72
    %v6581 = vpop.permute.xlu0 %6580
    %6582 = vrot.lane.b32.xlu0 %v1393, 72
    %v6583 = vpop.permute.xlu0 %6582
    %v6584 = vsel %vm1432, %v6577, 0
    %v6586 = vsel %vm1432, %v6579, 0
    %v6588 = vsel %vm1432, %v6581, 0
    %v6590 = vsel %vm1432, %v6583, 0
    %6592 = vmatprep.subr.mxu0 0.0
    %6593 = vmatpush1.xpose.msra.mxu0 0.0
    %6594 = vmatprep.subr.mxu0 0.0
    %6595 = vmatpush1.xpose.msra.mxu0 0.0
    %6596 = vmatprep.subr.mxu0 0.0
    %6597 = vmatpush1.xpose.msra.mxu0 0.0
    %6598 = vmatprep.subr.mxu0 0.0
    %6599 = vmatpush1.xpose.msra.mxu0 0.0
    %6600 = vmatprep.subr.mxu0 0.0
    %6601 = vmatpush1.xpose.msra.mxu0 0.0
    %6602 = vmatprep.subr.mxu0 0.0
    %6603 = vmatpush1.xpose.msra.mxu0 0.0
    %6604 = vmatprep.subr.mxu0 0.0
    %6605 = vmatpush1.xpose.msra.mxu0 0.0
    %6606 = vmatprep.subr.mxu0 0.0
    %6607 = vmatpush1.xpose.msra.mxu0 0.0
    %6608 = vmatprep.subr.mxu0 0.0
    %6609 = vmatpush1.xpose.msra.mxu0 0.0
    %6610 = vmatprep.subr.mxu0 0.0
    %6611 = vmatpush1.xpose.msra.mxu0 0.0
    %6612 = vmatprep.subr.mxu0 0.0
    %6613 = vmatpush1.xpose.msra.mxu0 0.0
    %6614 = vmatprep.subr.mxu0 0.0
    %6615 = vmatpush1.xpose.msra.mxu0 0.0
    %6616 = vmatprep.subr.mxu0 0.0
    %6617 = vmatpush1.xpose.msra.mxu0 0.0
    %6618 = vmatprep.subr.mxu0 0.0
    %6619 = vmatpush1.xpose.msra.mxu0 0.0
    %6620 = vmatprep.subr.mxu0 0.0
    %6621 = vmatpush1.xpose.msra.mxu0 %v6590
    %6622 = vmatprep.subr.mxu0 0.0
    %6623 = vmatpush1.xpose.msra.mxu0 %v6588
    %6624 = vmatprep.subr.mxu0 0.0
    %6625 = vmatpush2.xpose.msra.mxu0 0.0
    %6626 = vmatprep.subr.mxu0 0.0
    %6627 = vmatpush2.xpose.msra.mxu0 0.0
    %6628 = vmatprep.subr.mxu0 0.0
    %6629 = vmatpush2.xpose.msra.mxu0 0.0
    %6630 = vmatprep.subr.mxu0 0.0
    %6631 = vmatpush2.xpose.msra.mxu0 0.0
    %6632 = vmatprep.subr.mxu0 0.0
    %6633 = vmatpush2.xpose.msra.mxu0 0.0
    %6634 = vmatprep.subr.mxu0 0.0
    %6635 = vmatpush2.xpose.msra.mxu0 0.0
    %6636 = vmatprep.subr.mxu0 0.0
    %6637 = vmatpush2.xpose.msra.mxu0 0.0
    %6638 = vmatprep.subr.mxu0 0.0
    %6639 = vmatpush2.xpose.msra.mxu0 0.0
    %6640 = vmatprep.subr.mxu0 0.0
    %6641 = vmatpush2.xpose.msra.mxu0 0.0
    %6642 = vmatprep.subr.mxu0 0.0
    %6643 = vmatpush2.xpose.msra.mxu0 0.0
    %6644 = vmatprep.subr.mxu0 0.0
    %6645 = vmatpush2.xpose.msra.mxu0 0.0
    %6646 = vmatprep.subr.mxu0 0.0
    %6647 = vmatpush2.xpose.msra.mxu0 0.0
    %6648 = vmatprep.subr.mxu0 0.0
    %6649 = vmatpush2.xpose.msra.mxu0 0.0
    %6650 = vmatprep.subr.mxu0 0.0
    %6651 = vmatpush2.xpose.msra.mxu0 0.0
    %6652 = vmatprep.subr.mxu0 0.0
    %6653 = vmatpush2.xpose.msra.mxu0 0.0
    %6654 = vmatprep.subr.mxu0 0.0
    %6655 = vmatpush2.xpose.msra.mxu0 0.0
    %6656 = vmatprep.mubr.f32.mxu0 0.0
    %6657 = vmatmul.mubr.f32.gmra.mxu0 %v6584
    %v6658 = vpop.f32.mrf.mxu0
    %v6659 = vadd.f32 0.0, %v6658
    %v6660 = vpop.f32.mrf.mxu0
    %6661 = vmatprep.mubr.f32.mxu0 0.0
    %6662 = vmatmul.mubr.f32.gmra.mxu0 %v6586
    %v6663 = vpop.f32.mrf.mxu0
    %v6664 = vadd.f32 0.0, %v6663
    %v6665 = vpop.f32.mrf.mxu0
    %6666 = vdwg.mxu0
    %6667 = vrot.lane.b32.xlu0 %v1398, 104
    %v6668 = vpop.permute.xlu0 %6667
    %6669 = vrot.lane.b32.xlu0 %v1403, 104
    %v6670 = vpop.permute.xlu0 %6669
    %6671 = vrot.lane.b32.xlu0 %v1398, 72
    %v6672 = vpop.permute.xlu0 %6671
    %6673 = vrot.lane.b32.xlu0 %v1403, 72
    %v6674 = vpop.permute.xlu0 %6673
    %v6675 = vsel %vm1432, %v6668, 0
    %v6677 = vsel %vm1432, %v6670, 0
    %v6679 = vsel %vm1432, %v6672, 0
    %v6681 = vsel %vm1432, %v6674, 0
    %6683 = vmatprep.subr.mxu0 0.0
    %6684 = vmatpush1.xpose.msra.mxu0 0.0
    %6685 = vmatprep.subr.mxu0 0.0
    %6686 = vmatpush1.xpose.msra.mxu0 0.0
    %6687 = vmatprep.subr.mxu0 0.0
    %6688 = vmatpush1.xpose.msra.mxu0 0.0
    %6689 = vmatprep.subr.mxu0 0.0
    %6690 = vmatpush1.xpose.msra.mxu0 0.0
    %6691 = vmatprep.subr.mxu0 0.0
    %6692 = vmatpush1.xpose.msra.mxu0 0.0
    %6693 = vmatprep.subr.mxu0 0.0
    %6694 = vmatpush1.xpose.msra.mxu0 0.0
    %6695 = vmatprep.subr.mxu0 0.0
    %6696 = vmatpush1.xpose.msra.mxu0 0.0
    %6697 = vmatprep.subr.mxu0 0.0
    %6698 = vmatpush1.xpose.msra.mxu0 0.0
    %6699 = vmatprep.subr.mxu0 0.0
    %6700 = vmatpush1.xpose.msra.mxu0 0.0
    %6701 = vmatprep.subr.mxu0 0.0
    %6702 = vmatpush1.xpose.msra.mxu0 0.0
    %6703 = vmatprep.subr.mxu0 0.0
    %6704 = vmatpush1.xpose.msra.mxu0 0.0
    %6705 = vmatprep.subr.mxu0 0.0
    %6706 = vmatpush1.xpose.msra.mxu0 0.0
    %6707 = vmatprep.subr.mxu0 0.0
    %6708 = vmatpush1.xpose.msra.mxu0 0.0
    %6709 = vmatprep.subr.mxu0 0.0
    %6710 = vmatpush1.xpose.msra.mxu0 0.0
    %6711 = vmatprep.subr.mxu0 0.0
    %6712 = vmatpush1.xpose.msra.mxu0 %v6681
    %6713 = vmatprep.subr.mxu0 0.0
    %6714 = vmatpush1.xpose.msra.mxu0 %v6679
    %6715 = vmatprep.subr.mxu0 0.0
    %6716 = vmatpush2.xpose.msra.mxu0 0.0
    %6717 = vmatprep.subr.mxu0 0.0
    %6718 = vmatpush2.xpose.msra.mxu0 0.0
    %6719 = vmatprep.subr.mxu0 0.0
    %6720 = vmatpush2.xpose.msra.mxu0 0.0
    %6721 = vmatprep.subr.mxu0 0.0
    %6722 = vmatpush2.xpose.msra.mxu0 0.0
    %6723 = vmatprep.subr.mxu0 0.0
    %6724 = vmatpush2.xpose.msra.mxu0 0.0
    %6725 = vmatprep.subr.mxu0 0.0
    %6726 = vmatpush2.xpose.msra.mxu0 0.0
    %6727 = vmatprep.subr.mxu0 0.0
    %6728 = vmatpush2.xpose.msra.mxu0 0.0
    %6729 = vmatprep.subr.mxu0 0.0
    %6730 = vmatpush2.xpose.msra.mxu0 0.0
    %6731 = vmatprep.subr.mxu0 0.0
    %6732 = vmatpush2.xpose.msra.mxu0 0.0
    %6733 = vmatprep.subr.mxu0 0.0
    %6734 = vmatpush2.xpose.msra.mxu0 0.0
    %6735 = vmatprep.subr.mxu0 0.0
    %6736 = vmatpush2.xpose.msra.mxu0 0.0
    %6737 = vmatprep.subr.mxu0 0.0
    %6738 = vmatpush2.xpose.msra.mxu0 0.0
    %6739 = vmatprep.subr.mxu0 0.0
    %6740 = vmatpush2.xpose.msra.mxu0 0.0
    %6741 = vmatprep.subr.mxu0 0.0
    %6742 = vmatpush2.xpose.msra.mxu0 0.0
    %6743 = vmatprep.subr.mxu0 0.0
    %6744 = vmatpush2.xpose.msra.mxu0 0.0
    %6745 = vmatprep.subr.mxu0 0.0
    %6746 = vmatpush2.xpose.msra.mxu0 0.0
    %6747 = vmatprep.mubr.f32.mxu0 0.0
    %6748 = vmatmul.mubr.f32.gmra.mxu0 %v6675
    %v6749 = vpop.f32.mrf.mxu0
    %v6750 = vadd.f32 0.0, %v6749
    %v6751 = vpop.f32.mrf.mxu0
    %6752 = vmatprep.mubr.f32.mxu0 0.0
    %6753 = vmatmul.mubr.f32.gmra.mxu0 %v6677
    %v6754 = vpop.f32.mrf.mxu0
    %v6755 = vadd.f32 0.0, %v6754
    %v6756 = vpop.f32.mrf.mxu0
    %6757 = vdwg.mxu0
    %6758 = vrot.lane.b32.xlu0 %v1408, 104
    %v6759 = vpop.permute.xlu0 %6758
    %6760 = vrot.lane.b32.xlu0 %v1413, 104
    %v6761 = vpop.permute.xlu0 %6760
    %6762 = vrot.lane.b32.xlu0 %v1408, 72
    %v6763 = vpop.permute.xlu0 %6762
    %6764 = vrot.lane.b32.xlu0 %v1413, 72
    %v6765 = vpop.permute.xlu0 %6764
    %v6766 = vsel %vm1432, %v6759, 0
    %v6768 = vsel %vm1432, %v6761, 0
    %v6770 = vsel %vm1432, %v6763, 0
    %v6772 = vsel %vm1432, %v6765, 0
    %6774 = vmatprep.subr.mxu0 0.0
    %6775 = vmatpush1.xpose.msra.mxu0 0.0
    %6776 = vmatprep.subr.mxu0 0.0
    %6777 = vmatpush1.xpose.msra.mxu0 0.0
    %6778 = vmatprep.subr.mxu0 0.0
    %6779 = vmatpush1.xpose.msra.mxu0 0.0
    %6780 = vmatprep.subr.mxu0 0.0
    %6781 = vmatpush1.xpose.msra.mxu0 0.0
    %6782 = vmatprep.subr.mxu0 0.0
    %6783 = vmatpush1.xpose.msra.mxu0 0.0
    %6784 = vmatprep.subr.mxu0 0.0
    %6785 = vmatpush1.xpose.msra.mxu0 0.0
    %6786 = vmatprep.subr.mxu0 0.0
    %6787 = vmatpush1.xpose.msra.mxu0 0.0
    %6788 = vmatprep.subr.mxu0 0.0
    %6789 = vmatpush1.xpose.msra.mxu0 0.0
    %6790 = vmatprep.subr.mxu0 0.0
    %6791 = vmatpush1.xpose.msra.mxu0 0.0
    %6792 = vmatprep.subr.mxu0 0.0
    %6793 = vmatpush1.xpose.msra.mxu0 0.0
    %6794 = vmatprep.subr.mxu0 0.0
    %6795 = vmatpush1.xpose.msra.mxu0 0.0
    %6796 = vmatprep.subr.mxu0 0.0
    %6797 = vmatpush1.xpose.msra.mxu0 0.0
    %6798 = vmatprep.subr.mxu0 0.0
    %6799 = vmatpush1.xpose.msra.mxu0 0.0
    %6800 = vmatprep.subr.mxu0 0.0
    %6801 = vmatpush1.xpose.msra.mxu0 0.0
    %6802 = vmatprep.subr.mxu0 0.0
    %6803 = vmatpush1.xpose.msra.mxu0 %v6772
    %6804 = vmatprep.subr.mxu0 0.0
    %6805 = vmatpush1.xpose.msra.mxu0 %v6770
    %6806 = vmatprep.subr.mxu0 0.0
    %6807 = vmatpush2.xpose.msra.mxu0 0.0
    %6808 = vmatprep.subr.mxu0 0.0
    %6809 = vmatpush2.xpose.msra.mxu0 0.0
    %6810 = vmatprep.subr.mxu0 0.0
    %6811 = vmatpush2.xpose.msra.mxu0 0.0
    %6812 = vmatprep.subr.mxu0 0.0
    %6813 = vmatpush2.xpose.msra.mxu0 0.0
    %6814 = vmatprep.subr.mxu0 0.0
    %6815 = vmatpush2.xpose.msra.mxu0 0.0
    %6816 = vmatprep.subr.mxu0 0.0
    %6817 = vmatpush2.xpose.msra.mxu0 0.0
    %6818 = vmatprep.subr.mxu0 0.0
    %6819 = vmatpush2.xpose.msra.mxu0 0.0
    %6820 = vmatprep.subr.mxu0 0.0
    %6821 = vmatpush2.xpose.msra.mxu0 0.0
    %6822 = vmatprep.subr.mxu0 0.0
    %6823 = vmatpush2.xpose.msra.mxu0 0.0
    %6824 = vmatprep.subr.mxu0 0.0
    %6825 = vmatpush2.xpose.msra.mxu0 0.0
    %6826 = vmatprep.subr.mxu0 0.0
    %6827 = vmatpush2.xpose.msra.mxu0 0.0
    %6828 = vmatprep.subr.mxu0 0.0
    %6829 = vmatpush2.xpose.msra.mxu0 0.0
    %6830 = vmatprep.subr.mxu0 0.0
    %6831 = vmatpush2.xpose.msra.mxu0 0.0
    %6832 = vmatprep.subr.mxu0 0.0
    %6833 = vmatpush2.xpose.msra.mxu0 0.0
    %6834 = vmatprep.subr.mxu0 0.0
    %6835 = vmatpush2.xpose.msra.mxu0 0.0
    %6836 = vmatprep.subr.mxu0 0.0
    %6837 = vmatpush2.xpose.msra.mxu0 0.0
    %6838 = vmatprep.mubr.f32.mxu0 0.0
    %6839 = vmatmul.mubr.f32.gmra.mxu0 %v6766
    %v6840 = vpop.f32.mrf.mxu0
    %v6841 = vadd.f32 0.0, %v6840
    %v6842 = vpop.f32.mrf.mxu0
    %6843 = vmatprep.mubr.f32.mxu0 0.0
    %6844 = vmatmul.mubr.f32.gmra.mxu0 %v6768
    %v6845 = vpop.f32.mrf.mxu0
    %v6846 = vadd.f32 0.0, %v6845
    %v6847 = vpop.f32.mrf.mxu0
    %6848 = vdwg.mxu0
    %6849 = vrot.lane.b32.xlu0 %v1418, 104
    %v6850 = vpop.permute.xlu0 %6849
    %6851 = vrot.lane.b32.xlu0 %v1423, 104
    %v6852 = vpop.permute.xlu0 %6851
    %6853 = vrot.lane.b32.xlu0 %v1418, 72
    %v6854 = vpop.permute.xlu0 %6853
    %6855 = vrot.lane.b32.xlu0 %v1423, 72
    %v6856 = vpop.permute.xlu0 %6855
    %v6857 = vsel %vm1432, %v6850, 0
    %v6859 = vsel %vm1432, %v6852, 0
    %v6861 = vsel %vm1432, %v6854, 0
    %v6863 = vsel %vm1432, %v6856, 0
    %6865 = vmatprep.subr.mxu0 0.0
    %6866 = vmatpush1.xpose.msra.mxu0 0.0
    %6867 = vmatprep.subr.mxu0 0.0
    %6868 = vmatpush1.xpose.msra.mxu0 0.0
    %6869 = vmatprep.subr.mxu0 0.0
    %6870 = vmatpush1.xpose.msra.mxu0 0.0
    %6871 = vmatprep.subr.mxu0 0.0
    %6872 = vmatpush1.xpose.msra.mxu0 0.0
    %6873 = vmatprep.subr.mxu0 0.0
    %6874 = vmatpush1.xpose.msra.mxu0 0.0
    %6875 = vmatprep.subr.mxu0 0.0
    %6876 = vmatpush1.xpose.msra.mxu0 0.0
    %6877 = vmatprep.subr.mxu0 0.0
    %6878 = vmatpush1.xpose.msra.mxu0 0.0
    %6879 = vmatprep.subr.mxu0 0.0
    %6880 = vmatpush1.xpose.msra.mxu0 0.0
    %6881 = vmatprep.subr.mxu0 0.0
    %6882 = vmatpush1.xpose.msra.mxu0 0.0
    %6883 = vmatprep.subr.mxu0 0.0
    %6884 = vmatpush1.xpose.msra.mxu0 0.0
    %6885 = vmatprep.subr.mxu0 0.0
    %6886 = vmatpush1.xpose.msra.mxu0 0.0
    %6887 = vmatprep.subr.mxu0 0.0
    %6888 = vmatpush1.xpose.msra.mxu0 0.0
    %6889 = vmatprep.subr.mxu0 0.0
    %6890 = vmatpush1.xpose.msra.mxu0 0.0
    %6891 = vmatprep.subr.mxu0 0.0
    %6892 = vmatpush1.xpose.msra.mxu0 0.0
    %6893 = vmatprep.subr.mxu0 0.0
    %6894 = vmatpush1.xpose.msra.mxu0 %v6863
    %6895 = vmatprep.subr.mxu0 0.0
    %6896 = vmatpush1.xpose.msra.mxu0 %v6861
    %6897 = vmatprep.subr.mxu0 0.0
    %6898 = vmatpush2.xpose.msra.mxu0 0.0
    %6899 = vmatprep.subr.mxu0 0.0
    %6900 = vmatpush2.xpose.msra.mxu0 0.0
    %6901 = vmatprep.subr.mxu0 0.0
    %6902 = vmatpush2.xpose.msra.mxu0 0.0
    %6903 = vmatprep.subr.mxu0 0.0
    %6904 = vmatpush2.xpose.msra.mxu0 0.0
    %6905 = vmatprep.subr.mxu0 0.0
    %6906 = vmatpush2.xpose.msra.mxu0 0.0
    %6907 = vmatprep.subr.mxu0 0.0
    %6908 = vmatpush2.xpose.msra.mxu0 0.0
    %6909 = vmatprep.subr.mxu0 0.0
    %6910 = vmatpush2.xpose.msra.mxu0 0.0
    %6911 = vmatprep.subr.mxu0 0.0
    %6912 = vmatpush2.xpose.msra.mxu0 0.0
    %6913 = vmatprep.subr.mxu0 0.0
    %6914 = vmatpush2.xpose.msra.mxu0 0.0
    %6915 = vmatprep.subr.mxu0 0.0
    %6916 = vmatpush2.xpose.msra.mxu0 0.0
    %6917 = vmatprep.subr.mxu0 0.0
    %6918 = vmatpush2.xpose.msra.mxu0 0.0
    %6919 = vmatprep.subr.mxu0 0.0
    %6920 = vmatpush2.xpose.msra.mxu0 0.0
    %6921 = vmatprep.subr.mxu0 0.0
    %6922 = vmatpush2.xpose.msra.mxu0 0.0
    %6923 = vmatprep.subr.mxu0 0.0
    %6924 = vmatpush2.xpose.msra.mxu0 0.0
    %6925 = vmatprep.subr.mxu0 0.0
    %6926 = vmatpush2.xpose.msra.mxu0 0.0
    %6927 = vmatprep.subr.mxu0 0.0
    %6928 = vmatpush2.xpose.msra.mxu0 0.0
    %6929 = vmatprep.mubr.f32.mxu0 0.0
    %6930 = vmatmul.mubr.f32.gmra.mxu0 %v6857
    %v6931 = vpop.f32.mrf.mxu0
    %v6932 = vadd.f32 0.0, %v6931
    %v6933 = vpop.f32.mrf.mxu0
    %6934 = vmatprep.mubr.f32.mxu0 0.0
    %6935 = vmatmul.mubr.f32.gmra.mxu0 %v6859
    %v6936 = vpop.f32.mrf.mxu0
    %v6937 = vadd.f32 0.0, %v6936
    %v6938 = vpop.f32.mrf.mxu0
    %6939 = vdwg.mxu0
    %v6940 = vsel %vm2139, %v6295, -inf
    %6941 = vmax.xlane.f32.xlu0 %v6940
    %v6942 = vpop.xlane.xlu0 %6941
    %v6943 = vsel %vm2139, %v6300, -inf
    %6944 = vmax.xlane.f32.xlu0 %v6943
    %v6945 = vpop.xlane.xlu0 %6944
    %v6946 = vsel %vm2139, %v6386, -inf
    %6947 = vmax.xlane.f32.xlu0 %v6946
    %v6948 = vpop.xlane.xlu0 %6947
    %v6949 = vsel %vm2139, %v6391, -inf
    %6950 = vmax.xlane.f32.xlu0 %v6949
    %v6951 = vpop.xlane.xlu0 %6950
    %v6952 = vsel %vm2139, %v6477, -inf
    %6953 = vmax.xlane.f32.xlu0 %v6952
    %v6954 = vpop.xlane.xlu0 %6953
    %v6955 = vsel %vm2139, %v6482, -inf
    %6956 = vmax.xlane.f32.xlu0 %v6955
    %v6957 = vpop.xlane.xlu0 %6956
    %v6958 = vsel %vm2139, %v6568, -inf
    %6959 = vmax.xlane.f32.xlu0 %v6958
    %v6960 = vpop.xlane.xlu0 %6959
    %v6961 = vsel %vm2139, %v6573, -inf
    %6962 = vmax.xlane.f32.xlu0 %v6961
    %v6963 = vpop.xlane.xlu0 %6962
    %v6964 = vsel %vm2139, %v6659, -inf
    %6965 = vmax.xlane.f32.xlu0 %v6964
    %v6966 = vpop.xlane.xlu0 %6965
    %v6967 = vsel %vm2139, %v6664, -inf
    %6968 = vmax.xlane.f32.xlu0 %v6967
    %v6969 = vpop.xlane.xlu0 %6968
    %v6970 = vsel %vm2139, %v6750, -inf
    %6971 = vmax.xlane.f32.xlu0 %v6970
    %v6972 = vpop.xlane.xlu0 %6971
    %v6973 = vsel %vm2139, %v6755, -inf
    %6974 = vmax.xlane.f32.xlu0 %v6973
    %v6975 = vpop.xlane.xlu0 %6974
    %v6976 = vsel %vm2139, %v6841, -inf
    %6977 = vmax.xlane.f32.xlu0 %v6976
    %v6978 = vpop.xlane.xlu0 %6977
    %v6979 = vsel %vm2139, %v6846, -inf
    %6980 = vmax.xlane.f32.xlu0 %v6979
    %v6981 = vpop.xlane.xlu0 %6980
    %v6982 = vsel %vm2139, %v6932, -inf
    %6983 = vmax.xlane.f32.xlu0 %v6982
    %v6984 = vpop.xlane.xlu0 %6983
    %v6985 = vsel %vm2139, %v6937, -inf
    %6986 = vmax.xlane.f32.xlu0 %v6985
    %v6987 = vpop.xlane.xlu0 %6986
    %v6988 = vsub.f32 %v6295, %v6942
    %v6989 = vsub.f32 %v6300, %v6945
    %v6990 = vsub.f32 %v6386, %v6948
    %v6991 = vsub.f32 %v6391, %v6951
    %v6992 = vsub.f32 %v6477, %v6954
    %v6993 = vsub.f32 %v6482, %v6957
    %v6994 = vsub.f32 %v6568, %v6960
    %v6995 = vsub.f32 %v6573, %v6963
    %v6996 = vsub.f32 %v6659, %v6966
    %v6997 = vsub.f32 %v6664, %v6969
    %v6998 = vsub.f32 %v6750, %v6972
    %v6999 = vsub.f32 %v6755, %v6975
    %v7000 = vsub.f32 %v6841, %v6978
    %v7001 = vsub.f32 %v6846, %v6981
    %v7002 = vsub.f32 %v6932, %v6984
    %v7003 = vsub.f32 %v6937, %v6987
    %v7004 = vmul.f32 %v6988, 1.442695
    %v7005 = vpow.pop %v7004
    %v7006 = vmul.f32 %v6989, 1.442695
    %v7007 = vpow.pop %v7006
    %v7008 = vmul.f32 %v6990, 1.442695
    %v7009 = vpow.pop %v7008
    %v7010 = vmul.f32 %v6991, 1.442695
    %v7011 = vpow.pop %v7010
    %v7012 = vmul.f32 %v6992, 1.442695
    %v7013 = vpow.pop %v7012
    %v7014 = vmul.f32 %v6993, 1.442695
    %v7015 = vpow.pop %v7014
    %v7016 = vmul.f32 %v6994, 1.442695
    %v7017 = vpow.pop %v7016
    %v7018 = vmul.f32 %v6995, 1.442695
    %v7019 = vpow.pop %v7018
    %v7020 = vmul.f32 %v6996, 1.442695
    %v7021 = vpow.pop %v7020
    %v7022 = vmul.f32 %v6997, 1.442695
    %v7023 = vpow.pop %v7022
    %v7024 = vmul.f32 %v6998, 1.442695
    %v7025 = vpow.pop %v7024
    %v7026 = vmul.f32 %v6999, 1.442695
    %v7027 = vpow.pop %v7026
    %v7028 = vmul.f32 %v7000, 1.442695
    %v7029 = vpow.pop %v7028
    %v7030 = vmul.f32 %v7001, 1.442695
    %v7031 = vpow.pop %v7030
    %v7032 = vmul.f32 %v7002, 1.442695
    %v7033 = vpow.pop %v7032
    %v7034 = vmul.f32 %v7003, 1.442695
    %v7035 = vpow.pop %v7034
    %v7036 = vsel %vm2139, %v7005, 0.0
    %7037 = vadd.xlane.f32.xlu0 %v7036
    %v7038 = vpop.xlane.xlu0 %7037
    %v7039 = vsel %vm2139, %v7007, 0.0
    %7040 = vadd.xlane.f32.xlu0 %v7039
    %v7041 = vpop.xlane.xlu0 %7040
    %v7042 = vsel %vm2139, %v7009, 0.0
    %7043 = vadd.xlane.f32.xlu0 %v7042
    %v7044 = vpop.xlane.xlu0 %7043
    %v7045 = vsel %vm2139, %v7011, 0.0
    %7046 = vadd.xlane.f32.xlu0 %v7045
    %v7047 = vpop.xlane.xlu0 %7046
    %v7048 = vsel %vm2139, %v7013, 0.0
    %7049 = vadd.xlane.f32.xlu0 %v7048
    %v7050 = vpop.xlane.xlu0 %7049
    %v7051 = vsel %vm2139, %v7015, 0.0
    %7052 = vadd.xlane.f32.xlu0 %v7051
    %v7053 = vpop.xlane.xlu0 %7052
    %v7054 = vsel %vm2139, %v7017, 0.0
    %7055 = vadd.xlane.f32.xlu0 %v7054
    %v7056 = vpop.xlane.xlu0 %7055
    %v7057 = vsel %vm2139, %v7019, 0.0
    %7058 = vadd.xlane.f32.xlu0 %v7057
    %v7059 = vpop.xlane.xlu0 %7058
    %v7060 = vsel %vm2139, %v7021, 0.0
    %7061 = vadd.xlane.f32.xlu0 %v7060
    %v7062 = vpop.xlane.xlu0 %7061
    %v7063 = vsel %vm2139, %v7023, 0.0
    %7064 = vadd.xlane.f32.xlu0 %v7063
    %v7065 = vpop.xlane.xlu0 %7064
    %v7066 = vsel %vm2139, %v7025, 0.0
    %7067 = vadd.xlane.f32.xlu0 %v7066
    %v7068 = vpop.xlane.xlu0 %7067
    %v7069 = vsel %vm2139, %v7027, 0.0
    %7070 = vadd.xlane.f32.xlu0 %v7069
    %v7071 = vpop.xlane.xlu0 %7070
    %v7072 = vsel %vm2139, %v7029, 0.0
    %7073 = vadd.xlane.f32.xlu0 %v7072
    %v7074 = vpop.xlane.xlu0 %7073
    %v7075 = vsel %vm2139, %v7031, 0.0
    %7076 = vadd.xlane.f32.xlu0 %v7075
    %v7077 = vpop.xlane.xlu0 %7076
    %v7078 = vsel %vm2139, %v7033, 0.0
    %7079 = vadd.xlane.f32.xlu0 %v7078
    %v7080 = vpop.xlane.xlu0 %7079
    %v7081 = vsel %vm2139, %v7035, 0.0
    %7082 = vadd.xlane.f32.xlu0 %v7081
    %v7083 = vpop.xlane.xlu0 %7082
    %v7084 = vrcp.pop %v7038
    %v7085 = vrcp.pop %v7041
    %v7086 = vrcp.pop %v7044
    %v7087 = vrcp.pop %v7047
    %v7088 = vrcp.pop %v7050
    %v7089 = vrcp.pop %v7053
    %v7090 = vrcp.pop %v7056
    %v7091 = vrcp.pop %v7059
    %v7092 = vrcp.pop %v7062
    %v7093 = vrcp.pop %v7065
    %v7094 = vrcp.pop %v7068
    %v7095 = vrcp.pop %v7071
    %v7096 = vrcp.pop %v7074
    %v7097 = vrcp.pop %v7077
    %v7098 = vrcp.pop %v7080
    %v7099 = vrcp.pop %v7083
    %v7100 = vmul.f32 %v7005, %v7084
    %v7101 = vmul.f32 %v7007, %v7085
    %v7102 = vmul.f32 %v7009, %v7086
    %v7103 = vmul.f32 %v7011, %v7087
    %v7104 = vmul.f32 %v7013, %v7088
    %v7105 = vmul.f32 %v7015, %v7089
    %v7106 = vmul.f32 %v7017, %v7090
    %v7107 = vmul.f32 %v7019, %v7091
    %v7108 = vmul.f32 %v7021, %v7092
    %v7109 = vmul.f32 %v7023, %v7093
    %v7110 = vmul.f32 %v7025, %v7094
    %v7111 = vmul.f32 %v7027, %v7095
    %v7112 = vmul.f32 %v7029, %v7096
    %v7113 = vmul.f32 %v7031, %v7097
    %v7114 = vmul.f32 %v7033, %v7098
    %v7115 = vmul.f32 %v7035, %v7099
    %7116 = vrot.lane.b32.xlu0 %v1348, 40
    %v7117 = vpop.permute.xlu0 %7116
    %7118 = vrot.lane.b32.xlu0 %v1353, 40
    %v7119 = vpop.permute.xlu0 %7118
    %v7123 = vsel %vm2139, %v7100, 0
    %v7126 = vsel %vm2139, %v7101, 0
    %7128 = vmatprep.subr.mxu0 0.0
    %7129 = vmatpush1.msra.mxu0 0.0
    %7130 = vmatprep.subr.mxu0 0.0
    %7131 = vmatpush1.msra.mxu0 0.0
    %7132 = vmatprep.subr.mxu0 0.0
    %7133 = vmatpush1.msra.mxu0 0.0
    %7134 = vmatprep.subr.mxu0 0.0
    %7135 = vmatpush1.msra.mxu0 0.0
    %7136 = vmatprep.subr.mxu0 0.0
    %7137 = vmatpush1.msra.mxu0 0.0
    %7138 = vmatprep.subr.mxu0 0.0
    %7139 = vmatpush1.msra.mxu0 0.0
    %7140 = vmatprep.subr.mxu0 0.0
    %7141 = vmatpush1.msra.mxu0 0.0
    %7142 = vmatprep.subr.mxu0 0.0
    %7143 = vmatpush1.msra.mxu0 0.0
    %7144 = vmatprep.subr.mxu0 0.0
    %7145 = vmatpush1.msra.mxu0 0.0
    %7146 = vmatprep.subr.mxu0 0.0
    %7147 = vmatpush1.msra.mxu0 0.0
    %7148 = vmatprep.subr.mxu0 0.0
    %7149 = vmatpush1.msra.mxu0 0.0
    %7150 = vmatprep.subr.mxu0 0.0
    %7151 = vmatpush1.msra.mxu0 0.0
    %7152 = vmatprep.subr.mxu0 0.0
    %7153 = vmatpush1.msra.mxu0 0.0
    %7154 = vmatprep.subr.mxu0 0.0
    %7155 = vmatpush1.msra.mxu0 0.0
    %7156 = vmatprep.subr.mxu0 0.0
    %7157 = vmatpush1.msra.mxu0 %v7119
    %7158 = vmatprep.subr.mxu0 0.0
    %7159 = vmatpush1.msra.mxu0 %v7117
    %7160 = vmatprep.subr.mxu0 0.0
    %7161 = vmatpush2.msra.mxu0 0.0
    %7162 = vmatprep.subr.mxu0 0.0
    %7163 = vmatpush2.msra.mxu0 0.0
    %7164 = vmatprep.subr.mxu0 0.0
    %7165 = vmatpush2.msra.mxu0 0.0
    %7166 = vmatprep.subr.mxu0 0.0
    %7167 = vmatpush2.msra.mxu0 0.0
    %7168 = vmatprep.subr.mxu0 0.0
    %7169 = vmatpush2.msra.mxu0 0.0
    %7170 = vmatprep.subr.mxu0 0.0
    %7171 = vmatpush2.msra.mxu0 0.0
    %7172 = vmatprep.subr.mxu0 0.0
    %7173 = vmatpush2.msra.mxu0 0.0
    %7174 = vmatprep.subr.mxu0 0.0
    %7175 = vmatpush2.msra.mxu0 0.0
    %7176 = vmatprep.subr.mxu0 0.0
    %7177 = vmatpush2.msra.mxu0 0.0
    %7178 = vmatprep.subr.mxu0 0.0
    %7179 = vmatpush2.msra.mxu0 0.0
    %7180 = vmatprep.subr.mxu0 0.0
    %7181 = vmatpush2.msra.mxu0 0.0
    %7182 = vmatprep.subr.mxu0 0.0
    %7183 = vmatpush2.msra.mxu0 0.0
    %7184 = vmatprep.subr.mxu0 0.0
    %7185 = vmatpush2.msra.mxu0 0.0
    %7186 = vmatprep.subr.mxu0 0.0
    %7187 = vmatpush2.msra.mxu0 0.0
    %7188 = vmatprep.subr.mxu0 0.0
    %7189 = vmatpush2.msra.mxu0 0.0
    %7190 = vmatprep.subr.mxu0 0.0
    %7191 = vmatpush2.msra.mxu0 0.0
    %7192 = vmatprep.mubr.f32.mxu0 0.0
    %7193 = vmatmul.mubr.f32.gmra.mxu0 %v7123
    %v7194 = vpop.f32.mrf.mxu0
    %v7195 = vadd.f32 0.0, %v7194
    %v7196 = vpop.f32.mrf.mxu0
    %7197 = vmatprep.mubr.f32.mxu0 0.0
    %7198 = vmatmul.mubr.f32.gmra.mxu0 %v7126
    %v7199 = vpop.f32.mrf.mxu0
    %v7200 = vadd.f32 0.0, %v7199
    %v7201 = vpop.f32.mrf.mxu0
    %7202 = vdwg.mxu0
    %7203 = vrot.lane.b32.xlu0 %v1358, 40
    %v7204 = vpop.permute.xlu0 %7203
    %7205 = vrot.lane.b32.xlu0 %v1363, 40
    %v7206 = vpop.permute.xlu0 %7205
    %v7210 = vsel %vm2139, %v7102, 0
    %v7213 = vsel %vm2139, %v7103, 0
    %7215 = vmatprep.subr.mxu0 0.0
    %7216 = vmatpush1.msra.mxu0 0.0
    %7217 = vmatprep.subr.mxu0 0.0
    %7218 = vmatpush1.msra.mxu0 0.0
    %7219 = vmatprep.subr.mxu0 0.0
    %7220 = vmatpush1.msra.mxu0 0.0
    %7221 = vmatprep.subr.mxu0 0.0
    %7222 = vmatpush1.msra.mxu0 0.0
    %7223 = vmatprep.subr.mxu0 0.0
    %7224 = vmatpush1.msra.mxu0 0.0
    %7225 = vmatprep.subr.mxu0 0.0
    %7226 = vmatpush1.msra.mxu0 0.0
    %7227 = vmatprep.subr.mxu0 0.0
    %7228 = vmatpush1.msra.mxu0 0.0
    %7229 = vmatprep.subr.mxu0 0.0
    %7230 = vmatpush1.msra.mxu0 0.0
    %7231 = vmatprep.subr.mxu0 0.0
    %7232 = vmatpush1.msra.mxu0 0.0
    %7233 = vmatprep.subr.mxu0 0.0
    %7234 = vmatpush1.msra.mxu0 0.0
    %7235 = vmatprep.subr.mxu0 0.0
    %7236 = vmatpush1.msra.mxu0 0.0
    %7237 = vmatprep.subr.mxu0 0.0
    %7238 = vmatpush1.msra.mxu0 0.0
    %7239 = vmatprep.subr.mxu0 0.0
    %7240 = vmatpush1.msra.mxu0 0.0
    %7241 = vmatprep.subr.mxu0 0.0
    %7242 = vmatpush1.msra.mxu0 0.0
    %7243 = vmatprep.subr.mxu0 0.0
    %7244 = vmatpush1.msra.mxu0 %v7206
    %7245 = vmatprep.subr.mxu0 0.0
    %7246 = vmatpush1.msra.mxu0 %v7204
    %7247 = vmatprep.subr.mxu0 0.0
    %7248 = vmatpush2.msra.mxu0 0.0
    %7249 = vmatprep.subr.mxu0 0.0
    %7250 = vmatpush2.msra.mxu0 0.0
    %7251 = vmatprep.subr.mxu0 0.0
    %7252 = vmatpush2.msra.mxu0 0.0
    %7253 = vmatprep.subr.mxu0 0.0
    %7254 = vmatpush2.msra.mxu0 0.0
    %7255 = vmatprep.subr.mxu0 0.0
    %7256 = vmatpush2.msra.mxu0 0.0
    %7257 = vmatprep.subr.mxu0 0.0
    %7258 = vmatpush2.msra.mxu0 0.0
    %7259 = vmatprep.subr.mxu0 0.0
    %7260 = vmatpush2.msra.mxu0 0.0
    %7261 = vmatprep.subr.mxu0 0.0
    %7262 = vmatpush2.msra.mxu0 0.0
    %7263 = vmatprep.subr.mxu0 0.0
    %7264 = vmatpush2.msra.mxu0 0.0
    %7265 = vmatprep.subr.mxu0 0.0
    %7266 = vmatpush2.msra.mxu0 0.0
    %7267 = vmatprep.subr.mxu0 0.0
    %7268 = vmatpush2.msra.mxu0 0.0
    %7269 = vmatprep.subr.mxu0 0.0
    %7270 = vmatpush2.msra.mxu0 0.0
    %7271 = vmatprep.subr.mxu0 0.0
    %7272 = vmatpush2.msra.mxu0 0.0
    %7273 = vmatprep.subr.mxu0 0.0
    %7274 = vmatpush2.msra.mxu0 0.0
    %7275 = vmatprep.subr.mxu0 0.0
    %7276 = vmatpush2.msra.mxu0 0.0
    %7277 = vmatprep.subr.mxu0 0.0
    %7278 = vmatpush2.msra.mxu0 0.0
    %7279 = vmatprep.mubr.f32.mxu0 0.0
    %7280 = vmatmul.mubr.f32.gmra.mxu0 %v7210
    %v7281 = vpop.f32.mrf.mxu0
    %v7282 = vadd.f32 0.0, %v7281
    %v7283 = vpop.f32.mrf.mxu0
    %7284 = vmatprep.mubr.f32.mxu0 0.0
    %7285 = vmatmul.mubr.f32.gmra.mxu0 %v7213
    %v7286 = vpop.f32.mrf.mxu0
    %v7287 = vadd.f32 0.0, %v7286
    %v7288 = vpop.f32.mrf.mxu0
    %7289 = vdwg.mxu0
    %7290 = vrot.lane.b32.xlu0 %v1368, 40
    %v7291 = vpop.permute.xlu0 %7290
    %7292 = vrot.lane.b32.xlu0 %v1373, 40
    %v7293 = vpop.permute.xlu0 %7292
    %v7297 = vsel %vm2139, %v7104, 0
    %v7300 = vsel %vm2139, %v7105, 0
    %7302 = vmatprep.subr.mxu0 0.0
    %7303 = vmatpush1.msra.mxu0 0.0
    %7304 = vmatprep.subr.mxu0 0.0
    %7305 = vmatpush1.msra.mxu0 0.0
    %7306 = vmatprep.subr.mxu0 0.0
    %7307 = vmatpush1.msra.mxu0 0.0
    %7308 = vmatprep.subr.mxu0 0.0
    %7309 = vmatpush1.msra.mxu0 0.0
    %7310 = vmatprep.subr.mxu0 0.0
    %7311 = vmatpush1.msra.mxu0 0.0
    %7312 = vmatprep.subr.mxu0 0.0
    %7313 = vmatpush1.msra.mxu0 0.0
    %7314 = vmatprep.subr.mxu0 0.0
    %7315 = vmatpush1.msra.mxu0 0.0
    %7316 = vmatprep.subr.mxu0 0.0
    %7317 = vmatpush1.msra.mxu0 0.0
    %7318 = vmatprep.subr.mxu0 0.0
    %7319 = vmatpush1.msra.mxu0 0.0
    %7320 = vmatprep.subr.mxu0 0.0
    %7321 = vmatpush1.msra.mxu0 0.0
    %7322 = vmatprep.subr.mxu0 0.0
    %7323 = vmatpush1.msra.mxu0 0.0
    %7324 = vmatprep.subr.mxu0 0.0
    %7325 = vmatpush1.msra.mxu0 0.0
    %7326 = vmatprep.subr.mxu0 0.0
    %7327 = vmatpush1.msra.mxu0 0.0
    %7328 = vmatprep.subr.mxu0 0.0
    %7329 = vmatpush1.msra.mxu0 0.0
    %7330 = vmatprep.subr.mxu0 0.0
    %7331 = vmatpush1.msra.mxu0 %v7293
    %7332 = vmatprep.subr.mxu0 0.0
    %7333 = vmatpush1.msra.mxu0 %v7291
    %7334 = vmatprep.subr.mxu0 0.0
    %7335 = vmatpush2.msra.mxu0 0.0
    %7336 = vmatprep.subr.mxu0 0.0
    %7337 = vmatpush2.msra.mxu0 0.0
    %7338 = vmatprep.subr.mxu0 0.0
    %7339 = vmatpush2.msra.mxu0 0.0
    %7340 = vmatprep.subr.mxu0 0.0
    %7341 = vmatpush2.msra.mxu0 0.0
    %7342 = vmatprep.subr.mxu0 0.0
    %7343 = vmatpush2.msra.mxu0 0.0
    %7344 = vmatprep.subr.mxu0 0.0
    %7345 = vmatpush2.msra.mxu0 0.0
    %7346 = vmatprep.subr.mxu0 0.0
    %7347 = vmatpush2.msra.mxu0 0.0
    %7348 = vmatprep.subr.mxu0 0.0
    %7349 = vmatpush2.msra.mxu0 0.0
    %7350 = vmatprep.subr.mxu0 0.0
    %7351 = vmatpush2.msra.mxu0 0.0
    %7352 = vmatprep.subr.mxu0 0.0
    %7353 = vmatpush2.msra.mxu0 0.0
    %7354 = vmatprep.subr.mxu0 0.0
    %7355 = vmatpush2.msra.mxu0 0.0
    %7356 = vmatprep.subr.mxu0 0.0
    %7357 = vmatpush2.msra.mxu0 0.0
    %7358 = vmatprep.subr.mxu0 0.0
    %7359 = vmatpush2.msra.mxu0 0.0
    %7360 = vmatprep.subr.mxu0 0.0
    %7361 = vmatpush2.msra.mxu0 0.0
    %7362 = vmatprep.subr.mxu0 0.0
    %7363 = vmatpush2.msra.mxu0 0.0
    %7364 = vmatprep.subr.mxu0 0.0
    %7365 = vmatpush2.msra.mxu0 0.0
    %7366 = vmatprep.mubr.f32.mxu0 0.0
    %7367 = vmatmul.mubr.f32.gmra.mxu0 %v7297
    %v7368 = vpop.f32.mrf.mxu0
    %v7369 = vadd.f32 0.0, %v7368
    %v7370 = vpop.f32.mrf.mxu0
    %7371 = vmatprep.mubr.f32.mxu0 0.0
    %7372 = vmatmul.mubr.f32.gmra.mxu0 %v7300
    %v7373 = vpop.f32.mrf.mxu0
    %v7374 = vadd.f32 0.0, %v7373
    %v7375 = vpop.f32.mrf.mxu0
    %7376 = vdwg.mxu0
    %7377 = vrot.lane.b32.xlu0 %v1378, 40
    %v7378 = vpop.permute.xlu0 %7377
    %7379 = vrot.lane.b32.xlu0 %v1383, 40
    %v7380 = vpop.permute.xlu0 %7379
    %v7384 = vsel %vm2139, %v7106, 0
    %v7387 = vsel %vm2139, %v7107, 0
    %7389 = vmatprep.subr.mxu0 0.0
    %7390 = vmatpush1.msra.mxu0 0.0
    %7391 = vmatprep.subr.mxu0 0.0
    %7392 = vmatpush1.msra.mxu0 0.0
    %7393 = vmatprep.subr.mxu0 0.0
    %7394 = vmatpush1.msra.mxu0 0.0
    %7395 = vmatprep.subr.mxu0 0.0
    %7396 = vmatpush1.msra.mxu0 0.0
    %7397 = vmatprep.subr.mxu0 0.0
    %7398 = vmatpush1.msra.mxu0 0.0
    %7399 = vmatprep.subr.mxu0 0.0
    %7400 = vmatpush1.msra.mxu0 0.0
    %7401 = vmatprep.subr.mxu0 0.0
    %7402 = vmatpush1.msra.mxu0 0.0
    %7403 = vmatprep.subr.mxu0 0.0
    %7404 = vmatpush1.msra.mxu0 0.0
    %7405 = vmatprep.subr.mxu0 0.0
    %7406 = vmatpush1.msra.mxu0 0.0
    %7407 = vmatprep.subr.mxu0 0.0
    %7408 = vmatpush1.msra.mxu0 0.0
    %7409 = vmatprep.subr.mxu0 0.0
    %7410 = vmatpush1.msra.mxu0 0.0
    %7411 = vmatprep.subr.mxu0 0.0
    %7412 = vmatpush1.msra.mxu0 0.0
    %7413 = vmatprep.subr.mxu0 0.0
    %7414 = vmatpush1.msra.mxu0 0.0
    %7415 = vmatprep.subr.mxu0 0.0
    %7416 = vmatpush1.msra.mxu0 0.0
    %7417 = vmatprep.subr.mxu0 0.0
    %7418 = vmatpush1.msra.mxu0 %v7380
    %7419 = vmatprep.subr.mxu0 0.0
    %7420 = vmatpush1.msra.mxu0 %v7378
    %7421 = vmatprep.subr.mxu0 0.0
    %7422 = vmatpush2.msra.mxu0 0.0
    %7423 = vmatprep.subr.mxu0 0.0
    %7424 = vmatpush2.msra.mxu0 0.0
    %7425 = vmatprep.subr.mxu0 0.0
    %7426 = vmatpush2.msra.mxu0 0.0
    %7427 = vmatprep.subr.mxu0 0.0
    %7428 = vmatpush2.msra.mxu0 0.0
    %7429 = vmatprep.subr.mxu0 0.0
    %7430 = vmatpush2.msra.mxu0 0.0
    %7431 = vmatprep.subr.mxu0 0.0
    %7432 = vmatpush2.msra.mxu0 0.0
    %7433 = vmatprep.subr.mxu0 0.0
    %7434 = vmatpush2.msra.mxu0 0.0
    %7435 = vmatprep.subr.mxu0 0.0
    %7436 = vmatpush2.msra.mxu0 0.0
    %7437 = vmatprep.subr.mxu0 0.0
    %7438 = vmatpush2.msra.mxu0 0.0
    %7439 = vmatprep.subr.mxu0 0.0
    %7440 = vmatpush2.msra.mxu0 0.0
    %7441 = vmatprep.subr.mxu0 0.0
    %7442 = vmatpush2.msra.mxu0 0.0
    %7443 = vmatprep.subr.mxu0 0.0
    %7444 = vmatpush2.msra.mxu0 0.0
    %7445 = vmatprep.subr.mxu0 0.0
    %7446 = vmatpush2.msra.mxu0 0.0
    %7447 = vmatprep.subr.mxu0 0.0
    %7448 = vmatpush2.msra.mxu0 0.0
    %7449 = vmatprep.subr.mxu0 0.0
    %7450 = vmatpush2.msra.mxu0 0.0
    %7451 = vmatprep.subr.mxu0 0.0
    %7452 = vmatpush2.msra.mxu0 0.0
    %7453 = vmatprep.mubr.f32.mxu0 0.0
    %7454 = vmatmul.mubr.f32.gmra.mxu0 %v7384
    %v7455 = vpop.f32.mrf.mxu0
    %v7456 = vadd.f32 0.0, %v7455
    %v7457 = vpop.f32.mrf.mxu0
    %7458 = vmatprep.mubr.f32.mxu0 0.0
    %7459 = vmatmul.mubr.f32.gmra.mxu0 %v7387
    %v7460 = vpop.f32.mrf.mxu0
    %v7461 = vadd.f32 0.0, %v7460
    %v7462 = vpop.f32.mrf.mxu0
    %7463 = vdwg.mxu0
    %7464 = vrot.lane.b32.xlu0 %v1388, 40
    %v7465 = vpop.permute.xlu0 %7464
    %7466 = vrot.lane.b32.xlu0 %v1393, 40
    %v7467 = vpop.permute.xlu0 %7466
    %v7471 = vsel %vm2139, %v7108, 0
    %v7474 = vsel %vm2139, %v7109, 0
    %7476 = vmatprep.subr.mxu0 0.0
    %7477 = vmatpush1.msra.mxu0 0.0
    %7478 = vmatprep.subr.mxu0 0.0
    %7479 = vmatpush1.msra.mxu0 0.0
    %7480 = vmatprep.subr.mxu0 0.0
    %7481 = vmatpush1.msra.mxu0 0.0
    %7482 = vmatprep.subr.mxu0 0.0
    %7483 = vmatpush1.msra.mxu0 0.0
    %7484 = vmatprep.subr.mxu0 0.0
    %7485 = vmatpush1.msra.mxu0 0.0
    %7486 = vmatprep.subr.mxu0 0.0
    %7487 = vmatpush1.msra.mxu0 0.0
    %7488 = vmatprep.subr.mxu0 0.0
    %7489 = vmatpush1.msra.mxu0 0.0
    %7490 = vmatprep.subr.mxu0 0.0
    %7491 = vmatpush1.msra.mxu0 0.0
    %7492 = vmatprep.subr.mxu0 0.0
    %7493 = vmatpush1.msra.mxu0 0.0
    %7494 = vmatprep.subr.mxu0 0.0
    %7495 = vmatpush1.msra.mxu0 0.0
    %7496 = vmatprep.subr.mxu0 0.0
    %7497 = vmatpush1.msra.mxu0 0.0
    %7498 = vmatprep.subr.mxu0 0.0
    %7499 = vmatpush1.msra.mxu0 0.0
    %7500 = vmatprep.subr.mxu0 0.0
    %7501 = vmatpush1.msra.mxu0 0.0
    %7502 = vmatprep.subr.mxu0 0.0
    %7503 = vmatpush1.msra.mxu0 0.0
    %7504 = vmatprep.subr.mxu0 0.0
    %7505 = vmatpush1.msra.mxu0 %v7467
    %7506 = vmatprep.subr.mxu0 0.0
    %7507 = vmatpush1.msra.mxu0 %v7465
    %7508 = vmatprep.subr.mxu0 0.0
    %7509 = vmatpush2.msra.mxu0 0.0
    %7510 = vmatprep.subr.mxu0 0.0
    %7511 = vmatpush2.msra.mxu0 0.0
    %7512 = vmatprep.subr.mxu0 0.0
    %7513 = vmatpush2.msra.mxu0 0.0
    %7514 = vmatprep.subr.mxu0 0.0
    %7515 = vmatpush2.msra.mxu0 0.0
    %7516 = vmatprep.subr.mxu0 0.0
    %7517 = vmatpush2.msra.mxu0 0.0
    %7518 = vmatprep.subr.mxu0 0.0
    %7519 = vmatpush2.msra.mxu0 0.0
    %7520 = vmatprep.subr.mxu0 0.0
    %7521 = vmatpush2.msra.mxu0 0.0
    %7522 = vmatprep.subr.mxu0 0.0
    %7523 = vmatpush2.msra.mxu0 0.0
    %7524 = vmatprep.subr.mxu0 0.0
    %7525 = vmatpush2.msra.mxu0 0.0
    %7526 = vmatprep.subr.mxu0 0.0
    %7527 = vmatpush2.msra.mxu0 0.0
    %7528 = vmatprep.subr.mxu0 0.0
    %7529 = vmatpush2.msra.mxu0 0.0
    %7530 = vmatprep.subr.mxu0 0.0
    %7531 = vmatpush2.msra.mxu0 0.0
    %7532 = vmatprep.subr.mxu0 0.0
    %7533 = vmatpush2.msra.mxu0 0.0
    %7534 = vmatprep.subr.mxu0 0.0
    %7535 = vmatpush2.msra.mxu0 0.0
    %7536 = vmatprep.subr.mxu0 0.0
    %7537 = vmatpush2.msra.mxu0 0.0
    %7538 = vmatprep.subr.mxu0 0.0
    %7539 = vmatpush2.msra.mxu0 0.0
    %7540 = vmatprep.mubr.f32.mxu0 0.0
    %7541 = vmatmul.mubr.f32.gmra.mxu0 %v7471
    %v7542 = vpop.f32.mrf.mxu0
    %v7543 = vadd.f32 0.0, %v7542
    %v7544 = vpop.f32.mrf.mxu0
    %7545 = vmatprep.mubr.f32.mxu0 0.0
    %7546 = vmatmul.mubr.f32.gmra.mxu0 %v7474
    %v7547 = vpop.f32.mrf.mxu0
    %v7548 = vadd.f32 0.0, %v7547
    %v7549 = vpop.f32.mrf.mxu0
    %7550 = vdwg.mxu0
    %7551 = vrot.lane.b32.xlu0 %v1398, 40
    %v7552 = vpop.permute.xlu0 %7551
    %7553 = vrot.lane.b32.xlu0 %v1403, 40
    %v7554 = vpop.permute.xlu0 %7553
    %v7558 = vsel %vm2139, %v7110, 0
    %v7561 = vsel %vm2139, %v7111, 0
    %7563 = vmatprep.subr.mxu0 0.0
    %7564 = vmatpush1.msra.mxu0 0.0
    %7565 = vmatprep.subr.mxu0 0.0
    %7566 = vmatpush1.msra.mxu0 0.0
    %7567 = vmatprep.subr.mxu0 0.0
    %7568 = vmatpush1.msra.mxu0 0.0
    %7569 = vmatprep.subr.mxu0 0.0
    %7570 = vmatpush1.msra.mxu0 0.0
    %7571 = vmatprep.subr.mxu0 0.0
    %7572 = vmatpush1.msra.mxu0 0.0
    %7573 = vmatprep.subr.mxu0 0.0
    %7574 = vmatpush1.msra.mxu0 0.0
    %7575 = vmatprep.subr.mxu0 0.0
    %7576 = vmatpush1.msra.mxu0 0.0
    %7577 = vmatprep.subr.mxu0 0.0
    %7578 = vmatpush1.msra.mxu0 0.0
    %7579 = vmatprep.subr.mxu0 0.0
    %7580 = vmatpush1.msra.mxu0 0.0
    %7581 = vmatprep.subr.mxu0 0.0
    %7582 = vmatpush1.msra.mxu0 0.0
    %7583 = vmatprep.subr.mxu0 0.0
    %7584 = vmatpush1.msra.mxu0 0.0
    %7585 = vmatprep.subr.mxu0 0.0
    %7586 = vmatpush1.msra.mxu0 0.0
    %7587 = vmatprep.subr.mxu0 0.0
    %7588 = vmatpush1.msra.mxu0 0.0
    %7589 = vmatprep.subr.mxu0 0.0
    %7590 = vmatpush1.msra.mxu0 0.0
    %7591 = vmatprep.subr.mxu0 0.0
    %7592 = vmatpush1.msra.mxu0 %v7554
    %7593 = vmatprep.subr.mxu0 0.0
    %7594 = vmatpush1.msra.mxu0 %v7552
    %7595 = vmatprep.subr.mxu0 0.0
    %7596 = vmatpush2.msra.mxu0 0.0
    %7597 = vmatprep.subr.mxu0 0.0
    %7598 = vmatpush2.msra.mxu0 0.0
    %7599 = vmatprep.subr.mxu0 0.0
    %7600 = vmatpush2.msra.mxu0 0.0
    %7601 = vmatprep.subr.mxu0 0.0
    %7602 = vmatpush2.msra.mxu0 0.0
    %7603 = vmatprep.subr.mxu0 0.0
    %7604 = vmatpush2.msra.mxu0 0.0
    %7605 = vmatprep.subr.mxu0 0.0
    %7606 = vmatpush2.msra.mxu0 0.0
    %7607 = vmatprep.subr.mxu0 0.0
    %7608 = vmatpush2.msra.mxu0 0.0
    %7609 = vmatprep.subr.mxu0 0.0
    %7610 = vmatpush2.msra.mxu0 0.0
    %7611 = vmatprep.subr.mxu0 0.0
    %7612 = vmatpush2.msra.mxu0 0.0
    %7613 = vmatprep.subr.mxu0 0.0
    %7614 = vmatpush2.msra.mxu0 0.0
    %7615 = vmatprep.subr.mxu0 0.0
    %7616 = vmatpush2.msra.mxu0 0.0
    %7617 = vmatprep.subr.mxu0 0.0
    %7618 = vmatpush2.msra.mxu0 0.0
    %7619 = vmatprep.subr.mxu0 0.0
    %7620 = vmatpush2.msra.mxu0 0.0
    %7621 = vmatprep.subr.mxu0 0.0
    %7622 = vmatpush2.msra.mxu0 0.0
    %7623 = vmatprep.subr.mxu0 0.0
    %7624 = vmatpush2.msra.mxu0 0.0
    %7625 = vmatprep.subr.mxu0 0.0
    %7626 = vmatpush2.msra.mxu0 0.0
    %7627 = vmatprep.mubr.f32.mxu0 0.0
    %7628 = vmatmul.mubr.f32.gmra.mxu0 %v7558
    %v7629 = vpop.f32.mrf.mxu0
    %v7630 = vadd.f32 0.0, %v7629
    %v7631 = vpop.f32.mrf.mxu0
    %7632 = vmatprep.mubr.f32.mxu0 0.0
    %7633 = vmatmul.mubr.f32.gmra.mxu0 %v7561
    %v7634 = vpop.f32.mrf.mxu0
    %v7635 = vadd.f32 0.0, %v7634
    %v7636 = vpop.f32.mrf.mxu0
    %7637 = vdwg.mxu0
    %7638 = vrot.lane.b32.xlu0 %v1408, 40
    %v7639 = vpop.permute.xlu0 %7638
    %7640 = vrot.lane.b32.xlu0 %v1413, 40
    %v7641 = vpop.permute.xlu0 %7640
    %v7645 = vsel %vm2139, %v7112, 0
    %v7648 = vsel %vm2139, %v7113, 0
    %7650 = vmatprep.subr.mxu0 0.0
    %7651 = vmatpush1.msra.mxu0 0.0
    %7652 = vmatprep.subr.mxu0 0.0
    %7653 = vmatpush1.msra.mxu0 0.0
    %7654 = vmatprep.subr.mxu0 0.0
    %7655 = vmatpush1.msra.mxu0 0.0
    %7656 = vmatprep.subr.mxu0 0.0
    %7657 = vmatpush1.msra.mxu0 0.0
    %7658 = vmatprep.subr.mxu0 0.0
    %7659 = vmatpush1.msra.mxu0 0.0
    %7660 = vmatprep.subr.mxu0 0.0
    %7661 = vmatpush1.msra.mxu0 0.0
    %7662 = vmatprep.subr.mxu0 0.0
    %7663 = vmatpush1.msra.mxu0 0.0
    %7664 = vmatprep.subr.mxu0 0.0
    %7665 = vmatpush1.msra.mxu0 0.0
    %7666 = vmatprep.subr.mxu0 0.0
    %7667 = vmatpush1.msra.mxu0 0.0
    %7668 = vmatprep.subr.mxu0 0.0
    %7669 = vmatpush1.msra.mxu0 0.0
    %7670 = vmatprep.subr.mxu0 0.0
    %7671 = vmatpush1.msra.mxu0 0.0
    %7672 = vmatprep.subr.mxu0 0.0
    %7673 = vmatpush1.msra.mxu0 0.0
    %7674 = vmatprep.subr.mxu0 0.0
    %7675 = vmatpush1.msra.mxu0 0.0
    %7676 = vmatprep.subr.mxu0 0.0
    %7677 = vmatpush1.msra.mxu0 0.0
    %7678 = vmatprep.subr.mxu0 0.0
    %7679 = vmatpush1.msra.mxu0 %v7641
    %7680 = vmatprep.subr.mxu0 0.0
    %7681 = vmatpush1.msra.mxu0 %v7639
    %7682 = vmatprep.subr.mxu0 0.0
    %7683 = vmatpush2.msra.mxu0 0.0
    %7684 = vmatprep.subr.mxu0 0.0
    %7685 = vmatpush2.msra.mxu0 0.0
    %7686 = vmatprep.subr.mxu0 0.0
    %7687 = vmatpush2.msra.mxu0 0.0
    %7688 = vmatprep.subr.mxu0 0.0
    %7689 = vmatpush2.msra.mxu0 0.0
    %7690 = vmatprep.subr.mxu0 0.0
    %7691 = vmatpush2.msra.mxu0 0.0
    %7692 = vmatprep.subr.mxu0 0.0
    %7693 = vmatpush2.msra.mxu0 0.0
    %7694 = vmatprep.subr.mxu0 0.0
    %7695 = vmatpush2.msra.mxu0 0.0
    %7696 = vmatprep.subr.mxu0 0.0
    %7697 = vmatpush2.msra.mxu0 0.0
    %7698 = vmatprep.subr.mxu0 0.0
    %7699 = vmatpush2.msra.mxu0 0.0
    %7700 = vmatprep.subr.mxu0 0.0
    %7701 = vmatpush2.msra.mxu0 0.0
    %7702 = vmatprep.subr.mxu0 0.0
    %7703 = vmatpush2.msra.mxu0 0.0
    %7704 = vmatprep.subr.mxu0 0.0
    %7705 = vmatpush2.msra.mxu0 0.0
    %7706 = vmatprep.subr.mxu0 0.0
    %7707 = vmatpush2.msra.mxu0 0.0
    %7708 = vmatprep.subr.mxu0 0.0
    %7709 = vmatpush2.msra.mxu0 0.0
    %7710 = vmatprep.subr.mxu0 0.0
    %7711 = vmatpush2.msra.mxu0 0.0
    %7712 = vmatprep.subr.mxu0 0.0
    %7713 = vmatpush2.msra.mxu0 0.0
    %7714 = vmatprep.mubr.f32.mxu0 0.0
    %7715 = vmatmul.mubr.f32.gmra.mxu0 %v7645
    %v7716 = vpop.f32.mrf.mxu0
    %v7717 = vadd.f32 0.0, %v7716
    %v7718 = vpop.f32.mrf.mxu0
    %7719 = vmatprep.mubr.f32.mxu0 0.0
    %7720 = vmatmul.mubr.f32.gmra.mxu0 %v7648
    %v7721 = vpop.f32.mrf.mxu0
    %v7722 = vadd.f32 0.0, %v7721
    %v7723 = vpop.f32.mrf.mxu0
    %7724 = vdwg.mxu0
    %7725 = vrot.lane.b32.xlu0 %v1418, 40
    %v7726 = vpop.permute.xlu0 %7725
    %7727 = vrot.lane.b32.xlu0 %v1423, 40
    %v7728 = vpop.permute.xlu0 %7727
    %v7732 = vsel %vm2139, %v7114, 0
    %v7735 = vsel %vm2139, %v7115, 0
    %7737 = vmatprep.subr.mxu0 0.0
    %7738 = vmatpush1.msra.mxu0 0.0
    %7739 = vmatprep.subr.mxu0 0.0
    %7740 = vmatpush1.msra.mxu0 0.0
    %7741 = vmatprep.subr.mxu0 0.0
    %7742 = vmatpush1.msra.mxu0 0.0
    %7743 = vmatprep.subr.mxu0 0.0
    %7744 = vmatpush1.msra.mxu0 0.0
    %7745 = vmatprep.subr.mxu0 0.0
    %7746 = vmatpush1.msra.mxu0 0.0
    %7747 = vmatprep.subr.mxu0 0.0
    %7748 = vmatpush1.msra.mxu0 0.0
    %7749 = vmatprep.subr.mxu0 0.0
    %7750 = vmatpush1.msra.mxu0 0.0
    %7751 = vmatprep.subr.mxu0 0.0
    %7752 = vmatpush1.msra.mxu0 0.0
    %7753 = vmatprep.subr.mxu0 0.0
    %7754 = vmatpush1.msra.mxu0 0.0
    %7755 = vmatprep.subr.mxu0 0.0
    %7756 = vmatpush1.msra.mxu0 0.0
    %7757 = vmatprep.subr.mxu0 0.0
    %7758 = vmatpush1.msra.mxu0 0.0
    %7759 = vmatprep.subr.mxu0 0.0
    %7760 = vmatpush1.msra.mxu0 0.0
    %7761 = vmatprep.subr.mxu0 0.0
    %7762 = vmatpush1.msra.mxu0 0.0
    %7763 = vmatprep.subr.mxu0 0.0
    %7764 = vmatpush1.msra.mxu0 0.0
    %7765 = vmatprep.subr.mxu0 0.0
    %7766 = vmatpush1.msra.mxu0 %v7728
    %7767 = vmatprep.subr.mxu0 0.0
    %7768 = vmatpush1.msra.mxu0 %v7726
    %7769 = vmatprep.subr.mxu0 0.0
    %7770 = vmatpush2.msra.mxu0 0.0
    %7771 = vmatprep.subr.mxu0 0.0
    %7772 = vmatpush2.msra.mxu0 0.0
    %7773 = vmatprep.subr.mxu0 0.0
    %7774 = vmatpush2.msra.mxu0 0.0
    %7775 = vmatprep.subr.mxu0 0.0
    %7776 = vmatpush2.msra.mxu0 0.0
    %7777 = vmatprep.subr.mxu0 0.0
    %7778 = vmatpush2.msra.mxu0 0.0
    %7779 = vmatprep.subr.mxu0 0.0
    %7780 = vmatpush2.msra.mxu0 0.0
    %7781 = vmatprep.subr.mxu0 0.0
    %7782 = vmatpush2.msra.mxu0 0.0
    %7783 = vmatprep.subr.mxu0 0.0
    %7784 = vmatpush2.msra.mxu0 0.0
    %7785 = vmatprep.subr.mxu0 0.0
    %7786 = vmatpush2.msra.mxu0 0.0
    %7787 = vmatprep.subr.mxu0 0.0
    %7788 = vmatpush2.msra.mxu0 0.0
    %7789 = vmatprep.subr.mxu0 0.0
    %7790 = vmatpush2.msra.mxu0 0.0
    %7791 = vmatprep.subr.mxu0 0.0
    %7792 = vmatpush2.msra.mxu0 0.0
    %7793 = vmatprep.subr.mxu0 0.0
    %7794 = vmatpush2.msra.mxu0 0.0
    %7795 = vmatprep.subr.mxu0 0.0
    %7796 = vmatpush2.msra.mxu0 0.0
    %7797 = vmatprep.subr.mxu0 0.0
    %7798 = vmatpush2.msra.mxu0 0.0
    %7799 = vmatprep.subr.mxu0 0.0
    %7800 = vmatpush2.msra.mxu0 0.0
    %7801 = vmatprep.mubr.f32.mxu0 0.0
    %7802 = vmatmul.mubr.f32.gmra.mxu0 %v7732
    %v7803 = vpop.f32.mrf.mxu0
    %v7804 = vadd.f32 0.0, %v7803
    %v7805 = vpop.f32.mrf.mxu0
    %7806 = vmatprep.mubr.f32.mxu0 0.0
    %7807 = vmatmul.mubr.f32.gmra.mxu0 %v7735
    %v7808 = vpop.f32.mrf.mxu0
    %v7809 = vadd.f32 0.0, %v7808
    %v7810 = vpop.f32.mrf.mxu0
    %7811 = vdwg.mxu0
    %7828 = vrot.lane.b32.xlu0 %v3995, 8
    %v7829 = vpop.permute.xlu0 %7828
    %7830 = vrot.lane.b32.xlu0 %v4000, 8
    %v7831 = vpop.permute.xlu0 %7830
    %7832 = vrot.lane.b32.xlu0 %v4082, 8
    %v7833 = vpop.permute.xlu0 %7832
    %7834 = vrot.lane.b32.xlu0 %v4087, 8
    %v7835 = vpop.permute.xlu0 %7834
    %7836 = vrot.lane.b32.xlu0 %v4169, 8
    %v7837 = vpop.permute.xlu0 %7836
    %7838 = vrot.lane.b32.xlu0 %v4174, 8
    %v7839 = vpop.permute.xlu0 %7838
    %7840 = vrot.lane.b32.xlu0 %v4256, 8
    %v7841 = vpop.permute.xlu0 %7840
    %7842 = vrot.lane.b32.xlu0 %v4261, 8
    %v7843 = vpop.permute.xlu0 %7842
    %7844 = vrot.lane.b32.xlu0 %v4343, 8
    %v7845 = vpop.permute.xlu0 %7844
    %7846 = vrot.lane.b32.xlu0 %v4348, 8
    %v7847 = vpop.permute.xlu0 %7846
    %7848 = vrot.lane.b32.xlu0 %v4430, 8
    %v7849 = vpop.permute.xlu0 %7848
    %7850 = vrot.lane.b32.xlu0 %v4435, 8
    %v7851 = vpop.permute.xlu0 %7850
    %7852 = vrot.lane.b32.xlu0 %v4517, 8
    %v7853 = vpop.permute.xlu0 %7852
    %7854 = vrot.lane.b32.xlu0 %v4522, 8
    %v7855 = vpop.permute.xlu0 %7854
    %7856 = vrot.lane.b32.xlu0 %v4604, 8
    %v7857 = vpop.permute.xlu0 %7856
    %7858 = vrot.lane.b32.xlu0 %v4609, 8
    %v7859 = vpop.permute.xlu0 %7858
    %7892 = vrot.lane.b32.xlu0 %v5595, 16
    %v7893 = vpop.permute.xlu0 %7892
    %7894 = vrot.lane.b32.xlu0 %v5600, 16
    %v7895 = vpop.permute.xlu0 %7894
    %7896 = vrot.lane.b32.xlu0 %v5682, 16
    %v7897 = vpop.permute.xlu0 %7896
    %7898 = vrot.lane.b32.xlu0 %v5687, 16
    %v7899 = vpop.permute.xlu0 %7898
    %7900 = vrot.lane.b32.xlu0 %v5769, 16
    %v7901 = vpop.permute.xlu0 %7900
    %7902 = vrot.lane.b32.xlu0 %v5774, 16
    %v7903 = vpop.permute.xlu0 %7902
    %7904 = vrot.lane.b32.xlu0 %v5856, 16
    %v7905 = vpop.permute.xlu0 %7904
    %7906 = vrot.lane.b32.xlu0 %v5861, 16
    %v7907 = vpop.permute.xlu0 %7906
    %7908 = vrot.lane.b32.xlu0 %v5943, 16
    %v7909 = vpop.permute.xlu0 %7908
    %7910 = vrot.lane.b32.xlu0 %v5948, 16
    %v7911 = vpop.permute.xlu0 %7910
    %7912 = vrot.lane.b32.xlu0 %v6030, 16
    %v7913 = vpop.permute.xlu0 %7912
    %7914 = vrot.lane.b32.xlu0 %v6035, 16
    %v7915 = vpop.permute.xlu0 %7914
    %7916 = vrot.lane.b32.xlu0 %v6117, 16
    %v7917 = vpop.permute.xlu0 %7916
    %7918 = vrot.lane.b32.xlu0 %v6122, 16
    %v7919 = vpop.permute.xlu0 %7918
    %7920 = vrot.lane.b32.xlu0 %v6204, 16
    %v7921 = vpop.permute.xlu0 %7920
    %7922 = vrot.lane.b32.xlu0 %v6209, 16
    %v7923 = vpop.permute.xlu0 %7922
    %7956 = vrot.lane.b32.xlu0 %v7195, 24
    %v7957 = vpop.permute.xlu0 %7956
    %7958 = vrot.lane.b32.xlu0 %v7200, 24
    %v7959 = vpop.permute.xlu0 %7958
    %7960 = vrot.lane.b32.xlu0 %v7282, 24
    %v7961 = vpop.permute.xlu0 %7960
    %7962 = vrot.lane.b32.xlu0 %v7287, 24
    %v7963 = vpop.permute.xlu0 %7962
    %7964 = vrot.lane.b32.xlu0 %v7369, 24
    %v7965 = vpop.permute.xlu0 %7964
    %7966 = vrot.lane.b32.xlu0 %v7374, 24
    %v7967 = vpop.permute.xlu0 %7966
    %7968 = vrot.lane.b32.xlu0 %v7456, 24
    %v7969 = vpop.permute.xlu0 %7968
    %7970 = vrot.lane.b32.xlu0 %v7461, 24
    %v7971 = vpop.permute.xlu0 %7970
    %7972 = vrot.lane.b32.xlu0 %v7543, 24
    %v7973 = vpop.permute.xlu0 %7972
    %7974 = vrot.lane.b32.xlu0 %v7548, 24
    %v7975 = vpop.permute.xlu0 %7974
    %7976 = vrot.lane.b32.xlu0 %v7630, 24
    %v7977 = vpop.permute.xlu0 %7976
    %7978 = vrot.lane.b32.xlu0 %v7635, 24
    %v7979 = vpop.permute.xlu0 %7978
    %7980 = vrot.lane.b32.xlu0 %v7717, 24
    %v7981 = vpop.permute.xlu0 %7980
    %7982 = vrot.lane.b32.xlu0 %v7722, 24
    %v7983 = vpop.permute.xlu0 %7982
    %7984 = vrot.lane.b32.xlu0 %v7804, 24
    %v7985 = vpop.permute.xlu0 %7984
    %7986 = vrot.lane.b32.xlu0 %v7809, 24
    %v7987 = vpop.permute.xlu0 %7986
    %v8004 = vsel %vm1432, %v2395, %v7829
    %v8005 = vsel %vm1432, %v2400, %v7831
    %v8006 = vsel %vm1432, %v2482, %v7833
    %v8007 = vsel %vm1432, %v2487, %v7835
    %v8008 = vsel %vm1432, %v2569, %v7837
    %v8009 = vsel %vm1432, %v2574, %v7839
    %v8010 = vsel %vm1432, %v2656, %v7841
    %v8011 = vsel %vm1432, %v2661, %v7843
    %v8012 = vsel %vm1432, %v2743, %v7845
    %v8013 = vsel %vm1432, %v2748, %v7847
    %v8014 = vsel %vm1432, %v2830, %v7849
    %v8015 = vsel %vm1432, %v2835, %v7851
    %v8016 = vsel %vm1432, %v2917, %v7853
    %v8017 = vsel %vm1432, %v2922, %v7855
    %v8018 = vsel %vm1432, %v3004, %v7857
    %v8019 = vsel %vm1432, %v3009, %v7859
    %v8020 = vsel %vm2139, %v8004, %v7893
    %v8021 = vsel %vm2139, %v8005, %v7895
    %v8022 = vsel %vm2139, %v8006, %v7897
    %v8023 = vsel %vm2139, %v8007, %v7899
    %v8024 = vsel %vm2139, %v8008, %v7901
    %v8025 = vsel %vm2139, %v8009, %v7903
    %v8026 = vsel %vm2139, %v8010, %v7905
    %v8027 = vsel %vm2139, %v8011, %v7907
    %v8028 = vsel %vm2139, %v8012, %v7909
    %v8029 = vsel %vm2139, %v8013, %v7911
    %v8030 = vsel %vm2139, %v8014, %v7913
    %v8031 = vsel %vm2139, %v8015, %v7915
    %v8032 = vsel %vm2139, %v8016, %v7917
    %v8033 = vsel %vm2139, %v8017, %v7919
    %v8034 = vsel %vm2139, %v8018, %v7921
    %v8035 = vsel %vm2139, %v8019, %v7923
    %vm8036 = vcmask 195584
    %v8037 = vsel %vm8036, %v8020, %v7957
    %v8038 = vsel %vm8036, %v8021, %v7959
    %v8039 = vsel %vm8036, %v8022, %v7961
    %v8040 = vsel %vm8036, %v8023, %v7963
    %v8041 = vsel %vm8036, %v8024, %v7965
    %v8042 = vsel %vm8036, %v8025, %v7967
    %v8043 = vsel %vm8036, %v8026, %v7969
    %v8044 = vsel %vm8036, %v8027, %v7971
    %v8045 = vsel %vm8036, %v8028, %v7973
    %v8046 = vsel %vm8036, %v8029, %v7975
    %v8047 = vsel %vm8036, %v8030, %v7977
    %v8048 = vsel %vm8036, %v8031, %v7979
    %v8049 = vsel %vm8036, %v8032, %v7981
    %v8050 = vsel %vm8036, %v8033, %v7983
    %v8051 = vsel %vm8036, %v8034, %v7985
    %v8052 = vsel %vm8036, %v8035, %v7987
    %v8053 = vlaneseq
    %v8054 = vshrl.u32 %v8053, 7
    %v8055 = vsub.s32 3, %v8054
    %v8056 = vrot.slane %v54, %v8055
    %v8058 = vsel %vm947, %v8037, 0
    %v8061 = vsel %vm947, %v8038, 0
    %v8064 = vsel %vm947, %v8039, 0
    %v8067 = vsel %vm947, %v8040, 0
    %v8070 = vsel %vm947, %v8041, 0
    %v8073 = vsel %vm947, %v8042, 0
    %v8076 = vsel %vm947, %v8043, 0
    %v8079 = vsel %vm947, %v8044, 0
    %v8082 = vsel %vm947, %v8045, 0
    %v8085 = vsel %vm947, %v8046, 0
    %v8088 = vsel %vm947, %v8047, 0
    %v8091 = vsel %vm947, %v8048, 0
    %v8094 = vsel %vm947, %v8049, 0
    %v8097 = vsel %vm947, %v8050, 0
    %v8100 = vsel %vm947, %v8051, 0
    %v8103 = vsel %vm947, %v8052, 0
    %8105 = vmatprep.subr.mxu0 0.0
    %8106 = vmatpush1.msra.mxu0 0.0
    %8107 = vmatprep.subr.mxu0 0.0
    %8108 = vmatpush1.msra.mxu0 0.0
    %8109 = vmatprep.subr.mxu0 0.0
    %8110 = vmatpush1.msra.mxu0 0.0
    %8111 = vmatprep.subr.mxu0 0.0
    %8112 = vmatpush1.msra.mxu0 0.0
    %8113 = vmatprep.subr.mxu0 0.0
    %8114 = vmatpush1.msra.mxu0 0.0
    %8115 = vmatprep.subr.mxu0 0.0
    %8116 = vmatpush1.msra.mxu0 0.0
    %8117 = vmatprep.subr.mxu0 0.0
    %8118 = vmatpush1.msra.mxu0 0.0
    %8119 = vmatprep.subr.mxu0 0.0
    %8120 = vmatpush1.msra.mxu0 0.0
    %8121 = vmatprep.subr.mxu0 0.0
    %8122 = vmatpush1.msra.mxu0 0.0
    %8123 = vmatprep.subr.mxu0 0.0
    %8124 = vmatpush1.msra.mxu0 0.0
    %8125 = vmatprep.subr.mxu0 0.0
    %8126 = vmatpush1.msra.mxu0 0.0
    %8127 = vmatprep.subr.mxu0 0.0
    %8128 = vmatpush1.msra.mxu0 0.0
    %8129 = vmatprep.subr.mxu0 0.0
    %8130 = vmatpush1.msra.mxu0 %v45
    %8131 = vmatprep.subr.mxu0 0.0
    %8132 = vmatpush1.msra.mxu0 %v44
    %8133 = vmatprep.subr.mxu0 0.0
    %8134 = vmatpush1.msra.mxu0 %v43
    %8135 = vmatprep.subr.mxu0 0.0
    %8136 = vmatpush1.msra.mxu0 %v42
    %8137 = vmatprep.subr.mxu0 0.0
    %8138 = vmatpush2.msra.mxu0 0.0
    %8139 = vmatprep.subr.mxu0 0.0
    %8140 = vmatpush2.msra.mxu0 0.0
    %8141 = vmatprep.subr.mxu0 0.0
    %8142 = vmatpush2.msra.mxu0 0.0
    %8143 = vmatprep.subr.mxu0 0.0
    %8144 = vmatpush2.msra.mxu0 0.0
    %8145 = vmatprep.subr.mxu0 0.0
    %8146 = vmatpush2.msra.mxu0 0.0
    %8147 = vmatprep.subr.mxu0 0.0
    %8148 = vmatpush2.msra.mxu0 0.0
    %8149 = vmatprep.subr.mxu0 0.0
    %8150 = vmatpush2.msra.mxu0 0.0
    %8151 = vmatprep.subr.mxu0 0.0
    %8152 = vmatpush2.msra.mxu0 0.0
    %8153 = vmatprep.subr.mxu0 0.0
    %8154 = vmatpush2.msra.mxu0 0.0
    %8155 = vmatprep.subr.mxu0 0.0
    %8156 = vmatpush2.msra.mxu0 0.0
    %8157 = vmatprep.subr.mxu0 0.0
    %8158 = vmatpush2.msra.mxu0 0.0
    %8159 = vmatprep.subr.mxu0 0.0
    %8160 = vmatpush2.msra.mxu0 0.0
    %8161 = vmatprep.subr.mxu0 0.0
    %8162 = vmatpush2.msra.mxu0 0.0
    %8163 = vmatprep.subr.mxu0 0.0
    %8164 = vmatpush2.msra.mxu0 0.0
    %8165 = vmatprep.subr.mxu0 0.0
    %8166 = vmatpush2.msra.mxu0 0.0
    %8167 = vmatprep.subr.mxu0 0.0
    %8168 = vmatpush2.msra.mxu0 0.0
    %8169 = vmatprep.mubr.f32.mxu0 0.0
    %8170 = vmatmul.mubr.f32.gmra.mxu0 %v8058
    %v8171 = vpop.f32.mrf.mxu0
    %v8172 = vadd.f32 %v8056, %v8171
    %v8173 = vpop.f32.mrf.mxu0
    %8174 = vmatprep.mubr.f32.mxu0 0.0
    %8175 = vmatmul.mubr.f32.gmra.mxu0 %v8061
    %v8176 = vpop.f32.mrf.mxu0
    %v8177 = vadd.f32 %v8056, %v8176
    %v8178 = vpop.f32.mrf.mxu0
    %8179 = vmatprep.mubr.f32.mxu0 0.0
    %8180 = vmatmul.mubr.f32.gmra.mxu0 %v8064
    %v8181 = vpop.f32.mrf.mxu0
    %v8182 = vadd.f32 %v8056, %v8181
    %v8183 = vpop.f32.mrf.mxu0
    %8184 = vmatprep.mubr.f32.mxu0 0.0
    %8185 = vmatmul.mubr.f32.gmra.mxu0 %v8067
    %v8186 = vpop.f32.mrf.mxu0
    %v8187 = vadd.f32 %v8056, %v8186
    %v8188 = vpop.f32.mrf.mxu0
    %8189 = vmatprep.mubr.f32.mxu0 0.0
    %8190 = vmatmul.mubr.f32.gmra.mxu0 %v8070
    %v8191 = vpop.f32.mrf.mxu0
    %v8192 = vadd.f32 %v8056, %v8191
    %v8193 = vpop.f32.mrf.mxu0
    %8194 = vmatprep.mubr.f32.mxu0 0.0
    %8195 = vmatmul.mubr.f32.gmra.mxu0 %v8073
    %v8196 = vpop.f32.mrf.mxu0
    %v8197 = vadd.f32 %v8056, %v8196
    %v8198 = vpop.f32.mrf.mxu0
    %8199 = vmatprep.mubr.f32.mxu0 0.0
    %8200 = vmatmul.mubr.f32.gmra.mxu0 %v8076
    %v8201 = vpop.f32.mrf.mxu0
    %v8202 = vadd.f32 %v8056, %v8201
    %v8203 = vpop.f32.mrf.mxu0
    %8204 = vmatprep.mubr.f32.mxu0 0.0
    %8205 = vmatmul.mubr.f32.gmra.mxu0 %v8079
    %v8206 = vpop.f32.mrf.mxu0
    %v8207 = vadd.f32 %v8056, %v8206
    %v8208 = vpop.f32.mrf.mxu0
    %8209 = vmatprep.mubr.f32.mxu0 0.0
    %8210 = vmatmul.mubr.f32.gmra.mxu0 %v8082
    %v8211 = vpop.f32.mrf.mxu0
    %v8212 = vadd.f32 %v8056, %v8211
    %v8213 = vpop.f32.mrf.mxu0
    %8214 = vmatprep.mubr.f32.mxu0 0.0
    %8215 = vmatmul.mubr.f32.gmra.mxu0 %v8085
    %v8216 = vpop.f32.mrf.mxu0
    %v8217 = vadd.f32 %v8056, %v8216
    %v8218 = vpop.f32.mrf.mxu0
    %8219 = vmatprep.mubr.f32.mxu0 0.0
    %8220 = vmatmul.mubr.f32.gmra.mxu0 %v8088
    %v8221 = vpop.f32.mrf.mxu0
    %v8222 = vadd.f32 %v8056, %v8221
    %v8223 = vpop.f32.mrf.mxu0
    %8224 = vmatprep.mubr.f32.mxu0 0.0
    %8225 = vmatmul.mubr.f32.gmra.mxu0 %v8091
    %v8226 = vpop.f32.mrf.mxu0
    %v8227 = vadd.f32 %v8056, %v8226
    %v8228 = vpop.f32.mrf.mxu0
    %8229 = vmatprep.mubr.f32.mxu0 0.0
    %8230 = vmatmul.mubr.f32.gmra.mxu0 %v8094
    %v8231 = vpop.f32.mrf.mxu0
    %v8232 = vadd.f32 %v8056, %v8231
    %v8233 = vpop.f32.mrf.mxu0
    %8234 = vmatprep.mubr.f32.mxu0 0.0
    %8235 = vmatmul.mubr.f32.gmra.mxu0 %v8097
    %v8236 = vpop.f32.mrf.mxu0
    %v8237 = vadd.f32 %v8056, %v8236
    %v8238 = vpop.f32.mrf.mxu0
    %8239 = vmatprep.mubr.f32.mxu0 0.0
    %8240 = vmatmul.mubr.f32.gmra.mxu0 %v8100
    %v8241 = vpop.f32.mrf.mxu0
    %v8242 = vadd.f32 %v8056, %v8241
    %v8243 = vpop.f32.mrf.mxu0
    %8244 = vmatprep.mubr.f32.mxu0 0.0
    %8245 = vmatmul.mubr.f32.gmra.mxu0 %v8103
    %v8246 = vpop.f32.mrf.mxu0
    %v8247 = vadd.f32 %v8056, %v8246
    %v8248 = vpop.f32.mrf.mxu0
    %8249 = vdwg.mxu0
    %v8250 = vadd.f32 %v8172, %v707
    %v8251 = vadd.f32 %v8177, %v708
    %v8252 = vadd.f32 %v8182, %v739
    %v8253 = vadd.f32 %v8187, %v740
    %v8254 = vadd.f32 %v8192, %v771
    %v8255 = vadd.f32 %v8197, %v772
    %v8256 = vadd.f32 %v8202, %v803
    %v8257 = vadd.f32 %v8207, %v804
    %v8258 = vadd.f32 %v8212, %v835
    %v8259 = vadd.f32 %v8217, %v836
    %v8260 = vadd.f32 %v8222, %v867
    %v8261 = vadd.f32 %v8227, %v868
    %v8262 = vadd.f32 %v8232, %v899
    %v8263 = vadd.f32 %v8237, %v900
    %v8264 = vadd.f32 %v8242, %v931
    %v8265 = vadd.f32 %v8247, %v932
    %v8266 = vsel %vm947, %v8250, 0.0
    %8267 = vadd.xlane.f32.xlu0 %v8266
    %v8268 = vpop.xlane.xlu0 %8267
    %v8269 = vsel %vm947, %v8251, 0.0
    %8270 = vadd.xlane.f32.xlu0 %v8269
    %v8271 = vpop.xlane.xlu0 %8270
    %v8272 = vsel %vm947, %v8252, 0.0
    %8273 = vadd.xlane.f32.xlu0 %v8272
    %v8274 = vpop.xlane.xlu0 %8273
    %v8275 = vsel %vm947, %v8253, 0.0
    %8276 = vadd.xlane.f32.xlu0 %v8275
    %v8277 = vpop.xlane.xlu0 %8276
    %v8278 = vsel %vm947, %v8254, 0.0
    %8279 = vadd.xlane.f32.xlu0 %v8278
    %v8280 = vpop.xlane.xlu0 %8279
    %v8281 = vsel %vm947, %v8255, 0.0
    %8282 = vadd.xlane.f32.xlu0 %v8281
    %v8283 = vpop.xlane.xlu0 %8282
    %v8284 = vsel %vm947, %v8256, 0.0
    %8285 = vadd.xlane.f32.xlu0 %v8284
    %v8286 = vpop.xlane.xlu0 %8285
    %v8287 = vsel %vm947, %v8257, 0.0
    %8288 = vadd.xlane.f32.xlu0 %v8287
    %v8289 = vpop.xlane.xlu0 %8288
    %v8290 = vsel %vm947, %v8258, 0.0
    %8291 = vadd.xlane.f32.xlu0 %v8290
    %v8292 = vpop.xlane.xlu0 %8291
    %v8293 = vsel %vm947, %v8259, 0.0
    %8294 = vadd.xlane.f32.xlu0 %v8293
    %v8295 = vpop.xlane.xlu0 %8294
    %v8296 = vsel %vm947, %v8260, 0.0
    %8297 = vadd.xlane.f32.xlu0 %v8296
    %v8298 = vpop.xlane.xlu0 %8297
    %v8299 = vsel %vm947, %v8261, 0.0
    %8300 = vadd.xlane.f32.xlu0 %v8299
    %v8301 = vpop.xlane.xlu0 %8300
    %v8302 = vsel %vm947, %v8262, 0.0
    %8303 = vadd.xlane.f32.xlu0 %v8302
    %v8304 = vpop.xlane.xlu0 %8303
    %v8305 = vsel %vm947, %v8263, 0.0
    %8306 = vadd.xlane.f32.xlu0 %v8305
    %v8307 = vpop.xlane.xlu0 %8306
    %v8308 = vsel %vm947, %v8264, 0.0
    %8309 = vadd.xlane.f32.xlu0 %v8308
    %v8310 = vpop.xlane.xlu0 %8309
    %v8311 = vsel %vm947, %v8265, 0.0
    %8312 = vadd.xlane.f32.xlu0 %v8311
    %v8313 = vpop.xlane.xlu0 %8312
    %v8314 = vmul.f32 %v8268, %v996
    %v8315 = vmul.f32 %v8271, %v996
    %v8316 = vmul.f32 %v8274, %v996
    %v8317 = vmul.f32 %v8277, %v996
    %v8318 = vmul.f32 %v8280, %v996
    %v8319 = vmul.f32 %v8283, %v996
    %v8320 = vmul.f32 %v8286, %v996
    %v8321 = vmul.f32 %v8289, %v996
    %v8322 = vmul.f32 %v8292, %v996
    %v8323 = vmul.f32 %v8295, %v996
    %v8324 = vmul.f32 %v8298, %v996
    %v8325 = vmul.f32 %v8301, %v996
    %v8326 = vmul.f32 %v8304, %v996
    %v8327 = vmul.f32 %v8307, %v996
    %v8328 = vmul.f32 %v8310, %v996
    %v8329 = vmul.f32 %v8313, %v996
    %v8330 = vmul.f32 %v8250, %v8250
    %v8331 = vmul.f32 %v8251, %v8251
    %v8332 = vmul.f32 %v8252, %v8252
    %v8333 = vmul.f32 %v8253, %v8253
    %v8334 = vmul.f32 %v8254, %v8254
    %v8335 = vmul.f32 %v8255, %v8255
    %v8336 = vmul.f32 %v8256, %v8256
    %v8337 = vmul.f32 %v8257, %v8257
    %v8338 = vmul.f32 %v8258, %v8258
    %v8339 = vmul.f32 %v8259, %v8259
    %v8340 = vmul.f32 %v8260, %v8260
    %v8341 = vmul.f32 %v8261, %v8261
    %v8342 = vmul.f32 %v8262, %v8262
    %v8343 = vmul.f32 %v8263, %v8263
    %v8344 = vmul.f32 %v8264, %v8264
    %v8345 = vmul.f32 %v8265, %v8265
    %v8346 = vsel %vm947, %v8330, 0.0
    %8347 = vadd.xlane.f32.xlu0 %v8346
    %v8348 = vpop.xlane.xlu0 %8347
    %v8349 = vsel %vm947, %v8331, 0.0
    %8350 = vadd.xlane.f32.xlu0 %v8349
    %v8351 = vpop.xlane.xlu0 %8350
    %v8352 = vsel %vm947, %v8332, 0.0
    %8353 = vadd.xlane.f32.xlu0 %v8352
    %v8354 = vpop.xlane.xlu0 %8353
    %v8355 = vsel %vm947, %v8333, 0.0
    %8356 = vadd.xlane.f32.xlu0 %v8355
    %v8357 = vpop.xlane.xlu0 %8356
    %v8358 = vsel %vm947, %v8334, 0.0
    %8359 = vadd.xlane.f32.xlu0 %v8358
    %v8360 = vpop.xlane.xlu0 %8359
    %v8361 = vsel %vm947, %v8335, 0.0
    %8362 = vadd.xlane.f32.xlu0 %v8361
    %v8363 = vpop.xlane.xlu0 %8362
    %v8364 = vsel %vm947, %v8336, 0.0
    %8365 = vadd.xlane.f32.xlu0 %v8364
    %v8366 = vpop.xlane.xlu0 %8365
    %v8367 = vsel %vm947, %v8337, 0.0
    %8368 = vadd.xlane.f32.xlu0 %v8367
    %v8369 = vpop.xlane.xlu0 %8368
    %v8370 = vsel %vm947, %v8338, 0.0
    %8371 = vadd.xlane.f32.xlu0 %v8370
    %v8372 = vpop.xlane.xlu0 %8371
    %v8373 = vsel %vm947, %v8339, 0.0
    %8374 = vadd.xlane.f32.xlu0 %v8373
    %v8375 = vpop.xlane.xlu0 %8374
    %v8376 = vsel %vm947, %v8340, 0.0
    %8377 = vadd.xlane.f32.xlu0 %v8376
    %v8378 = vpop.xlane.xlu0 %8377
    %v8379 = vsel %vm947, %v8341, 0.0
    %8380 = vadd.xlane.f32.xlu0 %v8379
    %v8381 = vpop.xlane.xlu0 %8380
    %v8382 = vsel %vm947, %v8342, 0.0
    %8383 = vadd.xlane.f32.xlu0 %v8382
    %v8384 = vpop.xlane.xlu0 %8383
    %v8385 = vsel %vm947, %v8343, 0.0
    %8386 = vadd.xlane.f32.xlu0 %v8385
    %v8387 = vpop.xlane.xlu0 %8386
    %v8388 = vsel %vm947, %v8344, 0.0
    %8389 = vadd.xlane.f32.xlu0 %v8388
    %v8390 = vpop.xlane.xlu0 %8389
    %v8391 = vsel %vm947, %v8345, 0.0
    %8392 = vadd.xlane.f32.xlu0 %v8391
    %v8393 = vpop.xlane.xlu0 %8392
    %v8394 = vmul.f32 %v8348, %v996
    %v8395 = vmul.f32 %v8351, %v996
    %v8396 = vmul.f32 %v8354, %v996
    %v8397 = vmul.f32 %v8357, %v996
    %v8398 = vmul.f32 %v8360, %v996
    %v8399 = vmul.f32 %v8363, %v996
    %v8400 = vmul.f32 %v8366, %v996
    %v8401 = vmul.f32 %v8369, %v996
    %v8402 = vmul.f32 %v8372, %v996
    %v8403 = vmul.f32 %v8375, %v996
    %v8404 = vmul.f32 %v8378, %v996
    %v8405 = vmul.f32 %v8381, %v996
    %v8406 = vmul.f32 %v8384, %v996
    %v8407 = vmul.f32 %v8387, %v996
    %v8408 = vmul.f32 %v8390, %v996
    %v8409 = vmul.f32 %v8393, %v996
    %v8410 = vmul.f32 %v8314, %v8314
    %v8411 = vmul.f32 %v8315, %v8315
    %v8412 = vmul.f32 %v8316, %v8316
    %v8413 = vmul.f32 %v8317, %v8317
    %v8414 = vmul.f32 %v8318, %v8318
    %v8415 = vmul.f32 %v8319, %v8319
    %v8416 = vmul.f32 %v8320, %v8320
    %v8417 = vmul.f32 %v8321, %v8321
    %v8418 = vmul.f32 %v8322, %v8322
    %v8419 = vmul.f32 %v8323, %v8323
    %v8420 = vmul.f32 %v8324, %v8324
    %v8421 = vmul.f32 %v8325, %v8325
    %v8422 = vmul.f32 %v8326, %v8326
    %v8423 = vmul.f32 %v8327, %v8327
    %v8424 = vmul.f32 %v8328, %v8328
    %v8425 = vmul.f32 %v8329, %v8329
    %v8426 = vsub.f32 %v8394, %v8410
    %v8427 = vsub.f32 %v8395, %v8411
    %v8428 = vsub.f32 %v8396, %v8412
    %v8429 = vsub.f32 %v8397, %v8413
    %v8430 = vsub.f32 %v8398, %v8414
    %v8431 = vsub.f32 %v8399, %v8415
    %v8432 = vsub.f32 %v8400, %v8416
    %v8433 = vsub.f32 %v8401, %v8417
    %v8434 = vsub.f32 %v8402, %v8418
    %v8435 = vsub.f32 %v8403, %v8419
    %v8436 = vsub.f32 %v8404, %v8420
    %v8437 = vsub.f32 %v8405, %v8421
    %v8438 = vsub.f32 %v8406, %v8422
    %v8439 = vsub.f32 %v8407, %v8423
    %v8440 = vsub.f32 %v8408, %v8424
    %v8441 = vsub.f32 %v8409, %v8425
    %v8442 = vsub.f32 %v8250, %v8314
    %v8443 = vsub.f32 %v8251, %v8315
    %v8444 = vsub.f32 %v8252, %v8316
    %v8445 = vsub.f32 %v8253, %v8317
    %v8446 = vsub.f32 %v8254, %v8318
    %v8447 = vsub.f32 %v8255, %v8319
    %v8448 = vsub.f32 %v8256, %v8320
    %v8449 = vsub.f32 %v8257, %v8321
    %v8450 = vsub.f32 %v8258, %v8322
    %v8451 = vsub.f32 %v8259, %v8323
    %v8452 = vsub.f32 %v8260, %v8324
    %v8453 = vsub.f32 %v8261, %v8325
    %v8454 = vsub.f32 %v8262, %v8326
    %v8455 = vsub.f32 %v8263, %v8327
    %v8456 = vsub.f32 %v8264, %v8328
    %v8457 = vsub.f32 %v8265, %v8329
    %v8458 = vadd.f32 %v8426, 1e-05
    %v8459 = vadd.f32 %v8427, 1e-05
    %v8460 = vadd.f32 %v8428, 1e-05
    %v8461 = vadd.f32 %v8429, 1e-05
    %v8462 = vadd.f32 %v8430, 1e-05
    %v8463 = vadd.f32 %v8431, 1e-05
    %v8464 = vadd.f32 %v8432, 1e-05
    %v8465 = vadd.f32 %v8433, 1e-05
    %v8466 = vadd.f32 %v8434, 1e-05
    %v8467 = vadd.f32 %v8435, 1e-05
    %v8468 = vadd.f32 %v8436, 1e-05
    %v8469 = vadd.f32 %v8437, 1e-05
    %v8470 = vadd.f32 %v8438, 1e-05
    %v8471 = vadd.f32 %v8439, 1e-05
    %v8472 = vadd.f32 %v8440, 1e-05
    %v8473 = vadd.f32 %v8441, 1e-05
    %v8474 = vrsqrt.pop %v8458
    %v8475 = vrsqrt.pop %v8459
    %v8476 = vrsqrt.pop %v8460
    %v8477 = vrsqrt.pop %v8461
    %v8478 = vrsqrt.pop %v8462
    %v8479 = vrsqrt.pop %v8463
    %v8480 = vrsqrt.pop %v8464
    %v8481 = vrsqrt.pop %v8465
    %v8482 = vrsqrt.pop %v8466
    %v8483 = vrsqrt.pop %v8467
    %v8484 = vrsqrt.pop %v8468
    %v8485 = vrsqrt.pop %v8469
    %v8486 = vrsqrt.pop %v8470
    %v8487 = vrsqrt.pop %v8471
    %v8488 = vrsqrt.pop %v8472
    %v8489 = vrsqrt.pop %v8473
    %v8490 = vmul.f32 %v8442, %v8474
    %v8491 = vmul.f32 %v8443, %v8475
    %v8492 = vmul.f32 %v8444, %v8476
    %v8493 = vmul.f32 %v8445, %v8477
    %v8494 = vmul.f32 %v8446, %v8478
    %v8495 = vmul.f32 %v8447, %v8479
    %v8496 = vmul.f32 %v8448, %v8480
    %v8497 = vmul.f32 %v8449, %v8481
    %v8498 = vmul.f32 %v8450, %v8482
    %v8499 = vmul.f32 %v8451, %v8483
    %v8500 = vmul.f32 %v8452, %v8484
    %v8501 = vmul.f32 %v8453, %v8485
    %v8502 = vmul.f32 %v8454, %v8486
    %v8503 = vmul.f32 %v8455, %v8487
    %v8504 = vmul.f32 %v8456, %v8488
    %v8505 = vmul.f32 %v8457, %v8489
    %v8506 = vlaneseq
    %v8507 = vshrl.u32 %v8506, 7
    %v8508 = vsub.s32 4, %v8507
    %v8509 = vrot.slane %v54, %v8508
    %v8510 = vmul.f32 %v8490, %v8509
    %v8511 = vmul.f32 %v8491, %v8509
    %v8512 = vmul.f32 %v8492, %v8509
    %v8513 = vmul.f32 %v8493, %v8509
    %v8514 = vmul.f32 %v8494, %v8509
    %v8515 = vmul.f32 %v8495, %v8509
    %v8516 = vmul.f32 %v8496, %v8509
    %v8517 = vmul.f32 %v8497, %v8509
    %v8518 = vmul.f32 %v8498, %v8509
    %v8519 = vmul.f32 %v8499, %v8509
    %v8520 = vmul.f32 %v8500, %v8509
    %v8521 = vmul.f32 %v8501, %v8509
    %v8522 = vmul.f32 %v8502, %v8509
    %v8523 = vmul.f32 %v8503, %v8509
    %v8524 = vmul.f32 %v8504, %v8509
    %v8525 = vmul.f32 %v8505, %v8509
    %v8526 = vlaneseq
    %v8527 = vshrl.u32 %v8526, 7
    %v8528 = vsub.s32 5, %v8527
    %v8529 = vrot.slane %v54, %v8528
    %v8530 = vadd.f32 %v8510, %v8529
    %v8531 = vadd.f32 %v8511, %v8529
    %v8532 = vadd.f32 %v8512, %v8529
    %v8533 = vadd.f32 %v8513, %v8529
    %v8534 = vadd.f32 %v8514, %v8529
    %v8535 = vadd.f32 %v8515, %v8529
    %v8536 = vadd.f32 %v8516, %v8529
    %v8537 = vadd.f32 %v8517, %v8529
    %v8538 = vadd.f32 %v8518, %v8529
    %v8539 = vadd.f32 %v8519, %v8529
    %v8540 = vadd.f32 %v8520, %v8529
    %v8541 = vadd.f32 %v8521, %v8529
    %v8542 = vadd.f32 %v8522, %v8529
    %v8543 = vadd.f32 %v8523, %v8529
    %v8544 = vadd.f32 %v8524, %v8529
    %v8545 = vadd.f32 %v8525, %v8529
    %v8546 = vlaneseq
    %v8547 = vshrl.u32 %v8546, 7
    %v8548 = vsub.s32 6, %v8547
    %v8549 = vrot.slane %v54, %v8548
    %v8551 = vsel %vm947, %v8530, 0
    %v8554 = vsel %vm947, %v8531, 0
    %v8557 = vsel %vm947, %v8532, 0
    %v8560 = vsel %vm947, %v8533, 0
    %v8563 = vsel %vm947, %v8534, 0
    %v8566 = vsel %vm947, %v8535, 0
    %v8569 = vsel %vm947, %v8536, 0
    %v8572 = vsel %vm947, %v8537, 0
    %v8575 = vsel %vm947, %v8538, 0
    %v8578 = vsel %vm947, %v8539, 0
    %v8581 = vsel %vm947, %v8540, 0
    %v8584 = vsel %vm947, %v8541, 0
    %v8587 = vsel %vm947, %v8542, 0
    %v8590 = vsel %vm947, %v8543, 0
    %v8593 = vsel %vm947, %v8544, 0
    %v8596 = vsel %vm947, %v8545, 0
    %8598 = vmatprep.subr.mxu0 0.0
    %8599 = vmatpush1.msra.mxu0 0.0
    %8600 = vmatprep.subr.mxu0 0.0
    %8601 = vmatpush1.msra.mxu0 0.0
    %8602 = vmatprep.subr.mxu0 0.0
    %8603 = vmatpush1.msra.mxu0 0.0
    %8604 = vmatprep.subr.mxu0 0.0
    %8605 = vmatpush1.msra.mxu0 0.0
    %8606 = vmatprep.subr.mxu0 0.0
    %8607 = vmatpush1.msra.mxu0 0.0
    %8608 = vmatprep.subr.mxu0 0.0
    %8609 = vmatpush1.msra.mxu0 0.0
    %8610 = vmatprep.subr.mxu0 0.0
    %8611 = vmatpush1.msra.mxu0 0.0
    %8612 = vmatprep.subr.mxu0 0.0
    %8613 = vmatpush1.msra.mxu0 0.0
    %8614 = vmatprep.subr.mxu0 0.0
    %8615 = vmatpush1.msra.mxu0 0.0
    %8616 = vmatprep.subr.mxu0 0.0
    %8617 = vmatpush1.msra.mxu0 0.0
    %8618 = vmatprep.subr.mxu0 0.0
    %8619 = vmatpush1.msra.mxu0 0.0
    %8620 = vmatprep.subr.mxu0 0.0
    %8621 = vmatpush1.msra.mxu0 0.0
    %8622 = vmatprep.subr.mxu0 0.0
    %8623 = vmatpush1.msra.mxu0 %v49
    %8624 = vmatprep.subr.mxu0 0.0
    %8625 = vmatpush1.msra.mxu0 %v48
    %8626 = vmatprep.subr.mxu0 0.0
    %8627 = vmatpush1.msra.mxu0 %v47
    %8628 = vmatprep.subr.mxu0 0.0
    %8629 = vmatpush1.msra.mxu0 %v46
    %8630 = vmatprep.subr.mxu0 0.0
    %8631 = vmatpush2.msra.mxu0 0.0
    %8632 = vmatprep.subr.mxu0 0.0
    %8633 = vmatpush2.msra.mxu0 0.0
    %8634 = vmatprep.subr.mxu0 0.0
    %8635 = vmatpush2.msra.mxu0 0.0
    %8636 = vmatprep.subr.mxu0 0.0
    %8637 = vmatpush2.msra.mxu0 0.0
    %8638 = vmatprep.subr.mxu0 0.0
    %8639 = vmatpush2.msra.mxu0 0.0
    %8640 = vmatprep.subr.mxu0 0.0
    %8641 = vmatpush2.msra.mxu0 0.0
    %8642 = vmatprep.subr.mxu0 0.0
    %8643 = vmatpush2.msra.mxu0 0.0
    %8644 = vmatprep.subr.mxu0 0.0
    %8645 = vmatpush2.msra.mxu0 0.0
    %8646 = vmatprep.subr.mxu0 0.0
    %8647 = vmatpush2.msra.mxu0 0.0
    %8648 = vmatprep.subr.mxu0 0.0
    %8649 = vmatpush2.msra.mxu0 0.0
    %8650 = vmatprep.subr.mxu0 0.0
    %8651 = vmatpush2.msra.mxu0 0.0
    %8652 = vmatprep.subr.mxu0 0.0
    %8653 = vmatpush2.msra.mxu0 0.0
    %8654 = vmatprep.subr.mxu0 0.0
    %8655 = vmatpush2.msra.mxu0 0.0
    %8656 = vmatprep.subr.mxu0 0.0
    %8657 = vmatpush2.msra.mxu0 0.0
    %8658 = vmatprep.subr.mxu0 0.0
    %8659 = vmatpush2.msra.mxu0 0.0
    %8660 = vmatprep.subr.mxu0 0.0
    %8661 = vmatpush2.msra.mxu0 0.0
    %8662 = vmatprep.mubr.f32.mxu0 0.0
    %8663 = vmatmul.mubr.f32.gmra.mxu0 %v8551
    %v8664 = vpop.f32.mrf.mxu0
    %v8665 = vadd.f32 %v8549, %v8664
    %v8666 = vpop.f32.mrf.mxu0
    %8667 = vmatprep.mubr.f32.mxu0 0.0
    %8668 = vmatmul.mubr.f32.gmra.mxu0 %v8554
    %v8669 = vpop.f32.mrf.mxu0
    %v8670 = vadd.f32 %v8549, %v8669
    %v8671 = vpop.f32.mrf.mxu0
    %8672 = vmatprep.mubr.f32.mxu0 0.0
    %8673 = vmatmul.mubr.f32.gmra.mxu0 %v8557
    %v8674 = vpop.f32.mrf.mxu0
    %v8675 = vadd.f32 %v8549, %v8674
    %v8676 = vpop.f32.mrf.mxu0
    %8677 = vmatprep.mubr.f32.mxu0 0.0
    %8678 = vmatmul.mubr.f32.gmra.mxu0 %v8560
    %v8679 = vpop.f32.mrf.mxu0
    %v8680 = vadd.f32 %v8549, %v8679
    %v8681 = vpop.f32.mrf.mxu0
    %8682 = vmatprep.mubr.f32.mxu0 0.0
    %8683 = vmatmul.mubr.f32.gmra.mxu0 %v8563
    %v8684 = vpop.f32.mrf.mxu0
    %v8685 = vadd.f32 %v8549, %v8684
    %v8686 = vpop.f32.mrf.mxu0
    %8687 = vmatprep.mubr.f32.mxu0 0.0
    %8688 = vmatmul.mubr.f32.gmra.mxu0 %v8566
    %v8689 = vpop.f32.mrf.mxu0
    %v8690 = vadd.f32 %v8549, %v8689
    %v8691 = vpop.f32.mrf.mxu0
    %8692 = vmatprep.mubr.f32.mxu0 0.0
    %8693 = vmatmul.mubr.f32.gmra.mxu0 %v8569
    %v8694 = vpop.f32.mrf.mxu0
    %v8695 = vadd.f32 %v8549, %v8694
    %v8696 = vpop.f32.mrf.mxu0
    %8697 = vmatprep.mubr.f32.mxu0 0.0
    %8698 = vmatmul.mubr.f32.gmra.mxu0 %v8572
    %v8699 = vpop.f32.mrf.mxu0
    %v8700 = vadd.f32 %v8549, %v8699
    %v8701 = vpop.f32.mrf.mxu0
    %8702 = vmatprep.mubr.f32.mxu0 0.0
    %8703 = vmatmul.mubr.f32.gmra.mxu0 %v8575
    %v8704 = vpop.f32.mrf.mxu0
    %v8705 = vadd.f32 %v8549, %v8704
    %v8706 = vpop.f32.mrf.mxu0
    %8707 = vmatprep.mubr.f32.mxu0 0.0
    %8708 = vmatmul.mubr.f32.gmra.mxu0 %v8578
    %v8709 = vpop.f32.mrf.mxu0
    %v8710 = vadd.f32 %v8549, %v8709
    %v8711 = vpop.f32.mrf.mxu0
    %8712 = vmatprep.mubr.f32.mxu0 0.0
    %8713 = vmatmul.mubr.f32.gmra.mxu0 %v8581
    %v8714 = vpop.f32.mrf.mxu0
    %v8715 = vadd.f32 %v8549, %v8714
    %v8716 = vpop.f32.mrf.mxu0
    %8717 = vmatprep.mubr.f32.mxu0 0.0
    %8718 = vmatmul.mubr.f32.gmra.mxu0 %v8584
    %v8719 = vpop.f32.mrf.mxu0
    %v8720 = vadd.f32 %v8549, %v8719
    %v8721 = vpop.f32.mrf.mxu0
    %8722 = vmatprep.mubr.f32.mxu0 0.0
    %8723 = vmatmul.mubr.f32.gmra.mxu0 %v8587
    %v8724 = vpop.f32.mrf.mxu0
    %v8725 = vadd.f32 %v8549, %v8724
    %v8726 = vpop.f32.mrf.mxu0
    %8727 = vmatprep.mubr.f32.mxu0 0.0
    %8728 = vmatmul.mubr.f32.gmra.mxu0 %v8590
    %v8729 = vpop.f32.mrf.mxu0
    %v8730 = vadd.f32 %v8549, %v8729
    %v8731 = vpop.f32.mrf.mxu0
    %8732 = vmatprep.mubr.f32.mxu0 0.0
    %8733 = vmatmul.mubr.f32.gmra.mxu0 %v8593
    %v8734 = vpop.f32.mrf.mxu0
    %v8735 = vadd.f32 %v8549, %v8734
    %v8736 = vpop.f32.mrf.mxu0
    %8737 = vmatprep.mubr.f32.mxu0 0.0
    %8738 = vmatmul.mubr.f32.gmra.mxu0 %v8596
    %v8739 = vpop.f32.mrf.mxu0
    %v8740 = vadd.f32 %v8549, %v8739
    %v8741 = vpop.f32.mrf.mxu0
    %8742 = vdwg.mxu0
    %v8743 = vmul.f32 %v8665, 0.5
    %v8744 = vmul.f32 %v8670, 0.5
    %v8745 = vmul.f32 %v8675, 0.5
    %v8746 = vmul.f32 %v8680, 0.5
    %v8747 = vmul.f32 %v8685, 0.5
    %v8748 = vmul.f32 %v8690, 0.5
    %v8749 = vmul.f32 %v8695, 0.5
    %v8750 = vmul.f32 %v8700, 0.5
    %v8751 = vmul.f32 %v8705, 0.5
    %v8752 = vmul.f32 %v8710, 0.5
    %v8753 = vmul.f32 %v8715, 0.5
    %v8754 = vmul.f32 %v8720, 0.5
    %v8755 = vmul.f32 %v8725, 0.5
    %v8756 = vmul.f32 %v8730, 0.5
    %v8757 = vmul.f32 %v8735, 0.5
    %v8758 = vmul.f32 %v8740, 0.5
    %v8759 = vrcp.pop 1.4142135
    %v8760 = vmul.f32 %v8665, %v8759
    %v8761 = vmul.f32 %v8670, %v8759
    %v8762 = vmul.f32 %v8675, %v8759
    %v8763 = vmul.f32 %v8680, %v8759
    %v8764 = vmul.f32 %v8685, %v8759
    %v8765 = vmul.f32 %v8690, %v8759
    %v8766 = vmul.f32 %v8695, %v8759
    %v8767 = vmul.f32 %v8700, %v8759
    %v8768 = vmul.f32 %v8705, %v8759
    %v8769 = vmul.f32 %v8710, %v8759
    %v8770 = vmul.f32 %v8715, %v8759
    %v8771 = vmul.f32 %v8720, %v8759
    %v8772 = vmul.f32 %v8725, %v8759
    %v8773 = vmul.f32 %v8730, %v8759
    %v8774 = vmul.f32 %v8735, %v8759
    %v8775 = vmul.f32 %v8740, %v8759
    %v8776 = verf.f32.pop %v8760
    %v8777 = verf.f32.pop %v8761
    %v8778 = verf.f32.pop %v8762
    %v8779 = verf.f32.pop %v8763
    %v8780 = verf.f32.pop %v8764
    %v8781 = verf.f32.pop %v8765
    %v8782 = verf.f32.pop %v8766
    %v8783 = verf.f32.pop %v8767
    %v8784 = verf.f32.pop %v8768
    %v8785 = verf.f32.pop %v8769
    %v8786 = verf.f32.pop %v8770
    %v8787 = verf.f32.pop %v8771
    %v8788 = verf.f32.pop %v8772
    %v8789 = verf.f32.pop %v8773
    %v8790 = verf.f32.pop %v8774
    %v8791 = verf.f32.pop %v8775
    %v8792 = vadd.f32 %v8776, 1.0
    %v8793 = vadd.f32 %v8777, 1.0
    %v8794 = vadd.f32 %v8778, 1.0
    %v8795 = vadd.f32 %v8779, 1.0
    %v8796 = vadd.f32 %v8780, 1.0
    %v8797 = vadd.f32 %v8781, 1.0
    %v8798 = vadd.f32 %v8782, 1.0
    %v8799 = vadd.f32 %v8783, 1.0
    %v8800 = vadd.f32 %v8784, 1.0
    %v8801 = vadd.f32 %v8785, 1.0
    %v8802 = vadd.f32 %v8786, 1.0
    %v8803 = vadd.f32 %v8787, 1.0
    %v8804 = vadd.f32 %v8788, 1.0
    %v8805 = vadd.f32 %v8789, 1.0
    %v8806 = vadd.f32 %v8790, 1.0
    %v8807 = vadd.f32 %v8791, 1.0
    %v8808 = vmul.f32 %v8743, %v8792
    %v8809 = vmul.f32 %v8744, %v8793
    %v8810 = vmul.f32 %v8745, %v8794
    %v8811 = vmul.f32 %v8746, %v8795
    %v8812 = vmul.f32 %v8747, %v8796
    %v8813 = vmul.f32 %v8748, %v8797
    %v8814 = vmul.f32 %v8749, %v8798
    %v8815 = vmul.f32 %v8750, %v8799
    %v8816 = vmul.f32 %v8751, %v8800
    %v8817 = vmul.f32 %v8752, %v8801
    %v8818 = vmul.f32 %v8753, %v8802
    %v8819 = vmul.f32 %v8754, %v8803
    %v8820 = vmul.f32 %v8755, %v8804
    %v8821 = vmul.f32 %v8756, %v8805
    %v8822 = vmul.f32 %v8757, %v8806
    %v8823 = vmul.f32 %v8758, %v8807
    %v8824 = vlaneseq
    %v8825 = vshrl.u32 %v8824, 7
    %v8826 = vsub.s32 7, %v8825
    %v8827 = vrot.slane %v54, %v8826
    %v8829 = vsel %vm947, %v8808, 0
    %v8832 = vsel %vm947, %v8809, 0
    %v8835 = vsel %vm947, %v8810, 0
    %v8838 = vsel %vm947, %v8811, 0
    %v8841 = vsel %vm947, %v8812, 0
    %v8844 = vsel %vm947, %v8813, 0
    %v8847 = vsel %vm947, %v8814, 0
    %v8850 = vsel %vm947, %v8815, 0
    %v8853 = vsel %vm947, %v8816, 0
    %v8856 = vsel %vm947, %v8817, 0
    %v8859 = vsel %vm947, %v8818, 0
    %v8862 = vsel %vm947, %v8819, 0
    %v8865 = vsel %vm947, %v8820, 0
    %v8868 = vsel %vm947, %v8821, 0
    %v8871 = vsel %vm947, %v8822, 0
    %v8874 = vsel %vm947, %v8823, 0
    %8876 = vmatprep.subr.mxu0 0.0
    %8877 = vmatpush1.msra.mxu0 0.0
    %8878 = vmatprep.subr.mxu0 0.0
    %8879 = vmatpush1.msra.mxu0 0.0
    %8880 = vmatprep.subr.mxu0 0.0
    %8881 = vmatpush1.msra.mxu0 0.0
    %8882 = vmatprep.subr.mxu0 0.0
    %8883 = vmatpush1.msra.mxu0 0.0
    %8884 = vmatprep.subr.mxu0 0.0
    %8885 = vmatpush1.msra.mxu0 0.0
    %8886 = vmatprep.subr.mxu0 0.0
    %8887 = vmatpush1.msra.mxu0 0.0
    %8888 = vmatprep.subr.mxu0 0.0
    %8889 = vmatpush1.msra.mxu0 0.0
    %8890 = vmatprep.subr.mxu0 0.0
    %8891 = vmatpush1.msra.mxu0 0.0
    %8892 = vmatprep.subr.mxu0 0.0
    %8893 = vmatpush1.msra.mxu0 0.0
    %8894 = vmatprep.subr.mxu0 0.0
    %8895 = vmatpush1.msra.mxu0 0.0
    %8896 = vmatprep.subr.mxu0 0.0
    %8897 = vmatpush1.msra.mxu0 0.0
    %8898 = vmatprep.subr.mxu0 0.0
    %8899 = vmatpush1.msra.mxu0 0.0
    %8900 = vmatprep.subr.mxu0 0.0
    %8901 = vmatpush1.msra.mxu0 %v53
    %8902 = vmatprep.subr.mxu0 0.0
    %8903 = vmatpush1.msra.mxu0 %v52
    %8904 = vmatprep.subr.mxu0 0.0
    %8905 = vmatpush1.msra.mxu0 %v51
    %8906 = vmatprep.subr.mxu0 0.0
    %8907 = vmatpush1.msra.mxu0 %v50
    %8908 = vmatprep.subr.mxu0 0.0
    %8909 = vmatpush2.msra.mxu0 0.0
    %8910 = vmatprep.subr.mxu0 0.0
    %8911 = vmatpush2.msra.mxu0 0.0
    %8912 = vmatprep.subr.mxu0 0.0
    %8913 = vmatpush2.msra.mxu0 0.0
    %8914 = vmatprep.subr.mxu0 0.0
    %8915 = vmatpush2.msra.mxu0 0.0
    %8916 = vmatprep.subr.mxu0 0.0
    %8917 = vmatpush2.msra.mxu0 0.0
    %8918 = vmatprep.subr.mxu0 0.0
    %8919 = vmatpush2.msra.mxu0 0.0
    %8920 = vmatprep.subr.mxu0 0.0
    %8921 = vmatpush2.msra.mxu0 0.0
    %8922 = vmatprep.subr.mxu0 0.0
    %8923 = vmatpush2.msra.mxu0 0.0
    %8924 = vmatprep.subr.mxu0 0.0
    %8925 = vmatpush2.msra.mxu0 0.0
    %8926 = vmatprep.subr.mxu0 0.0
    %8927 = vmatpush2.msra.mxu0 0.0
    %8928 = vmatprep.subr.mxu0 0.0
    %8929 = vmatpush2.msra.mxu0 0.0
    %8930 = vmatprep.subr.mxu0 0.0
    %8931 = vmatpush2.msra.mxu0 0.0
    %8932 = vmatprep.subr.mxu0 0.0
    %8933 = vmatpush2.msra.mxu0 0.0
    %8934 = vmatprep.subr.mxu0 0.0
    %8935 = vmatpush2.msra.mxu0 0.0
    %8936 = vmatprep.subr.mxu0 0.0
    %8937 = vmatpush2.msra.mxu0 0.0
    %8938 = vmatprep.subr.mxu0 0.0
    %8939 = vmatpush2.msra.mxu0 0.0
    %8940 = vmatprep.mubr.f32.mxu0 0.0
    %8941 = vmatmul.mubr.f32.gmra.mxu0 %v8829
    %v8942 = vpop.f32.mrf.mxu0
    %v8943 = vadd.f32 %v8827, %v8942
    %v8944 = vpop.f32.mrf.mxu0
    %8945 = vmatprep.mubr.f32.mxu0 0.0
    %8946 = vmatmul.mubr.f32.gmra.mxu0 %v8832
    %v8947 = vpop.f32.mrf.mxu0
    %v8948 = vadd.f32 %v8827, %v8947
    %v8949 = vpop.f32.mrf.mxu0
    %8950 = vmatprep.mubr.f32.mxu0 0.0
    %8951 = vmatmul.mubr.f32.gmra.mxu0 %v8835
    %v8952 = vpop.f32.mrf.mxu0
    %v8953 = vadd.f32 %v8827, %v8952
    %v8954 = vpop.f32.mrf.mxu0
    %8955 = vmatprep.mubr.f32.mxu0 0.0
    %8956 = vmatmul.mubr.f32.gmra.mxu0 %v8838
    %v8957 = vpop.f32.mrf.mxu0
    %v8958 = vadd.f32 %v8827, %v8957
    %v8959 = vpop.f32.mrf.mxu0
    %8960 = vmatprep.mubr.f32.mxu0 0.0
    %8961 = vmatmul.mubr.f32.gmra.mxu0 %v8841
    %v8962 = vpop.f32.mrf.mxu0
    %v8963 = vadd.f32 %v8827, %v8962
    %v8964 = vpop.f32.mrf.mxu0
    %8965 = vmatprep.mubr.f32.mxu0 0.0
    %8966 = vmatmul.mubr.f32.gmra.mxu0 %v8844
    %v8967 = vpop.f32.mrf.mxu0
    %v8968 = vadd.f32 %v8827, %v8967
    %v8969 = vpop.f32.mrf.mxu0
    %8970 = vmatprep.mubr.f32.mxu0 0.0
    %8971 = vmatmul.mubr.f32.gmra.mxu0 %v8847
    %v8972 = vpop.f32.mrf.mxu0
    %v8973 = vadd.f32 %v8827, %v8972
    %v8974 = vpop.f32.mrf.mxu0
    %8975 = vmatprep.mubr.f32.mxu0 0.0
    %8976 = vmatmul.mubr.f32.gmra.mxu0 %v8850
    %v8977 = vpop.f32.mrf.mxu0
    %v8978 = vadd.f32 %v8827, %v8977
    %v8979 = vpop.f32.mrf.mxu0
    %8980 = vmatprep.mubr.f32.mxu0 0.0
    %8981 = vmatmul.mubr.f32.gmra.mxu0 %v8853
    %v8982 = vpop.f32.mrf.mxu0
    %v8983 = vadd.f32 %v8827, %v8982
    %v8984 = vpop.f32.mrf.mxu0
    %8985 = vmatprep.mubr.f32.mxu0 0.0
    %8986 = vmatmul.mubr.f32.gmra.mxu0 %v8856
    %v8987 = vpop.f32.mrf.mxu0
    %v8988 = vadd.f32 %v8827, %v8987
    %v8989 = vpop.f32.mrf.mxu0
    %8990 = vmatprep.mubr.f32.mxu0 0.0
    %8991 = vmatmul.mubr.f32.gmra.mxu0 %v8859
    %v8992 = vpop.f32.mrf.mxu0
    %v8993 = vadd.f32 %v8827, %v8992
    %v8994 = vpop.f32.mrf.mxu0
    %8995 = vmatprep.mubr.f32.mxu0 0.0
    %8996 = vmatmul.mubr.f32.gmra.mxu0 %v8862
    %v8997 = vpop.f32.mrf.mxu0
    %v8998 = vadd.f32 %v8827, %v8997
    %v8999 = vpop.f32.mrf.mxu0
    %9000 = vmatprep.mubr.f32.mxu0 0.0
    %9001 = vmatmul.mubr.f32.gmra.mxu0 %v8865
    %v9002 = vpop.f32.mrf.mxu0
    %v9003 = vadd.f32 %v8827, %v9002
    %v9004 = vpop.f32.mrf.mxu0
    %9005 = vmatprep.mubr.f32.mxu0 0.0
    %9006 = vmatmul.mubr.f32.gmra.mxu0 %v8868
    %v9007 = vpop.f32.mrf.mxu0
    %v9008 = vadd.f32 %v8827, %v9007
    %v9009 = vpop.f32.mrf.mxu0
    %9010 = vmatprep.mubr.f32.mxu0 0.0
    %9011 = vmatmul.mubr.f32.gmra.mxu0 %v8871
    %v9012 = vpop.f32.mrf.mxu0
    %v9013 = vadd.f32 %v8827, %v9012
    %v9014 = vpop.f32.mrf.mxu0
    %9015 = vmatprep.mubr.f32.mxu0 0.0
    %9016 = vmatmul.mubr.f32.gmra.mxu0 %v8874
    %v9017 = vpop.f32.mrf.mxu0
    %v9018 = vadd.f32 %v8827, %v9017
    %v9019 = vpop.f32.mrf.mxu0
    %9020 = vdwg.mxu0
    %v9021 = vadd.f32 %v8943, %v8250
    %v9022 = vadd.f32 %v8948, %v8251
    %v9023 = vadd.f32 %v8953, %v8252
    %v9024 = vadd.f32 %v8958, %v8253
    %v9025 = vadd.f32 %v8963, %v8254
    %v9026 = vadd.f32 %v8968, %v8255
    %v9027 = vadd.f32 %v8973, %v8256
    %v9028 = vadd.f32 %v8978, %v8257
    %v9029 = vadd.f32 %v8983, %v8258
    %v9030 = vadd.f32 %v8988, %v8259
    %v9031 = vadd.f32 %v8993, %v8260
    %v9032 = vadd.f32 %v8998, %v8261
    %v9033 = vadd.f32 %v9003, %v8262
    %v9034 = vadd.f32 %v9008, %v8263
    %v9035 = vadd.f32 %v9013, %v8264
    %v9036 = vadd.f32 %v9018, %v8265
    %9037 = vxpose.xlu0.b32.start [1/16] %v9021, 128
    %9038 = vxpose.xlu0.b32.cont [2/16] %v9022, 128
    %9039 = vxpose.xlu0.b32.cont [3/16] 0.0, 128
    %9040 = vxpose.xlu0.b32.cont [4/16] 0.0, 128
    %9041 = vxpose.xlu0.b32.cont [5/16] 0.0, 128
    %9042 = vxpose.xlu0.b32.cont [6/16] 0.0, 128
    %9043 = vxpose.xlu0.b32.cont [7/16] 0.0, 128
    %9044 = vxpose.xlu0.b32.cont [8/16] 0.0, 128
    %9045 = vxpose.xlu0.b32.cont [9/16] 0.0, 128
    %9046 = vxpose.xlu0.b32.cont [10/16] 0.0, 128
    %9047 = vxpose.xlu0.b32.cont [11/16] 0.0, 128
    %9048 = vxpose.xlu0.b32.cont [12/16] 0.0, 128
    %9049 = vxpose.xlu0.b32.cont [13/16] 0.0, 128
    %9050 = vxpose.xlu0.b32.cont [14/16] 0.0, 128
    %9051 = vxpose.xlu0.b32.cont [15/16] 0.0, 128
    %9052 = vxpose.xlu0.b32.end [16/16] 0.0, 128
    %v9053 = vpop.trf.xlu0
    %v9054 = vpop.trf.xlu0
    %v9055 = vpop.trf.xlu0
    %v9056 = vpop.trf.xlu0
    %v9057 = vpop.trf.xlu0
    %v9058 = vpop.trf.xlu0
    %v9059 = vpop.trf.xlu0
    %v9060 = vpop.trf.xlu0
    %v9061 = vpop.trf.xlu0
    %v9062 = vpop.trf.xlu0
    %v9063 = vpop.trf.xlu0
    %v9064 = vpop.trf.xlu0
    %v9065 = vpop.trf.xlu0
    %v9066 = vpop.trf.xlu0
    %v9067 = vpop.trf.xlu0
    %v9068 = vpop.trf.xlu0
    %9069 = vxpose.xlu0.b32.start [1/16] %v9023, 128
    %9070 = vxpose.xlu0.b32.cont [2/16] %v9024, 128
    %9071 = vxpose.xlu0.b32.cont [3/16] 0.0, 128
    %9072 = vxpose.xlu0.b32.cont [4/16] 0.0, 128
    %9073 = vxpose.xlu0.b32.cont [5/16] 0.0, 128
    %9074 = vxpose.xlu0.b32.cont [6/16] 0.0, 128
    %9075 = vxpose.xlu0.b32.cont [7/16] 0.0, 128
    %9076 = vxpose.xlu0.b32.cont [8/16] 0.0, 128
    %9077 = vxpose.xlu0.b32.cont [9/16] 0.0, 128
    %9078 = vxpose.xlu0.b32.cont [10/16] 0.0, 128
    %9079 = vxpose.xlu0.b32.cont [11/16] 0.0, 128
    %9080 = vxpose.xlu0.b32.cont [12/16] 0.0, 128
    %9081 = vxpose.xlu0.b32.cont [13/16] 0.0, 128
    %9082 = vxpose.xlu0.b32.cont [14/16] 0.0, 128
    %9083 = vxpose.xlu0.b32.cont [15/16] 0.0, 128
    %9084 = vxpose.xlu0.b32.end [16/16] 0.0, 128
    %v9085 = vpop.trf.xlu0
    %v9086 = vpop.trf.xlu0
    %v9087 = vpop.trf.xlu0
    %v9088 = vpop.trf.xlu0
    %v9089 = vpop.trf.xlu0
    %v9090 = vpop.trf.xlu0
    %v9091 = vpop.trf.xlu0
    %v9092 = vpop.trf.xlu0
    %v9093 = vpop.trf.xlu0
    %v9094 = vpop.trf.xlu0
    %v9095 = vpop.trf.xlu0
    %v9096 = vpop.trf.xlu0
    %v9097 = vpop.trf.xlu0
    %v9098 = vpop.trf.xlu0
    %v9099 = vpop.trf.xlu0
    %v9100 = vpop.trf.xlu0
    %9101 = vxpose.xlu0.b32.start [1/16] %v9025, 128
    %9102 = vxpose.xlu0.b32.cont [2/16] %v9026, 128
    %9103 = vxpose.xlu0.b32.cont [3/16] 0.0, 128
    %9104 = vxpose.xlu0.b32.cont [4/16] 0.0, 128
    %9105 = vxpose.xlu0.b32.cont [5/16] 0.0, 128
    %9106 = vxpose.xlu0.b32.cont [6/16] 0.0, 128
    %9107 = vxpose.xlu0.b32.cont [7/16] 0.0, 128
    %9108 = vxpose.xlu0.b32.cont [8/16] 0.0, 128
    %9109 = vxpose.xlu0.b32.cont [9/16] 0.0, 128
    %9110 = vxpose.xlu0.b32.cont [10/16] 0.0, 128
    %9111 = vxpose.xlu0.b32.cont [11/16] 0.0, 128
    %9112 = vxpose.xlu0.b32.cont [12/16] 0.0, 128
    %9113 = vxpose.xlu0.b32.cont [13/16] 0.0, 128
    %9114 = vxpose.xlu0.b32.cont [14/16] 0.0, 128
    %9115 = vxpose.xlu0.b32.cont [15/16] 0.0, 128
    %9116 = vxpose.xlu0.b32.end [16/16] 0.0, 128
    %v9117 = vpop.trf.xlu0
    %v9118 = vpop.trf.xlu0
    %v9119 = vpop.trf.xlu0
    %v9120 = vpop.trf.xlu0
    %v9121 = vpop.trf.xlu0
    %v9122 = vpop.trf.xlu0
    %v9123 = vpop.trf.xlu0
    %v9124 = vpop.trf.xlu0
    %v9125 = vpop.trf.xlu0
    %v9126 = vpop.trf.xlu0
    %v9127 = vpop.trf.xlu0
    %v9128 = vpop.trf.xlu0
    %v9129 = vpop.trf.xlu0
    %v9130 = vpop.trf.xlu0
    %v9131 = vpop.trf.xlu0
    %v9132 = vpop.trf.xlu0
    %9133 = vxpose.xlu0.b32.start [1/16] %v9027, 128
    %9134 = vxpose.xlu0.b32.cont [2/16] %v9028, 128
    %9135 = vxpose.xlu0.b32.cont [3/16] 0.0, 128
    %9136 = vxpose.xlu0.b32.cont [4/16] 0.0, 128
    %9137 = vxpose.xlu0.b32.cont [5/16] 0.0, 128
    %9138 = vxpose.xlu0.b32.cont [6/16] 0.0, 128
    %9139 = vxpose.xlu0.b32.cont [7/16] 0.0, 128
    %9140 = vxpose.xlu0.b32.cont [8/16] 0.0, 128
    %9141 = vxpose.xlu0.b32.cont [9/16] 0.0, 128
    %9142 = vxpose.xlu0.b32.cont [10/16] 0.0, 128
    %9143 = vxpose.xlu0.b32.cont [11/16] 0.0, 128
    %9144 = vxpose.xlu0.b32.cont [12/16] 0.0, 128
    %9145 = vxpose.xlu0.b32.cont [13/16] 0.0, 128
    %9146 = vxpose.xlu0.b32.cont [14/16] 0.0, 128
    %9147 = vxpose.xlu0.b32.cont [15/16] 0.0, 128
    %9148 = vxpose.xlu0.b32.end [16/16] 0.0, 128
    %v9149 = vpop.trf.xlu0
    %v9150 = vpop.trf.xlu0
    %v9151 = vpop.trf.xlu0
    %v9152 = vpop.trf.xlu0
    %v9153 = vpop.trf.xlu0
    %v9154 = vpop.trf.xlu0
    %v9155 = vpop.trf.xlu0
    %v9156 = vpop.trf.xlu0
    %v9157 = vpop.trf.xlu0
    %v9158 = vpop.trf.xlu0
    %v9159 = vpop.trf.xlu0
    %v9160 = vpop.trf.xlu0
    %v9161 = vpop.trf.xlu0
    %v9162 = vpop.trf.xlu0
    %v9163 = vpop.trf.xlu0
    %v9164 = vpop.trf.xlu0
    %9165 = vxpose.xlu0.b32.start [1/16] %v9029, 128
    %9166 = vxpose.xlu0.b32.cont [2/16] %v9030, 128
    %9167 = vxpose.xlu0.b32.cont [3/16] 0.0, 128
    %9168 = vxpose.xlu0.b32.cont [4/16] 0.0, 128
    %9169 = vxpose.xlu0.b32.cont [5/16] 0.0, 128
    %9170 = vxpose.xlu0.b32.cont [6/16] 0.0, 128
    %9171 = vxpose.xlu0.b32.cont [7/16] 0.0, 128
    %9172 = vxpose.xlu0.b32.cont [8/16] 0.0, 128
    %9173 = vxpose.xlu0.b32.cont [9/16] 0.0, 128
    %9174 = vxpose.xlu0.b32.cont [10/16] 0.0, 128
    %9175 = vxpose.xlu0.b32.cont [11/16] 0.0, 128
    %9176 = vxpose.xlu0.b32.cont [12/16] 0.0, 128
    %9177 = vxpose.xlu0.b32.cont [13/16] 0.0, 128
    %9178 = vxpose.xlu0.b32.cont [14/16] 0.0, 128
    %9179 = vxpose.xlu0.b32.cont [15/16] 0.0, 128
    %9180 = vxpose.xlu0.b32.end [16/16] 0.0, 128
    %v9181 = vpop.trf.xlu0
    %v9182 = vpop.trf.xlu0
    %v9183 = vpop.trf.xlu0
    %v9184 = vpop.trf.xlu0
    %v9185 = vpop.trf.xlu0
    %v9186 = vpop.trf.xlu0
    %v9187 = vpop.trf.xlu0
    %v9188 = vpop.trf.xlu0
    %v9189 = vpop.trf.xlu0
    %v9190 = vpop.trf.xlu0
    %v9191 = vpop.trf.xlu0
    %v9192 = vpop.trf.xlu0
    %v9193 = vpop.trf.xlu0
    %v9194 = vpop.trf.xlu0
    %v9195 = vpop.trf.xlu0
    %v9196 = vpop.trf.xlu0
    %9197 = vxpose.xlu0.b32.start [1/16] %v9031, 128
    %9198 = vxpose.xlu0.b32.cont [2/16] %v9032, 128
    %9199 = vxpose.xlu0.b32.cont [3/16] 0.0, 128
    %9200 = vxpose.xlu0.b32.cont [4/16] 0.0, 128
    %9201 = vxpose.xlu0.b32.cont [5/16] 0.0, 128
    %9202 = vxpose.xlu0.b32.cont [6/16] 0.0, 128
    %9203 = vxpose.xlu0.b32.cont [7/16] 0.0, 128
    %9204 = vxpose.xlu0.b32.cont [8/16] 0.0, 128
    %9205 = vxpose.xlu0.b32.cont [9/16] 0.0, 128
    %9206 = vxpose.xlu0.b32.cont [10/16] 0.0, 128
    %9207 = vxpose.xlu0.b32.cont [11/16] 0.0, 128
    %9208 = vxpose.xlu0.b32.cont [12/16] 0.0, 128
    %9209 = vxpose.xlu0.b32.cont [13/16] 0.0, 128
    %9210 = vxpose.xlu0.b32.cont [14/16] 0.0, 128
    %9211 = vxpose.xlu0.b32.cont [15/16] 0.0, 128
    %9212 = vxpose.xlu0.b32.end [16/16] 0.0, 128
    %v9213 = vpop.trf.xlu0
    %v9214 = vpop.trf.xlu0
    %v9215 = vpop.trf.xlu0
    %v9216 = vpop.trf.xlu0
    %v9217 = vpop.trf.xlu0
    %v9218 = vpop.trf.xlu0
    %v9219 = vpop.trf.xlu0
    %v9220 = vpop.trf.xlu0
    %v9221 = vpop.trf.xlu0
    %v9222 = vpop.trf.xlu0
    %v9223 = vpop.trf.xlu0
    %v9224 = vpop.trf.xlu0
    %v9225 = vpop.trf.xlu0
    %v9226 = vpop.trf.xlu0
    %v9227 = vpop.trf.xlu0
    %v9228 = vpop.trf.xlu0
    %9229 = vxpose.xlu0.b32.start [1/16] %v9033, 128
    %9230 = vxpose.xlu0.b32.cont [2/16] %v9034, 128
    %9231 = vxpose.xlu0.b32.cont [3/16] 0.0, 128
    %9232 = vxpose.xlu0.b32.cont [4/16] 0.0, 128
    %9233 = vxpose.xlu0.b32.cont [5/16] 0.0, 128
    %9234 = vxpose.xlu0.b32.cont [6/16] 0.0, 128
    %9235 = vxpose.xlu0.b32.cont [7/16] 0.0, 128
    %9236 = vxpose.xlu0.b32.cont [8/16] 0.0, 128
    %9237 = vxpose.xlu0.b32.cont [9/16] 0.0, 128
    %9238 = vxpose.xlu0.b32.cont [10/16] 0.0, 128
    %9239 = vxpose.xlu0.b32.cont [11/16] 0.0, 128
    %9240 = vxpose.xlu0.b32.cont [12/16] 0.0, 128
    %9241 = vxpose.xlu0.b32.cont [13/16] 0.0, 128
    %9242 = vxpose.xlu0.b32.cont [14/16] 0.0, 128
    %9243 = vxpose.xlu0.b32.cont [15/16] 0.0, 128
    %9244 = vxpose.xlu0.b32.end [16/16] 0.0, 128
    %v9245 = vpop.trf.xlu0
    %v9246 = vpop.trf.xlu0
    %v9247 = vpop.trf.xlu0
    %v9248 = vpop.trf.xlu0
    %v9249 = vpop.trf.xlu0
    %v9250 = vpop.trf.xlu0
    %v9251 = vpop.trf.xlu0
    %v9252 = vpop.trf.xlu0
    %v9253 = vpop.trf.xlu0
    %v9254 = vpop.trf.xlu0
    %v9255 = vpop.trf.xlu0
    %v9256 = vpop.trf.xlu0
    %v9257 = vpop.trf.xlu0
    %v9258 = vpop.trf.xlu0
    %v9259 = vpop.trf.xlu0
    %v9260 = vpop.trf.xlu0
    %9261 = vxpose.xlu0.b32.start [1/16] %v9035, 128
    %9262 = vxpose.xlu0.b32.cont [2/16] %v9036, 128
    %9263 = vxpose.xlu0.b32.cont [3/16] 0.0, 128
    %9264 = vxpose.xlu0.b32.cont [4/16] 0.0, 128
    %9265 = vxpose.xlu0.b32.cont [5/16] 0.0, 128
    %9266 = vxpose.xlu0.b32.cont [6/16] 0.0, 128
    %9267 = vxpose.xlu0.b32.cont [7/16] 0.0, 128
    %9268 = vxpose.xlu0.b32.cont [8/16] 0.0, 128
    %9269 = vxpose.xlu0.b32.cont [9/16] 0.0, 128
    %9270 = vxpose.xlu0.b32.cont [10/16] 0.0, 128
    %9271 = vxpose.xlu0.b32.cont [11/16] 0.0, 128
    %9272 = vxpose.xlu0.b32.cont [12/16] 0.0, 128
    %9273 = vxpose.xlu0.b32.cont [13/16] 0.0, 128
    %9274 = vxpose.xlu0.b32.cont [14/16] 0.0, 128
    %9275 = vxpose.xlu0.b32.cont [15/16] 0.0, 128
    %9276 = vxpose.xlu0.b32.end [16/16] 0.0, 128
    %v9277 = vpop.trf.xlu0
    %v9278 = vpop.trf.xlu0
    %v9279 = vpop.trf.xlu0
    %v9280 = vpop.trf.xlu0
    %v9281 = vpop.trf.xlu0
    %v9282 = vpop.trf.xlu0
    %v9283 = vpop.trf.xlu0
    %v9284 = vpop.trf.xlu0
    %v9285 = vpop.trf.xlu0
    %v9286 = vpop.trf.xlu0
    %v9287 = vpop.trf.xlu0
    %v9288 = vpop.trf.xlu0
    %v9289 = vpop.trf.xlu0
    %v9290 = vpop.trf.xlu0
    %v9291 = vpop.trf.xlu0
    %v9292 = vpop.trf.xlu0
    %v9293 = vcombine.low %v9053, %v9117
    %v9294 = vcombine.high %v9053, %v9117
    %v9296 = vunpack.c.l.s4 1983009808
    %v9297 = vunpack.c.0.s8 %v9296
    %v9298 = vlaneseq
    %v9299 = vshrl.u32 %v9298, 7
    %v9300 = vsub.s32 %v9297, %v9299
    %v9301 = vrot.slane %v9293, %v9300
    %v9303 = vunpack.c.l.s4 1983009808
    %v9304 = vunpack.c.0.s8 %v9303
    %v9305 = vlaneseq
    %v9306 = vshrl.u32 %v9305, 7
    %v9307 = vsub.s32 %v9304, %v9306
    %v9308 = vrot.slane %v9294, %v9307
    %v9309 = vcombine.low %v9085, %v9149
    %v9310 = vcombine.high %v9085, %v9149
    %v9312 = vunpack.c.l.s4 1983009808
    %v9313 = vunpack.c.0.s8 %v9312
    %v9314 = vlaneseq
    %v9315 = vshrl.u32 %v9314, 7
    %v9316 = vsub.s32 %v9313, %v9315
    %v9317 = vrot.slane %v9309, %v9316
    %v9319 = vunpack.c.l.s4 1983009808
    %v9320 = vunpack.c.0.s8 %v9319
    %v9321 = vlaneseq
    %v9322 = vshrl.u32 %v9321, 7
    %v9323 = vsub.s32 %v9320, %v9322
    %v9324 = vrot.slane %v9310, %v9323
    %v9325 = vcombine.low %v9181, %v9245
    %v9326 = vcombine.high %v9181, %v9245
    %v9328 = vunpack.c.l.s4 1983009808
    %v9329 = vunpack.c.0.s8 %v9328
    %v9330 = vlaneseq
    %v9331 = vshrl.u32 %v9330, 7
    %v9332 = vsub.s32 %v9329, %v9331
    %v9333 = vrot.slane %v9325, %v9332
    %v9335 = vunpack.c.l.s4 1983009808
    %v9336 = vunpack.c.0.s8 %v9335
    %v9337 = vlaneseq
    %v9338 = vshrl.u32 %v9337, 7
    %v9339 = vsub.s32 %v9336, %v9338
    %v9340 = vrot.slane %v9326, %v9339
    %v9341 = vcombine.low %v9213, %v9277
    %v9342 = vcombine.high %v9213, %v9277
    %v9344 = vunpack.c.l.s4 1983009808
    %v9345 = vunpack.c.0.s8 %v9344
    %v9346 = vlaneseq
    %v9347 = vshrl.u32 %v9346, 7
    %v9348 = vsub.s32 %v9345, %v9347
    %v9349 = vrot.slane %v9341, %v9348
    %v9351 = vunpack.c.l.s4 1983009808
    %v9352 = vunpack.c.0.s8 %v9351
    %v9353 = vlaneseq
    %v9354 = vshrl.u32 %v9353, 7
    %v9355 = vsub.s32 %v9352, %v9354
    %v9356 = vrot.slane %v9342, %v9355
    %v9357 = vcombine.low %v9301, %v9317
    %v9358 = vcombine.high %v9301, %v9317
    %v9360 = vunpack.c.l.s4 1934713408
    %v9361 = vunpack.c.0.s8 %v9360
    %v9362 = vlaneseq
    %v9363 = vshrl.u32 %v9362, 7
    %v9364 = vsub.s32 %v9361, %v9363
    %v9365 = vrot.slane %v9357, %v9364
    %v9367 = vunpack.c.l.s4 1934713408
    %v9368 = vunpack.c.0.s8 %v9367
    %v9369 = vlaneseq
    %v9370 = vshrl.u32 %v9369, 7
    %v9371 = vsub.s32 %v9368, %v9370
    %v9372 = vrot.slane %v9358, %v9371
    %v9373 = vcombine.low %v9308, %v9324
    %v9374 = vcombine.high %v9308, %v9324
    %v9376 = vunpack.c.l.s4 1934713408
    %v9377 = vunpack.c.0.s8 %v9376
    %v9378 = vlaneseq
    %v9379 = vshrl.u32 %v9378, 7
    %v9380 = vsub.s32 %v9377, %v9379
    %v9381 = vrot.slane %v9373, %v9380
    %v9383 = vunpack.c.l.s4 1934713408
    %v9384 = vunpack.c.0.s8 %v9383
    %v9385 = vlaneseq
    %v9386 = vshrl.u32 %v9385, 7
    %v9387 = vsub.s32 %v9384, %v9386
    %v9388 = vrot.slane %v9374, %v9387
    %v9389 = vcombine.low %v9333, %v9349
    %v9390 = vcombine.high %v9333, %v9349
    %v9392 = vunpack.c.l.s4 1934713408
    %v9393 = vunpack.c.0.s8 %v9392
    %v9394 = vlaneseq
    %v9395 = vshrl.u32 %v9394, 7
    %v9396 = vsub.s32 %v9393, %v9395
    %v9397 = vrot.slane %v9389, %v9396
    %v9399 = vunpack.c.l.s4 1934713408
    %v9400 = vunpack.c.0.s8 %v9399
    %v9401 = vlaneseq
    %v9402 = vshrl.u32 %v9401, 7
    %v9403 = vsub.s32 %v9400, %v9402
    %v9404 = vrot.slane %v9390, %v9403
    %v9405 = vcombine.low %v9340, %v9356
    %v9406 = vcombine.high %v9340, %v9356
    %v9408 = vunpack.c.l.s4 1934713408
    %v9409 = vunpack.c.0.s8 %v9408
    %v9410 = vlaneseq
    %v9411 = vshrl.u32 %v9410, 7
    %v9412 = vsub.s32 %v9409, %v9411
    %v9413 = vrot.slane %v9405, %v9412
    %v9415 = vunpack.c.l.s4 1934713408
    %v9416 = vunpack.c.0.s8 %v9415
    %v9417 = vlaneseq
    %v9418 = vshrl.u32 %v9417, 7
    %v9419 = vsub.s32 %v9416, %v9418
    %v9420 = vrot.slane %v9406, %v9419
    %v9421 = vcombine.low %v9365, %v9397
    %v9422 = vcombine.high %v9365, %v9397
    %v9423 = vcombine.low %v9372, %v9404
    %v9424 = vcombine.high %v9372, %v9404
    %v9425 = vcombine.low %v9381, %v9413
    %v9426 = vcombine.high %v9381, %v9413
    %v9427 = vcombine.low %v9388, %v9420
    %v9428 = vcombine.high %v9388, %v9420
    %v9429 = vcombine.low %v9054, %v9118
    %v9430 = vcombine.high %v9054, %v9118
    %v9432 = vunpack.c.l.s4 1983009808
    %v9433 = vunpack.c.0.s8 %v9432
    %v9434 = vlaneseq
    %v9435 = vshrl.u32 %v9434, 7
    %v9436 = vsub.s32 %v9433, %v9435
    %v9437 = vrot.slane %v9429, %v9436
    %v9439 = vunpack.c.l.s4 1983009808
    %v9440 = vunpack.c.0.s8 %v9439
    %v9441 = vlaneseq
    %v9442 = vshrl.u32 %v9441, 7
    %v9443 = vsub.s32 %v9440, %v9442
    %v9444 = vrot.slane %v9430, %v9443
    %v9445 = vcombine.low %v9086, %v9150
    %v9446 = vcombine.high %v9086, %v9150
    %v9448 = vunpack.c.l.s4 1983009808
    %v9449 = vunpack.c.0.s8 %v9448
    %v9450 = vlaneseq
    %v9451 = vshrl.u32 %v9450, 7
    %v9452 = vsub.s32 %v9449, %v9451
    %v9453 = vrot.slane %v9445, %v9452
    %v9455 = vunpack.c.l.s4 1983009808
    %v9456 = vunpack.c.0.s8 %v9455
    %v9457 = vlaneseq
    %v9458 = vshrl.u32 %v9457, 7
    %v9459 = vsub.s32 %v9456, %v9458
    %v9460 = vrot.slane %v9446, %v9459
    %v9461 = vcombine.low %v9182, %v9246
    %v9462 = vcombine.high %v9182, %v9246
    %v9464 = vunpack.c.l.s4 1983009808
    %v9465 = vunpack.c.0.s8 %v9464
    %v9466 = vlaneseq
    %v9467 = vshrl.u32 %v9466, 7
    %v9468 = vsub.s32 %v9465, %v9467
    %v9469 = vrot.slane %v9461, %v9468
    %v9471 = vunpack.c.l.s4 1983009808
    %v9472 = vunpack.c.0.s8 %v9471
    %v9473 = vlaneseq
    %v9474 = vshrl.u32 %v9473, 7
    %v9475 = vsub.s32 %v9472, %v9474
    %v9476 = vrot.slane %v9462, %v9475
    %v9477 = vcombine.low %v9214, %v9278
    %v9478 = vcombine.high %v9214, %v9278
    %v9480 = vunpack.c.l.s4 1983009808
    %v9481 = vunpack.c.0.s8 %v9480
    %v9482 = vlaneseq
    %v9483 = vshrl.u32 %v9482, 7
    %v9484 = vsub.s32 %v9481, %v9483
    %v9485 = vrot.slane %v9477, %v9484
    %v9487 = vunpack.c.l.s4 1983009808
    %v9488 = vunpack.c.0.s8 %v9487
    %v9489 = vlaneseq
    %v9490 = vshrl.u32 %v9489, 7
    %v9491 = vsub.s32 %v9488, %v9490
    %v9492 = vrot.slane %v9478, %v9491
    %v9493 = vcombine.low %v9437, %v9453
    %v9494 = vcombine.high %v9437, %v9453
    %v9496 = vunpack.c.l.s4 1934713408
    %v9497 = vunpack.c.0.s8 %v9496
    %v9498 = vlaneseq
    %v9499 = vshrl.u32 %v9498, 7
    %v9500 = vsub.s32 %v9497, %v9499
    %v9501 = vrot.slane %v9493, %v9500
    %v9503 = vunpack.c.l.s4 1934713408
    %v9504 = vunpack.c.0.s8 %v9503
    %v9505 = vlaneseq
    %v9506 = vshrl.u32 %v9505, 7
    %v9507 = vsub.s32 %v9504, %v9506
    %v9508 = vrot.slane %v9494, %v9507
    %v9509 = vcombine.low %v9444, %v9460
    %v9510 = vcombine.high %v9444, %v9460
    %v9512 = vunpack.c.l.s4 1934713408
    %v9513 = vunpack.c.0.s8 %v9512
    %v9514 = vlaneseq
    %v9515 = vshrl.u32 %v9514, 7
    %v9516 = vsub.s32 %v9513, %v9515
    %v9517 = vrot.slane %v9509, %v9516
    %v9519 = vunpack.c.l.s4 1934713408
    %v9520 = vunpack.c.0.s8 %v9519
    %v9521 = vlaneseq
    %v9522 = vshrl.u32 %v9521, 7
    %v9523 = vsub.s32 %v9520, %v9522
    %v9524 = vrot.slane %v9510, %v9523
    %v9525 = vcombine.low %v9469, %v9485
    %v9526 = vcombine.high %v9469, %v9485
    %v9528 = vunpack.c.l.s4 1934713408
    %v9529 = vunpack.c.0.s8 %v9528
    %v9530 = vlaneseq
    %v9531 = vshrl.u32 %v9530, 7
    %v9532 = vsub.s32 %v9529, %v9531
    %v9533 = vrot.slane %v9525, %v9532
    %v9535 = vunpack.c.l.s4 1934713408
    %v9536 = vunpack.c.0.s8 %v9535
    %v9537 = vlaneseq
    %v9538 = vshrl.u32 %v9537, 7
    %v9539 = vsub.s32 %v9536, %v9538
    %v9540 = vrot.slane %v9526, %v9539
    %v9541 = vcombine.low %v9476, %v9492
    %v9542 = vcombine.high %v9476, %v9492
    %v9544 = vunpack.c.l.s4 1934713408
    %v9545 = vunpack.c.0.s8 %v9544
    %v9546 = vlaneseq
    %v9547 = vshrl.u32 %v9546, 7
    %v9548 = vsub.s32 %v9545, %v9547
    %v9549 = vrot.slane %v9541, %v9548
    %v9551 = vunpack.c.l.s4 1934713408
    %v9552 = vunpack.c.0.s8 %v9551
    %v9553 = vlaneseq
    %v9554 = vshrl.u32 %v9553, 7
    %v9555 = vsub.s32 %v9552, %v9554
    %v9556 = vrot.slane %v9542, %v9555
    %v9557 = vcombine.low %v9501, %v9533
    %v9558 = vcombine.high %v9501, %v9533
    %v9559 = vcombine.low %v9508, %v9540
    %v9560 = vcombine.high %v9508, %v9540
    %v9561 = vcombine.low %v9517, %v9549
    %v9562 = vcombine.high %v9517, %v9549
    %v9563 = vcombine.low %v9524, %v9556
    %v9564 = vcombine.high %v9524, %v9556
    %v9565 = vcombine.low %v9055, %v9119
    %v9566 = vcombine.high %v9055, %v9119
    %v9568 = vunpack.c.l.s4 1983009808
    %v9569 = vunpack.c.0.s8 %v9568
    %v9570 = vlaneseq
    %v9571 = vshrl.u32 %v9570, 7
    %v9572 = vsub.s32 %v9569, %v9571
    %v9573 = vrot.slane %v9565, %v9572
    %v9575 = vunpack.c.l.s4 1983009808
    %v9576 = vunpack.c.0.s8 %v9575
    %v9577 = vlaneseq
    %v9578 = vshrl.u32 %v9577, 7
    %v9579 = vsub.s32 %v9576, %v9578
    %v9580 = vrot.slane %v9566, %v9579
    %v9581 = vcombine.low %v9087, %v9151
    %v9582 = vcombine.high %v9087, %v9151
    %v9584 = vunpack.c.l.s4 1983009808
    %v9585 = vunpack.c.0.s8 %v9584
    %v9586 = vlaneseq
    %v9587 = vshrl.u32 %v9586, 7
    %v9588 = vsub.s32 %v9585, %v9587
    %v9589 = vrot.slane %v9581, %v9588
    %v9591 = vunpack.c.l.s4 1983009808
    %v9592 = vunpack.c.0.s8 %v9591
    %v9593 = vlaneseq
    %v9594 = vshrl.u32 %v9593, 7
    %v9595 = vsub.s32 %v9592, %v9594
    %v9596 = vrot.slane %v9582, %v9595
    %v9597 = vcombine.low %v9183, %v9247
    %v9598 = vcombine.high %v9183, %v9247
    %v9600 = vunpack.c.l.s4 1983009808
    %v9601 = vunpack.c.0.s8 %v9600
    %v9602 = vlaneseq
    %v9603 = vshrl.u32 %v9602, 7
    %v9604 = vsub.s32 %v9601, %v9603
    %v9605 = vrot.slane %v9597, %v9604
    %v9607 = vunpack.c.l.s4 1983009808
    %v9608 = vunpack.c.0.s8 %v9607
    %v9609 = vlaneseq
    %v9610 = vshrl.u32 %v9609, 7
    %v9611 = vsub.s32 %v9608, %v9610
    %v9612 = vrot.slane %v9598, %v9611
    %v9613 = vcombine.low %v9215, %v9279
    %v9614 = vcombine.high %v9215, %v9279
    %v9616 = vunpack.c.l.s4 1983009808
    %v9617 = vunpack.c.0.s8 %v9616
    %v9618 = vlaneseq
    %v9619 = vshrl.u32 %v9618, 7
    %v9620 = vsub.s32 %v9617, %v9619
    %v9621 = vrot.slane %v9613, %v9620
    %v9623 = vunpack.c.l.s4 1983009808
    %v9624 = vunpack.c.0.s8 %v9623
    %v9625 = vlaneseq
    %v9626 = vshrl.u32 %v9625, 7
    %v9627 = vsub.s32 %v9624, %v9626
    %v9628 = vrot.slane %v9614, %v9627
    %v9629 = vcombine.low %v9573, %v9589
    %v9630 = vcombine.high %v9573, %v9589
    %v9632 = vunpack.c.l.s4 1934713408
    %v9633 = vunpack.c.0.s8 %v9632
    %v9634 = vlaneseq
    %v9635 = vshrl.u32 %v9634, 7
    %v9636 = vsub.s32 %v9633, %v9635
    %v9637 = vrot.slane %v9629, %v9636
    %v9639 = vunpack.c.l.s4 1934713408
    %v9640 = vunpack.c.0.s8 %v9639
    %v9641 = vlaneseq
    %v9642 = vshrl.u32 %v9641, 7
    %v9643 = vsub.s32 %v9640, %v9642
    %v9644 = vrot.slane %v9630, %v9643
    %v9645 = vcombine.low %v9580, %v9596
    %v9646 = vcombine.high %v9580, %v9596
    %v9648 = vunpack.c.l.s4 1934713408
    %v9649 = vunpack.c.0.s8 %v9648
    %v9650 = vlaneseq
    %v9651 = vshrl.u32 %v9650, 7
    %v9652 = vsub.s32 %v9649, %v9651
    %v9653 = vrot.slane %v9645, %v9652
    %v9655 = vunpack.c.l.s4 1934713408
    %v9656 = vunpack.c.0.s8 %v9655
    %v9657 = vlaneseq
    %v9658 = vshrl.u32 %v9657, 7
    %v9659 = vsub.s32 %v9656, %v9658
    %v9660 = vrot.slane %v9646, %v9659
    %v9661 = vcombine.low %v9605, %v9621
    %v9662 = vcombine.high %v9605, %v9621
    %v9664 = vunpack.c.l.s4 1934713408
    %v9665 = vunpack.c.0.s8 %v9664
    %v9666 = vlaneseq
    %v9667 = vshrl.u32 %v9666, 7
    %v9668 = vsub.s32 %v9665, %v9667
    %v9669 = vrot.slane %v9661, %v9668
    %v9671 = vunpack.c.l.s4 1934713408
    %v9672 = vunpack.c.0.s8 %v9671
    %v9673 = vlaneseq
    %v9674 = vshrl.u32 %v9673, 7
    %v9675 = vsub.s32 %v9672, %v9674
    %v9676 = vrot.slane %v9662, %v9675
    %v9677 = vcombine.low %v9612, %v9628
    %v9678 = vcombine.high %v9612, %v9628
    %v9680 = vunpack.c.l.s4 1934713408
    %v9681 = vunpack.c.0.s8 %v9680
    %v9682 = vlaneseq
    %v9683 = vshrl.u32 %v9682, 7
    %v9684 = vsub.s32 %v9681, %v9683
    %v9685 = vrot.slane %v9677, %v9684
    %v9687 = vunpack.c.l.s4 1934713408
    %v9688 = vunpack.c.0.s8 %v9687
    %v9689 = vlaneseq
    %v9690 = vshrl.u32 %v9689, 7
    %v9691 = vsub.s32 %v9688, %v9690
    %v9692 = vrot.slane %v9678, %v9691
    %v9693 = vcombine.low %v9637, %v9669
    %v9694 = vcombine.high %v9637, %v9669
    %v9695 = vcombine.low %v9644, %v9676
    %v9696 = vcombine.high %v9644, %v9676
    %v9697 = vcombine.low %v9653, %v9685
    %v9698 = vcombine.high %v9653, %v9685
    %v9699 = vcombine.low %v9660, %v9692
    %v9700 = vcombine.high %v9660, %v9692
    %v9701 = vcombine.low %v9056, %v9120
    %v9702 = vcombine.high %v9056, %v9120
    %v9704 = vunpack.c.l.s4 1983009808
    %v9705 = vunpack.c.0.s8 %v9704
    %v9706 = vlaneseq
    %v9707 = vshrl.u32 %v9706, 7
    %v9708 = vsub.s32 %v9705, %v9707
    %v9709 = vrot.slane %v9701, %v9708
    %v9711 = vunpack.c.l.s4 1983009808
    %v9712 = vunpack.c.0.s8 %v9711
    %v9713 = vlaneseq
    %v9714 = vshrl.u32 %v9713, 7
    %v9715 = vsub.s32 %v9712, %v9714
    %v9716 = vrot.slane %v9702, %v9715
    %v9717 = vcombine.low %v9088, %v9152
    %v9718 = vcombine.high %v9088, %v9152
    %v9720 = vunpack.c.l.s4 1983009808
    %v9721 = vunpack.c.0.s8 %v9720
    %v9722 = vlaneseq
    %v9723 = vshrl.u32 %v9722, 7
    %v9724 = vsub.s32 %v9721, %v9723
    %v9725 = vrot.slane %v9717, %v9724
    %v9727 = vunpack.c.l.s4 1983009808
    %v9728 = vunpack.c.0.s8 %v9727
    %v9729 = vlaneseq
    %v9730 = vshrl.u32 %v9729, 7
    %v9731 = vsub.s32 %v9728, %v9730
    %v9732 = vrot.slane %v9718, %v9731
    %v9733 = vcombine.low %v9184, %v9248
    %v9734 = vcombine.high %v9184, %v9248
    %v9736 = vunpack.c.l.s4 1983009808
    %v9737 = vunpack.c.0.s8 %v9736
    %v9738 = vlaneseq
    %v9739 = vshrl.u32 %v9738, 7
    %v9740 = vsub.s32 %v9737, %v9739
    %v9741 = vrot.slane %v9733, %v9740
    %v9743 = vunpack.c.l.s4 1983009808
    %v9744 = vunpack.c.0.s8 %v9743
    %v9745 = vlaneseq
    %v9746 = vshrl.u32 %v9745, 7
    %v9747 = vsub.s32 %v9744, %v9746
    %v9748 = vrot.slane %v9734, %v9747
    %v9749 = vcombine.low %v9216, %v9280
    %v9750 = vcombine.high %v9216, %v9280
    %v9752 = vunpack.c.l.s4 1983009808
    %v9753 = vunpack.c.0.s8 %v9752
    %v9754 = vlaneseq
    %v9755 = vshrl.u32 %v9754, 7
    %v9756 = vsub.s32 %v9753, %v9755
    %v9757 = vrot.slane %v9749, %v9756
    %v9759 = vunpack.c.l.s4 1983009808
    %v9760 = vunpack.c.0.s8 %v9759
    %v9761 = vlaneseq
    %v9762 = vshrl.u32 %v9761, 7
    %v9763 = vsub.s32 %v9760, %v9762
    %v9764 = vrot.slane %v9750, %v9763
    %v9765 = vcombine.low %v9709, %v9725
    %v9766 = vcombine.high %v9709, %v9725
    %v9768 = vunpack.c.l.s4 1934713408
    %v9769 = vunpack.c.0.s8 %v9768
    %v9770 = vlaneseq
    %v9771 = vshrl.u32 %v9770, 7
    %v9772 = vsub.s32 %v9769, %v9771
    %v9773 = vrot.slane %v9765, %v9772
    %v9775 = vunpack.c.l.s4 1934713408
    %v9776 = vunpack.c.0.s8 %v9775
    %v9777 = vlaneseq
    %v9778 = vshrl.u32 %v9777, 7
    %v9779 = vsub.s32 %v9776, %v9778
    %v9780 = vrot.slane %v9766, %v9779
    %v9781 = vcombine.low %v9716, %v9732
    %v9782 = vcombine.high %v9716, %v9732
    %v9784 = vunpack.c.l.s4 1934713408
    %v9785 = vunpack.c.0.s8 %v9784
    %v9786 = vlaneseq
    %v9787 = vshrl.u32 %v9786, 7
    %v9788 = vsub.s32 %v9785, %v9787
    %v9789 = vrot.slane %v9781, %v9788
    %v9791 = vunpack.c.l.s4 1934713408
    %v9792 = vunpack.c.0.s8 %v9791
    %v9793 = vlaneseq
    %v9794 = vshrl.u32 %v9793, 7
    %v9795 = vsub.s32 %v9792, %v9794
    %v9796 = vrot.slane %v9782, %v9795
    %v9797 = vcombine.low %v9741, %v9757
    %v9798 = vcombine.high %v9741, %v9757
    %v9800 = vunpack.c.l.s4 1934713408
    %v9801 = vunpack.c.0.s8 %v9800
    %v9802 = vlaneseq
    %v9803 = vshrl.u32 %v9802, 7
    %v9804 = vsub.s32 %v9801, %v9803
    %v9805 = vrot.slane %v9797, %v9804
    %v9807 = vunpack.c.l.s4 1934713408
    %v9808 = vunpack.c.0.s8 %v9807
    %v9809 = vlaneseq
    %v9810 = vshrl.u32 %v9809, 7
    %v9811 = vsub.s32 %v9808, %v9810
    %v9812 = vrot.slane %v9798, %v9811
    %v9813 = vcombine.low %v9748, %v9764
    %v9814 = vcombine.high %v9748, %v9764
    %v9816 = vunpack.c.l.s4 1934713408
    %v9817 = vunpack.c.0.s8 %v9816
    %v9818 = vlaneseq
    %v9819 = vshrl.u32 %v9818, 7
    %v9820 = vsub.s32 %v9817, %v9819
    %v9821 = vrot.slane %v9813, %v9820
    %v9823 = vunpack.c.l.s4 1934713408
    %v9824 = vunpack.c.0.s8 %v9823
    %v9825 = vlaneseq
    %v9826 = vshrl.u32 %v9825, 7
    %v9827 = vsub.s32 %v9824, %v9826
    %v9828 = vrot.slane %v9814, %v9827
    %v9829 = vcombine.low %v9773, %v9805
    %v9830 = vcombine.high %v9773, %v9805
    %v9831 = vcombine.low %v9780, %v9812
    %v9832 = vcombine.high %v9780, %v9812
    %v9833 = vcombine.low %v9789, %v9821
    %v9834 = vcombine.high %v9789, %v9821
    %v9835 = vcombine.low %v9796, %v9828
    %v9836 = vcombine.high %v9796, %v9828
    %9838 = vrot.lane.b32.xlu0 %v9422, 16
    %v9839 = vpop.permute.xlu0 %9838
    %9842 = vrot.lane.b32.xlu0 %v9423, 32
    %v9843 = vpop.permute.xlu0 %9842
    %9846 = vrot.lane.b32.xlu0 %v9424, 48
    %v9847 = vpop.permute.xlu0 %9846
    %9850 = vrot.lane.b32.xlu0 %v9425, 64
    %v9851 = vpop.permute.xlu0 %9850
    %9854 = vrot.lane.b32.xlu0 %v9426, 80
    %v9855 = vpop.permute.xlu0 %9854
    %9858 = vrot.lane.b32.xlu0 %v9427, 96
    %v9859 = vpop.permute.xlu0 %9858
    %9862 = vrot.lane.b32.xlu0 %v9428, 112
    %v9863 = vpop.permute.xlu0 %9862
    %9866 = vrot.lane.b32.xlu0 %v9558, 16
    %v9867 = vpop.permute.xlu0 %9866
    %9870 = vrot.lane.b32.xlu0 %v9559, 32
    %v9871 = vpop.permute.xlu0 %9870
    %9874 = vrot.lane.b32.xlu0 %v9560, 48
    %v9875 = vpop.permute.xlu0 %9874
    %9878 = vrot.lane.b32.xlu0 %v9561, 64
    %v9879 = vpop.permute.xlu0 %9878
    %9882 = vrot.lane.b32.xlu0 %v9562, 80
    %v9883 = vpop.permute.xlu0 %9882
    %9886 = vrot.lane.b32.xlu0 %v9563, 96
    %v9887 = vpop.permute.xlu0 %9886
    %9890 = vrot.lane.b32.xlu0 %v9564, 112
    %v9891 = vpop.permute.xlu0 %9890
    %9894 = vrot.lane.b32.xlu0 %v9694, 16
    %v9895 = vpop.permute.xlu0 %9894
    %9898 = vrot.lane.b32.xlu0 %v9695, 32
    %v9899 = vpop.permute.xlu0 %9898
    %9902 = vrot.lane.b32.xlu0 %v9696, 48
    %v9903 = vpop.permute.xlu0 %9902
    %9906 = vrot.lane.b32.xlu0 %v9697, 64
    %v9907 = vpop.permute.xlu0 %9906
    %9910 = vrot.lane.b32.xlu0 %v9698, 80
    %v9911 = vpop.permute.xlu0 %9910
    %9914 = vrot.lane.b32.xlu0 %v9699, 96
    %v9915 = vpop.permute.xlu0 %9914
    %9918 = vrot.lane.b32.xlu0 %v9700, 112
    %v9919 = vpop.permute.xlu0 %9918
    %9922 = vrot.lane.b32.xlu0 %v9830, 16
    %v9923 = vpop.permute.xlu0 %9922
    %9926 = vrot.lane.b32.xlu0 %v9831, 32
    %v9927 = vpop.permute.xlu0 %9926
    %9930 = vrot.lane.b32.xlu0 %v9832, 48
    %v9931 = vpop.permute.xlu0 %9930
    %9934 = vrot.lane.b32.xlu0 %v9833, 64
    %v9935 = vpop.permute.xlu0 %9934
    %9938 = vrot.lane.b32.xlu0 %v9834, 80
    %v9939 = vpop.permute.xlu0 %9938
    %9942 = vrot.lane.b32.xlu0 %v9835, 96
    %v9943 = vpop.permute.xlu0 %9942
    %9946 = vrot.lane.b32.xlu0 %v9836, 112
    %v9947 = vpop.permute.xlu0 %9946
    %v9949 = vsel %vm2139, %v9421, %v9839
    %v9950 = vsel %vm947, %v9949, %v9843
    %vm9951 = vcmask 392192
    %v9952 = vsel %vm9951, %v9950, %v9847
    %vm9953 = vcmask 523264
    %v9954 = vsel %vm9953, %v9952, %v9851
    %vm9955 = vcmask 654336
    %v9956 = vsel %vm9955, %v9954, %v9855
    %vm9957 = vcmask 785408
    %v9958 = vsel %vm9957, %v9956, %v9859
    %vm9959 = vcmask 916480
    %v9960 = vsel %vm9959, %v9958, %v9863
    %v9961 = vsel %vm2139, %v9557, %v9867
    %v9962 = vsel %vm947, %v9961, %v9871
    %v9963 = vsel %vm9951, %v9962, %v9875
    %v9964 = vsel %vm9953, %v9963, %v9879
    %v9965 = vsel %vm9955, %v9964, %v9883
    %v9966 = vsel %vm9957, %v9965, %v9887
    %v9967 = vsel %vm9959, %v9966, %v9891
    %v9968 = vsel %vm2139, %v9693, %v9895
    %v9969 = vsel %vm947, %v9968, %v9899
    %v9970 = vsel %vm9951, %v9969, %v9903
    %v9971 = vsel %vm9953, %v9970, %v9907
    %v9972 = vsel %vm9955, %v9971, %v9911
    %v9973 = vsel %vm9957, %v9972, %v9915
    %v9974 = vsel %vm9959, %v9973, %v9919
    %v9975 = vsel %vm2139, %v9829, %v9923
    %v9976 = vsel %vm947, %v9975, %v9927
    %v9977 = vsel %vm9951, %v9976, %v9931
    %v9978 = vsel %vm9953, %v9977, %v9935
    %v9979 = vsel %vm9955, %v9978, %v9939
    %v9980 = vsel %vm9957, %v9979, %v9943
    %v9981 = vsel %vm9959, %v9980, %v9947
    %9982 = vst [vmem:[#allocation7] sm:$0xff] %v9960
    %9983 = vst [vmem:[#allocation7 + $0x8] sm:$0xff] %v9967
    %9984 = vst [vmem:[#allocation7 + $0x10] sm:$0xff] %v9974
    %9985 = vst [vmem:[#allocation7 + $0x18] sm:$0xff] %v9981
    // Predicated region
    $region18: #{tpu_custom_call.1} parent=1 // pred_check
      _
    $region19: #{tpu_custom_call.1} parent=1 // pred_check_branch
      %9987 = sbr.rel (0) target = $region21
    $region20: #{tpu_custom_call.1} parent=1 // pred_region
      %s9989 = ssub.s32 512, 512
      %9990 = vsyncadd [#allocation4], %s9989
      %s9992 = sshll.u32 [#allocation7], 4
      %s9993 = int_to_ptr.vmem [resolvable:$true] %s9992
      %9995 = dma.vmem_to_hbm [thread:$0]  %s9993, 512, %s2, [#allocation4]
    $region21: #{tpu_custom_call.1} parent=1 // pred_fallthru
      _
    // Predicated region
    $region22: #{tpu_custom_call.1} parent=1 // pred_check
      _
    $region23: #{tpu_custom_call.1} parent=1 // pred_check_branch
      %9997 = sbr.rel (0) target = $region25
    $region24: #{tpu_custom_call.1} parent=1 // pred_region
      %9998 = dma.done [#allocation4], 512
    $region25: #{tpu_custom_call.1} parent=1 // pred_fallthru
      _
    %9999 = vsyncpa [#allocation3], 1
    %10000 = vsyncpa [#allocation6], 1
    %10001 = vsyncpa [#allocation4], 1

</llo_original>
